<compile_context>
chip_gen: v6e
topology: v6e:2x2x1
jax: 0.10.0
libtpu: 0.0.40
codegen_flags: <defaults>
</compile_context>

<pallas_src>
import functools

import numpy as np
import jax
import jax.numpy as jnp
from jax.experimental import pallas as pl
from jax.experimental.pallas import tpu as pltpu

LANE = 128


def _round_up(x, m):
    return ((x + m - 1) // m) * m


def _pick_vmem_limit():
    # ~70% of physical VMEM: ~45 MiB on v7x (64 MiB phys), ~90 MiB on
    # v5e/v6e (128 MiB phys); capped so double-buffered blocks keep headroom.
    try:
        cap = int(pltpu.get_tpu_info().vmem_capacity_bytes)
    except Exception:
        cap = 64 * 1024 * 1024
    return max(16 * 1024 * 1024, min(int(cap * 0.7), 100 * 1024 * 1024))


_VMEM_LIMIT = _pick_vmem_limit()


# ---------------------------------------------------------------------------
# Kernel 1: multi-branch fused 1x1 conv:  out = relu?( sum_i x_i @ w_i + b )
# (BN scale already folded into w; bias shared per logical conv.)
# Covers plain 1x1 conv, the concat-split first conv of a bottleneck, and
# conv3 with the downsample projection fused in as extra branches.
# ---------------------------------------------------------------------------
def _fused_matmul_kernel(*refs, n_branches, relu):
    o_ref = refs[-1]
    b_ref = refs[-2]
    acc = None
    for i in range(n_branches):
        x_ref, w_ref = refs[2 * i], refs[2 * i + 1]
        t = jnp.dot(x_ref[...].astype(jnp.bfloat16), w_ref[...],
                    preferred_element_type=jnp.float32)
        acc = t if acc is None else acc + t
    acc = acc + b_ref[...]
    if relu:
        acc = jnp.maximum(acc, 0.0)
    o_ref[...] = acc.astype(o_ref.dtype)


def fused_matmul_branches(branches, bias, relu=False, out_dtype=jnp.bfloat16,
                          tm=512):
    """branches: list of (x (M,Ki), w (Ki,Ncols) bf16).  bias: (Ncols,) f32.
    Returns relu?(sum_i x_i @ w_i + bias) with shape (M, Ncols)."""
    M = branches[0][0].shape[0]
    ncols = branches[0][1].shape[1]
    if tm >= M:
        tm = M
    else:
        tm = max(8, (tm // 8) * 8)          # sublane-aligned row tiles
    grid = (pl.cdiv(M, tm),)

    in_specs, args = [], []
    for x, w in branches:
        K = x.shape[1]
        in_specs += [pl.BlockSpec((tm, K), lambda i: (i, 0)),
                     pl.BlockSpec((K, ncols), lambda i: (0, 0))]
        args += [x, w]
    in_specs.append(pl.BlockSpec((1, ncols), lambda i: (0, 0)))
    args.append(jnp.reshape(bias, (1, ncols)).astype(jnp.float32))

    kernel = functools.partial(_fused_matmul_kernel,
                               n_branches=len(branches), relu=relu)
    return pl.pallas_call(
        kernel,
        out_shape=jax.ShapeDtypeStruct((M, ncols), out_dtype),
        grid=grid,
        in_specs=in_specs,
        out_specs=pl.BlockSpec((tm, ncols), lambda i: (i, 0)),
        compiler_params=pltpu.CompilerParams(
            dimension_semantics=("parallel",),
            vmem_limit_bytes=_VMEM_LIMIT),
    )(*args)


# ---------------------------------------------------------------------------
# Kernel 2: 3x3 conv (stride 1, pad 1) + bias + ReLU, row-tiled, no HBM pad.
# grid = (N, H // TH).  At r == 0 the image is copied into a zeroed VMEM
# halo scratch; each row tile does 9 shifted MXU dots with an f32 accumulator
# of only (TH*W, Cout).
# ---------------------------------------------------------------------------
def _conv3x3_kernel(x_ref, w_ref, b_ref, o_ref, xp_scr, *, H, W, TH):
    C = x_ref.shape[3]
    cout = w_ref.shape[2]
    r = pl.program_id(1)

    @pl.when(r == 0)
    def _():
        xp_scr[...] = jnp.zeros_like(xp_scr)            # zero halo border
        xp_scr[1:H + 1, 1:W + 1, :] = x_ref[0].astype(xp_scr.dtype)

    r0 = pl.multiple_of(r * TH, TH)
    acc = jnp.zeros((TH * W, cout), jnp.float32)
    for dh in range(3):
        for dw in range(3):
            patch = xp_scr[pl.ds(r0 + dh, TH), dw:dw + W, :]      # (TH,W,C)
            acc = acc + jnp.dot(patch.reshape(TH * W, C),
                                w_ref[dh * 3 + dw],
                                preferred_element_type=jnp.float32)
    acc = jnp.maximum(acc + b_ref[...], 0.0)
    o_ref[0] = acc.reshape(TH, W, cout).astype(o_ref.dtype)


def conv3x3_bias_relu(x_nhwc, w9, bias, th=8):
    """x_nhwc: (N,H,W,C) bf16; w9: (9,C,Cout) bf16 (tap-major dh*3+dw, BN
    scale folded); bias: (Cout,) f32."""
    N, H, W, C = x_nhwc.shape
    cout = w9.shape[2]
    th = min(th, H)
    while H % th:
        th -= 1
    kernel = functools.partial(_conv3x3_kernel, H=H, W=W, TH=th)
    return pl.pallas_call(
        kernel,
        out_shape=jax.ShapeDtypeStruct((N, H, W, cout), jnp.bfloat16),
        grid=(N, H // th),
        in_specs=[
            pl.BlockSpec((1, H, W, C), lambda n, r: (n, 0, 0, 0)),
            pl.BlockSpec((9, C, cout), lambda n, r: (0, 0, 0)),
            pl.BlockSpec((1, cout), lambda n, r: (0, 0)),
        ],
        out_specs=pl.BlockSpec((1, th, W, cout), lambda n, r: (n, r, 0, 0)),
        scratch_shapes=[pltpu.VMEM((H + 2, W + 2, C), jnp.bfloat16)],
        compiler_params=pltpu.CompilerParams(
            dimension_semantics=("parallel", "arbitrary"),
            vmem_limit_bytes=_VMEM_LIMIT),
    )(x_nhwc, w9, jnp.reshape(bias, (1, cout)).astype(jnp.float32))


# ---------------------------------------------------------------------------
# Kernel 3: separable bilinear x2 upsample (align_corners=True), per image.
#   H direction: one (2H,H) @ (H, W*C) MXU dot (f32).
#   W direction: 2W static 2-tap VPU column FMAs written into the lane-flat
#   (2H, 2W*C) output block (channels stay minor).
# ---------------------------------------------------------------------------
def _bilinear_lo_frac(out_size, in_size):
    if in_size == 1:
        return [0] * out_size, [0.0] * out_size
    src = np.arange(out_size, dtype=np.float64) * (in_size - 1) / (out_size - 1)
    lo = np.clip(np.floor(src).astype(np.int64), 0, in_size - 2)
    frac = (src - lo)
    return [int(v) for v in lo], [float(v) for v in frac]


def _bilinear_matrix(out_size, in_size):
    lo, frac = _bilinear_lo_frac(out_size, in_size)
    m = np.zeros((out_size, in_size), np.float32)
    for i, (l, f) in enumerate(zip(lo, frac)):
        m[i, l] += 1.0 - f
        if f > 0.0:
            m[i, l + 1] += f
    return m


def _upsample_kernel(x_ref, ah_ref, o_ref, *, C, W_out, lo, frac):
    # x_ref: (1, H, W*C) f32 ; ah_ref: (2H, H) f32 ; o_ref: (1, 2H, 2W*C)
    t = jnp.dot(ah_ref[...], x_ref[0],
                preferred_element_type=jnp.float32)        # (2H, W*C)
    for o in range(W_out):
        l = lo[o]
        f = frac[o]
        col = t[:, l * C:(l + 1) * C]
        if f > 0.0:
            col = col * (1.0 - f) + t[:, (l + 1) * C:(l + 2) * C] * f
        o_ref[0, :, o * C:(o + 1) * C] = col.astype(o_ref.dtype)


def upsample_bilinear_x2(x_nhwc, out_dtype=jnp.bfloat16):
    """(N,H,W,C) f32 -> (N, 2H, 2W*C) out_dtype (rows = (h2, flat w2*C))."""
    N, H, W, C = x_nhwc.shape
    ah = jnp.asarray(_bilinear_matrix(2 * H, H), jnp.float32)
    lo, frac = _bilinear_lo_frac(2 * W, W)
    x_flat = x_nhwc.reshape(N, H, W * C).astype(jnp.float32)
    kernel = functools.partial(_upsample_kernel, C=C, W_out=2 * W,
                               lo=tuple(lo), frac=tuple(frac))
    return pl.pallas_call(
        kernel,
        out_shape=jax.ShapeDtypeStruct((N, 2 * H, 2 * W * C), out_dtype),
        grid=(N,),
        in_specs=[
            pl.BlockSpec((1, H, W * C), lambda n: (n, 0, 0)),
            pl.BlockSpec((2 * H, H), lambda n: (0, 0)),
        ],
        out_specs=pl.BlockSpec((1, 2 * H, 2 * W * C), lambda n: (n, 0, 0)),
        compiler_params=pltpu.CompilerParams(
            dimension_semantics=("parallel",),
            vmem_limit_bytes=_VMEM_LIMIT),
    )(x_flat, ah)


# ---------------------------------------------------------------------------
# Parameter init: eval-mode BN folded into weights, channels padded to 128.
# ---------------------------------------------------------------------------
def _fold_bn(gamma, beta, mean, var, eps=1e-5):
    s = gamma / jnp.sqrt(var + eps)
    return s, beta - mean * s


def _init_bn(key, c):
    k1, k2, k3, k4 = jax.random.split(key, 4)
    gamma = jax.random.uniform(k1, (c,), minval=0.5, maxval=1.5)
    beta = jax.random.normal(k2, (c,)) * 0.1
    mean = jax.random.normal(k3, (c,)) * 0.1
    var = jax.random.uniform(k4, (c,), minval=0.5, maxval=1.5)
    return _fold_bn(gamma, beta, mean, var)


def _pad2(w, rows, cols):
    return jnp.pad(w, ((0, rows - w.shape[0]), (0, cols - w.shape[1])))


def init_bottleneck(key, cin_true, cin_pad, cmid, expansion=2):
    cexp = cmid * expansion
    pm = _round_up(cmid, LANE)
    pe = _round_up(cexp, LANE)
    keys = jax.random.split(key, 8)
    w1 = jax.random.normal(keys[0], (cin_true, cmid)) * 0.1      # 1x1
    s1, b1 = _init_bn(keys[1], cmid)
    w2 = jax.random.normal(keys[2], (9, cmid, cmid)) * 0.1       # 3x3 taps
    s2, b2 = _init_bn(keys[3], cmid)
    w3 = jax.random.normal(keys[4], (cmid, cexp)) * 0.1          # 1x1
    s3, b3 = _init_bn(keys[5], cexp)
    wd = jax.random.normal(keys[6], (cin_true, cexp)) * 0.1      # downsample
    sd, bd = _init_bn(keys[7], cexp)

    p = {}
    p['w1'] = _pad2(w1 * s1[None, :], cin_pad, pm).astype(jnp.bfloat16)
    p['b1'] = jnp.pad(b1, (0, pm - cmid)).reshape(1, pm).astype(jnp.float32)
    p['w2'] = jnp.pad(w2 * s2[None, None, :],
                      ((0, 0), (0, pm - cmid), (0, pm - cmid))
                      ).astype(jnp.bfloat16)
    p['b2'] = jnp.pad(b2, (0, pm - cmid)).reshape(1, pm).astype(jnp.float32)
    p['w3'] = _pad2(w3 * s3[None, :], pm, pe).astype(jnp.bfloat16)
    p['wd'] = _pad2(wd * sd[None, :], cin_pad, pe).astype(jnp.bfloat16)
    p['b3d'] = (jnp.pad(b3, (0, pe - cexp)) +
                jnp.pad(bd, (0, pe - cexp))).reshape(1, pe).astype(jnp.float32)
    return p


def init_up_params(key, in_channel, out_channel):
    k1, k2 = jax.random.split(key)
    cexp1 = out_channel * 2
    return {
        # Bottleneck(in_channel, out_channel, expansion=2) -> out_channel*2 ch
        'block1': init_bottleneck(k1, in_channel, in_channel, out_channel, 2),
        # Bottleneck(out_channel*2, out_channel//2, expansion=2) -> out_channel
        'block2': init_bottleneck(k2, cexp1, _round_up(cexp1, LANE),
                                  out_channel // 2, 2),
    }


# ---------------------------------------------------------------------------
# Forward passes.
# ---------------------------------------------------------------------------
def bottleneck_forward(branch_inputs, p, spatial, out_dtype=jnp.bfloat16,
                       tm=512, th=8):
    """branch_inputs: list of (M, Ki) tensors whose channel-concat is the
    bottleneck input (fuses the UNet skip-concat into conv1 / downsample)."""
    N, H, W = spatial
    M = N * H * W
    pm = p['w1'].shape[1]                       # padded mid width
    offs = np.cumsum([0] + [x.shape[1] for x in branch_inputs]).tolist()

    # conv1 (1x1, K split over branches) + folded BN + ReLU
    conv1 = [(x, p['w1'][offs[i]:offs[i + 1]])
             for i, x in enumerate(branch_inputs)]
    h = fused_matmul_branches(conv1, p['b1'], relu=True, tm=tm)       # (M,pm)

    # conv2 (3x3, pad 1) + folded BN + ReLU, row-tiled
    h2 = conv3x3_bias_relu(h.reshape(N, H, W, pm), p['w2'], p['b2'], th=th)
    h2f = h2.reshape(M, pm)

    # conv3 (1x1) + downsample projection fused as extra branches,
    # residual add is free on the accumulator, then ReLU.
    conv3 = [(h2f, p['w3'])] + [(x, p['wd'][offs[i]:offs[i + 1]])
                                for i, x in enumerate(branch_inputs)]
    return fused_matmul_branches(conv3, p['b3d'], relu=True,
                                 out_dtype=out_dtype, tm=tm)          # (M,pe)


def up_forward(x_prev_nhwc, x_nhwc, params, out_channel):
    """Up.forward: upsample x by 2, concat with x_prev on channels, two
    Bottleneck blocks.  Module boundary is NHWC (channels-last); NCHW callers
    transpose once outside."""
    N, H2, W2, Cp = x_prev_nhwc.shape
    _, H, W, Cx = x_nhwc.shape
    M = N * H2 * W2

    x_up = upsample_bilinear_x2(x_nhwc)             # (N, 2H, 2W*Cx) bf16
    xu = x_up.reshape(M, Cx)
    xp = x_prev_nhwc.reshape(M, Cp)                 # f32; cast in-kernel

    # block1 consumes [x_prev, x_up] as K-split branches (fused concat).
    h1 = bottleneck_forward([xp, xu], params['block1'], (N, H2, W2))
    # block2
    h2 = bottleneck_forward([h1], params['block2'], (N, H2, W2),
                            out_dtype=jnp.float32)
    # slice off the lane padding
    return h2.reshape(N, H2, W2, -1)[..., :out_channel]


if __name__ == "__main__":
    key = jax.random.PRNGKey(0)
    k_prev, k_x, k_params = jax.random.split(key, 3)

    in_channel, out_channel = 8, 8
    N, H, W = 2, 8, 8            # x is the low-resolution decoder feature
    c_x = 4                      # channels of x (upsampled to 2H x 2W)
    c_prev = in_channel - c_x    # channels of the skip connection x_prev

    # NHWC (channels-last) module boundary.
    x_prev = jax.random.normal(k_prev, (N, 2 * H, 2 * W, c_prev),
                               dtype=jnp.float32)
    x = jax.random.normal(k_x, (N, H, W, c_x), dtype=jnp.float32)

    params = init_up_params(k_params, in_channel, out_channel)

    fwd = jax.jit(functools.partial(up_forward, out_channel=out_channel))
    out = fwd(x_prev, x, params)
    out = jax.block_until_ready(out)

    assert out.shape == (N, 2 * H, 2 * W, out_channel), out.shape
    assert bool(jnp.all(jnp.isfinite(out)))
    print("KERNEL_OK")
</pallas_src>

<mosaic_0001>
module attributes {stable_mosaic.version = 11 : i64} {
  func.func @_upsample_kernel(%arg0: i32, %arg1: memref<1x8x32xf32, #tpu.memory_space<vmem>>, %arg2: memref<16x8xf32, #tpu.memory_space<vmem>>, %arg3: memref<1x16x64xbf16, #tpu.memory_space<vmem>>) attributes {dimension_semantics = [#tpu.dimension_semantics<parallel>], iteration_bounds = array<i64: 2>, scalar_prefetch = 0 : i64, scratch_operands = 0 : i64, tpu.core_type = #tpu.core_type<tc>, window_params = [{transform_indices = @transform_0, window_bounds = array<i64: 1, 8, 32>}, {pipeline_mode = #tpu.pipeline_mode<synchronous>, transform_indices = @transform_1, window_bounds = array<i64: 16, 8>}, {transform_indices = @transform_2, window_bounds = array<i64: 1, 16, 64>}]} {
    %c0 = arith.constant 0 : index
    %c0_0 = arith.constant 0 : index
    %0 = vector.load %arg2[%c0, %c0_0] : memref<16x8xf32, #tpu.memory_space<vmem>>, vector<16x8xf32>
    %c0_1 = arith.constant 0 : index
    %c0_2 = arith.constant 0 : index
    %c0_3 = arith.constant 0 : index
    %1 = vector.load %arg1[%c0_1, %c0_2, %c0_3] : memref<1x8x32xf32, #tpu.memory_space<vmem>>, vector<1x8x32xf32>
    %2 = vector.shape_cast %1 : vector<1x8x32xf32> to vector<8x32xf32>
    %cst = arith.constant dense<0.000000e+00> : vector<16x32xf32>
    %3 = tpu.matmul %0, %2, %cst {dimension_numbers = #tpu.dot_dimension_numbers<[1], [0], [0], [1], [0, 0, 1, 1], [], []>} : vector<16x8xf32>, vector<8x32xf32>, vector<16x32xf32> -> vector<16x32xf32>
    %4 = vector.extract_strided_slice %3 {offsets = [0, 0], sizes = [16, 4], strides = [1, 1]} : vector<16x32xf32> to vector<16x4xf32>
    %5 = arith.truncf %4 : vector<16x4xf32> to vector<16x4xbf16>
    %c0_4 = arith.constant 0 : index
    %c0_5 = arith.constant 0 : index
    %c0_6 = arith.constant 0 : index
    %6 = vector.load %arg3[%c0_4, %c0_5, %c0_6] : memref<1x16x64xbf16, #tpu.memory_space<vmem>>, vector<1x16x4xbf16>
    %7 = vector.shape_cast %6 : vector<1x16x4xbf16> to vector<16x4xbf16>
    %8 = vector.shape_cast %5 : vector<16x4xbf16> to vector<1x16x4xbf16>
    tpu.vector_store %arg3[%c0_4, %c0_5, %c0_6], %8 {strides = array<i32>} : memref<1x16x64xbf16, #tpu.memory_space<vmem>>, vector<1x16x4xbf16>,
    %9 = vector.extract_strided_slice %3 {offsets = [0, 0], sizes = [16, 4], strides = [1, 1]} : vector<16x32xf32> to vector<16x4xf32>
    %cst_7 = arith.constant 0.533333361 : f32
    %10 = vector.broadcast %cst_7 : f32 to vector<16x4xf32>
    %11 = arith.mulf %9, %10 : vector<16x4xf32>
    %12 = vector.extract_strided_slice %3 {offsets = [0, 4], sizes = [16, 4], strides = [1, 1]} : vector<16x32xf32> to vector<16x4xf32>
    %cst_8 = arith.constant 0.466666669 : f32
    %13 = vector.broadcast %cst_8 : f32 to vector<16x4xf32>
    %14 = arith.mulf %12, %13 : vector<16x4xf32>
    %15 = arith.addf %11, %14 : vector<16x4xf32>
    %16 = arith.truncf %15 : vector<16x4xf32> to vector<16x4xbf16>
    %c0_9 = arith.constant 0 : index
    %c0_10 = arith.constant 0 : index
    %c4 = arith.constant 4 : index
    %17 = vector.load %arg3[%c0_9, %c0_10, %c4] : memref<1x16x64xbf16, #tpu.memory_space<vmem>>, vector<1x16x4xbf16>
    %18 = vector.shape_cast %17 : vector<1x16x4xbf16> to vector<16x4xbf16>
    %19 = vector.shape_cast %16 : vector<16x4xbf16> to vector<1x16x4xbf16>
    tpu.vector_store %arg3[%c0_9, %c0_10, %c4], %19 {strides = array<i32>} : memref<1x16x64xbf16, #tpu.memory_space<vmem>>, vector<1x16x4xbf16>,
    %20 = vector.extract_strided_slice %3 {offsets = [0, 0], sizes = [16, 4], strides = [1, 1]} : vector<16x32xf32> to vector<16x4xf32>
    %cst_11 = arith.constant 0.0666666701 : f32
    %21 = vector.broadcast %cst_11 : f32 to vector<16x4xf32>
    %22 = arith.mulf %20, %21 : vector<16x4xf32>
    %23 = vector.extract_strided_slice %3 {offsets = [0, 4], sizes = [16, 4], strides = [1, 1]} : vector<16x32xf32> to vector<16x4xf32>
    %cst_12 = arith.constant 0.933333337 : f32
    %24 = vector.broadcast %cst_12 : f32 to vector<16x4xf32>
    %25 = arith.mulf %23, %24 : vector<16x4xf32>
    %26 = arith.addf %22, %25 : vector<16x4xf32>
    %27 = arith.truncf %26 : vector<16x4xf32> to vector<16x4xbf16>
    %c0_13 = arith.constant 0 : index
    %c0_14 = arith.constant 0 : index
    %c8 = arith.constant 8 : index
    %28 = vector.load %arg3[%c0_13, %c0_14, %c8] : memref<1x16x64xbf16, #tpu.memory_space<vmem>>, vector<1x16x4xbf16>
    %29 = vector.shape_cast %28 : vector<1x16x4xbf16> to vector<16x4xbf16>
    %30 = vector.shape_cast %27 : vector<16x4xbf16> to vector<1x16x4xbf16>
    tpu.vector_store %arg3[%c0_13, %c0_14, %c8], %30 {strides = array<i32>} : memref<1x16x64xbf16, #tpu.memory_space<vmem>>, vector<1x16x4xbf16>,
    %31 = vector.extract_strided_slice %3 {offsets = [0, 4], sizes = [16, 4], strides = [1, 1]} : vector<16x32xf32> to vector<16x4xf32>
    %cst_15 = arith.constant 6.000000e-01 : f32
    %32 = vector.broadcast %cst_15 : f32 to vector<16x4xf32>
    %33 = arith.mulf %31, %32 : vector<16x4xf32>
    %34 = vector.extract_strided_slice %3 {offsets = [0, 8], sizes = [16, 4], strides = [1, 1]} : vector<16x32xf32> to vector<16x4xf32>
    %cst_16 = arith.constant 4.000000e-01 : f32
    %35 = vector.broadcast %cst_16 : f32 to vector<16x4xf32>
    %36 = arith.mulf %34, %35 : vector<16x4xf32>
    %37 = arith.addf %33, %36 : vector<16x4xf32>
    %38 = arith.truncf %37 : vector<16x4xf32> to vector<16x4xbf16>
    %c0_17 = arith.constant 0 : index
    %c0_18 = arith.constant 0 : index
    %c12 = arith.constant 12 : index
    %39 = vector.load %arg3[%c0_17, %c0_18, %c12] : memref<1x16x64xbf16, #tpu.memory_space<vmem>>, vector<1x16x4xbf16>
    %40 = vector.shape_cast %39 : vector<1x16x4xbf16> to vector<16x4xbf16>
    %41 = vector.shape_cast %38 : vector<16x4xbf16> to vector<1x16x4xbf16>
    tpu.vector_store %arg3[%c0_17, %c0_18, %c12], %41 {strides = array<i32>} : memref<1x16x64xbf16, #tpu.memory_space<vmem>>, vector<1x16x4xbf16>,
    %42 = vector.extract_strided_slice %3 {offsets = [0, 4], sizes = [16, 4], strides = [1, 1]} : vector<16x32xf32> to vector<16x4xf32>
    %cst_19 = arith.constant 0.13333334 : f32
    %43 = vector.broadcast %cst_19 : f32 to vector<16x4xf32>
    %44 = arith.mulf %42, %43 : vector<16x4xf32>
    %45 = vector.extract_strided_slice %3 {offsets = [0, 8], sizes = [16, 4], strides = [1, 1]} : vector<16x32xf32> to vector<16x4xf32>
    %cst_20 = arith.constant 0.866666674 : f32
    %46 = vector.broadcast %cst_20 : f32 to vector<16x4xf32>
    %47 = arith.mulf %45, %46 : vector<16x4xf32>
    %48 = arith.addf %44, %47 : vector<16x4xf32>
    %49 = arith.truncf %48 : vector<16x4xf32> to vector<16x4xbf16>
    %c0_21 = arith.constant 0 : index
    %c0_22 = arith.constant 0 : index
    %c16 = arith.constant 16 : index
    %50 = vector.load %arg3[%c0_21, %c0_22, %c16] : memref<1x16x64xbf16, #tpu.memory_space<vmem>>, vector<1x16x4xbf16>
    %51 = vector.shape_cast %50 : vector<1x16x4xbf16> to vector<16x4xbf16>
    %52 = vector.shape_cast %49 : vector<16x4xbf16> to vector<1x16x4xbf16>
    tpu.vector_store %arg3[%c0_21, %c0_22, %c16], %52 {strides = array<i32>} : memref<1x16x64xbf16, #tpu.memory_space<vmem>>, vector<1x16x4xbf16>,
    %53 = vector.extract_strided_slice %3 {offsets = [0, 8], sizes = [16, 4], strides = [1, 1]} : vector<16x32xf32> to vector<16x4xf32>
    %cst_23 = arith.constant 0.666666686 : f32
    %54 = vector.broadcast %cst_23 : f32 to vector<16x4xf32>
    %55 = arith.mulf %53, %54 : vector<16x4xf32>
    %56 = vector.extract_strided_slice %3 {offsets = [0, 12], sizes = [16, 4], strides = [1, 1]} : vector<16x32xf32> to vector<16x4xf32>
    %cst_24 = arith.constant 0.333333343 : f32
    %57 = vector.broadcast %cst_24 : f32 to vector<16x4xf32>
    %58 = arith.mulf %56, %57 : vector<16x4xf32>
    %59 = arith.addf %55, %58 : vector<16x4xf32>
    %60 = arith.truncf %59 : vector<16x4xf32> to vector<16x4xbf16>
    %c0_25 = arith.constant 0 : index
    %c0_26 = arith.constant 0 : index
    %c20 = arith.constant 20 : index
    %61 = vector.load %arg3[%c0_25, %c0_26, %c20] : memref<1x16x64xbf16, #tpu.memory_space<vmem>>, vector<1x16x4xbf16>
    %62 = vector.shape_cast %61 : vector<1x16x4xbf16> to vector<16x4xbf16>
    %63 = vector.shape_cast %60 : vector<16x4xbf16> to vector<1x16x4xbf16>
    tpu.vector_store %arg3[%c0_25, %c0_26, %c20], %63 {strides = array<i32>} : memref<1x16x64xbf16, #tpu.memory_space<vmem>>, vector<1x16x4xbf16>,
    %64 = vector.extract_strided_slice %3 {offsets = [0, 8], sizes = [16, 4], strides = [1, 1]} : vector<16x32xf32> to vector<16x4xf32>
    %cst_27 = arith.constant 2.000000e-01 : f32
    %65 = vector.broadcast %cst_27 : f32 to vector<16x4xf32>
    %66 = arith.mulf %64, %65 : vector<16x4xf32>
    %67 = vector.extract_strided_slice %3 {offsets = [0, 12], sizes = [16, 4], strides = [1, 1]} : vector<16x32xf32> to vector<16x4xf32>
    %cst_28 = arith.constant 8.000000e-01 : f32
    %68 = vector.broadcast %cst_28 : f32 to vector<16x4xf32>
    %69 = arith.mulf %67, %68 : vector<16x4xf32>
    %70 = arith.addf %66, %69 : vector<16x4xf32>
    %71 = arith.truncf %70 : vector<16x4xf32> to vector<16x4xbf16>
    %c0_29 = arith.constant 0 : index
    %c0_30 = arith.constant 0 : index
    %c24 = arith.constant 24 : index
    %72 = vector.load %arg3[%c0_29, %c0_30, %c24] : memref<1x16x64xbf16, #tpu.memory_space<vmem>>, vector<1x16x4xbf16>
    %73 = vector.shape_cast %72 : vector<1x16x4xbf16> to vector<16x4xbf16>
    %74 = vector.shape_cast %71 : vector<16x4xbf16> to vector<1x16x4xbf16>
    tpu.vector_store %arg3[%c0_29, %c0_30, %c24], %74 {strides = array<i32>} : memref<1x16x64xbf16, #tpu.memory_space<vmem>>, vector<1x16x4xbf16>,
    %75 = vector.extract_strided_slice %3 {offsets = [0, 12], sizes = [16, 4], strides = [1, 1]} : vector<16x32xf32> to vector<16x4xf32>
    %cst_31 = arith.constant 0.733333349 : f32
    %76 = vector.broadcast %cst_31 : f32 to vector<16x4xf32>
    %77 = arith.mulf %75, %76 : vector<16x4xf32>
    %78 = vector.extract_strided_slice %3 {offsets = [0, 16], sizes = [16, 4], strides = [1, 1]} : vector<16x32xf32> to vector<16x4xf32>
    %cst_32 = arith.constant 0.266666681 : f32
    %79 = vector.broadcast %cst_32 : f32 to vector<16x4xf32>
    %80 = arith.mulf %78, %79 : vector<16x4xf32>
    %81 = arith.addf %77, %80 : vector<16x4xf32>
    %82 = arith.truncf %81 : vector<16x4xf32> to vector<16x4xbf16>
    %c0_33 = arith.constant 0 : index
    %c0_34 = arith.constant 0 : index
    %c28 = arith.constant 28 : index
    %83 = vector.load %arg3[%c0_33, %c0_34, %c28] : memref<1x16x64xbf16, #tpu.memory_space<vmem>>, vector<1x16x4xbf16>
    %84 = vector.shape_cast %83 : vector<1x16x4xbf16> to vector<16x4xbf16>
    %85 = vector.shape_cast %82 : vector<16x4xbf16> to vector<1x16x4xbf16>
    tpu.vector_store %arg3[%c0_33, %c0_34, %c28], %85 {strides = array<i32>} : memref<1x16x64xbf16, #tpu.memory_space<vmem>>, vector<1x16x4xbf16>,
    %86 = vector.extract_strided_slice %3 {offsets = [0, 12], sizes = [16, 4], strides = [1, 1]} : vector<16x32xf32> to vector<16x4xf32>
    %cst_35 = arith.constant 0.266666681 : f32
    %87 = vector.broadcast %cst_35 : f32 to vector<16x4xf32>
    %88 = arith.mulf %86, %87 : vector<16x4xf32>
    %89 = vector.extract_strided_slice %3 {offsets = [0, 16], sizes = [16, 4], strides = [1, 1]} : vector<16x32xf32> to vector<16x4xf32>
    %cst_36 = arith.constant 0.733333349 : f32
    %90 = vector.broadcast %cst_36 : f32 to vector<16x4xf32>
    %91 = arith.mulf %89, %90 : vector<16x4xf32>
    %92 = arith.addf %88, %91 : vector<16x4xf32>
    %93 = arith.truncf %92 : vector<16x4xf32> to vector<16x4xbf16>
    %c0_37 = arith.constant 0 : index
    %c0_38 = arith.constant 0 : index
    %c32 = arith.constant 32 : index
    %94 = vector.load %arg3[%c0_37, %c0_38, %c32] : memref<1x16x64xbf16, #tpu.memory_space<vmem>>, vector<1x16x4xbf16>
    %95 = vector.shape_cast %94 : vector<1x16x4xbf16> to vector<16x4xbf16>
    %96 = vector.shape_cast %93 : vector<16x4xbf16> to vector<1x16x4xbf16>
    tpu.vector_store %arg3[%c0_37, %c0_38, %c32], %96 {strides = array<i32>} : memref<1x16x64xbf16, #tpu.memory_space<vmem>>, vector<1x16x4xbf16>,
    %97 = vector.extract_strided_slice %3 {offsets = [0, 16], sizes = [16, 4], strides = [1, 1]} : vector<16x32xf32> to vector<16x4xf32>
    %cst_39 = arith.constant 8.000000e-01 : f32
    %98 = vector.broadcast %cst_39 : f32 to vector<16x4xf32>
    %99 = arith.mulf %97, %98 : vector<16x4xf32>
    %100 = vector.extract_strided_slice %3 {offsets = [0, 20], sizes = [16, 4], strides = [1, 1]} : vector<16x32xf32> to vector<16x4xf32>
    %cst_40 = arith.constant 2.000000e-01 : f32
    %101 = vector.broadcast %cst_40 : f32 to vector<16x4xf32>
    %102 = arith.mulf %100, %101 : vector<16x4xf32>
    %103 = arith.addf %99, %102 : vector<16x4xf32>
    %104 = arith.truncf %103 : vector<16x4xf32> to vector<16x4xbf16>
    %c0_41 = arith.constant 0 : index
    %c0_42 = arith.constant 0 : index
    %c36 = arith.constant 36 : index
    %105 = vector.load %arg3[%c0_41, %c0_42, %c36] : memref<1x16x64xbf16, #tpu.memory_space<vmem>>, vector<1x16x4xbf16>
    %106 = vector.shape_cast %105 : vector<1x16x4xbf16> to vector<16x4xbf16>
    %107 = vector.shape_cast %104 : vector<16x4xbf16> to vector<1x16x4xbf16>
    tpu.vector_store %arg3[%c0_41, %c0_42, %c36], %107 {strides = array<i32>} : memref<1x16x64xbf16, #tpu.memory_space<vmem>>, vector<1x16x4xbf16>,
    %108 = vector.extract_strided_slice %3 {offsets = [0, 16], sizes = [16, 4], strides = [1, 1]} : vector<16x32xf32> to vector<16x4xf32>
    %cst_43 = arith.constant 0.333333343 : f32
    %109 = vector.broadcast %cst_43 : f32 to vector<16x4xf32>
    %110 = arith.mulf %108, %109 : vector<16x4xf32>
    %111 = vector.extract_strided_slice %3 {offsets = [0, 20], sizes = [16, 4], strides = [1, 1]} : vector<16x32xf32> to vector<16x4xf32>
    %cst_44 = arith.constant 0.666666686 : f32
    %112 = vector.broadcast %cst_44 : f32 to vector<16x4xf32>
    %113 = arith.mulf %111, %112 : vector<16x4xf32>
    %114 = arith.addf %110, %113 : vector<16x4xf32>
    %115 = arith.truncf %114 : vector<16x4xf32> to vector<16x4xbf16>
    %c0_45 = arith.constant 0 : index
    %c0_46 = arith.constant 0 : index
    %c40 = arith.constant 40 : index
    %116 = vector.load %arg3[%c0_45, %c0_46, %c40] : memref<1x16x64xbf16, #tpu.memory_space<vmem>>, vector<1x16x4xbf16>
    %117 = vector.shape_cast %116 : vector<1x16x4xbf16> to vector<16x4xbf16>
    %118 = vector.shape_cast %115 : vector<16x4xbf16> to vector<1x16x4xbf16>
    tpu.vector_store %arg3[%c0_45, %c0_46, %c40], %118 {strides = array<i32>} : memref<1x16x64xbf16, #tpu.memory_space<vmem>>, vector<1x16x4xbf16>,
    %119 = vector.extract_strided_slice %3 {offsets = [0, 20], sizes = [16, 4], strides = [1, 1]} : vector<16x32xf32> to vector<16x4xf32>
    %cst_47 = arith.constant 0.866666674 : f32
    %120 = vector.broadcast %cst_47 : f32 to vector<16x4xf32>
    %121 = arith.mulf %119, %120 : vector<16x4xf32>
    %122 = vector.extract_strided_slice %3 {offsets = [0, 24], sizes = [16, 4], strides = [1, 1]} : vector<16x32xf32> to vector<16x4xf32>
    %cst_48 = arith.constant 0.13333334 : f32
    %123 = vector.broadcast %cst_48 : f32 to vector<16x4xf32>
    %124 = arith.mulf %122, %123 : vector<16x4xf32>
    %125 = arith.addf %121, %124 : vector<16x4xf32>
    %126 = arith.truncf %125 : vector<16x4xf32> to vector<16x4xbf16>
    %c0_49 = arith.constant 0 : index
    %c0_50 = arith.constant 0 : index
    %c44 = arith.constant 44 : index
    %127 = vector.load %arg3[%c0_49, %c0_50, %c44] : memref<1x16x64xbf16, #tpu.memory_space<vmem>>, vector<1x16x4xbf16>
    %128 = vector.shape_cast %127 : vector<1x16x4xbf16> to vector<16x4xbf16>
    %129 = vector.shape_cast %126 : vector<16x4xbf16> to vector<1x16x4xbf16>
    tpu.vector_store %arg3[%c0_49, %c0_50, %c44], %129 {strides = array<i32>} : memref<1x16x64xbf16, #tpu.memory_space<vmem>>, vector<1x16x4xbf16>,
    %130 = vector.extract_strided_slice %3 {offsets = [0, 20], sizes = [16, 4], strides = [1, 1]} : vector<16x32xf32> to vector<16x4xf32>
    %cst_51 = arith.constant 4.000000e-01 : f32
    %131 = vector.broadcast %cst_51 : f32 to vector<16x4xf32>
    %132 = arith.mulf %130, %131 : vector<16x4xf32>
    %133 = vector.extract_strided_slice %3 {offsets = [0, 24], sizes = [16, 4], strides = [1, 1]} : vector<16x32xf32> to vector<16x4xf32>
    %cst_52 = arith.constant 6.000000e-01 : f32
    %134 = vector.broadcast %cst_52 : f32 to vector<16x4xf32>
    %135 = arith.mulf %133, %134 : vector<16x4xf32>
    %136 = arith.addf %132, %135 : vector<16x4xf32>
    %137 = arith.truncf %136 : vector<16x4xf32> to vector<16x4xbf16>
    %c0_53 = arith.constant 0 : index
    %c0_54 = arith.constant 0 : index
    %c48 = arith.constant 48 : index
    %138 = vector.load %arg3[%c0_53, %c0_54, %c48] : memref<1x16x64xbf16, #tpu.memory_space<vmem>>, vector<1x16x4xbf16>
    %139 = vector.shape_cast %138 : vector<1x16x4xbf16> to vector<16x4xbf16>
    %140 = vector.shape_cast %137 : vector<16x4xbf16> to vector<1x16x4xbf16>
    tpu.vector_store %arg3[%c0_53, %c0_54, %c48], %140 {strides = array<i32>} : memref<1x16x64xbf16, #tpu.memory_space<vmem>>, vector<1x16x4xbf16>,
    %141 = vector.extract_strided_slice %3 {offsets = [0, 24], sizes = [16, 4], strides = [1, 1]} : vector<16x32xf32> to vector<16x4xf32>
    %cst_55 = arith.constant 0.933333337 : f32
    %142 = vector.broadcast %cst_55 : f32 to vector<16x4xf32>
    %143 = arith.mulf %141, %142 : vector<16x4xf32>
    %144 = vector.extract_strided_slice %3 {offsets = [0, 28], sizes = [16, 4], strides = [1, 1]} : vector<16x32xf32> to vector<16x4xf32>
    %cst_56 = arith.constant 0.0666666701 : f32
    %145 = vector.broadcast %cst_56 : f32 to vector<16x4xf32>
    %146 = arith.mulf %144, %145 : vector<16x4xf32>
    %147 = arith.addf %143, %146 : vector<16x4xf32>
    %148 = arith.truncf %147 : vector<16x4xf32> to vector<16x4xbf16>
    %c0_57 = arith.constant 0 : index
    %c0_58 = arith.constant 0 : index
    %c52 = arith.constant 52 : index
    %149 = vector.load %arg3[%c0_57, %c0_58, %c52] : memref<1x16x64xbf16, #tpu.memory_space<vmem>>, vector<1x16x4xbf16>
    %150 = vector.shape_cast %149 : vector<1x16x4xbf16> to vector<16x4xbf16>
    %151 = vector.shape_cast %148 : vector<16x4xbf16> to vector<1x16x4xbf16>
    tpu.vector_store %arg3[%c0_57, %c0_58, %c52], %151 {strides = array<i32>} : memref<1x16x64xbf16, #tpu.memory_space<vmem>>, vector<1x16x4xbf16>,
    %152 = vector.extract_strided_slice %3 {offsets = [0, 24], sizes = [16, 4], strides = [1, 1]} : vector<16x32xf32> to vector<16x4xf32>
    %cst_59 = arith.constant 0.466666669 : f32
    %153 = vector.broadcast %cst_59 : f32 to vector<16x4xf32>
    %154 = arith.mulf %152, %153 : vector<16x4xf32>
    %155 = vector.extract_strided_slice %3 {offsets = [0, 28], sizes = [16, 4], strides = [1, 1]} : vector<16x32xf32> to vector<16x4xf32>
    %cst_60 = arith.constant 0.533333361 : f32
    %156 = vector.broadcast %cst_60 : f32 to vector<16x4xf32>
    %157 = arith.mulf %155, %156 : vector<16x4xf32>
    %158 = arith.addf %154, %157 : vector<16x4xf32>
    %159 = arith.truncf %158 : vector<16x4xf32> to vector<16x4xbf16>
    %c0_61 = arith.constant 0 : index
    %c0_62 = arith.constant 0 : index
    %c56 = arith.constant 56 : index
    %160 = vector.load %arg3[%c0_61, %c0_62, %c56] : memref<1x16x64xbf16, #tpu.memory_space<vmem>>, vector<1x16x4xbf16>
    %161 = vector.shape_cast %160 : vector<1x16x4xbf16> to vector<16x4xbf16>
    %162 = vector.shape_cast %159 : vector<16x4xbf16> to vector<1x16x4xbf16>
    tpu.vector_store %arg3[%c0_61, %c0_62, %c56], %162 {strides = array<i32>} : memref<1x16x64xbf16, #tpu.memory_space<vmem>>, vector<1x16x4xbf16>,
    %163 = vector.extract_strided_slice %3 {offsets = [0, 24], sizes = [16, 4], strides = [1, 1]} : vector<16x32xf32> to vector<16x4xf32>
    %cst_63 = arith.constant 0.000000e+00 : f32
    %164 = vector.broadcast %cst_63 : f32 to vector<16x4xf32>
    %165 = arith.mulf %163, %164 : vector<16x4xf32>
    %166 = vector.extract_strided_slice %3 {offsets = [0, 28], sizes = [16, 4], strides = [1, 1]} : vector<16x32xf32> to vector<16x4xf32>
    %cst_64 = arith.constant 1.000000e+00 : f32
    %167 = vector.broadcast %cst_64 : f32 to vector<16x4xf32>
    %168 = arith.mulf %166, %167 : vector<16x4xf32>
    %169 = arith.addf %165, %168 : vector<16x4xf32>
    %170 = arith.truncf %169 : vector<16x4xf32> to vector<16x4xbf16>
    %c0_65 = arith.constant 0 : index
    %c0_66 = arith.constant 0 : index
    %c60 = arith.constant 60 : index
    %171 = vector.load %arg3[%c0_65, %c0_66, %c60] : memref<1x16x64xbf16, #tpu.memory_space<vmem>>, vector<1x16x4xbf16>
    %172 = vector.shape_cast %171 : vector<1x16x4xbf16> to vector<16x4xbf16>
    %173 = vector.shape_cast %170 : vector<16x4xbf16> to vector<1x16x4xbf16>
    tpu.vector_store %arg3[%c0_65, %c0_66, %c60], %173 {strides = array<i32>} : memref<1x16x64xbf16, #tpu.memory_space<vmem>>, vector<1x16x4xbf16>,
    return
  }
  func.func @transform_0(%arg0: i32) -> (i32, i32, i32) {
    %c0_i32 = arith.constant 0 : i32
    %c0_i32_0 = arith.constant 0 : i32
    %c0_i32_1 = arith.constant 0 : i32
    return %arg0, %c0_i32, %c0_i32_0 : i32, i32, i32
  }
  func.func @transform_1(%arg0: i32) -> (i32, i32) {
    %c0_i32 = arith.constant 0 : i32
    %c0_i32_0 = arith.constant 0 : i32
    %c0_i32_1 = arith.constant 0 : i32
    return %c0_i32, %c0_i32_0 : i32, i32
  }
  func.func @transform_2(%arg0: i32) -> (i32, i32, i32) {
    %c0_i32 = arith.constant 0 : i32
    %c0_i32_0 = arith.constant 0 : i32
    %c0_i32_1 = arith.constant 0 : i32
    return %arg0, %c0_i32, %c0_i32_0 : i32, i32, i32
  }
}

module attributes {stable_mosaic.version = 11 : i64} {
  func.func @_fused_matmul_kernel(%arg0: i32, %arg1: memref<512x4xf32, #tpu.memory_space<vmem>>, %arg2: memref<4x128xbf16, #tpu.memory_space<vmem>>, %arg3: memref<512x4xbf16, #tpu.memory_space<vmem>>, %arg4: memref<4x128xbf16, #tpu.memory_space<vmem>>, %arg5: memref<1x128xf32, #tpu.memory_space<vmem>>, %arg6: memref<512x128xbf16, #tpu.memory_space<vmem>>) attributes {dimension_semantics = [#tpu.dimension_semantics<parallel>], iteration_bounds = array<i64: 1>, scalar_prefetch = 0 : i64, scratch_operands = 0 : i64, tpu.core_type = #tpu.core_type<tc>, window_params = [{transform_indices = @transform_0, window_bounds = array<i64: 512, 4>}, {pipeline_mode = #tpu.pipeline_mode<synchronous>, transform_indices = @transform_1, window_bounds = array<i64: 4, 128>}, {transform_indices = @transform_2, window_bounds = array<i64: 512, 4>}, {pipeline_mode = #tpu.pipeline_mode<synchronous>, transform_indices = @transform_3, window_bounds = array<i64: 4, 128>}, {pipeline_mode = #tpu.pipeline_mode<synchronous>, transform_indices = @transform_4, window_bounds = array<i64: 1, 128>}, {transform_indices = @transform_5, window_bounds = array<i64: 512, 128>}]} {
    %c0 = arith.constant 0 : index
    %c0_0 = arith.constant 0 : index
    %0 = vector.load %arg1[%c0, %c0_0] : memref<512x4xf32, #tpu.memory_space<vmem>>, vector<512x4xf32>
    %1 = arith.truncf %0 : vector<512x4xf32> to vector<512x4xbf16>
    %c0_1 = arith.constant 0 : index
    %c0_2 = arith.constant 0 : index
    %2 = vector.load %arg2[%c0_1, %c0_2] : memref<4x128xbf16, #tpu.memory_space<vmem>>, vector<4x128xbf16>
    %cst = arith.constant dense<0.000000e+00> : vector<512x128xf32>
    %3 = tpu.matmul %1, %2, %cst {dimension_numbers = #tpu.dot_dimension_numbers<[1], [0], [0], [1], [0, 0, 1, 1], [], []>} : vector<512x4xbf16>, vector<4x128xbf16>, vector<512x128xf32> -> vector<512x128xf32>
    %c0_3 = arith.constant 0 : index
    %c0_4 = arith.constant 0 : index
    %4 = vector.load %arg3[%c0_3, %c0_4] : memref<512x4xbf16, #tpu.memory_space<vmem>>, vector<512x4xbf16>
    %c0_5 = arith.constant 0 : index
    %c0_6 = arith.constant 0 : index
    %5 = vector.load %arg4[%c0_5, %c0_6] : memref<4x128xbf16, #tpu.memory_space<vmem>>, vector<4x128xbf16>
    %cst_7 = arith.constant dense<0.000000e+00> : vector<512x128xf32>
    %6 = tpu.matmul %4, %5, %cst_7 {dimension_numbers = #tpu.dot_dimension_numbers<[1], [0], [0], [1], [0, 0, 1, 1], [], []>} : vector<512x4xbf16>, vector<4x128xbf16>, vector<512x128xf32> -> vector<512x128xf32>
    %7 = arith.addf %3, %6 : vector<512x128xf32>
    %c0_8 = arith.constant 0 : index
    %c0_9 = arith.constant 0 : index
    %8 = vector.load %arg5[%c0_8, %c0_9] : memref<1x128xf32, #tpu.memory_space<vmem>>, vector<1x128xf32>
    %9 = vector.broadcast %8 : vector<1x128xf32> to vector<512x128xf32>
    %10 = arith.addf %7, %9 : vector<512x128xf32>
    %cst_10 = arith.constant 0.000000e+00 : f32
    %11 = vector.broadcast %cst_10 : f32 to vector<512x128xf32>
    %12 = arith.maximumf %10, %11 : vector<512x128xf32>
    %13 = arith.truncf %12 : vector<512x128xf32> to vector<512x128xbf16>
    %c0_11 = arith.constant 0 : index
    %c0_12 = arith.constant 0 : index
    %14 = vector.load %arg6[%c0_11, %c0_12] : memref<512x128xbf16, #tpu.memory_space<vmem>>, vector<512x128xbf16>
    tpu.vector_store %arg6[%c0_11, %c0_12], %13 {strides = array<i32>} : memref<512x128xbf16, #tpu.memory_space<vmem>>, vector<512x128xbf16>,
    return
  }
  func.func @transform_0(%arg0: i32) -> (i32, i32) {
    %c0_i32 = arith.constant 0 : i32
    %c0_i32_0 = arith.constant 0 : i32
    return %arg0, %c0_i32 : i32, i32
  }
  func.func @transform_1(%arg0: i32) -> (i32, i32) {
    %c0_i32 = arith.constant 0 : i32
    %c0_i32_0 = arith.constant 0 : i32
    %c0_i32_1 = arith.constant 0 : i32
    return %c0_i32, %c0_i32_0 : i32, i32
  }
  func.func @transform_2(%arg0: i32) -> (i32, i32) {
    %c0_i32 = arith.constant 0 : i32
    %c0_i32_0 = arith.constant 0 : i32
    return %arg0, %c0_i32 : i32, i32
  }
  func.func @transform_3(%arg0: i32) -> (i32, i32) {
    %c0_i32 = arith.constant 0 : i32
    %c0_i32_0 = arith.constant 0 : i32
    %c0_i32_1 = arith.constant 0 : i32
    return %c0_i32, %c0_i32_0 : i32, i32
  }
  func.func @transform_4(%arg0: i32) -> (i32, i32) {
    %c0_i32 = arith.constant 0 : i32
    %c0_i32_0 = arith.constant 0 : i32
    %c0_i32_1 = arith.constant 0 : i32
    return %c0_i32, %c0_i32_0 : i32, i32
  }
  func.func @transform_5(%arg0: i32) -> (i32, i32) {
    %c0_i32 = arith.constant 0 : i32
    %c0_i32_0 = arith.constant 0 : i32
    return %arg0, %c0_i32 : i32, i32
  }
}

module attributes {stable_mosaic.version = 11 : i64} {
  func.func @_conv3x3_kernel(%arg0: i32, %arg1: i32, %arg2: memref<1x16x16x128xbf16, #tpu.memory_space<vmem>>, %arg3: memref<9x128x128xbf16, #tpu.memory_space<vmem>>, %arg4: memref<1x128xf32, #tpu.memory_space<vmem>>, %arg5: memref<1x8x16x128xbf16, #tpu.memory_space<vmem>>, %arg6: memref<18x18x128xbf16, #tpu.memory_space<vmem>>) attributes {dimension_semantics = [#tpu.dimension_semantics<parallel>, #tpu.dimension_semantics<arbitrary>], iteration_bounds = array<i64: 2, 2>, scalar_prefetch = 0 : i64, scratch_operands = 1 : i64, tpu.core_type = #tpu.core_type<tc>, window_params = [{transform_indices = @transform_0, window_bounds = array<i64: 1, 16, 16, 128>}, {pipeline_mode = #tpu.pipeline_mode<synchronous>, transform_indices = @transform_1, window_bounds = array<i64: 9, 128, 128>}, {pipeline_mode = #tpu.pipeline_mode<synchronous>, transform_indices = @transform_2, window_bounds = array<i64: 1, 128>}, {transform_indices = @transform_3, window_bounds = array<i64: 1, 8, 16, 128>}]} {
    %c0_i32 = arith.constant 0 : i32
    %0 = arith.cmpi eq, %arg1, %c0_i32 : i32
    %1 = arith.extui %0 : i1 to i32
    %c0_i32_0 = arith.constant 0 : i32
    %2 = arith.cmpi ne, %1, %c0_i32_0 : i32
    scf.if %2 {
      %cst_60 = arith.constant 0.000000e+00 : bf16
      %88 = vector.broadcast %cst_60 : bf16 to vector<18x18x128xbf16>
      %c0_61 = arith.constant 0 : index
      %c0_62 = arith.constant 0 : index
      %c0_63 = arith.constant 0 : index
      %89 = vector.load %arg6[%c0_61, %c0_62, %c0_63] : memref<18x18x128xbf16, #tpu.memory_space<vmem>>, vector<18x18x128xbf16>
      tpu.vector_store %arg6[%c0_61, %c0_62, %c0_63], %88 {strides = array<i32>} : memref<18x18x128xbf16, #tpu.memory_space<vmem>>, vector<18x18x128xbf16>,
      %c0_64 = arith.constant 0 : index
      %c0_65 = arith.constant 0 : index
      %c0_66 = arith.constant 0 : index
      %c0_67 = arith.constant 0 : index
      %90 = vector.load %arg2[%c0_64, %c0_65, %c0_66, %c0_67] : memref<1x16x16x128xbf16, #tpu.memory_space<vmem>>, vector<1x16x16x128xbf16>
      %91 = vector.shape_cast %90 : vector<1x16x16x128xbf16> to vector<16x16x128xbf16>
      %c1_68 = arith.constant 1 : index
      %c1_69 = arith.constant 1 : index
      %c0_70 = arith.constant 0 : index
      %92 = vector.load %arg6[%c1_68, %c1_69, %c0_70] : memref<18x18x128xbf16, #tpu.memory_space<vmem>>, vector<16x16x128xbf16>
      tpu.vector_store %arg6[%c1_68, %c1_69, %c0_70], %91 {strides = array<i32>} : memref<18x18x128xbf16, #tpu.memory_space<vmem>>, vector<16x16x128xbf16>,
    } else {
    }
    %c8_i32 = arith.constant 8 : i32
    %3 = arith.muli %arg1, %c8_i32 : i32
    %4 = tpu.assume_multiple %3, 8 : i32
    %cst = arith.constant 0.000000e+00 : f32
    %5 = vector.broadcast %cst : f32 to vector<128x128xf32>
    %c0_i32_1 = arith.constant 0 : i32
    %6 = arith.addi %4, %c0_i32_1 : i32
    %7 = arith.index_cast %6 : i32 to index
    %c0 = arith.constant 0 : index
    %c0_2 = arith.constant 0 : index
    %8 = vector.load %arg6[%7, %c0, %c0_2] : memref<18x18x128xbf16, #tpu.memory_space<vmem>>, vector<8x16x128xbf16>
    %9 = vector.shape_cast %8 : vector<8x16x128xbf16> to vector<128x128xbf16>
    %c0_3 = arith.constant 0 : index
    %c0_4 = arith.constant 0 : index
    %c0_5 = arith.constant 0 : index
    %10 = vector.load %arg3[%c0_3, %c0_4, %c0_5] : memref<9x128x128xbf16, #tpu.memory_space<vmem>>, vector<1x128x128xbf16>
    %11 = vector.shape_cast %10 : vector<1x128x128xbf16> to vector<128x128xbf16>
    %cst_6 = arith.constant dense<0.000000e+00> : vector<128x128xf32>
    %12 = tpu.matmul %9, %11, %cst_6 {dimension_numbers = #tpu.dot_dimension_numbers<[1], [0], [0], [1], [0, 0, 1, 1], [], []>} : vector<128x128xbf16>, vector<128x128xbf16>, vector<128x128xf32> -> vector<128x128xf32>
    %13 = arith.addf %5, %12 : vector<128x128xf32>
    %c0_i32_7 = arith.constant 0 : i32
    %14 = arith.addi %4, %c0_i32_7 : i32
    %15 = arith.index_cast %14 : i32 to index
    %c1 = arith.constant 1 : index
    %c0_8 = arith.constant 0 : index
    %16 = vector.load %arg6[%15, %c1, %c0_8] : memref<18x18x128xbf16, #tpu.memory_space<vmem>>, vector<8x16x128xbf16>
    %17 = vector.shape_cast %16 : vector<8x16x128xbf16> to vector<128x128xbf16>
    %c1_9 = arith.constant 1 : index
    %c0_10 = arith.constant 0 : index
    %c0_11 = arith.constant 0 : index
    %18 = vector.load %arg3[%c1_9, %c0_10, %c0_11] : memref<9x128x128xbf16, #tpu.memory_space<vmem>>, vector<1x128x128xbf16>
    %19 = vector.shape_cast %18 : vector<1x128x128xbf16> to vector<128x128xbf16>
    %cst_12 = arith.constant dense<0.000000e+00> : vector<128x128xf32>
    %20 = tpu.matmul %17, %19, %cst_12 {dimension_numbers = #tpu.dot_dimension_numbers<[1], [0], [0], [1], [0, 0, 1, 1], [], []>} : vector<128x128xbf16>, vector<128x128xbf16>, vector<128x128xf32> -> vector<128x128xf32>
    %21 = arith.addf %13, %20 : vector<128x128xf32>
    %c0_i32_13 = arith.constant 0 : i32
    %22 = arith.addi %4, %c0_i32_13 : i32
    %23 = arith.index_cast %22 : i32 to index
    %c2 = arith.constant 2 : index
    %c0_14 = arith.constant 0 : index
    %24 = vector.load %arg6[%23, %c2, %c0_14] : memref<18x18x128xbf16, #tpu.memory_space<vmem>>, vector<8x16x128xbf16>
    %25 = vector.shape_cast %24 : vector<8x16x128xbf16> to vector<128x128xbf16>
    %c2_15 = arith.constant 2 : index
    %c0_16 = arith.constant 0 : index
    %c0_17 = arith.constant 0 : index
    %26 = vector.load %arg3[%c2_15, %c0_16, %c0_17] : memref<9x128x128xbf16, #tpu.memory_space<vmem>>, vector<1x128x128xbf16>
    %27 = vector.shape_cast %26 : vector<1x128x128xbf16> to vector<128x128xbf16>
    %cst_18 = arith.constant dense<0.000000e+00> : vector<128x128xf32>
    %28 = tpu.matmul %25, %27, %cst_18 {dimension_numbers = #tpu.dot_dimension_numbers<[1], [0], [0], [1], [0, 0, 1, 1], [], []>} : vector<128x128xbf16>, vector<128x128xbf16>, vector<128x128xf32> -> vector<128x128xf32>
    %29 = arith.addf %21, %28 : vector<128x128xf32>
    %c1_i32 = arith.constant 1 : i32
    %30 = arith.addi %4, %c1_i32 : i32
    %31 = arith.index_cast %30 : i32 to index
    %c0_19 = arith.constant 0 : index
    %c0_20 = arith.constant 0 : index
    %32 = vector.load %arg6[%31, %c0_19, %c0_20] : memref<18x18x128xbf16, #tpu.memory_space<vmem>>, vector<8x16x128xbf16>
    %33 = vector.shape_cast %32 : vector<8x16x128xbf16> to vector<128x128xbf16>
    %c3 = arith.constant 3 : index
    %c0_21 = arith.constant 0 : index
    %c0_22 = arith.constant 0 : index
    %34 = vector.load %arg3[%c3, %c0_21, %c0_22] : memref<9x128x128xbf16, #tpu.memory_space<vmem>>, vector<1x128x128xbf16>
    %35 = vector.shape_cast %34 : vector<1x128x128xbf16> to vector<128x128xbf16>
    %cst_23 = arith.constant dense<0.000000e+00> : vector<128x128xf32>
    %36 = tpu.matmul %33, %35, %cst_23 {dimension_numbers = #tpu.dot_dimension_numbers<[1], [0], [0], [1], [0, 0, 1, 1], [], []>} : vector<128x128xbf16>, vector<128x128xbf16>, vector<128x128xf32> -> vector<128x128xf32>
    %37 = arith.addf %29, %36 : vector<128x128xf32>
    %c1_i32_24 = arith.constant 1 : i32
    %38 = arith.addi %4, %c1_i32_24 : i32
    %39 = arith.index_cast %38 : i32 to index
    %c1_25 = arith.constant 1 : index
    %c0_26 = arith.constant 0 : index
    %40 = vector.load %arg6[%39, %c1_25, %c0_26] : memref<18x18x128xbf16, #tpu.memory_space<vmem>>, vector<8x16x128xbf16>
    %41 = vector.shape_cast %40 : vector<8x16x128xbf16> to vector<128x128xbf16>
    %c4 = arith.constant 4 : index
    %c0_27 = arith.constant 0 : index
    %c0_28 = arith.constant 0 : index
    %42 = vector.load %arg3[%c4, %c0_27, %c0_28] : memref<9x128x128xbf16, #tpu.memory_space<vmem>>, vector<1x128x128xbf16>
    %43 = vector.shape_cast %42 : vector<1x128x128xbf16> to vector<128x128xbf16>
    %cst_29 = arith.constant dense<0.000000e+00> : vector<128x128xf32>
    %44 = tpu.matmul %41, %43, %cst_29 {dimension_numbers = #tpu.dot_dimension_numbers<[1], [0], [0], [1], [0, 0, 1, 1], [], []>} : vector<128x128xbf16>, vector<128x128xbf16>, vector<128x128xf32> -> vector<128x128xf32>
    %45 = arith.addf %37, %44 : vector<128x128xf32>
    %c1_i32_30 = arith.constant 1 : i32
    %46 = arith.addi %4, %c1_i32_30 : i32
    %47 = arith.index_cast %46 : i32 to index
    %c2_31 = arith.constant 2 : index
    %c0_32 = arith.constant 0 : index
    %48 = vector.load %arg6[%47, %c2_31, %c0_32] : memref<18x18x128xbf16, #tpu.memory_space<vmem>>, vector<8x16x128xbf16>
    %49 = vector.shape_cast %48 : vector<8x16x128xbf16> to vector<128x128xbf16>
    %c5 = arith.constant 5 : index
    %c0_33 = arith.constant 0 : index
    %c0_34 = arith.constant 0 : index
    %50 = vector.load %arg3[%c5, %c0_33, %c0_34] : memref<9x128x128xbf16, #tpu.memory_space<vmem>>, vector<1x128x128xbf16>
    %51 = vector.shape_cast %50 : vector<1x128x128xbf16> to vector<128x128xbf16>
    %cst_35 = arith.constant dense<0.000000e+00> : vector<128x128xf32>
    %52 = tpu.matmul %49, %51, %cst_35 {dimension_numbers = #tpu.dot_dimension_numbers<[1], [0], [0], [1], [0, 0, 1, 1], [], []>} : vector<128x128xbf16>, vector<128x128xbf16>, vector<128x128xf32> -> vector<128x128xf32>
    %53 = arith.addf %45, %52 : vector<128x128xf32>
    %c2_i32 = arith.constant 2 : i32
    %54 = arith.addi %4, %c2_i32 : i32
    %55 = arith.index_cast %54 : i32 to index
    %c0_36 = arith.constant 0 : index
    %c0_37 = arith.constant 0 : index
    %56 = vector.load %arg6[%55, %c0_36, %c0_37] : memref<18x18x128xbf16, #tpu.memory_space<vmem>>, vector<8x16x128xbf16>
    %57 = vector.shape_cast %56 : vector<8x16x128xbf16> to vector<128x128xbf16>
    %c6 = arith.constant 6 : index
    %c0_38 = arith.constant 0 : index
    %c0_39 = arith.constant 0 : index
    %58 = vector.load %arg3[%c6, %c0_38, %c0_39] : memref<9x128x128xbf16, #tpu.memory_space<vmem>>, vector<1x128x128xbf16>
    %59 = vector.shape_cast %58 : vector<1x128x128xbf16> to vector<128x128xbf16>
    %cst_40 = arith.constant dense<0.000000e+00> : vector<128x128xf32>
    %60 = tpu.matmul %57, %59, %cst_40 {dimension_numbers = #tpu.dot_dimension_numbers<[1], [0], [0], [1], [0, 0, 1, 1], [], []>} : vector<128x128xbf16>, vector<128x128xbf16>, vector<128x128xf32> -> vector<128x128xf32>
    %61 = arith.addf %53, %60 : vector<128x128xf32>
    %c2_i32_41 = arith.constant 2 : i32
    %62 = arith.addi %4, %c2_i32_41 : i32
    %63 = arith.index_cast %62 : i32 to index
    %c1_42 = arith.constant 1 : index
    %c0_43 = arith.constant 0 : index
    %64 = vector.load %arg6[%63, %c1_42, %c0_43] : memref<18x18x128xbf16, #tpu.memory_space<vmem>>, vector<8x16x128xbf16>
    %65 = vector.shape_cast %64 : vector<8x16x128xbf16> to vector<128x128xbf16>
    %c7 = arith.constant 7 : index
    %c0_44 = arith.constant 0 : index
    %c0_45 = arith.constant 0 : index
    %66 = vector.load %arg3[%c7, %c0_44, %c0_45] : memref<9x128x128xbf16, #tpu.memory_space<vmem>>, vector<1x128x128xbf16>
    %67 = vector.shape_cast %66 : vector<1x128x128xbf16> to vector<128x128xbf16>
    %cst_46 = arith.constant dense<0.000000e+00> : vector<128x128xf32>
    %68 = tpu.matmul %65, %67, %cst_46 {dimension_numbers = #tpu.dot_dimension_numbers<[1], [0], [0], [1], [0, 0, 1, 1], [], []>} : vector<128x128xbf16>, vector<128x128xbf16>, vector<128x128xf32> -> vector<128x128xf32>
    %69 = arith.addf %61, %68 : vector<128x128xf32>
    %c2_i32_47 = arith.constant 2 : i32
    %70 = arith.addi %4, %c2_i32_47 : i32
    %71 = arith.index_cast %70 : i32 to index
    %c2_48 = arith.constant 2 : index
    %c0_49 = arith.constant 0 : index
    %72 = vector.load %arg6[%71, %c2_48, %c0_49] : memref<18x18x128xbf16, #tpu.memory_space<vmem>>, vector<8x16x128xbf16>
    %73 = vector.shape_cast %72 : vector<8x16x128xbf16> to vector<128x128xbf16>
    %c8 = arith.constant 8 : index
    %c0_50 = arith.constant 0 : index
    %c0_51 = arith.constant 0 : index
    %74 = vector.load %arg3[%c8, %c0_50, %c0_51] : memref<9x128x128xbf16, #tpu.memory_space<vmem>>, vector<1x128x128xbf16>
    %75 = vector.shape_cast %74 : vector<1x128x128xbf16> to vector<128x128xbf16>
    %cst_52 = arith.constant dense<0.000000e+00> : vector<128x128xf32>
    %76 = tpu.matmul %73, %75, %cst_52 {dimension_numbers = #tpu.dot_dimension_numbers<[1], [0], [0], [1], [0, 0, 1, 1], [], []>} : vector<128x128xbf16>, vector<128x128xbf16>, vector<128x128xf32> -> vector<128x128xf32>
    %77 = arith.addf %69, %76 : vector<128x128xf32>
    %c0_53 = arith.constant 0 : index
    %c0_54 = arith.constant 0 : index
    %78 = vector.load %arg4[%c0_53, %c0_54] : memref<1x128xf32, #tpu.memory_space<vmem>>, vector<1x128xf32>
    %79 = vector.broadcast %78 : vector<1x128xf32> to vector<128x128xf32>
    %80 = arith.addf %77, %79 : vector<128x128xf32>
    %cst_55 = arith.constant 0.000000e+00 : f32
    %81 = vector.broadcast %cst_55 : f32 to vector<128x128xf32>
    %82 = arith.maximumf %80, %81 : vector<128x128xf32>
    %83 = vector.shape_cast %82 : vector<128x128xf32> to vector<8x16x128xf32>
    %84 = arith.truncf %83 : vector<8x16x128xf32> to vector<8x16x128xbf16>
    %c0_56 = arith.constant 0 : index
    %c0_57 = arith.constant 0 : index
    %c0_58 = arith.constant 0 : index
    %c0_59 = arith.constant 0 : index
    %85 = vector.load %arg5[%c0_56, %c0_57, %c0_58, %c0_59] : memref<1x8x16x128xbf16, #tpu.memory_space<vmem>>, vector<1x8x16x128xbf16>
    %86 = vector.shape_cast %85 : vector<1x8x16x128xbf16> to vector<8x16x128xbf16>
    %87 = vector.shape_cast %84 : vector<8x16x128xbf16> to vector<1x8x16x128xbf16>
    tpu.vector_store %arg5[%c0_56, %c0_57, %c0_58, %c0_59], %87 {strides = array<i32>} : memref<1x8x16x128xbf16, #tpu.memory_space<vmem>>, vector<1x8x16x128xbf16>,
    return
  }
  func.func @transform_0(%arg0: i32, %arg1: i32) -> (i32, i32, i32, i32) {
    %c0_i32 = arith.constant 0 : i32
    %c0_i32_0 = arith.constant 0 : i32
    %c0_i32_1 = arith.constant 0 : i32
    %c0_i32_2 = arith.constant 0 : i32
    return %arg0, %c0_i32, %c0_i32_0, %c0_i32_1 : i32, i32, i32, i32
  }
  func.func @transform_1(%arg0: i32, %arg1: i32) -> (i32, i32, i32) {
    %c0_i32 = arith.constant 0 : i32
    %c0_i32_0 = arith.constant 0 : i32
    %c0_i32_1 = arith.constant 0 : i32
    %c0_i32_2 = arith.constant 0 : i32
    return %c0_i32, %c0_i32_0, %c0_i32_1 : i32, i32, i32
  }
  func.func @transform_2(%arg0: i32, %arg1: i32) -> (i32, i32) {
    %c0_i32 = arith.constant 0 : i32
    %c0_i32_0 = arith.constant 0 : i32
    %c0_i32_1 = arith.constant 0 : i32
    return %c0_i32, %c0_i32_0 : i32, i32
  }
  func.func @transform_3(%arg0: i32, %arg1: i32) -> (i32, i32, i32, i32) {
    %c0_i32 = arith.constant 0 : i32
    %c0_i32_0 = arith.constant 0 : i32
    %c0_i32_1 = arith.constant 0 : i32
    return %arg0, %arg1, %c0_i32, %c0_i32_0 : i32, i32, i32, i32
  }
}

module attributes {stable_mosaic.version = 11 : i64} {
  func.func @_fused_matmul_kernel(%arg0: i32, %arg1: memref<512x128xbf16, #tpu.memory_space<vmem>>, %arg2: memref<128x128xbf16, #tpu.memory_space<vmem>>, %arg3: memref<512x4xf32, #tpu.memory_space<vmem>>, %arg4: memref<4x128xbf16, #tpu.memory_space<vmem>>, %arg5: memref<512x4xbf16, #tpu.memory_space<vmem>>, %arg6: memref<4x128xbf16, #tpu.memory_space<vmem>>, %arg7: memref<1x128xf32, #tpu.memory_space<vmem>>, %arg8: memref<512x128xbf16, #tpu.memory_space<vmem>>) attributes {dimension_semantics = [#tpu.dimension_semantics<parallel>], iteration_bounds = array<i64: 1>, scalar_prefetch = 0 : i64, scratch_operands = 0 : i64, tpu.core_type = #tpu.core_type<tc>, window_params = [{transform_indices = @transform_0, window_bounds = array<i64: 512, 128>}, {pipeline_mode = #tpu.pipeline_mode<synchronous>, transform_indices = @transform_1, window_bounds = array<i64: 128, 128>}, {transform_indices = @transform_2, window_bounds = array<i64: 512, 4>}, {pipeline_mode = #tpu.pipeline_mode<synchronous>, transform_indices = @transform_3, window_bounds = array<i64: 4, 128>}, {transform_indices = @transform_4, window_bounds = array<i64: 512, 4>}, {pipeline_mode = #tpu.pipeline_mode<synchronous>, transform_indices = @transform_5, window_bounds = array<i64: 4, 128>}, {pipeline_mode = #tpu.pipeline_mode<synchronous>, transform_indices = @transform_6, window_bounds = array<i64: 1, 128>}, {transform_indices = @transform_7, window_bounds = array<i64: 512, 128>}]} {
    %c0 = arith.constant 0 : index
    %c0_0 = arith.constant 0 : index
    %0 = vector.load %arg1[%c0, %c0_0] : memref<512x128xbf16, #tpu.memory_space<vmem>>, vector<512x128xbf16>
    %c0_1 = arith.constant 0 : index
    %c0_2 = arith.constant 0 : index
    %1 = vector.load %arg2[%c0_1, %c0_2] : memref<128x128xbf16, #tpu.memory_space<vmem>>, vector<128x128xbf16>
    %cst = arith.constant dense<0.000000e+00> : vector<512x128xf32>
    %2 = tpu.matmul %0, %1, %cst {dimension_numbers = #tpu.dot_dimension_numbers<[1], [0], [0], [1], [0, 0, 1, 1], [], []>} : vector<512x128xbf16>, vector<128x128xbf16>, vector<512x128xf32> -> vector<512x128xf32>
    %c0_3 = arith.constant 0 : index
    %c0_4 = arith.constant 0 : index
    %3 = vector.load %arg3[%c0_3, %c0_4] : memref<512x4xf32, #tpu.memory_space<vmem>>, vector<512x4xf32>
    %4 = arith.truncf %3 : vector<512x4xf32> to vector<512x4xbf16>
    %c0_5 = arith.constant 0 : index
    %c0_6 = arith.constant 0 : index
    %5 = vector.load %arg4[%c0_5, %c0_6] : memref<4x128xbf16, #tpu.memory_space<vmem>>, vector<4x128xbf16>
    %cst_7 = arith.constant dense<0.000000e+00> : vector<512x128xf32>
    %6 = tpu.matmul %4, %5, %cst_7 {dimension_numbers = #tpu.dot_dimension_numbers<[1], [0], [0], [1], [0, 0, 1, 1], [], []>} : vector<512x4xbf16>, vector<4x128xbf16>, vector<512x128xf32> -> vector<512x128xf32>
    %7 = arith.addf %2, %6 : vector<512x128xf32>
    %c0_8 = arith.constant 0 : index
    %c0_9 = arith.constant 0 : index
    %8 = vector.load %arg5[%c0_8, %c0_9] : memref<512x4xbf16, #tpu.memory_space<vmem>>, vector<512x4xbf16>
    %c0_10 = arith.constant 0 : index
    %c0_11 = arith.constant 0 : index
    %9 = vector.load %arg6[%c0_10, %c0_11] : memref<4x128xbf16, #tpu.memory_space<vmem>>, vector<4x128xbf16>
    %cst_12 = arith.constant dense<0.000000e+00> : vector<512x128xf32>
    %10 = tpu.matmul %8, %9, %cst_12 {dimension_numbers = #tpu.dot_dimension_numbers<[1], [0], [0], [1], [0, 0, 1, 1], [], []>} : vector<512x4xbf16>, vector<4x128xbf16>, vector<512x128xf32> -> vector<512x128xf32>
    %11 = arith.addf %7, %10 : vector<512x128xf32>
    %c0_13 = arith.constant 0 : index
    %c0_14 = arith.constant 0 : index
    %12 = vector.load %arg7[%c0_13, %c0_14] : memref<1x128xf32, #tpu.memory_space<vmem>>, vector<1x128xf32>
    %13 = vector.broadcast %12 : vector<1x128xf32> to vector<512x128xf32>
    %14 = arith.addf %11, %13 : vector<512x128xf32>
    %cst_15 = arith.constant 0.000000e+00 : f32
    %15 = vector.broadcast %cst_15 : f32 to vector<512x128xf32>
    %16 = arith.maximumf %14, %15 : vector<512x128xf32>
    %17 = arith.truncf %16 : vector<512x128xf32> to vector<512x128xbf16>
    %c0_16 = arith.constant 0 : index
    %c0_17 = arith.constant 0 : index
    %18 = vector.load %arg8[%c0_16, %c0_17] : memref<512x128xbf16, #tpu.memory_space<vmem>>, vector<512x128xbf16>
    tpu.vector_store %arg8[%c0_16, %c0_17], %17 {strides = array<i32>} : memref<512x128xbf16, #tpu.memory_space<vmem>>, vector<512x128xbf16>,
    return
  }
  func.func @transform_0(%arg0: i32) -> (i32, i32) {
    %c0_i32 = arith.constant 0 : i32
    %c0_i32_0 = arith.constant 0 : i32
    return %arg0, %c0_i32 : i32, i32
  }
  func.func @transform_1(%arg0: i32) -> (i32, i32) {
    %c0_i32 = arith.constant 0 : i32
    %c0_i32_0 = arith.constant 0 : i32
    %c0_i32_1 = arith.constant 0 : i32
    return %c0_i32, %c0_i32_0 : i32, i32
  }
  func.func @transform_2(%arg0: i32) -> (i32, i32) {
    %c0_i32 = arith.constant 0 : i32
    %c0_i32_0 = arith.constant 0 : i32
    return %arg0, %c0_i32 : i32, i32
  }
  func.func @transform_3(%arg0: i32) -> (i32, i32) {
    %c0_i32 = arith.constant 0 : i32
    %c0_i32_0 = arith.constant 0 : i32
    %c0_i32_1 = arith.constant 0 : i32
    return %c0_i32, %c0_i32_0 : i32, i32
  }
  func.func @transform_4(%arg0: i32) -> (i32, i32) {
    %c0_i32 = arith.constant 0 : i32
    %c0_i32_0 = arith.constant 0 : i32
    return %arg0, %c0_i32 : i32, i32
  }
  func.func @transform_5(%arg0: i32) -> (i32, i32) {
    %c0_i32 = arith.constant 0 : i32
    %c0_i32_0 = arith.constant 0 : i32
    %c0_i32_1 = arith.constant 0 : i32
    return %c0_i32, %c0_i32_0 : i32, i32
  }
  func.func @transform_6(%arg0: i32) -> (i32, i32) {
    %c0_i32 = arith.constant 0 : i32
    %c0_i32_0 = arith.constant 0 : i32
    %c0_i32_1 = arith.constant 0 : i32
    return %c0_i32, %c0_i32_0 : i32, i32
  }
  func.func @transform_7(%arg0: i32) -> (i32, i32) {
    %c0_i32 = arith.constant 0 : i32
    %c0_i32_0 = arith.constant 0 : i32
    return %arg0, %c0_i32 : i32, i32
  }
}

module attributes {stable_mosaic.version = 11 : i64} {
  func.func @_fused_matmul_kernel(%arg0: i32, %arg1: memref<512x128xbf16, #tpu.memory_space<vmem>>, %arg2: memref<128x128xbf16, #tpu.memory_space<vmem>>, %arg3: memref<1x128xf32, #tpu.memory_space<vmem>>, %arg4: memref<512x128xbf16, #tpu.memory_space<vmem>>) attributes {dimension_semantics = [#tpu.dimension_semantics<parallel>], iteration_bounds = array<i64: 1>, scalar_prefetch = 0 : i64, scratch_operands = 0 : i64, tpu.core_type = #tpu.core_type<tc>, window_params = [{transform_indices = @transform_0, window_bounds = array<i64: 512, 128>}, {pipeline_mode = #tpu.pipeline_mode<synchronous>, transform_indices = @transform_1, window_bounds = array<i64: 128, 128>}, {pipeline_mode = #tpu.pipeline_mode<synchronous>, transform_indices = @transform_2, window_bounds = array<i64: 1, 128>}, {transform_indices = @transform_3, window_bounds = array<i64: 512, 128>}]} {
    %c0 = arith.constant 0 : index
    %c0_0 = arith.constant 0 : index
    %0 = vector.load %arg1[%c0, %c0_0] : memref<512x128xbf16, #tpu.memory_space<vmem>>, vector<512x128xbf16>
    %c0_1 = arith.constant 0 : index
    %c0_2 = arith.constant 0 : index
    %1 = vector.load %arg2[%c0_1, %c0_2] : memref<128x128xbf16, #tpu.memory_space<vmem>>, vector<128x128xbf16>
    %cst = arith.constant dense<0.000000e+00> : vector<512x128xf32>
    %2 = tpu.matmul %0, %1, %cst {dimension_numbers = #tpu.dot_dimension_numbers<[1], [0], [0], [1], [0, 0, 1, 1], [], []>} : vector<512x128xbf16>, vector<128x128xbf16>, vector<512x128xf32> -> vector<512x128xf32>
    %c0_3 = arith.constant 0 : index
    %c0_4 = arith.constant 0 : index
    %3 = vector.load %arg3[%c0_3, %c0_4] : memref<1x128xf32, #tpu.memory_space<vmem>>, vector<1x128xf32>
    %4 = vector.broadcast %3 : vector<1x128xf32> to vector<512x128xf32>
    %5 = arith.addf %2, %4 : vector<512x128xf32>
    %cst_5 = arith.constant 0.000000e+00 : f32
    %6 = vector.broadcast %cst_5 : f32 to vector<512x128xf32>
    %7 = arith.maximumf %5, %6 : vector<512x128xf32>
    %8 = arith.truncf %7 : vector<512x128xf32> to vector<512x128xbf16>
    %c0_6 = arith.constant 0 : index
    %c0_7 = arith.constant 0 : index
    %9 = vector.load %arg4[%c0_6, %c0_7] : memref<512x128xbf16, #tpu.memory_space<vmem>>, vector<512x128xbf16>
    tpu.vector_store %arg4[%c0_6, %c0_7], %8 {strides = array<i32>} : memref<512x128xbf16, #tpu.memory_space<vmem>>, vector<512x128xbf16>,
    return
  }
  func.func @transform_0(%arg0: i32) -> (i32, i32) {
    %c0_i32 = arith.constant 0 : i32
    %c0_i32_0 = arith.constant 0 : i32
    return %arg0, %c0_i32 : i32, i32
  }
  func.func @transform_1(%arg0: i32) -> (i32, i32) {
    %c0_i32 = arith.constant 0 : i32
    %c0_i32_0 = arith.constant 0 : i32
    %c0_i32_1 = arith.constant 0 : i32
    return %c0_i32, %c0_i32_0 : i32, i32
  }
  func.func @transform_2(%arg0: i32) -> (i32, i32) {
    %c0_i32 = arith.constant 0 : i32
    %c0_i32_0 = arith.constant 0 : i32
    %c0_i32_1 = arith.constant 0 : i32
    return %c0_i32, %c0_i32_0 : i32, i32
  }
  func.func @transform_3(%arg0: i32) -> (i32, i32) {
    %c0_i32 = arith.constant 0 : i32
    %c0_i32_0 = arith.constant 0 : i32
    return %arg0, %c0_i32 : i32, i32
  }
}

module attributes {stable_mosaic.version = 11 : i64} {
  func.func @_fused_matmul_kernel(%arg0: i32, %arg1: memref<512x128xbf16, #tpu.memory_space<vmem>>, %arg2: memref<128x128xbf16, #tpu.memory_space<vmem>>, %arg3: memref<512x128xbf16, #tpu.memory_space<vmem>>, %arg4: memref<128x128xbf16, #tpu.memory_space<vmem>>, %arg5: memref<1x128xf32, #tpu.memory_space<vmem>>, %arg6: memref<512x128xf32, #tpu.memory_space<vmem>>) attributes {dimension_semantics = [#tpu.dimension_semantics<parallel>], iteration_bounds = array<i64: 1>, scalar_prefetch = 0 : i64, scratch_operands = 0 : i64, tpu.core_type = #tpu.core_type<tc>, window_params = [{transform_indices = @transform_0, window_bounds = array<i64: 512, 128>}, {pipeline_mode = #tpu.pipeline_mode<synchronous>, transform_indices = @transform_1, window_bounds = array<i64: 128, 128>}, {transform_indices = @transform_2, window_bounds = array<i64: 512, 128>}, {pipeline_mode = #tpu.pipeline_mode<synchronous>, transform_indices = @transform_3, window_bounds = array<i64: 128, 128>}, {pipeline_mode = #tpu.pipeline_mode<synchronous>, transform_indices = @transform_4, window_bounds = array<i64: 1, 128>}, {transform_indices = @transform_5, window_bounds = array<i64: 512, 128>}]} {
    %c0 = arith.constant 0 : index
    %c0_0 = arith.constant 0 : index
    %0 = vector.load %arg1[%c0, %c0_0] : memref<512x128xbf16, #tpu.memory_space<vmem>>, vector<512x128xbf16>
    %c0_1 = arith.constant 0 : index
    %c0_2 = arith.constant 0 : index
    %1 = vector.load %arg2[%c0_1, %c0_2] : memref<128x128xbf16, #tpu.memory_space<vmem>>, vector<128x128xbf16>
    %cst = arith.constant dense<0.000000e+00> : vector<512x128xf32>
    %2 = tpu.matmul %0, %1, %cst {dimension_numbers = #tpu.dot_dimension_numbers<[1], [0], [0], [1], [0, 0, 1, 1], [], []>} : vector<512x128xbf16>, vector<128x128xbf16>, vector<512x128xf32> -> vector<512x128xf32>
    %c0_3 = arith.constant 0 : index
    %c0_4 = arith.constant 0 : index
    %3 = vector.load %arg3[%c0_3, %c0_4] : memref<512x128xbf16, #tpu.memory_space<vmem>>, vector<512x128xbf16>
    %c0_5 = arith.constant 0 : index
    %c0_6 = arith.constant 0 : index
    %4 = vector.load %arg4[%c0_5, %c0_6] : memref<128x128xbf16, #tpu.memory_space<vmem>>, vector<128x128xbf16>
    %cst_7 = arith.constant dense<0.000000e+00> : vector<512x128xf32>
    %5 = tpu.matmul %3, %4, %cst_7 {dimension_numbers = #tpu.dot_dimension_numbers<[1], [0], [0], [1], [0, 0, 1, 1], [], []>} : vector<512x128xbf16>, vector<128x128xbf16>, vector<512x128xf32> -> vector<512x128xf32>
    %6 = arith.addf %2, %5 : vector<512x128xf32>
    %c0_8 = arith.constant 0 : index
    %c0_9 = arith.constant 0 : index
    %7 = vector.load %arg5[%c0_8, %c0_9] : memref<1x128xf32, #tpu.memory_space<vmem>>, vector<1x128xf32>
    %8 = vector.broadcast %7 : vector<1x128xf32> to vector<512x128xf32>
    %9 = arith.addf %6, %8 : vector<512x128xf32>
    %cst_10 = arith.constant 0.000000e+00 : f32
    %10 = vector.broadcast %cst_10 : f32 to vector<512x128xf32>
    %11 = arith.maximumf %9, %10 : vector<512x128xf32>
    %c0_11 = arith.constant 0 : index
    %c0_12 = arith.constant 0 : index
    %12 = vector.load %arg6[%c0_11, %c0_12] : memref<512x128xf32, #tpu.memory_space<vmem>>, vector<512x128xf32>
    tpu.vector_store %arg6[%c0_11, %c0_12], %11 {strides = array<i32>} : memref<512x128xf32, #tpu.memory_space<vmem>>, vector<512x128xf32>,
    return
  }
  func.func @transform_0(%arg0: i32) -> (i32, i32) {
    %c0_i32 = arith.constant 0 : i32
    %c0_i32_0 = arith.constant 0 : i32
    return %arg0, %c0_i32 : i32, i32
  }
  func.func @transform_1(%arg0: i32) -> (i32, i32) {
    %c0_i32 = arith.constant 0 : i32
    %c0_i32_0 = arith.constant 0 : i32
    %c0_i32_1 = arith.constant 0 : i32
    return %c0_i32, %c0_i32_0 : i32, i32
  }
  func.func @transform_2(%arg0: i32) -> (i32, i32) {
    %c0_i32 = arith.constant 0 : i32
    %c0_i32_0 = arith.constant 0 : i32
    return %arg0, %c0_i32 : i32, i32
  }
  func.func @transform_3(%arg0: i32) -> (i32, i32) {
    %c0_i32 = arith.constant 0 : i32
    %c0_i32_0 = arith.constant 0 : i32
    %c0_i32_1 = arith.constant 0 : i32
    return %c0_i32, %c0_i32_0 : i32, i32
  }
  func.func @transform_4(%arg0: i32) -> (i32, i32) {
    %c0_i32 = arith.constant 0 : i32
    %c0_i32_0 = arith.constant 0 : i32
    %c0_i32_1 = arith.constant 0 : i32
    return %c0_i32, %c0_i32_0 : i32, i32
  }
  func.func @transform_5(%arg0: i32) -> (i32, i32) {
    %c0_i32 = arith.constant 0 : i32
    %c0_i32_0 = arith.constant 0 : i32
    return %arg0, %c0_i32 : i32, i32
  }
}

</mosaic_0001>

<llo_original>
// kernel: up_forward.7
$region0: #{up_forward.7}
  #allocation0 [shape = 'u32[]', space=smem, size = 0x4, offset = 0x4, fixed_abs, tag = 'smem constant byte address 0x4 - core index']
  #allocation1 [shape = 'u32[144,128]{1,0:T(1,128)}', space=vmem, size = 0x12000, scoped, tag = 'internal scratch']
  %s0 = inlined_call_operand.vmem [shape: f32[2,8,32], index: 0, kind: input, shape index: {}]
  %s1 = inlined_call_operand.vmem [shape: f32[16,8], index: 1, kind: input, shape index: {}]
  %s2 = inlined_call_operand.vmem [shape: bf16[2,16,64], index: 2, kind: output, shape index: {}]
  %s3 = sld [smem:[#allocation0]]
  $region41: #{up_forward.7} parent=0
    _
  %s5 = ssub.s32 1, %s3
  %s6 = scalar_select 0, %s5, %s3
  loop: start=0, step=1, limit=4
  $region2: #{up_forward.7} parent=0 // loop_pre_header
    _
  $region3: #{up_forward.7} parent=0 // loop_header
    %s8 = sphi 0, %s12
    %p9 = scmp.ge.s32.totalorder %s8, 4
    %s18 = sphi 0, %s20
    %s21 = sphi 0, %s18
    %s22 = sphi 0, %s21
    %s38 = sphi 0, %s22
    %s42 = sphi 0, %s42
    %s44 = sphi 0, %s42
    %s45 = sphi 0, %s44
    %s59 = sphi 0, %s45
    %s65 = sphi 0, %s67
    %s68 = sphi 0, %s65
    %s69 = sphi 0, %s68
    %s85 = sphi 0, %s69
  $region4: #{up_forward.7} parent=0 // loop_header_branch
    %11 = sbr.rel (%p9) target = $region8
  $region5: #{up_forward.7} parent=0 // loop_body
    %s13 = ssub.s32 %s8, 1
    %s14 = ssub.s32 %s8, 2
    %s15 = sadd.s32 %s8, 1
    %s16 = ssub.s32 %s8, %s15
    %p17 = scmp.eq.s32.totalorder %s16, 0
    %s19 = sadd.s32 %s18, 1
    %s20 = scalar_select %p17, %s18, %s19
    %p23 = pneg %p17
    %p24 = scmp.eq.s32.totalorder %s8, 1
    %p25 = por %p23, %p24
    %p26 = scmp.ne.s32.totalorder %s18, %s21
    %p27 = scmp.eq.s32.totalorder %s8, 0
    %p28 = por %p26, %p27
    %p29 = scmp.ne.s32.totalorder %s18, %s21
    %p30 = scmp.eq.s32.totalorder %s13, 1
    %p31 = por %p29, %p30
    %p32 = scmp.ne.s32.totalorder %s21, %s22
    %p33 = scmp.eq.s32.totalorder %s13, 0
    %p34 = por %p32, %p33
    %p35 = scmp.ne.s32.totalorder %s21, %s22
    %p36 = scmp.eq.s32.totalorder %s14, 1
    %p37 = por %p35, %p36
    %p39 = scmp.ne.s32.totalorder %s22, %s38
    %p40 = scmp.eq.s32.totalorder %s14, 0
    %p41 = por %p39, %p40
    %s43 = sadd.s32 %s42, 1
    %p46 = scmp.eq.s32.totalorder %s8, 1
    %p47 = scmp.ne.s32.totalorder %s42, %s44
    %p48 = scmp.eq.s32.totalorder %s8, 0
    %p49 = por %p47, %p48
    %p50 = scmp.ne.s32.totalorder %s42, %s44
    %p51 = scmp.eq.s32.totalorder %s13, 1
    %p52 = por %p50, %p51
    %p53 = scmp.ne.s32.totalorder %s44, %s45
    %p54 = scmp.eq.s32.totalorder %s13, 0
    %p55 = por %p53, %p54
    %p56 = scmp.ne.s32.totalorder %s44, %s45
    %p57 = scmp.eq.s32.totalorder %s14, 1
    %p58 = por %p56, %p57
    %p60 = scmp.ne.s32.totalorder %s45, %s59
    %p61 = scmp.eq.s32.totalorder %s14, 0
    %p62 = por %p60, %p61
    %s63 = ssub.s32 %s8, %s15
    %p64 = scmp.eq.s32.totalorder %s63, 0
    %s66 = sadd.s32 %s65, 1
    %s67 = scalar_select %p64, %s65, %s66
    %p70 = pneg %p64
    %p71 = scmp.eq.s32.totalorder %s8, 1
    %p72 = por %p70, %p71
    %p73 = scmp.ne.s32.totalorder %s65, %s68
    %p74 = scmp.eq.s32.totalorder %s8, 0
    %p75 = por %p73, %p74
    %p76 = scmp.ne.s32.totalorder %s65, %s68
    %p77 = scmp.eq.s32.totalorder %s13, 1
    %p78 = por %p76, %p77
    %p79 = scmp.ne.s32.totalorder %s68, %s69
    %p80 = scmp.eq.s32.totalorder %s13, 0
    %p81 = por %p79, %p80
    %p82 = scmp.ne.s32.totalorder %s68, %s69
    %p83 = scmp.eq.s32.totalorder %s14, 1
    %p84 = por %p82, %p83
    %p86 = scmp.ne.s32.totalorder %s69, %s85
    %p87 = scmp.eq.s32.totalorder %s14, 0
    %p88 = por %p86, %p87
    %p89 = scmp.le.s32.totalorder 1, %s8
    %p90 = scmp.lt.s32.totalorder %s8, 3
    %p91 = pnand %p89, %p90
    %p92 = pneg %p91
    // Predicated region
    $region9: #{up_forward.7} parent=5 // pred_check
      _
    $region10: #{up_forward.7} parent=5 // pred_check_branch
      %94 = sbr.rel (%p91) target = $region12
    $region11: #{up_forward.7} parent=5 // pred_region
      %s95 = ssub.s32 %s8, 1
      // Predicated region
      $region13: #{up_forward.7} parent=11 // pred_check
        %p96 = pneg %p55
      $region14: #{up_forward.7} parent=11 // pred_check_branch
        %98 = sbr.rel (%p96) target = $region16
      $region15: #{up_forward.7} parent=11 // pred_region
        _
      $region16: #{up_forward.7} parent=11 // pred_fallthru
        _
    $region12: #{up_forward.7} parent=5 // pred_fallthru
      _
    %p99 = scmp.lt.s32.totalorder %s8, 2
    // Predicated region
    $region17: #{up_forward.7} parent=5 // pred_check
      %p100 = pneg %p99
    $region18: #{up_forward.7} parent=5 // pred_check_branch
      %102 = sbr.rel (%p100) target = $region20
    $region19: #{up_forward.7} parent=5 // pred_region
      // Predicated region
      $region21: #{up_forward.7} parent=19 // pred_check
        %p103 = pneg %p28
      $region22: #{up_forward.7} parent=19 // pred_check_branch
        %105 = sbr.rel (%p103) target = $region24
      $region23: #{up_forward.7} parent=19 // pred_region
        %p106 = scmp.lt.s32.totalorder %s8, 1
        %s107 = scalar_select %p106, %s8, 1
        %s108 = smul.addr %s107, 8
        %s109 = scalar_lea.vmem %s0, %s108
      $region24: #{up_forward.7} parent=19 // pred_fallthru
        _
    $region20: #{up_forward.7} parent=5 // pred_fallthru
      _
    %p110 = scmp.le.s32.totalorder 1, %s8
    %p111 = scmp.lt.s32.totalorder %s8, 3
    %p112 = pnand %p110, %p111
    %p113 = pneg %p112
    // Predicated region
    $region25: #{up_forward.7} parent=5 // pred_check
      _
    $region26: #{up_forward.7} parent=5 // pred_check_branch
      %115 = sbr.rel (%p112) target = $region28
    $region27: #{up_forward.7} parent=5 // pred_region
      %s116 = ssub.s32 %s8, 1
      %p117 = scmp.lt.s32.totalorder %s13, 1
      %s118 = scalar_select %p117, %s13, 1
      %s119 = smul.addr %s118, 8
      %s120 = scalar_lea.vmem %s0, %s119
      %p121 = pneg %p34
      %p122 = pneg %p31
      %p123 = pneg %p55
      %p124 = pneg %p52
      %p125 = pneg %p81
      %p126 = pneg %p78
      %p127 = scmp.lt.s32.totalorder %s13, 1
      %s128 = scalar_select %p127, %s13, 1
      %s129 = smul.addr %s128, 2
      %s130 = smul.addr %s129, 4
      %s131 = scalar_lea.vmem %s2, %s130
      %p132 = scmp.lt.s32.totalorder %s13, 1
      %s133 = scalar_select %p132, %s13, 1
      %s134 = smul.addr %s133, 8
      %s135 = scalar_lea.vmem %s0, %s134
      %p136 = scmp.lt.s32.totalorder %s13, 1
      %s137 = scalar_select %p136, %s13, 1
      %s138 = smul.addr %s137, 2
      %s139 = smul.addr %s138, 4
      %s140 = scalar_lea.vmem %s2, %s139
      %v141 = vld [vmem:[%s1] sm:$0xff]
      %v142 = vld [vmem:[%s1 + $0x8] sm:$0xff]
      %v143 = vld [vmem:[%s135] sm:$0xff]
      %vm144 = vcmask 64512
      %v146 = vsel %vm144, %v141, 0
      %v149 = vsel %vm144, %v142, 0
      %151 = vmatprep.subr.mxu0 0.0
      %152 = vmatpush1.msra.mxu0 0.0
      %153 = vmatprep.subr.mxu0 0.0
      %154 = vmatpush1.msra.mxu0 0.0
      %155 = vmatprep.subr.mxu0 0.0
      %156 = vmatpush1.msra.mxu0 0.0
      %157 = vmatprep.subr.mxu0 0.0
      %158 = vmatpush1.msra.mxu0 0.0
      %159 = vmatprep.subr.mxu0 0.0
      %160 = vmatpush1.msra.mxu0 0.0
      %161 = vmatprep.subr.mxu0 0.0
      %162 = vmatpush1.msra.mxu0 0.0
      %163 = vmatprep.subr.mxu0 0.0
      %164 = vmatpush1.msra.mxu0 0.0
      %165 = vmatprep.subr.mxu0 0.0
      %166 = vmatpush1.msra.mxu0 0.0
      %167 = vmatprep.subr.mxu0 0.0
      %168 = vmatpush1.msra.mxu0 0.0
      %169 = vmatprep.subr.mxu0 0.0
      %170 = vmatpush1.msra.mxu0 0.0
      %171 = vmatprep.subr.mxu0 0.0
      %172 = vmatpush1.msra.mxu0 0.0
      %173 = vmatprep.subr.mxu0 0.0
      %174 = vmatpush1.msra.mxu0 0.0
      %175 = vmatprep.subr.mxu0 0.0
      %176 = vmatpush1.msra.mxu0 0.0
      %177 = vmatprep.subr.mxu0 0.0
      %178 = vmatpush1.msra.mxu0 0.0
      %179 = vmatprep.subr.mxu0 0.0
      %180 = vmatpush1.msra.mxu0 0.0
      %181 = vmatprep.subr.mxu0 0.0
      %182 = vmatpush1.msra.mxu0 %v143
      %183 = vmatprep.subr.mxu0 0.0
      %184 = vmatpush2.msra.mxu0 0.0
      %185 = vmatprep.subr.mxu0 0.0
      %186 = vmatpush2.msra.mxu0 0.0
      %187 = vmatprep.subr.mxu0 0.0
      %188 = vmatpush2.msra.mxu0 0.0
      %189 = vmatprep.subr.mxu0 0.0
      %190 = vmatpush2.msra.mxu0 0.0
      %191 = vmatprep.subr.mxu0 0.0
      %192 = vmatpush2.msra.mxu0 0.0
      %193 = vmatprep.subr.mxu0 0.0
      %194 = vmatpush2.msra.mxu0 0.0
      %195 = vmatprep.subr.mxu0 0.0
      %196 = vmatpush2.msra.mxu0 0.0
      %197 = vmatprep.subr.mxu0 0.0
      %198 = vmatpush2.msra.mxu0 0.0
      %199 = vmatprep.subr.mxu0 0.0
      %200 = vmatpush2.msra.mxu0 0.0
      %201 = vmatprep.subr.mxu0 0.0
      %202 = vmatpush2.msra.mxu0 0.0
      %203 = vmatprep.subr.mxu0 0.0
      %204 = vmatpush2.msra.mxu0 0.0
      %205 = vmatprep.subr.mxu0 0.0
      %206 = vmatpush2.msra.mxu0 0.0
      %207 = vmatprep.subr.mxu0 0.0
      %208 = vmatpush2.msra.mxu0 0.0
      %209 = vmatprep.subr.mxu0 0.0
      %210 = vmatpush2.msra.mxu0 0.0
      %211 = vmatprep.subr.mxu0 0.0
      %212 = vmatpush2.msra.mxu0 0.0
      %213 = vmatprep.subr.mxu0 0.0
      %214 = vmatpush2.msra.mxu0 0.0
      %215 = vmatprep.mubr.f32.mxu0 0.0
      %216 = vmatmul.mubr.f32.gmra.mxu0 %v146
      %v217 = vpop.f32.mrf.mxu0
      %v218 = vadd.f32 0.0, %v217
      %v219 = vpop.f32.mrf.mxu0
      %220 = vmatprep.mubr.f32.mxu0 0.0
      %221 = vmatmul.mubr.f32.gmra.mxu0 %v149
      %v222 = vpop.f32.mrf.mxu0
      %v223 = vadd.f32 0.0, %v222
      %v224 = vpop.f32.mrf.mxu0
      %225 = vdwg.mxu0
      %v226 = vpack.c.bf16 %v223, %v218
      %v228 = vunpack.c.l.b16 %v226
      %v229 = vunpack.c.h.b16 %v226
      %v230 = vpack.c.b16 %v228, %v228
      %v231 = vpack.c.b16 %v229, %v229
      %vm234 = vcmask 27648
      %235 = vst.msk [vmem:[%s140] sm:$0xf] %vm234, %v230
      %236 = vst.msk [vmem:[%s140 + $0x4] sm:$0xf] %vm234, %v231
      %v237 = vmul.f32 %v218, 0.53333336
      %v238 = vmul.f32 %v223, 0.53333336
      %v239 = vmul.f32 %v218, 0.46666667
      %v240 = vmul.f32 %v223, 0.46666667
      %243 = vrot.lane.b32.xlu0 %v239, 124
      %v244 = vpop.permute.xlu0 %243
      %245 = vrot.lane.b32.xlu0 %v240, 124
      %v246 = vpop.permute.xlu0 %245
      %v249 = vadd.f32 %v237, %v244
      %v250 = vadd.f32 %v238, %v246
      %v251 = vpack.c.bf16 %v250, %v249
      %v253 = vunpack.c.l.b16 %v251
      %v254 = vunpack.c.h.b16 %v251
      %v255 = vpack.c.b16 %v253, %v253
      %v256 = vpack.c.b16 %v254, %v254
      %257 = vrot.lane.b32.xlu0 %v255, 4
      %v258 = vpop.permute.xlu0 %257
      %259 = vrot.lane.b32.xlu0 %v256, 4
      %v260 = vpop.permute.xlu0 %259
      %vm263 = vcmask 60448
      %264 = vst.msk [vmem:[%s140] sm:$0xf] %vm263, %v258
      %265 = vst.msk [vmem:[%s140 + $0x4] sm:$0xf] %vm263, %v260
      %v266 = vmul.f32 %v218, 0.06666667
      %v267 = vmul.f32 %v223, 0.06666667
      %v268 = vmul.f32 %v218, 0.93333334
      %v269 = vmul.f32 %v223, 0.93333334
      %272 = vrot.lane.b32.xlu0 %v268, 124
      %v273 = vpop.permute.xlu0 %272
      %274 = vrot.lane.b32.xlu0 %v269, 124
      %v275 = vpop.permute.xlu0 %274
      %v278 = vadd.f32 %v266, %v273
      %v279 = vadd.f32 %v267, %v275
      %v280 = vpack.c.bf16 %v279, %v278
      %v282 = vunpack.c.l.b16 %v280
      %v283 = vunpack.c.h.b16 %v280
      %v284 = vpack.c.b16 %v282, %v282
      %v285 = vpack.c.b16 %v283, %v283
      %286 = vrot.lane.b32.xlu0 %v284, 8
      %v287 = vpop.permute.xlu0 %286
      %288 = vrot.lane.b32.xlu0 %v285, 8
      %v289 = vpop.permute.xlu0 %288
      %vm292 = vcmask 93248
      %293 = vst.msk [vmem:[%s140] sm:$0xf] %vm292, %v287
      %294 = vst.msk [vmem:[%s140 + $0x4] sm:$0xf] %vm292, %v289
      %v295 = vmul.f32 %v218, 0.6
      %v296 = vmul.f32 %v223, 0.6
      %v297 = vmul.f32 %v218, 0.4
      %v298 = vmul.f32 %v223, 0.4
      %301 = vrot.lane.b32.xlu0 %v297, 124
      %v302 = vpop.permute.xlu0 %301
      %303 = vrot.lane.b32.xlu0 %v298, 124
      %v304 = vpop.permute.xlu0 %303
      %v307 = vadd.f32 %v295, %v302
      %v308 = vadd.f32 %v296, %v304
      %v309 = vpack.c.bf16 %v308, %v307
      %v311 = vunpack.c.l.b16 %v309
      %v312 = vunpack.c.h.b16 %v309
      %v313 = vpack.c.b16 %v311, %v311
      %v314 = vpack.c.b16 %v312, %v312
      %315 = vrot.lane.b32.xlu0 %v313, 8
      %v316 = vpop.permute.xlu0 %315
      %317 = vrot.lane.b32.xlu0 %v314, 8
      %v318 = vpop.permute.xlu0 %317
      %vm321 = vcmask 126048
      %322 = vst.msk [vmem:[%s140] sm:$0xf] %vm321, %v316
      %323 = vst.msk [vmem:[%s140 + $0x4] sm:$0xf] %vm321, %v318
      %v324 = vmul.f32 %v218, 0.13333334
      %v325 = vmul.f32 %v223, 0.13333334
      %v326 = vmul.f32 %v218, 0.8666667
      %v327 = vmul.f32 %v223, 0.8666667
      %330 = vrot.lane.b32.xlu0 %v326, 124
      %v331 = vpop.permute.xlu0 %330
      %332 = vrot.lane.b32.xlu0 %v327, 124
      %v333 = vpop.permute.xlu0 %332
      %v336 = vadd.f32 %v324, %v331
      %v337 = vadd.f32 %v325, %v333
      %v338 = vpack.c.bf16 %v337, %v336
      %v340 = vunpack.c.l.b16 %v338
      %v341 = vunpack.c.h.b16 %v338
      %v342 = vpack.c.b16 %v340, %v340
      %v343 = vpack.c.b16 %v341, %v341
      %344 = vrot.lane.b32.xlu0 %v342, 12
      %v345 = vpop.permute.xlu0 %344
      %346 = vrot.lane.b32.xlu0 %v343, 12
      %v347 = vpop.permute.xlu0 %346
      %vm350 = vcmask 158848
      %351 = vst.msk [vmem:[%s140] sm:$0xf] %vm350, %v345
      %352 = vst.msk [vmem:[%s140 + $0x4] sm:$0xf] %vm350, %v347
      %v353 = vmul.f32 %v218, 0.6666667
      %v354 = vmul.f32 %v223, 0.6666667
      %v355 = vmul.f32 %v218, 0.33333334
      %v356 = vmul.f32 %v223, 0.33333334
      %359 = vrot.lane.b32.xlu0 %v355, 124
      %v360 = vpop.permute.xlu0 %359
      %361 = vrot.lane.b32.xlu0 %v356, 124
      %v362 = vpop.permute.xlu0 %361
      %v365 = vadd.f32 %v353, %v360
      %v366 = vadd.f32 %v354, %v362
      %v367 = vpack.c.bf16 %v366, %v365
      %v369 = vunpack.c.l.b16 %v367
      %v370 = vunpack.c.h.b16 %v367
      %v371 = vpack.c.b16 %v369, %v369
      %v372 = vpack.c.b16 %v370, %v370
      %373 = vrot.lane.b32.xlu0 %v371, 12
      %v374 = vpop.permute.xlu0 %373
      %375 = vrot.lane.b32.xlu0 %v372, 12
      %v376 = vpop.permute.xlu0 %375
      %vm379 = vcmask 191648
      %380 = vst.msk [vmem:[%s140] sm:$0xf] %vm379, %v374
      %381 = vst.msk [vmem:[%s140 + $0x4] sm:$0xf] %vm379, %v376
      %v382 = vmul.f32 %v218, 0.2
      %v383 = vmul.f32 %v223, 0.2
      %v384 = vmul.f32 %v218, 0.8
      %v385 = vmul.f32 %v223, 0.8
      %388 = vrot.lane.b32.xlu0 %v384, 124
      %v389 = vpop.permute.xlu0 %388
      %390 = vrot.lane.b32.xlu0 %v385, 124
      %v391 = vpop.permute.xlu0 %390
      %v394 = vadd.f32 %v382, %v389
      %v395 = vadd.f32 %v383, %v391
      %v396 = vpack.c.bf16 %v395, %v394
      %v398 = vunpack.c.l.b16 %v396
      %v399 = vunpack.c.h.b16 %v396
      %v400 = vpack.c.b16 %v398, %v398
      %v401 = vpack.c.b16 %v399, %v399
      %402 = vrot.lane.b32.xlu0 %v400, 16
      %v403 = vpop.permute.xlu0 %402
      %404 = vrot.lane.b32.xlu0 %v401, 16
      %v405 = vpop.permute.xlu0 %404
      %vm408 = vcmask 224448
      %409 = vst.msk [vmem:[%s140] sm:$0xf] %vm408, %v403
      %410 = vst.msk [vmem:[%s140 + $0x4] sm:$0xf] %vm408, %v405
      %v411 = vmul.f32 %v218, 0.73333335
      %v412 = vmul.f32 %v223, 0.73333335
      %v413 = vmul.f32 %v218, 0.26666668
      %v414 = vmul.f32 %v223, 0.26666668
      %417 = vrot.lane.b32.xlu0 %v413, 124
      %v418 = vpop.permute.xlu0 %417
      %419 = vrot.lane.b32.xlu0 %v414, 124
      %v420 = vpop.permute.xlu0 %419
      %v423 = vadd.f32 %v411, %v418
      %v424 = vadd.f32 %v412, %v420
      %v425 = vpack.c.bf16 %v424, %v423
      %v427 = vunpack.c.l.b16 %v425
      %v428 = vunpack.c.h.b16 %v425
      %v429 = vpack.c.b16 %v427, %v427
      %v430 = vpack.c.b16 %v428, %v428
      %431 = vrot.lane.b32.xlu0 %v429, 16
      %v432 = vpop.permute.xlu0 %431
      %433 = vrot.lane.b32.xlu0 %v430, 16
      %v434 = vpop.permute.xlu0 %433
      %vm437 = vcmask 257248
      %438 = vst.msk [vmem:[%s140] sm:$0xf] %vm437, %v432
      %439 = vst.msk [vmem:[%s140 + $0x4] sm:$0xf] %vm437, %v434
      %442 = vrot.lane.b32.xlu0 %v411, 124
      %v443 = vpop.permute.xlu0 %442
      %444 = vrot.lane.b32.xlu0 %v412, 124
      %v445 = vpop.permute.xlu0 %444
      %v448 = vadd.f32 %v413, %v443
      %v449 = vadd.f32 %v414, %v445
      %v450 = vpack.c.bf16 %v449, %v448
      %v452 = vunpack.c.l.b16 %v450
      %v453 = vunpack.c.h.b16 %v450
      %v454 = vpack.c.b16 %v452, %v452
      %v455 = vpack.c.b16 %v453, %v453
      %456 = vrot.lane.b32.xlu0 %v454, 20
      %v457 = vpop.permute.xlu0 %456
      %458 = vrot.lane.b32.xlu0 %v455, 20
      %v459 = vpop.permute.xlu0 %458
      %vm462 = vcmask 290048
      %463 = vst.msk [vmem:[%s140] sm:$0xf] %vm462, %v457
      %464 = vst.msk [vmem:[%s140 + $0x4] sm:$0xf] %vm462, %v459
      %467 = vrot.lane.b32.xlu0 %v382, 124
      %v468 = vpop.permute.xlu0 %467
      %469 = vrot.lane.b32.xlu0 %v383, 124
      %v470 = vpop.permute.xlu0 %469
      %v473 = vadd.f32 %v384, %v468
      %v474 = vadd.f32 %v385, %v470
      %v475 = vpack.c.bf16 %v474, %v473
      %v477 = vunpack.c.l.b16 %v475
      %v478 = vunpack.c.h.b16 %v475
      %v479 = vpack.c.b16 %v477, %v477
      %v480 = vpack.c.b16 %v478, %v478
      %481 = vrot.lane.b32.xlu0 %v479, 20
      %v482 = vpop.permute.xlu0 %481
      %483 = vrot.lane.b32.xlu0 %v480, 20
      %v484 = vpop.permute.xlu0 %483
      %vm487 = vcmask 322848
      %488 = vst.msk [vmem:[%s140] sm:$0xf] %vm487, %v482
      %489 = vst.msk [vmem:[%s140 + $0x4] sm:$0xf] %vm487, %v484
      %492 = vrot.lane.b32.xlu0 %v353, 124
      %v493 = vpop.permute.xlu0 %492
      %494 = vrot.lane.b32.xlu0 %v354, 124
      %v495 = vpop.permute.xlu0 %494
      %v498 = vadd.f32 %v355, %v493
      %v499 = vadd.f32 %v356, %v495
      %v500 = vpack.c.bf16 %v499, %v498
      %v502 = vunpack.c.l.b16 %v500
      %v503 = vunpack.c.h.b16 %v500
      %v504 = vpack.c.b16 %v502, %v502
      %v505 = vpack.c.b16 %v503, %v503
      %506 = vrot.lane.b32.xlu0 %v504, 24
      %v507 = vpop.permute.xlu0 %506
      %508 = vrot.lane.b32.xlu0 %v505, 24
      %v509 = vpop.permute.xlu0 %508
      %vm512 = vcmask 355648
      %513 = vst.msk [vmem:[%s140] sm:$0xf] %vm512, %v507
      %514 = vst.msk [vmem:[%s140 + $0x4] sm:$0xf] %vm512, %v509
      %517 = vrot.lane.b32.xlu0 %v324, 124
      %v518 = vpop.permute.xlu0 %517
      %519 = vrot.lane.b32.xlu0 %v325, 124
      %v520 = vpop.permute.xlu0 %519
      %v523 = vadd.f32 %v326, %v518
      %v524 = vadd.f32 %v327, %v520
      %v525 = vpack.c.bf16 %v524, %v523
      %v527 = vunpack.c.l.b16 %v525
      %v528 = vunpack.c.h.b16 %v525
      %v529 = vpack.c.b16 %v527, %v527
      %v530 = vpack.c.b16 %v528, %v528
      %531 = vrot.lane.b32.xlu0 %v529, 24
      %v532 = vpop.permute.xlu0 %531
      %533 = vrot.lane.b32.xlu0 %v530, 24
      %v534 = vpop.permute.xlu0 %533
      %vm537 = vcmask 388448
      %538 = vst.msk [vmem:[%s140] sm:$0xf] %vm537, %v532
      %539 = vst.msk [vmem:[%s140 + $0x4] sm:$0xf] %vm537, %v534
      %542 = vrot.lane.b32.xlu0 %v295, 124
      %v543 = vpop.permute.xlu0 %542
      %544 = vrot.lane.b32.xlu0 %v296, 124
      %v545 = vpop.permute.xlu0 %544
      %v548 = vadd.f32 %v297, %v543
      %v549 = vadd.f32 %v298, %v545
      %v550 = vpack.c.bf16 %v549, %v548
      %v552 = vunpack.c.l.b16 %v550
      %v553 = vunpack.c.h.b16 %v550
      %v554 = vpack.c.b16 %v552, %v552
      %v555 = vpack.c.b16 %v553, %v553
      %556 = vrot.lane.b32.xlu0 %v554, 28
      %v557 = vpop.permute.xlu0 %556
      %558 = vrot.lane.b32.xlu0 %v555, 28
      %v559 = vpop.permute.xlu0 %558
      %vm562 = vcmask 421248
      %563 = vst.msk [vmem:[%s140] sm:$0xf] %vm562, %v557
      %564 = vst.msk [vmem:[%s140 + $0x4] sm:$0xf] %vm562, %v559
      %567 = vrot.lane.b32.xlu0 %v266, 124
      %v568 = vpop.permute.xlu0 %567
      %569 = vrot.lane.b32.xlu0 %v267, 124
      %v570 = vpop.permute.xlu0 %569
      %v573 = vadd.f32 %v268, %v568
      %v574 = vadd.f32 %v269, %v570
      %v575 = vpack.c.bf16 %v574, %v573
      %v577 = vunpack.c.l.b16 %v575
      %v578 = vunpack.c.h.b16 %v575
      %v579 = vpack.c.b16 %v577, %v577
      %v580 = vpack.c.b16 %v578, %v578
      %581 = vrot.lane.b32.xlu0 %v579, 28
      %v582 = vpop.permute.xlu0 %581
      %583 = vrot.lane.b32.xlu0 %v580, 28
      %v584 = vpop.permute.xlu0 %583
      %vm587 = vcmask 454048
      %588 = vst.msk [vmem:[%s140] sm:$0xf] %vm587, %v582
      %589 = vst.msk [vmem:[%s140 + $0x4] sm:$0xf] %vm587, %v584
      %592 = vrot.lane.b32.xlu0 %v237, 124
      %v593 = vpop.permute.xlu0 %592
      %594 = vrot.lane.b32.xlu0 %v238, 124
      %v595 = vpop.permute.xlu0 %594
      %v598 = vadd.f32 %v239, %v593
      %v599 = vadd.f32 %v240, %v595
      %v600 = vpack.c.bf16 %v599, %v598
      %v602 = vunpack.c.l.b16 %v600
      %v603 = vunpack.c.h.b16 %v600
      %v604 = vpack.c.b16 %v602, %v602
      %v605 = vpack.c.b16 %v603, %v603
      %606 = vrot.lane.b32.xlu0 %v604, 32
      %v607 = vpop.permute.xlu0 %606
      %608 = vrot.lane.b32.xlu0 %v605, 32
      %v609 = vpop.permute.xlu0 %608
      %vm612 = vcmask 486848
      %613 = vst.msk [vmem:[%s140] sm:$0xf] %vm612, %v607
      %614 = vst.msk [vmem:[%s140 + $0x4] sm:$0xf] %vm612, %v609
      %v615 = vmul.f32 %v218, 0.0
      %v616 = vmul.f32 %v223, 0.0
      %619 = vrot.lane.b32.xlu0 %v218, 124
      %v620 = vpop.permute.xlu0 %619
      %621 = vrot.lane.b32.xlu0 %v223, 124
      %v622 = vpop.permute.xlu0 %621
      %v625 = vadd.f32 %v615, %v620
      %v626 = vadd.f32 %v616, %v622
      %v627 = vpack.c.bf16 %v626, %v625
      %v629 = vunpack.c.l.b16 %v627
      %v630 = vunpack.c.h.b16 %v627
      %v631 = vpack.c.b16 %v629, %v629
      %v632 = vpack.c.b16 %v630, %v630
      %633 = vrot.lane.b32.xlu0 %v631, 36
      %v634 = vpop.permute.xlu0 %633
      %635 = vrot.lane.b32.xlu0 %v632, 36
      %v636 = vpop.permute.xlu0 %635
      %vm639 = vcmask 519648
      %640 = vst.msk [vmem:[%s140] sm:$0xf] %vm639, %v634
      %641 = vst.msk [vmem:[%s140 + $0x4] sm:$0xf] %vm639, %v636
      %p642 = scmp.lt.s32.totalorder %s13, 1
      %s643 = scalar_select %p642, %s13, 1
      %s644 = smul.addr %s643, 2
      %s645 = smul.addr %s644, 4
      %s646 = scalar_lea.vmem %s2, %s645
      // Predicated region
      $region29: #{up_forward.7} parent=27 // pred_check
        %p647 = pneg %p78
      $region30: #{up_forward.7} parent=27 // pred_check_branch
        %649 = sbr.rel (%p647) target = $region32
      $region31: #{up_forward.7} parent=27 // pred_region
        _
      $region32: #{up_forward.7} parent=27 // pred_fallthru
        _
    $region28: #{up_forward.7} parent=5 // pred_fallthru
      _
    %p650 = scmp.le.s32.totalorder 2, %s8
    // Predicated region
    $region33: #{up_forward.7} parent=5 // pred_check
      %p651 = pneg %p650
    $region34: #{up_forward.7} parent=5 // pred_check_branch
      %653 = sbr.rel (%p651) target = $region36
    $region35: #{up_forward.7} parent=5 // pred_region
      %s654 = ssub.s32 %s8, 2
      // Predicated region
      $region37: #{up_forward.7} parent=35 // pred_check
        %p655 = pneg %p84
      $region38: #{up_forward.7} parent=35 // pred_check_branch
        %657 = sbr.rel (%p655) target = $region40
      $region39: #{up_forward.7} parent=35 // pred_region
        %p658 = scmp.lt.s32.totalorder %s14, 1
        %s659 = scalar_select %p658, %s14, 1
        %s660 = smul.addr %s659, 2
        %s661 = smul.addr %s660, 4
        %s662 = scalar_lea.vmem %s2, %s661
      $region40: #{up_forward.7} parent=35 // pred_fallthru
        _
    $region36: #{up_forward.7} parent=5 // pred_fallthru
      _
  $region6: #{up_forward.7} parent=0 // loop_footer
    %s12 = sadd.s32 1, %s8
  $region7: #{up_forward.7} parent=0 // loop_footer_branch
    %7 = sbr.rel target = $region3
  $region8: #{up_forward.7} parent=0 // loop_exit
    _

// kernel: up_forward.8
$region0: #{up_forward.8}
  #allocation0 [shape = 'u32[]', space=smem, size = 0x4, offset = 0x4, fixed_abs, tag = 'smem constant byte address 0x4 - core index']
  #allocation1 [shape = 'u32[144,128]{1,0:T(1,128)}', space=vmem, size = 0x12000, scoped, tag = 'internal scratch']
  %s0 = inlined_call_operand.vmem [shape: f32[512,4], index: 0, kind: input, shape index: {}]
  %s1 = inlined_call_operand.vmem [shape: bf16[4,128], index: 1, kind: input, shape index: {}]
  %s2 = inlined_call_operand.vmem [shape: bf16[512,4], index: 2, kind: input, shape index: {}]
  %s3 = inlined_call_operand.vmem [shape: bf16[4,128], index: 3, kind: input, shape index: {}]
  %s4 = inlined_call_operand.vmem [shape: f32[1,128], index: 4, kind: input, shape index: {}]
  %s5 = inlined_call_operand.vmem [shape: bf16[512,128], index: 5, kind: output, shape index: {}]
  %s6 = sld [smem:[#allocation0]]
  $region30: #{up_forward.8} parent=0
    _
  %s8 = ssub.s32 1, %s6
  %s9 = scalar_select 0, %s8, %s6
  // Predicated region
  $region2: #{up_forward.8} parent=0 // pred_check
    _
  $region3: #{up_forward.8} parent=0 // pred_check_branch
    %11 = sbr.rel (0) target = $region5
  $region4: #{up_forward.8} parent=0 // pred_region
    _
  $region5: #{up_forward.8} parent=0 // pred_fallthru
    _
  // Predicated region
  $region6: #{up_forward.8} parent=0 // pred_check
    _
  $region7: #{up_forward.8} parent=0 // pred_check_branch
    %13 = sbr.rel (0) target = $region9
  $region8: #{up_forward.8} parent=0 // pred_region
    _
  $region9: #{up_forward.8} parent=0 // pred_fallthru
    _
  // Predicated region
  $region10: #{up_forward.8} parent=0 // pred_check
    _
  $region11: #{up_forward.8} parent=0 // pred_check_branch
    %15 = sbr.rel (0) target = $region13
  $region12: #{up_forward.8} parent=0 // pred_region
    _
  $region13: #{up_forward.8} parent=0 // pred_fallthru
    _
  // Predicated region
  $region14: #{up_forward.8} parent=0 // pred_check
    _
  $region15: #{up_forward.8} parent=0 // pred_check_branch
    %17 = sbr.rel (0) target = $region17
  $region16: #{up_forward.8} parent=0 // pred_region
    _
  $region17: #{up_forward.8} parent=0 // pred_fallthru
    _
  // Predicated region
  $region18: #{up_forward.8} parent=0 // pred_check
    _
  $region19: #{up_forward.8} parent=0 // pred_check_branch
    %19 = sbr.rel (0) target = $region21
  $region20: #{up_forward.8} parent=0 // pred_region
    _
  $region21: #{up_forward.8} parent=0 // pred_fallthru
    _
  %v21 = vld [vmem:[%s0] sm:$0xff]
  %v22 = vld [vmem:[%s0 + $0x8] sm:$0xff]
  %v23 = vld [vmem:[%s0 + $0x10] sm:$0xff]
  %v24 = vld [vmem:[%s0 + $0x18] sm:$0xff]
  %v25 = vld [vmem:[%s0 + $0x20] sm:$0xff]
  %v26 = vld [vmem:[%s0 + $0x28] sm:$0xff]
  %v27 = vld [vmem:[%s0 + $0x30] sm:$0xff]
  %v28 = vld [vmem:[%s0 + $0x38] sm:$0xff]
  %v29 = vld [vmem:[%s0 + $0x40] sm:$0xff]
  %v30 = vld [vmem:[%s0 + $0x48] sm:$0xff]
  %v31 = vld [vmem:[%s0 + $0x50] sm:$0xff]
  %v32 = vld [vmem:[%s0 + $0x58] sm:$0xff]
  %v33 = vld [vmem:[%s0 + $0x60] sm:$0xff]
  %v34 = vld [vmem:[%s0 + $0x68] sm:$0xff]
  %v35 = vld [vmem:[%s0 + $0x70] sm:$0xff]
  %v36 = vld [vmem:[%s0 + $0x78] sm:$0xff]
  %v37 = vld [vmem:[%s0 + $0x80] sm:$0xff]
  %v38 = vld [vmem:[%s0 + $0x88] sm:$0xff]
  %v39 = vld [vmem:[%s0 + $0x90] sm:$0xff]
  %v40 = vld [vmem:[%s0 + $0x98] sm:$0xff]
  %v41 = vld [vmem:[%s0 + $0xa0] sm:$0xff]
  %v42 = vld [vmem:[%s0 + $0xa8] sm:$0xff]
  %v43 = vld [vmem:[%s0 + $0xb0] sm:$0xff]
  %v44 = vld [vmem:[%s0 + $0xb8] sm:$0xff]
  %v45 = vld [vmem:[%s0 + $0xc0] sm:$0xff]
  %v46 = vld [vmem:[%s0 + $0xc8] sm:$0xff]
  %v47 = vld [vmem:[%s0 + $0xd0] sm:$0xff]
  %v48 = vld [vmem:[%s0 + $0xd8] sm:$0xff]
  %v49 = vld [vmem:[%s0 + $0xe0] sm:$0xff]
  %v50 = vld [vmem:[%s0 + $0xe8] sm:$0xff]
  %v51 = vld [vmem:[%s0 + $0xf0] sm:$0xff]
  %v52 = vld [vmem:[%s0 + $0xf8] sm:$0xff]
  %v53 = vld [vmem:[%s0 + $0x100] sm:$0xff]
  %v54 = vld [vmem:[%s0 + $0x108] sm:$0xff]
  %v55 = vld [vmem:[%s0 + $0x110] sm:$0xff]
  %v56 = vld [vmem:[%s0 + $0x118] sm:$0xff]
  %v57 = vld [vmem:[%s0 + $0x120] sm:$0xff]
  %v58 = vld [vmem:[%s0 + $0x128] sm:$0xff]
  %v59 = vld [vmem:[%s0 + $0x130] sm:$0xff]
  %v60 = vld [vmem:[%s0 + $0x138] sm:$0xff]
  %v61 = vld [vmem:[%s0 + $0x140] sm:$0xff]
  %v62 = vld [vmem:[%s0 + $0x148] sm:$0xff]
  %v63 = vld [vmem:[%s0 + $0x150] sm:$0xff]
  %v64 = vld [vmem:[%s0 + $0x158] sm:$0xff]
  %v65 = vld [vmem:[%s0 + $0x160] sm:$0xff]
  %v66 = vld [vmem:[%s0 + $0x168] sm:$0xff]
  %v67 = vld [vmem:[%s0 + $0x170] sm:$0xff]
  %v68 = vld [vmem:[%s0 + $0x178] sm:$0xff]
  %v69 = vld [vmem:[%s0 + $0x180] sm:$0xff]
  %v70 = vld [vmem:[%s0 + $0x188] sm:$0xff]
  %v71 = vld [vmem:[%s0 + $0x190] sm:$0xff]
  %v72 = vld [vmem:[%s0 + $0x198] sm:$0xff]
  %v73 = vld [vmem:[%s0 + $0x1a0] sm:$0xff]
  %v74 = vld [vmem:[%s0 + $0x1a8] sm:$0xff]
  %v75 = vld [vmem:[%s0 + $0x1b0] sm:$0xff]
  %v76 = vld [vmem:[%s0 + $0x1b8] sm:$0xff]
  %v77 = vld [vmem:[%s0 + $0x1c0] sm:$0xff]
  %v78 = vld [vmem:[%s0 + $0x1c8] sm:$0xff]
  %v79 = vld [vmem:[%s0 + $0x1d0] sm:$0xff]
  %v80 = vld [vmem:[%s0 + $0x1d8] sm:$0xff]
  %v81 = vld [vmem:[%s0 + $0x1e0] sm:$0xff]
  %v82 = vld [vmem:[%s0 + $0x1e8] sm:$0xff]
  %v83 = vld [vmem:[%s0 + $0x1f0] sm:$0xff]
  %v84 = vld [vmem:[%s0 + $0x1f8] sm:$0xff]
  %v85 = vpack.c.bf16 %v22, %v21
  %v86 = vpack.c.bf16 %v24, %v23
  %v87 = vpack.c.bf16 %v26, %v25
  %v88 = vpack.c.bf16 %v28, %v27
  %v89 = vpack.c.bf16 %v30, %v29
  %v90 = vpack.c.bf16 %v32, %v31
  %v91 = vpack.c.bf16 %v34, %v33
  %v92 = vpack.c.bf16 %v36, %v35
  %v93 = vpack.c.bf16 %v38, %v37
  %v94 = vpack.c.bf16 %v40, %v39
  %v95 = vpack.c.bf16 %v42, %v41
  %v96 = vpack.c.bf16 %v44, %v43
  %v97 = vpack.c.bf16 %v46, %v45
  %v98 = vpack.c.bf16 %v48, %v47
  %v99 = vpack.c.bf16 %v50, %v49
  %v100 = vpack.c.bf16 %v52, %v51
  %v101 = vpack.c.bf16 %v54, %v53
  %v102 = vpack.c.bf16 %v56, %v55
  %v103 = vpack.c.bf16 %v58, %v57
  %v104 = vpack.c.bf16 %v60, %v59
  %v105 = vpack.c.bf16 %v62, %v61
  %v106 = vpack.c.bf16 %v64, %v63
  %v107 = vpack.c.bf16 %v66, %v65
  %v108 = vpack.c.bf16 %v68, %v67
  %v109 = vpack.c.bf16 %v70, %v69
  %v110 = vpack.c.bf16 %v72, %v71
  %v111 = vpack.c.bf16 %v74, %v73
  %v112 = vpack.c.bf16 %v76, %v75
  %v113 = vpack.c.bf16 %v78, %v77
  %v114 = vpack.c.bf16 %v80, %v79
  %v115 = vpack.c.bf16 %v82, %v81
  %v116 = vpack.c.bf16 %v84, %v83
  %v117 = vld [vmem:[%s1] sm:$0x3]
  %v118 = vld [vmem:[%s2] sm:$0xf]
  %v119 = vld [vmem:[%s2 + $0x4] sm:$0xf]
  %v120 = vld [vmem:[%s2 + $0x8] sm:$0xf]
  %v121 = vld [vmem:[%s2 + $0xc] sm:$0xf]
  %v122 = vld [vmem:[%s2 + $0x10] sm:$0xf]
  %v123 = vld [vmem:[%s2 + $0x14] sm:$0xf]
  %v124 = vld [vmem:[%s2 + $0x18] sm:$0xf]
  %v125 = vld [vmem:[%s2 + $0x1c] sm:$0xf]
  %v126 = vld [vmem:[%s2 + $0x20] sm:$0xf]
  %v127 = vld [vmem:[%s2 + $0x24] sm:$0xf]
  %v128 = vld [vmem:[%s2 + $0x28] sm:$0xf]
  %v129 = vld [vmem:[%s2 + $0x2c] sm:$0xf]
  %v130 = vld [vmem:[%s2 + $0x30] sm:$0xf]
  %v131 = vld [vmem:[%s2 + $0x34] sm:$0xf]
  %v132 = vld [vmem:[%s2 + $0x38] sm:$0xf]
  %v133 = vld [vmem:[%s2 + $0x3c] sm:$0xf]
  %v134 = vld [vmem:[%s2 + $0x40] sm:$0xf]
  %v135 = vld [vmem:[%s2 + $0x44] sm:$0xf]
  %v136 = vld [vmem:[%s2 + $0x48] sm:$0xf]
  %v137 = vld [vmem:[%s2 + $0x4c] sm:$0xf]
  %v138 = vld [vmem:[%s2 + $0x50] sm:$0xf]
  %v139 = vld [vmem:[%s2 + $0x54] sm:$0xf]
  %v140 = vld [vmem:[%s2 + $0x58] sm:$0xf]
  %v141 = vld [vmem:[%s2 + $0x5c] sm:$0xf]
  %v142 = vld [vmem:[%s2 + $0x60] sm:$0xf]
  %v143 = vld [vmem:[%s2 + $0x64] sm:$0xf]
  %v144 = vld [vmem:[%s2 + $0x68] sm:$0xf]
  %v145 = vld [vmem:[%s2 + $0x6c] sm:$0xf]
  %v146 = vld [vmem:[%s2 + $0x70] sm:$0xf]
  %v147 = vld [vmem:[%s2 + $0x74] sm:$0xf]
  %v148 = vld [vmem:[%s2 + $0x78] sm:$0xf]
  %v149 = vld [vmem:[%s2 + $0x7c] sm:$0xf]
  %v150 = vld [vmem:[%s2 + $0x80] sm:$0xf]
  %v151 = vld [vmem:[%s2 + $0x84] sm:$0xf]
  %v152 = vld [vmem:[%s2 + $0x88] sm:$0xf]
  %v153 = vld [vmem:[%s2 + $0x8c] sm:$0xf]
  %v154 = vld [vmem:[%s2 + $0x90] sm:$0xf]
  %v155 = vld [vmem:[%s2 + $0x94] sm:$0xf]
  %v156 = vld [vmem:[%s2 + $0x98] sm:$0xf]
  %v157 = vld [vmem:[%s2 + $0x9c] sm:$0xf]
  %v158 = vld [vmem:[%s2 + $0xa0] sm:$0xf]
  %v159 = vld [vmem:[%s2 + $0xa4] sm:$0xf]
  %v160 = vld [vmem:[%s2 + $0xa8] sm:$0xf]
  %v161 = vld [vmem:[%s2 + $0xac] sm:$0xf]
  %v162 = vld [vmem:[%s2 + $0xb0] sm:$0xf]
  %v163 = vld [vmem:[%s2 + $0xb4] sm:$0xf]
  %v164 = vld [vmem:[%s2 + $0xb8] sm:$0xf]
  %v165 = vld [vmem:[%s2 + $0xbc] sm:$0xf]
  %v166 = vld [vmem:[%s2 + $0xc0] sm:$0xf]
  %v167 = vld [vmem:[%s2 + $0xc4] sm:$0xf]
  %v168 = vld [vmem:[%s2 + $0xc8] sm:$0xf]
  %v169 = vld [vmem:[%s2 + $0xcc] sm:$0xf]
  %v170 = vld [vmem:[%s2 + $0xd0] sm:$0xf]
  %v171 = vld [vmem:[%s2 + $0xd4] sm:$0xf]
  %v172 = vld [vmem:[%s2 + $0xd8] sm:$0xf]
  %v173 = vld [vmem:[%s2 + $0xdc] sm:$0xf]
  %v174 = vld [vmem:[%s2 + $0xe0] sm:$0xf]
  %v175 = vld [vmem:[%s2 + $0xe4] sm:$0xf]
  %v176 = vld [vmem:[%s2 + $0xe8] sm:$0xf]
  %v177 = vld [vmem:[%s2 + $0xec] sm:$0xf]
  %v178 = vld [vmem:[%s2 + $0xf0] sm:$0xf]
  %v179 = vld [vmem:[%s2 + $0xf4] sm:$0xf]
  %v180 = vld [vmem:[%s2 + $0xf8] sm:$0xf]
  %v181 = vld [vmem:[%s2 + $0xfc] sm:$0xf]
  %v182 = vld [vmem:[%s3] sm:$0x3]
  %v247 = vunpack.c.l.b16 %v118
  %v248 = vunpack.c.l.b16 %v119
  %v249 = vunpack.c.l.b16 %v120
  %v250 = vunpack.c.l.b16 %v121
  %v251 = vunpack.c.l.b16 %v122
  %v252 = vunpack.c.l.b16 %v123
  %v253 = vunpack.c.l.b16 %v124
  %v254 = vunpack.c.l.b16 %v125
  %v255 = vunpack.c.l.b16 %v126
  %v256 = vunpack.c.l.b16 %v127
  %v257 = vunpack.c.l.b16 %v128
  %v258 = vunpack.c.l.b16 %v129
  %v259 = vunpack.c.l.b16 %v130
  %v260 = vunpack.c.l.b16 %v131
  %v261 = vunpack.c.l.b16 %v132
  %v262 = vunpack.c.l.b16 %v133
  %v263 = vunpack.c.l.b16 %v134
  %v264 = vunpack.c.l.b16 %v135
  %v265 = vunpack.c.l.b16 %v136
  %v266 = vunpack.c.l.b16 %v137
  %v267 = vunpack.c.l.b16 %v138
  %v268 = vunpack.c.l.b16 %v139
  %v269 = vunpack.c.l.b16 %v140
  %v270 = vunpack.c.l.b16 %v141
  %v271 = vunpack.c.l.b16 %v142
  %v272 = vunpack.c.l.b16 %v143
  %v273 = vunpack.c.l.b16 %v144
  %v274 = vunpack.c.l.b16 %v145
  %v275 = vunpack.c.l.b16 %v146
  %v276 = vunpack.c.l.b16 %v147
  %v277 = vunpack.c.l.b16 %v148
  %v278 = vunpack.c.l.b16 %v149
  %v279 = vunpack.c.l.b16 %v150
  %v280 = vunpack.c.l.b16 %v151
  %v281 = vunpack.c.l.b16 %v152
  %v282 = vunpack.c.l.b16 %v153
  %v283 = vunpack.c.l.b16 %v154
  %v284 = vunpack.c.l.b16 %v155
  %v285 = vunpack.c.l.b16 %v156
  %v286 = vunpack.c.l.b16 %v157
  %v287 = vunpack.c.l.b16 %v158
  %v288 = vunpack.c.l.b16 %v159
  %v289 = vunpack.c.l.b16 %v160
  %v290 = vunpack.c.l.b16 %v161
  %v291 = vunpack.c.l.b16 %v162
  %v292 = vunpack.c.l.b16 %v163
  %v293 = vunpack.c.l.b16 %v164
  %v294 = vunpack.c.l.b16 %v165
  %v295 = vunpack.c.l.b16 %v166
  %v296 = vunpack.c.l.b16 %v167
  %v297 = vunpack.c.l.b16 %v168
  %v298 = vunpack.c.l.b16 %v169
  %v299 = vunpack.c.l.b16 %v170
  %v300 = vunpack.c.l.b16 %v171
  %v301 = vunpack.c.l.b16 %v172
  %v302 = vunpack.c.l.b16 %v173
  %v303 = vunpack.c.l.b16 %v174
  %v304 = vunpack.c.l.b16 %v175
  %v305 = vunpack.c.l.b16 %v176
  %v306 = vunpack.c.l.b16 %v177
  %v307 = vunpack.c.l.b16 %v178
  %v308 = vunpack.c.l.b16 %v179
  %v309 = vunpack.c.l.b16 %v180
  %v310 = vunpack.c.l.b16 %v181
  %v311 = vpack.c.b16 %v248, %v247
  %v312 = vpack.c.b16 %v250, %v249
  %v313 = vpack.c.b16 %v252, %v251
  %v314 = vpack.c.b16 %v254, %v253
  %v315 = vpack.c.b16 %v256, %v255
  %v316 = vpack.c.b16 %v258, %v257
  %v317 = vpack.c.b16 %v260, %v259
  %v318 = vpack.c.b16 %v262, %v261
  %v319 = vpack.c.b16 %v264, %v263
  %v320 = vpack.c.b16 %v266, %v265
  %v321 = vpack.c.b16 %v268, %v267
  %v322 = vpack.c.b16 %v270, %v269
  %v323 = vpack.c.b16 %v272, %v271
  %v324 = vpack.c.b16 %v274, %v273
  %v325 = vpack.c.b16 %v276, %v275
  %v326 = vpack.c.b16 %v278, %v277
  %v327 = vpack.c.b16 %v280, %v279
  %v328 = vpack.c.b16 %v282, %v281
  %v329 = vpack.c.b16 %v284, %v283
  %v330 = vpack.c.b16 %v286, %v285
  %v331 = vpack.c.b16 %v288, %v287
  %v332 = vpack.c.b16 %v290, %v289
  %v333 = vpack.c.b16 %v292, %v291
  %v334 = vpack.c.b16 %v294, %v293
  %v335 = vpack.c.b16 %v296, %v295
  %v336 = vpack.c.b16 %v298, %v297
  %v337 = vpack.c.b16 %v300, %v299
  %v338 = vpack.c.b16 %v302, %v301
  %v339 = vpack.c.b16 %v304, %v303
  %v340 = vpack.c.b16 %v306, %v305
  %v341 = vpack.c.b16 %v308, %v307
  %v342 = vpack.c.b16 %v310, %v309
  %vm343 = vcmask 31744
  %v345 = vsel %vm343, %v311, 0
  %v348 = vsel %vm343, %v312, 0
  %v351 = vsel %vm343, %v313, 0
  %v354 = vsel %vm343, %v314, 0
  %v357 = vsel %vm343, %v315, 0
  %v360 = vsel %vm343, %v316, 0
  %v363 = vsel %vm343, %v317, 0
  %v366 = vsel %vm343, %v318, 0
  %v369 = vsel %vm343, %v319, 0
  %v372 = vsel %vm343, %v320, 0
  %v375 = vsel %vm343, %v321, 0
  %v378 = vsel %vm343, %v322, 0
  %v381 = vsel %vm343, %v323, 0
  %v384 = vsel %vm343, %v324, 0
  %v387 = vsel %vm343, %v325, 0
  %v390 = vsel %vm343, %v326, 0
  %v393 = vsel %vm343, %v327, 0
  %v396 = vsel %vm343, %v328, 0
  %v399 = vsel %vm343, %v329, 0
  %v402 = vsel %vm343, %v330, 0
  %v405 = vsel %vm343, %v331, 0
  %v408 = vsel %vm343, %v332, 0
  %v411 = vsel %vm343, %v333, 0
  %v414 = vsel %vm343, %v334, 0
  %v417 = vsel %vm343, %v335, 0
  %v420 = vsel %vm343, %v336, 0
  %v423 = vsel %vm343, %v337, 0
  %v426 = vsel %vm343, %v338, 0
  %v429 = vsel %vm343, %v339, 0
  %v432 = vsel %vm343, %v340, 0
  %v435 = vsel %vm343, %v341, 0
  %v438 = vsel %vm343, %v342, 0
  %vm440 = vcmask 1041408
  %v442 = vsel %vm440, %v182, 0
  %444 = vmatprep.subr.bf16.mxu0 0
  %445 = vmatpush1.bf16.msra.mxu0 0
  %446 = vmatprep.subr.bf16.mxu0 0
  %447 = vmatpush1.bf16.msra.mxu0 0
  %448 = vmatprep.subr.bf16.mxu0 0
  %449 = vmatpush1.bf16.msra.mxu0 0
  %450 = vmatprep.subr.bf16.mxu0 0
  %451 = vmatpush1.bf16.msra.mxu0 0
  %452 = vmatprep.subr.bf16.mxu0 0
  %453 = vmatpush1.bf16.msra.mxu0 0
  %454 = vmatprep.subr.bf16.mxu0 0
  %455 = vmatpush1.bf16.msra.mxu0 0
  %456 = vmatprep.subr.bf16.mxu0 0
  %457 = vmatpush1.bf16.msra.mxu0 0
  %458 = vmatprep.subr.bf16.mxu0 0
  %459 = vmatpush1.bf16.msra.mxu0 %v442
  %460 = vmatprep.subr.bf16.mxu0 0
  %461 = vmatpush2.bf16.msra.mxu0 0
  %462 = vmatprep.subr.bf16.mxu0 0
  %463 = vmatpush2.bf16.msra.mxu0 0
  %464 = vmatprep.subr.bf16.mxu0 0
  %465 = vmatpush2.bf16.msra.mxu0 0
  %466 = vmatprep.subr.bf16.mxu0 0
  %467 = vmatpush2.bf16.msra.mxu0 0
  %468 = vmatprep.subr.bf16.mxu0 0
  %469 = vmatpush2.bf16.msra.mxu0 0
  %470 = vmatprep.subr.bf16.mxu0 0
  %471 = vmatpush2.bf16.msra.mxu0 0
  %472 = vmatprep.subr.bf16.mxu0 0
  %473 = vmatpush2.bf16.msra.mxu0 0
  %474 = vmatprep.subr.bf16.mxu0 0
  %475 = vmatpush2.bf16.msra.mxu0 0
  %476 = vmatprep.mubr.bf16.mxu0 0
  %477 = vmatmul.mubr.bf16.gmra.mxu0 %v345
  %v478 = vpop.f32.mrf.mxu0
  %v479 = vadd.f32 0.0, %v478
  %v480 = vpop.f32.mrf.mxu0
  %v481 = vpop.f32.mrf.mxu0
  %v482 = vadd.f32 0.0, %v481
  %v483 = vpop.f32.mrf.mxu0
  %484 = vmatprep.mubr.bf16.mxu0 0
  %485 = vmatmul.mubr.bf16.gmra.mxu0 %v348
  %v486 = vpop.f32.mrf.mxu0
  %v487 = vadd.f32 0.0, %v486
  %v488 = vpop.f32.mrf.mxu0
  %v489 = vpop.f32.mrf.mxu0
  %v490 = vadd.f32 0.0, %v489
  %v491 = vpop.f32.mrf.mxu0
  %492 = vmatprep.mubr.bf16.mxu0 0
  %493 = vmatmul.mubr.bf16.gmra.mxu0 %v351
  %v494 = vpop.f32.mrf.mxu0
  %v495 = vadd.f32 0.0, %v494
  %v496 = vpop.f32.mrf.mxu0
  %v497 = vpop.f32.mrf.mxu0
  %v498 = vadd.f32 0.0, %v497
  %v499 = vpop.f32.mrf.mxu0
  %500 = vmatprep.mubr.bf16.mxu0 0
  %501 = vmatmul.mubr.bf16.gmra.mxu0 %v354
  %v502 = vpop.f32.mrf.mxu0
  %v503 = vadd.f32 0.0, %v502
  %v504 = vpop.f32.mrf.mxu0
  %v505 = vpop.f32.mrf.mxu0
  %v506 = vadd.f32 0.0, %v505
  %v507 = vpop.f32.mrf.mxu0
  %508 = vmatprep.mubr.bf16.mxu0 0
  %509 = vmatmul.mubr.bf16.gmra.mxu0 %v357
  %v510 = vpop.f32.mrf.mxu0
  %v511 = vadd.f32 0.0, %v510
  %v512 = vpop.f32.mrf.mxu0
  %v513 = vpop.f32.mrf.mxu0
  %v514 = vadd.f32 0.0, %v513
  %v515 = vpop.f32.mrf.mxu0
  %516 = vmatprep.mubr.bf16.mxu0 0
  %517 = vmatmul.mubr.bf16.gmra.mxu0 %v360
  %v518 = vpop.f32.mrf.mxu0
  %v519 = vadd.f32 0.0, %v518
  %v520 = vpop.f32.mrf.mxu0
  %v521 = vpop.f32.mrf.mxu0
  %v522 = vadd.f32 0.0, %v521
  %v523 = vpop.f32.mrf.mxu0
  %524 = vmatprep.mubr.bf16.mxu0 0
  %525 = vmatmul.mubr.bf16.gmra.mxu0 %v363
  %v526 = vpop.f32.mrf.mxu0
  %v527 = vadd.f32 0.0, %v526
  %v528 = vpop.f32.mrf.mxu0
  %v529 = vpop.f32.mrf.mxu0
  %v530 = vadd.f32 0.0, %v529
  %v531 = vpop.f32.mrf.mxu0
  %532 = vmatprep.mubr.bf16.mxu0 0
  %533 = vmatmul.mubr.bf16.gmra.mxu0 %v366
  %v534 = vpop.f32.mrf.mxu0
  %v535 = vadd.f32 0.0, %v534
  %v536 = vpop.f32.mrf.mxu0
  %v537 = vpop.f32.mrf.mxu0
  %v538 = vadd.f32 0.0, %v537
  %v539 = vpop.f32.mrf.mxu0
  %540 = vmatprep.mubr.bf16.mxu0 0
  %541 = vmatmul.mubr.bf16.gmra.mxu0 %v369
  %v542 = vpop.f32.mrf.mxu0
  %v543 = vadd.f32 0.0, %v542
  %v544 = vpop.f32.mrf.mxu0
  %v545 = vpop.f32.mrf.mxu0
  %v546 = vadd.f32 0.0, %v545
  %v547 = vpop.f32.mrf.mxu0
  %548 = vmatprep.mubr.bf16.mxu0 0
  %549 = vmatmul.mubr.bf16.gmra.mxu0 %v372
  %v550 = vpop.f32.mrf.mxu0
  %v551 = vadd.f32 0.0, %v550
  %v552 = vpop.f32.mrf.mxu0
  %v553 = vpop.f32.mrf.mxu0
  %v554 = vadd.f32 0.0, %v553
  %v555 = vpop.f32.mrf.mxu0
  %556 = vmatprep.mubr.bf16.mxu0 0
  %557 = vmatmul.mubr.bf16.gmra.mxu0 %v375
  %v558 = vpop.f32.mrf.mxu0
  %v559 = vadd.f32 0.0, %v558
  %v560 = vpop.f32.mrf.mxu0
  %v561 = vpop.f32.mrf.mxu0
  %v562 = vadd.f32 0.0, %v561
  %v563 = vpop.f32.mrf.mxu0
  %564 = vmatprep.mubr.bf16.mxu0 0
  %565 = vmatmul.mubr.bf16.gmra.mxu0 %v378
  %v566 = vpop.f32.mrf.mxu0
  %v567 = vadd.f32 0.0, %v566
  %v568 = vpop.f32.mrf.mxu0
  %v569 = vpop.f32.mrf.mxu0
  %v570 = vadd.f32 0.0, %v569
  %v571 = vpop.f32.mrf.mxu0
  %572 = vmatprep.mubr.bf16.mxu0 0
  %573 = vmatmul.mubr.bf16.gmra.mxu0 %v381
  %v574 = vpop.f32.mrf.mxu0
  %v575 = vadd.f32 0.0, %v574
  %v576 = vpop.f32.mrf.mxu0
  %v577 = vpop.f32.mrf.mxu0
  %v578 = vadd.f32 0.0, %v577
  %v579 = vpop.f32.mrf.mxu0
  %580 = vmatprep.mubr.bf16.mxu0 0
  %581 = vmatmul.mubr.bf16.gmra.mxu0 %v384
  %v582 = vpop.f32.mrf.mxu0
  %v583 = vadd.f32 0.0, %v582
  %v584 = vpop.f32.mrf.mxu0
  %v585 = vpop.f32.mrf.mxu0
  %v586 = vadd.f32 0.0, %v585
  %v587 = vpop.f32.mrf.mxu0
  %588 = vmatprep.mubr.bf16.mxu0 0
  %589 = vmatmul.mubr.bf16.gmra.mxu0 %v387
  %v590 = vpop.f32.mrf.mxu0
  %v591 = vadd.f32 0.0, %v590
  %v592 = vpop.f32.mrf.mxu0
  %v593 = vpop.f32.mrf.mxu0
  %v594 = vadd.f32 0.0, %v593
  %v595 = vpop.f32.mrf.mxu0
  %596 = vmatprep.mubr.bf16.mxu0 0
  %597 = vmatmul.mubr.bf16.gmra.mxu0 %v390
  %v598 = vpop.f32.mrf.mxu0
  %v599 = vadd.f32 0.0, %v598
  %v600 = vpop.f32.mrf.mxu0
  %v601 = vpop.f32.mrf.mxu0
  %v602 = vadd.f32 0.0, %v601
  %v603 = vpop.f32.mrf.mxu0
  %604 = vmatprep.mubr.bf16.mxu0 0
  %605 = vmatmul.mubr.bf16.gmra.mxu0 %v393
  %v606 = vpop.f32.mrf.mxu0
  %v607 = vadd.f32 0.0, %v606
  %v608 = vpop.f32.mrf.mxu0
  %v609 = vpop.f32.mrf.mxu0
  %v610 = vadd.f32 0.0, %v609
  %v611 = vpop.f32.mrf.mxu0
  %612 = vmatprep.mubr.bf16.mxu0 0
  %613 = vmatmul.mubr.bf16.gmra.mxu0 %v396
  %v614 = vpop.f32.mrf.mxu0
  %v615 = vadd.f32 0.0, %v614
  %v616 = vpop.f32.mrf.mxu0
  %v617 = vpop.f32.mrf.mxu0
  %v618 = vadd.f32 0.0, %v617
  %v619 = vpop.f32.mrf.mxu0
  %620 = vmatprep.mubr.bf16.mxu0 0
  %621 = vmatmul.mubr.bf16.gmra.mxu0 %v399
  %v622 = vpop.f32.mrf.mxu0
  %v623 = vadd.f32 0.0, %v622
  %v624 = vpop.f32.mrf.mxu0
  %v625 = vpop.f32.mrf.mxu0
  %v626 = vadd.f32 0.0, %v625
  %v627 = vpop.f32.mrf.mxu0
  %628 = vmatprep.mubr.bf16.mxu0 0
  %629 = vmatmul.mubr.bf16.gmra.mxu0 %v402
  %v630 = vpop.f32.mrf.mxu0
  %v631 = vadd.f32 0.0, %v630
  %v632 = vpop.f32.mrf.mxu0
  %v633 = vpop.f32.mrf.mxu0
  %v634 = vadd.f32 0.0, %v633
  %v635 = vpop.f32.mrf.mxu0
  %636 = vmatprep.mubr.bf16.mxu0 0
  %637 = vmatmul.mubr.bf16.gmra.mxu0 %v405
  %v638 = vpop.f32.mrf.mxu0
  %v639 = vadd.f32 0.0, %v638
  %v640 = vpop.f32.mrf.mxu0
  %v641 = vpop.f32.mrf.mxu0
  %v642 = vadd.f32 0.0, %v641
  %v643 = vpop.f32.mrf.mxu0
  %644 = vmatprep.mubr.bf16.mxu0 0
  %645 = vmatmul.mubr.bf16.gmra.mxu0 %v408
  %v646 = vpop.f32.mrf.mxu0
  %v647 = vadd.f32 0.0, %v646
  %v648 = vpop.f32.mrf.mxu0
  %v649 = vpop.f32.mrf.mxu0
  %v650 = vadd.f32 0.0, %v649
  %v651 = vpop.f32.mrf.mxu0
  %652 = vmatprep.mubr.bf16.mxu0 0
  %653 = vmatmul.mubr.bf16.gmra.mxu0 %v411
  %v654 = vpop.f32.mrf.mxu0
  %v655 = vadd.f32 0.0, %v654
  %v656 = vpop.f32.mrf.mxu0
  %v657 = vpop.f32.mrf.mxu0
  %v658 = vadd.f32 0.0, %v657
  %v659 = vpop.f32.mrf.mxu0
  %660 = vmatprep.mubr.bf16.mxu0 0
  %661 = vmatmul.mubr.bf16.gmra.mxu0 %v414
  %v662 = vpop.f32.mrf.mxu0
  %v663 = vadd.f32 0.0, %v662
  %v664 = vpop.f32.mrf.mxu0
  %v665 = vpop.f32.mrf.mxu0
  %v666 = vadd.f32 0.0, %v665
  %v667 = vpop.f32.mrf.mxu0
  %668 = vmatprep.mubr.bf16.mxu0 0
  %669 = vmatmul.mubr.bf16.gmra.mxu0 %v417
  %v670 = vpop.f32.mrf.mxu0
  %v671 = vadd.f32 0.0, %v670
  %v672 = vpop.f32.mrf.mxu0
  %v673 = vpop.f32.mrf.mxu0
  %v674 = vadd.f32 0.0, %v673
  %v675 = vpop.f32.mrf.mxu0
  %676 = vmatprep.mubr.bf16.mxu0 0
  %677 = vmatmul.mubr.bf16.gmra.mxu0 %v420
  %v678 = vpop.f32.mrf.mxu0
  %v679 = vadd.f32 0.0, %v678
  %v680 = vpop.f32.mrf.mxu0
  %v681 = vpop.f32.mrf.mxu0
  %v682 = vadd.f32 0.0, %v681
  %v683 = vpop.f32.mrf.mxu0
  %684 = vmatprep.mubr.bf16.mxu0 0
  %685 = vmatmul.mubr.bf16.gmra.mxu0 %v423
  %v686 = vpop.f32.mrf.mxu0
  %v687 = vadd.f32 0.0, %v686
  %v688 = vpop.f32.mrf.mxu0
  %v689 = vpop.f32.mrf.mxu0
  %v690 = vadd.f32 0.0, %v689
  %v691 = vpop.f32.mrf.mxu0
  %692 = vmatprep.mubr.bf16.mxu0 0
  %693 = vmatmul.mubr.bf16.gmra.mxu0 %v426
  %v694 = vpop.f32.mrf.mxu0
  %v695 = vadd.f32 0.0, %v694
  %v696 = vpop.f32.mrf.mxu0
  %v697 = vpop.f32.mrf.mxu0
  %v698 = vadd.f32 0.0, %v697
  %v699 = vpop.f32.mrf.mxu0
  %700 = vmatprep.mubr.bf16.mxu0 0
  %701 = vmatmul.mubr.bf16.gmra.mxu0 %v429
  %v702 = vpop.f32.mrf.mxu0
  %v703 = vadd.f32 0.0, %v702
  %v704 = vpop.f32.mrf.mxu0
  %v705 = vpop.f32.mrf.mxu0
  %v706 = vadd.f32 0.0, %v705
  %v707 = vpop.f32.mrf.mxu0
  %708 = vmatprep.mubr.bf16.mxu0 0
  %709 = vmatmul.mubr.bf16.gmra.mxu0 %v432
  %v710 = vpop.f32.mrf.mxu0
  %v711 = vadd.f32 0.0, %v710
  %v712 = vpop.f32.mrf.mxu0
  %v713 = vpop.f32.mrf.mxu0
  %v714 = vadd.f32 0.0, %v713
  %v715 = vpop.f32.mrf.mxu0
  %716 = vmatprep.mubr.bf16.mxu0 0
  %717 = vmatmul.mubr.bf16.gmra.mxu0 %v435
  %v718 = vpop.f32.mrf.mxu0
  %v719 = vadd.f32 0.0, %v718
  %v720 = vpop.f32.mrf.mxu0
  %v721 = vpop.f32.mrf.mxu0
  %v722 = vadd.f32 0.0, %v721
  %v723 = vpop.f32.mrf.mxu0
  %724 = vmatprep.mubr.bf16.mxu0 0
  %725 = vmatmul.mubr.bf16.gmra.mxu0 %v438
  %v726 = vpop.f32.mrf.mxu0
  %v727 = vadd.f32 0.0, %v726
  %v728 = vpop.f32.mrf.mxu0
  %v729 = vpop.f32.mrf.mxu0
  %v730 = vadd.f32 0.0, %v729
  %v731 = vpop.f32.mrf.mxu0
  %732 = vdwg.mxu0
  %v734 = vsel %vm343, %v85, 0
  %v737 = vsel %vm343, %v86, 0
  %v740 = vsel %vm343, %v87, 0
  %v743 = vsel %vm343, %v88, 0
  %v746 = vsel %vm343, %v89, 0
  %v749 = vsel %vm343, %v90, 0
  %v752 = vsel %vm343, %v91, 0
  %v755 = vsel %vm343, %v92, 0
  %v758 = vsel %vm343, %v93, 0
  %v761 = vsel %vm343, %v94, 0
  %v764 = vsel %vm343, %v95, 0
  %v767 = vsel %vm343, %v96, 0
  %v770 = vsel %vm343, %v97, 0
  %v773 = vsel %vm343, %v98, 0
  %v776 = vsel %vm343, %v99, 0
  %v779 = vsel %vm343, %v100, 0
  %v782 = vsel %vm343, %v101, 0
  %v785 = vsel %vm343, %v102, 0
  %v788 = vsel %vm343, %v103, 0
  %v791 = vsel %vm343, %v104, 0
  %v794 = vsel %vm343, %v105, 0
  %v797 = vsel %vm343, %v106, 0
  %v800 = vsel %vm343, %v107, 0
  %v803 = vsel %vm343, %v108, 0
  %v806 = vsel %vm343, %v109, 0
  %v809 = vsel %vm343, %v110, 0
  %v812 = vsel %vm343, %v111, 0
  %v815 = vsel %vm343, %v112, 0
  %v818 = vsel %vm343, %v113, 0
  %v821 = vsel %vm343, %v114, 0
  %v824 = vsel %vm343, %v115, 0
  %v827 = vsel %vm343, %v116, 0
  %v830 = vsel %vm440, %v117, 0
  %832 = vmatprep.subr.bf16.mxu0 0
  %833 = vmatpush1.bf16.msra.mxu0 0
  %834 = vmatprep.subr.bf16.mxu0 0
  %835 = vmatpush1.bf16.msra.mxu0 0
  %836 = vmatprep.subr.bf16.mxu0 0
  %837 = vmatpush1.bf16.msra.mxu0 0
  %838 = vmatprep.subr.bf16.mxu0 0
  %839 = vmatpush1.bf16.msra.mxu0 0
  %840 = vmatprep.subr.bf16.mxu0 0
  %841 = vmatpush1.bf16.msra.mxu0 0
  %842 = vmatprep.subr.bf16.mxu0 0
  %843 = vmatpush1.bf16.msra.mxu0 0
  %844 = vmatprep.subr.bf16.mxu0 0
  %845 = vmatpush1.bf16.msra.mxu0 0
  %846 = vmatprep.subr.bf16.mxu0 0
  %847 = vmatpush1.bf16.msra.mxu0 %v830
  %848 = vmatprep.subr.bf16.mxu0 0
  %849 = vmatpush2.bf16.msra.mxu0 0
  %850 = vmatprep.subr.bf16.mxu0 0
  %851 = vmatpush2.bf16.msra.mxu0 0
  %852 = vmatprep.subr.bf16.mxu0 0
  %853 = vmatpush2.bf16.msra.mxu0 0
  %854 = vmatprep.subr.bf16.mxu0 0
  %855 = vmatpush2.bf16.msra.mxu0 0
  %856 = vmatprep.subr.bf16.mxu0 0
  %857 = vmatpush2.bf16.msra.mxu0 0
  %858 = vmatprep.subr.bf16.mxu0 0
  %859 = vmatpush2.bf16.msra.mxu0 0
  %860 = vmatprep.subr.bf16.mxu0 0
  %861 = vmatpush2.bf16.msra.mxu0 0
  %862 = vmatprep.subr.bf16.mxu0 0
  %863 = vmatpush2.bf16.msra.mxu0 0
  %864 = vmatprep.mubr.bf16.mxu0 0
  %865 = vmatmul.mubr.bf16.gmra.mxu0 %v734
  %v866 = vpop.f32.mrf.mxu0
  %v867 = vadd.f32 %v479, %v866
  %v868 = vpop.f32.mrf.mxu0
  %v869 = vpop.f32.mrf.mxu0
  %v870 = vadd.f32 %v482, %v869
  %v871 = vpop.f32.mrf.mxu0
  %872 = vmatprep.mubr.bf16.mxu0 0
  %873 = vmatmul.mubr.bf16.gmra.mxu0 %v737
  %v874 = vpop.f32.mrf.mxu0
  %v875 = vadd.f32 %v487, %v874
  %v876 = vpop.f32.mrf.mxu0
  %v877 = vpop.f32.mrf.mxu0
  %v878 = vadd.f32 %v490, %v877
  %v879 = vpop.f32.mrf.mxu0
  %880 = vmatprep.mubr.bf16.mxu0 0
  %881 = vmatmul.mubr.bf16.gmra.mxu0 %v740
  %v882 = vpop.f32.mrf.mxu0
  %v883 = vadd.f32 %v495, %v882
  %v884 = vpop.f32.mrf.mxu0
  %v885 = vpop.f32.mrf.mxu0
  %v886 = vadd.f32 %v498, %v885
  %v887 = vpop.f32.mrf.mxu0
  %888 = vmatprep.mubr.bf16.mxu0 0
  %889 = vmatmul.mubr.bf16.gmra.mxu0 %v743
  %v890 = vpop.f32.mrf.mxu0
  %v891 = vadd.f32 %v503, %v890
  %v892 = vpop.f32.mrf.mxu0
  %v893 = vpop.f32.mrf.mxu0
  %v894 = vadd.f32 %v506, %v893
  %v895 = vpop.f32.mrf.mxu0
  %896 = vmatprep.mubr.bf16.mxu0 0
  %897 = vmatmul.mubr.bf16.gmra.mxu0 %v746
  %v898 = vpop.f32.mrf.mxu0
  %v899 = vadd.f32 %v511, %v898
  %v900 = vpop.f32.mrf.mxu0
  %v901 = vpop.f32.mrf.mxu0
  %v902 = vadd.f32 %v514, %v901
  %v903 = vpop.f32.mrf.mxu0
  %904 = vmatprep.mubr.bf16.mxu0 0
  %905 = vmatmul.mubr.bf16.gmra.mxu0 %v749
  %v906 = vpop.f32.mrf.mxu0
  %v907 = vadd.f32 %v519, %v906
  %v908 = vpop.f32.mrf.mxu0
  %v909 = vpop.f32.mrf.mxu0
  %v910 = vadd.f32 %v522, %v909
  %v911 = vpop.f32.mrf.mxu0
  %912 = vmatprep.mubr.bf16.mxu0 0
  %913 = vmatmul.mubr.bf16.gmra.mxu0 %v752
  %v914 = vpop.f32.mrf.mxu0
  %v915 = vadd.f32 %v527, %v914
  %v916 = vpop.f32.mrf.mxu0
  %v917 = vpop.f32.mrf.mxu0
  %v918 = vadd.f32 %v530, %v917
  %v919 = vpop.f32.mrf.mxu0
  %920 = vmatprep.mubr.bf16.mxu0 0
  %921 = vmatmul.mubr.bf16.gmra.mxu0 %v755
  %v922 = vpop.f32.mrf.mxu0
  %v923 = vadd.f32 %v535, %v922
  %v924 = vpop.f32.mrf.mxu0
  %v925 = vpop.f32.mrf.mxu0
  %v926 = vadd.f32 %v538, %v925
  %v927 = vpop.f32.mrf.mxu0
  %928 = vmatprep.mubr.bf16.mxu0 0
  %929 = vmatmul.mubr.bf16.gmra.mxu0 %v758
  %v930 = vpop.f32.mrf.mxu0
  %v931 = vadd.f32 %v543, %v930
  %v932 = vpop.f32.mrf.mxu0
  %v933 = vpop.f32.mrf.mxu0
  %v934 = vadd.f32 %v546, %v933
  %v935 = vpop.f32.mrf.mxu0
  %936 = vmatprep.mubr.bf16.mxu0 0
  %937 = vmatmul.mubr.bf16.gmra.mxu0 %v761
  %v938 = vpop.f32.mrf.mxu0
  %v939 = vadd.f32 %v551, %v938
  %v940 = vpop.f32.mrf.mxu0
  %v941 = vpop.f32.mrf.mxu0
  %v942 = vadd.f32 %v554, %v941
  %v943 = vpop.f32.mrf.mxu0
  %944 = vmatprep.mubr.bf16.mxu0 0
  %945 = vmatmul.mubr.bf16.gmra.mxu0 %v764
  %v946 = vpop.f32.mrf.mxu0
  %v947 = vadd.f32 %v559, %v946
  %v948 = vpop.f32.mrf.mxu0
  %v949 = vpop.f32.mrf.mxu0
  %v950 = vadd.f32 %v562, %v949
  %v951 = vpop.f32.mrf.mxu0
  %952 = vmatprep.mubr.bf16.mxu0 0
  %953 = vmatmul.mubr.bf16.gmra.mxu0 %v767
  %v954 = vpop.f32.mrf.mxu0
  %v955 = vadd.f32 %v567, %v954
  %v956 = vpop.f32.mrf.mxu0
  %v957 = vpop.f32.mrf.mxu0
  %v958 = vadd.f32 %v570, %v957
  %v959 = vpop.f32.mrf.mxu0
  %960 = vmatprep.mubr.bf16.mxu0 0
  %961 = vmatmul.mubr.bf16.gmra.mxu0 %v770
  %v962 = vpop.f32.mrf.mxu0
  %v963 = vadd.f32 %v575, %v962
  %v964 = vpop.f32.mrf.mxu0
  %v965 = vpop.f32.mrf.mxu0
  %v966 = vadd.f32 %v578, %v965
  %v967 = vpop.f32.mrf.mxu0
  %968 = vmatprep.mubr.bf16.mxu0 0
  %969 = vmatmul.mubr.bf16.gmra.mxu0 %v773
  %v970 = vpop.f32.mrf.mxu0
  %v971 = vadd.f32 %v583, %v970
  %v972 = vpop.f32.mrf.mxu0
  %v973 = vpop.f32.mrf.mxu0
  %v974 = vadd.f32 %v586, %v973
  %v975 = vpop.f32.mrf.mxu0
  %976 = vmatprep.mubr.bf16.mxu0 0
  %977 = vmatmul.mubr.bf16.gmra.mxu0 %v776
  %v978 = vpop.f32.mrf.mxu0
  %v979 = vadd.f32 %v591, %v978
  %v980 = vpop.f32.mrf.mxu0
  %v981 = vpop.f32.mrf.mxu0
  %v982 = vadd.f32 %v594, %v981
  %v983 = vpop.f32.mrf.mxu0
  %984 = vmatprep.mubr.bf16.mxu0 0
  %985 = vmatmul.mubr.bf16.gmra.mxu0 %v779
  %v986 = vpop.f32.mrf.mxu0
  %v987 = vadd.f32 %v599, %v986
  %v988 = vpop.f32.mrf.mxu0
  %v989 = vpop.f32.mrf.mxu0
  %v990 = vadd.f32 %v602, %v989
  %v991 = vpop.f32.mrf.mxu0
  %992 = vmatprep.mubr.bf16.mxu0 0
  %993 = vmatmul.mubr.bf16.gmra.mxu0 %v782
  %v994 = vpop.f32.mrf.mxu0
  %v995 = vadd.f32 %v607, %v994
  %v996 = vpop.f32.mrf.mxu0
  %v997 = vpop.f32.mrf.mxu0
  %v998 = vadd.f32 %v610, %v997
  %v999 = vpop.f32.mrf.mxu0
  %1000 = vmatprep.mubr.bf16.mxu0 0
  %1001 = vmatmul.mubr.bf16.gmra.mxu0 %v785
  %v1002 = vpop.f32.mrf.mxu0
  %v1003 = vadd.f32 %v615, %v1002
  %v1004 = vpop.f32.mrf.mxu0
  %v1005 = vpop.f32.mrf.mxu0
  %v1006 = vadd.f32 %v618, %v1005
  %v1007 = vpop.f32.mrf.mxu0
  %1008 = vmatprep.mubr.bf16.mxu0 0
  %1009 = vmatmul.mubr.bf16.gmra.mxu0 %v788
  %v1010 = vpop.f32.mrf.mxu0
  %v1011 = vadd.f32 %v623, %v1010
  %v1012 = vpop.f32.mrf.mxu0
  %v1013 = vpop.f32.mrf.mxu0
  %v1014 = vadd.f32 %v626, %v1013
  %v1015 = vpop.f32.mrf.mxu0
  %1016 = vmatprep.mubr.bf16.mxu0 0
  %1017 = vmatmul.mubr.bf16.gmra.mxu0 %v791
  %v1018 = vpop.f32.mrf.mxu0
  %v1019 = vadd.f32 %v631, %v1018
  %v1020 = vpop.f32.mrf.mxu0
  %v1021 = vpop.f32.mrf.mxu0
  %v1022 = vadd.f32 %v634, %v1021
  %v1023 = vpop.f32.mrf.mxu0
  %1024 = vmatprep.mubr.bf16.mxu0 0
  %1025 = vmatmul.mubr.bf16.gmra.mxu0 %v794
  %v1026 = vpop.f32.mrf.mxu0
  %v1027 = vadd.f32 %v639, %v1026
  %v1028 = vpop.f32.mrf.mxu0
  %v1029 = vpop.f32.mrf.mxu0
  %v1030 = vadd.f32 %v642, %v1029
  %v1031 = vpop.f32.mrf.mxu0
  %1032 = vmatprep.mubr.bf16.mxu0 0
  %1033 = vmatmul.mubr.bf16.gmra.mxu0 %v797
  %v1034 = vpop.f32.mrf.mxu0
  %v1035 = vadd.f32 %v647, %v1034
  %v1036 = vpop.f32.mrf.mxu0
  %v1037 = vpop.f32.mrf.mxu0
  %v1038 = vadd.f32 %v650, %v1037
  %v1039 = vpop.f32.mrf.mxu0
  %1040 = vmatprep.mubr.bf16.mxu0 0
  %1041 = vmatmul.mubr.bf16.gmra.mxu0 %v800
  %v1042 = vpop.f32.mrf.mxu0
  %v1043 = vadd.f32 %v655, %v1042
  %v1044 = vpop.f32.mrf.mxu0
  %v1045 = vpop.f32.mrf.mxu0
  %v1046 = vadd.f32 %v658, %v1045
  %v1047 = vpop.f32.mrf.mxu0
  %1048 = vmatprep.mubr.bf16.mxu0 0
  %1049 = vmatmul.mubr.bf16.gmra.mxu0 %v803
  %v1050 = vpop.f32.mrf.mxu0
  %v1051 = vadd.f32 %v663, %v1050
  %v1052 = vpop.f32.mrf.mxu0
  %v1053 = vpop.f32.mrf.mxu0
  %v1054 = vadd.f32 %v666, %v1053
  %v1055 = vpop.f32.mrf.mxu0
  %1056 = vmatprep.mubr.bf16.mxu0 0
  %1057 = vmatmul.mubr.bf16.gmra.mxu0 %v806
  %v1058 = vpop.f32.mrf.mxu0
  %v1059 = vadd.f32 %v671, %v1058
  %v1060 = vpop.f32.mrf.mxu0
  %v1061 = vpop.f32.mrf.mxu0
  %v1062 = vadd.f32 %v674, %v1061
  %v1063 = vpop.f32.mrf.mxu0
  %1064 = vmatprep.mubr.bf16.mxu0 0
  %1065 = vmatmul.mubr.bf16.gmra.mxu0 %v809
  %v1066 = vpop.f32.mrf.mxu0
  %v1067 = vadd.f32 %v679, %v1066
  %v1068 = vpop.f32.mrf.mxu0
  %v1069 = vpop.f32.mrf.mxu0
  %v1070 = vadd.f32 %v682, %v1069
  %v1071 = vpop.f32.mrf.mxu0
  %1072 = vmatprep.mubr.bf16.mxu0 0
  %1073 = vmatmul.mubr.bf16.gmra.mxu0 %v812
  %v1074 = vpop.f32.mrf.mxu0
  %v1075 = vadd.f32 %v687, %v1074
  %v1076 = vpop.f32.mrf.mxu0
  %v1077 = vpop.f32.mrf.mxu0
  %v1078 = vadd.f32 %v690, %v1077
  %v1079 = vpop.f32.mrf.mxu0
  %1080 = vmatprep.mubr.bf16.mxu0 0
  %1081 = vmatmul.mubr.bf16.gmra.mxu0 %v815
  %v1082 = vpop.f32.mrf.mxu0
  %v1083 = vadd.f32 %v695, %v1082
  %v1084 = vpop.f32.mrf.mxu0
  %v1085 = vpop.f32.mrf.mxu0
  %v1086 = vadd.f32 %v698, %v1085
  %v1087 = vpop.f32.mrf.mxu0
  %1088 = vmatprep.mubr.bf16.mxu0 0
  %1089 = vmatmul.mubr.bf16.gmra.mxu0 %v818
  %v1090 = vpop.f32.mrf.mxu0
  %v1091 = vadd.f32 %v703, %v1090
  %v1092 = vpop.f32.mrf.mxu0
  %v1093 = vpop.f32.mrf.mxu0
  %v1094 = vadd.f32 %v706, %v1093
  %v1095 = vpop.f32.mrf.mxu0
  %1096 = vmatprep.mubr.bf16.mxu0 0
  %1097 = vmatmul.mubr.bf16.gmra.mxu0 %v821
  %v1098 = vpop.f32.mrf.mxu0
  %v1099 = vadd.f32 %v711, %v1098
  %v1100 = vpop.f32.mrf.mxu0
  %v1101 = vpop.f32.mrf.mxu0
  %v1102 = vadd.f32 %v714, %v1101
  %v1103 = vpop.f32.mrf.mxu0
  %1104 = vmatprep.mubr.bf16.mxu0 0
  %1105 = vmatmul.mubr.bf16.gmra.mxu0 %v824
  %v1106 = vpop.f32.mrf.mxu0
  %v1107 = vadd.f32 %v719, %v1106
  %v1108 = vpop.f32.mrf.mxu0
  %v1109 = vpop.f32.mrf.mxu0
  %v1110 = vadd.f32 %v722, %v1109
  %v1111 = vpop.f32.mrf.mxu0
  %1112 = vmatprep.mubr.bf16.mxu0 0
  %1113 = vmatmul.mubr.bf16.gmra.mxu0 %v827
  %v1114 = vpop.f32.mrf.mxu0
  %v1115 = vadd.f32 %v727, %v1114
  %v1116 = vpop.f32.mrf.mxu0
  %v1117 = vpop.f32.mrf.mxu0
  %v1118 = vadd.f32 %v730, %v1117
  %v1119 = vpop.f32.mrf.mxu0
  %1120 = vdwg.mxu0
  %v1121 = vld [vmem:[%s4] sm:$0x1]
  %v1123 = vlaneseq
  %v1124 = vshrl.u32 %v1123, 7
  %v1125 = vsub.s32 0, %v1124
  %v1126 = vrot.slane %v1121, %v1125
  %v1128 = vadd.f32 %v867, %v1126
  %v1129 = vadd.f32 %v870, %v1126
  %v1130 = vadd.f32 %v875, %v1126
  %v1131 = vadd.f32 %v878, %v1126
  %v1132 = vadd.f32 %v883, %v1126
  %v1133 = vadd.f32 %v886, %v1126
  %v1134 = vadd.f32 %v891, %v1126
  %v1135 = vadd.f32 %v894, %v1126
  %v1136 = vadd.f32 %v899, %v1126
  %v1137 = vadd.f32 %v902, %v1126
  %v1138 = vadd.f32 %v907, %v1126
  %v1139 = vadd.f32 %v910, %v1126
  %v1140 = vadd.f32 %v915, %v1126
  %v1141 = vadd.f32 %v918, %v1126
  %v1142 = vadd.f32 %v923, %v1126
  %v1143 = vadd.f32 %v926, %v1126
  %v1144 = vadd.f32 %v931, %v1126
  %v1145 = vadd.f32 %v934, %v1126
  %v1146 = vadd.f32 %v939, %v1126
  %v1147 = vadd.f32 %v942, %v1126
  %v1148 = vadd.f32 %v947, %v1126
  %v1149 = vadd.f32 %v950, %v1126
  %v1150 = vadd.f32 %v955, %v1126
  %v1151 = vadd.f32 %v958, %v1126
  %v1152 = vadd.f32 %v963, %v1126
  %v1153 = vadd.f32 %v966, %v1126
  %v1154 = vadd.f32 %v971, %v1126
  %v1155 = vadd.f32 %v974, %v1126
  %v1156 = vadd.f32 %v979, %v1126
  %v1157 = vadd.f32 %v982, %v1126
  %v1158 = vadd.f32 %v987, %v1126
  %v1159 = vadd.f32 %v990, %v1126
  %v1160 = vadd.f32 %v995, %v1126
  %v1161 = vadd.f32 %v998, %v1126
  %v1162 = vadd.f32 %v1003, %v1126
  %v1163 = vadd.f32 %v1006, %v1126
  %v1164 = vadd.f32 %v1011, %v1126
  %v1165 = vadd.f32 %v1014, %v1126
  %v1166 = vadd.f32 %v1019, %v1126
  %v1167 = vadd.f32 %v1022, %v1126
  %v1168 = vadd.f32 %v1027, %v1126
  %v1169 = vadd.f32 %v1030, %v1126
  %v1170 = vadd.f32 %v1035, %v1126
  %v1171 = vadd.f32 %v1038, %v1126
  %v1172 = vadd.f32 %v1043, %v1126
  %v1173 = vadd.f32 %v1046, %v1126
  %v1174 = vadd.f32 %v1051, %v1126
  %v1175 = vadd.f32 %v1054, %v1126
  %v1176 = vadd.f32 %v1059, %v1126
  %v1177 = vadd.f32 %v1062, %v1126
  %v1178 = vadd.f32 %v1067, %v1126
  %v1179 = vadd.f32 %v1070, %v1126
  %v1180 = vadd.f32 %v1075, %v1126
  %v1181 = vadd.f32 %v1078, %v1126
  %v1182 = vadd.f32 %v1083, %v1126
  %v1183 = vadd.f32 %v1086, %v1126
  %v1184 = vadd.f32 %v1091, %v1126
  %v1185 = vadd.f32 %v1094, %v1126
  %v1186 = vadd.f32 %v1099, %v1126
  %v1187 = vadd.f32 %v1102, %v1126
  %v1188 = vadd.f32 %v1107, %v1126
  %v1189 = vadd.f32 %v1110, %v1126
  %v1190 = vadd.f32 %v1115, %v1126
  %v1191 = vadd.f32 %v1118, %v1126
  %v1192 = vmax.f32 %v1128, 0.0
  %v1193 = vmax.f32 %v1129, 0.0
  %v1194 = vmax.f32 %v1130, 0.0
  %v1195 = vmax.f32 %v1131, 0.0
  %v1196 = vmax.f32 %v1132, 0.0
  %v1197 = vmax.f32 %v1133, 0.0
  %v1198 = vmax.f32 %v1134, 0.0
  %v1199 = vmax.f32 %v1135, 0.0
  %v1200 = vmax.f32 %v1136, 0.0
  %v1201 = vmax.f32 %v1137, 0.0
  %v1202 = vmax.f32 %v1138, 0.0
  %v1203 = vmax.f32 %v1139, 0.0
  %v1204 = vmax.f32 %v1140, 0.0
  %v1205 = vmax.f32 %v1141, 0.0
  %v1206 = vmax.f32 %v1142, 0.0
  %v1207 = vmax.f32 %v1143, 0.0
  %v1208 = vmax.f32 %v1144, 0.0
  %v1209 = vmax.f32 %v1145, 0.0
  %v1210 = vmax.f32 %v1146, 0.0
  %v1211 = vmax.f32 %v1147, 0.0
  %v1212 = vmax.f32 %v1148, 0.0
  %v1213 = vmax.f32 %v1149, 0.0
  %v1214 = vmax.f32 %v1150, 0.0
  %v1215 = vmax.f32 %v1151, 0.0
  %v1216 = vmax.f32 %v1152, 0.0
  %v1217 = vmax.f32 %v1153, 0.0
  %v1218 = vmax.f32 %v1154, 0.0
  %v1219 = vmax.f32 %v1155, 0.0
  %v1220 = vmax.f32 %v1156, 0.0
  %v1221 = vmax.f32 %v1157, 0.0
  %v1222 = vmax.f32 %v1158, 0.0
  %v1223 = vmax.f32 %v1159, 0.0
  %v1224 = vmax.f32 %v1160, 0.0
  %v1225 = vmax.f32 %v1161, 0.0
  %v1226 = vmax.f32 %v1162, 0.0
  %v1227 = vmax.f32 %v1163, 0.0
  %v1228 = vmax.f32 %v1164, 0.0
  %v1229 = vmax.f32 %v1165, 0.0
  %v1230 = vmax.f32 %v1166, 0.0
  %v1231 = vmax.f32 %v1167, 0.0
  %v1232 = vmax.f32 %v1168, 0.0
  %v1233 = vmax.f32 %v1169, 0.0
  %v1234 = vmax.f32 %v1170, 0.0
  %v1235 = vmax.f32 %v1171, 0.0
  %v1236 = vmax.f32 %v1172, 0.0
  %v1237 = vmax.f32 %v1173, 0.0
  %v1238 = vmax.f32 %v1174, 0.0
  %v1239 = vmax.f32 %v1175, 0.0
  %v1240 = vmax.f32 %v1176, 0.0
  %v1241 = vmax.f32 %v1177, 0.0
  %v1242 = vmax.f32 %v1178, 0.0
  %v1243 = vmax.f32 %v1179, 0.0
  %v1244 = vmax.f32 %v1180, 0.0
  %v1245 = vmax.f32 %v1181, 0.0
  %v1246 = vmax.f32 %v1182, 0.0
  %v1247 = vmax.f32 %v1183, 0.0
  %v1248 = vmax.f32 %v1184, 0.0
  %v1249 = vmax.f32 %v1185, 0.0
  %v1250 = vmax.f32 %v1186, 0.0
  %v1251 = vmax.f32 %v1187, 0.0
  %v1252 = vmax.f32 %v1188, 0.0
  %v1253 = vmax.f32 %v1189, 0.0
  %v1254 = vmax.f32 %v1190, 0.0
  %v1255 = vmax.f32 %v1191, 0.0
  %v1256 = vpack.c.bf16 %v1193, %v1192
  %v1257 = vpack.c.bf16 %v1195, %v1194
  %v1258 = vpack.c.bf16 %v1197, %v1196
  %v1259 = vpack.c.bf16 %v1199, %v1198
  %v1260 = vpack.c.bf16 %v1201, %v1200
  %v1261 = vpack.c.bf16 %v1203, %v1202
  %v1262 = vpack.c.bf16 %v1205, %v1204
  %v1263 = vpack.c.bf16 %v1207, %v1206
  %v1264 = vpack.c.bf16 %v1209, %v1208
  %v1265 = vpack.c.bf16 %v1211, %v1210
  %v1266 = vpack.c.bf16 %v1213, %v1212
  %v1267 = vpack.c.bf16 %v1215, %v1214
  %v1268 = vpack.c.bf16 %v1217, %v1216
  %v1269 = vpack.c.bf16 %v1219, %v1218
  %v1270 = vpack.c.bf16 %v1221, %v1220
  %v1271 = vpack.c.bf16 %v1223, %v1222
  %v1272 = vpack.c.bf16 %v1225, %v1224
  %v1273 = vpack.c.bf16 %v1227, %v1226
  %v1274 = vpack.c.bf16 %v1229, %v1228
  %v1275 = vpack.c.bf16 %v1231, %v1230
  %v1276 = vpack.c.bf16 %v1233, %v1232
  %v1277 = vpack.c.bf16 %v1235, %v1234
  %v1278 = vpack.c.bf16 %v1237, %v1236
  %v1279 = vpack.c.bf16 %v1239, %v1238
  %v1280 = vpack.c.bf16 %v1241, %v1240
  %v1281 = vpack.c.bf16 %v1243, %v1242
  %v1282 = vpack.c.bf16 %v1245, %v1244
  %v1283 = vpack.c.bf16 %v1247, %v1246
  %v1284 = vpack.c.bf16 %v1249, %v1248
  %v1285 = vpack.c.bf16 %v1251, %v1250
  %v1286 = vpack.c.bf16 %v1253, %v1252
  %v1287 = vpack.c.bf16 %v1255, %v1254
  %v1320 = vunpack.c.l.b16 %v1256
  %v1321 = vunpack.c.h.b16 %v1256
  %v1322 = vunpack.c.l.b16 %v1257
  %v1323 = vunpack.c.h.b16 %v1257
  %v1324 = vunpack.c.l.b16 %v1258
  %v1325 = vunpack.c.h.b16 %v1258
  %v1326 = vunpack.c.l.b16 %v1259
  %v1327 = vunpack.c.h.b16 %v1259
  %v1328 = vunpack.c.l.b16 %v1260
  %v1329 = vunpack.c.h.b16 %v1260
  %v1330 = vunpack.c.l.b16 %v1261
  %v1331 = vunpack.c.h.b16 %v1261
  %v1332 = vunpack.c.l.b16 %v1262
  %v1333 = vunpack.c.h.b16 %v1262
  %v1334 = vunpack.c.l.b16 %v1263
  %v1335 = vunpack.c.h.b16 %v1263
  %v1336 = vunpack.c.l.b16 %v1264
  %v1337 = vunpack.c.h.b16 %v1264
  %v1338 = vunpack.c.l.b16 %v1265
  %v1339 = vunpack.c.h.b16 %v1265
  %v1340 = vunpack.c.l.b16 %v1266
  %v1341 = vunpack.c.h.b16 %v1266
  %v1342 = vunpack.c.l.b16 %v1267
  %v1343 = vunpack.c.h.b16 %v1267
  %v1344 = vunpack.c.l.b16 %v1268
  %v1345 = vunpack.c.h.b16 %v1268
  %v1346 = vunpack.c.l.b16 %v1269
  %v1347 = vunpack.c.h.b16 %v1269
  %v1348 = vunpack.c.l.b16 %v1270
  %v1349 = vunpack.c.h.b16 %v1270
  %v1350 = vunpack.c.l.b16 %v1271
  %v1351 = vunpack.c.h.b16 %v1271
  %v1352 = vunpack.c.l.b16 %v1272
  %v1353 = vunpack.c.h.b16 %v1272
  %v1354 = vunpack.c.l.b16 %v1273
  %v1355 = vunpack.c.h.b16 %v1273
  %v1356 = vunpack.c.l.b16 %v1274
  %v1357 = vunpack.c.h.b16 %v1274
  %v1358 = vunpack.c.l.b16 %v1275
  %v1359 = vunpack.c.h.b16 %v1275
  %v1360 = vunpack.c.l.b16 %v1276
  %v1361 = vunpack.c.h.b16 %v1276
  %v1362 = vunpack.c.l.b16 %v1277
  %v1363 = vunpack.c.h.b16 %v1277
  %v1364 = vunpack.c.l.b16 %v1278
  %v1365 = vunpack.c.h.b16 %v1278
  %v1366 = vunpack.c.l.b16 %v1279
  %v1367 = vunpack.c.h.b16 %v1279
  %v1368 = vunpack.c.l.b16 %v1280
  %v1369 = vunpack.c.h.b16 %v1280
  %v1370 = vunpack.c.l.b16 %v1281
  %v1371 = vunpack.c.h.b16 %v1281
  %v1372 = vunpack.c.l.b16 %v1282
  %v1373 = vunpack.c.h.b16 %v1282
  %v1374 = vunpack.c.l.b16 %v1283
  %v1375 = vunpack.c.h.b16 %v1283
  %v1376 = vunpack.c.l.b16 %v1284
  %v1377 = vunpack.c.h.b16 %v1284
  %v1378 = vunpack.c.l.b16 %v1285
  %v1379 = vunpack.c.h.b16 %v1285
  %v1380 = vunpack.c.l.b16 %v1286
  %v1381 = vunpack.c.h.b16 %v1286
  %v1382 = vunpack.c.l.b16 %v1287
  %v1383 = vunpack.c.h.b16 %v1287
  %v1384 = vpack.c.b16 %v1320, %v1320
  %v1385 = vpack.c.b16 %v1321, %v1321
  %v1386 = vpack.c.b16 %v1322, %v1322
  %v1387 = vpack.c.b16 %v1323, %v1323
  %v1388 = vpack.c.b16 %v1324, %v1324
  %v1389 = vpack.c.b16 %v1325, %v1325
  %v1390 = vpack.c.b16 %v1326, %v1326
  %v1391 = vpack.c.b16 %v1327, %v1327
  %v1392 = vpack.c.b16 %v1328, %v1328
  %v1393 = vpack.c.b16 %v1329, %v1329
  %v1394 = vpack.c.b16 %v1330, %v1330
  %v1395 = vpack.c.b16 %v1331, %v1331
  %v1396 = vpack.c.b16 %v1332, %v1332
  %v1397 = vpack.c.b16 %v1333, %v1333
  %v1398 = vpack.c.b16 %v1334, %v1334
  %v1399 = vpack.c.b16 %v1335, %v1335
  %v1400 = vpack.c.b16 %v1336, %v1336
  %v1401 = vpack.c.b16 %v1337, %v1337
  %v1402 = vpack.c.b16 %v1338, %v1338
  %v1403 = vpack.c.b16 %v1339, %v1339
  %v1404 = vpack.c.b16 %v1340, %v1340
  %v1405 = vpack.c.b16 %v1341, %v1341
  %v1406 = vpack.c.b16 %v1342, %v1342
  %v1407 = vpack.c.b16 %v1343, %v1343
  %v1408 = vpack.c.b16 %v1344, %v1344
  %v1409 = vpack.c.b16 %v1345, %v1345
  %v1410 = vpack.c.b16 %v1346, %v1346
  %v1411 = vpack.c.b16 %v1347, %v1347
  %v1412 = vpack.c.b16 %v1348, %v1348
  %v1413 = vpack.c.b16 %v1349, %v1349
  %v1414 = vpack.c.b16 %v1350, %v1350
  %v1415 = vpack.c.b16 %v1351, %v1351
  %v1416 = vpack.c.b16 %v1352, %v1352
  %v1417 = vpack.c.b16 %v1353, %v1353
  %v1418 = vpack.c.b16 %v1354, %v1354
  %v1419 = vpack.c.b16 %v1355, %v1355
  %v1420 = vpack.c.b16 %v1356, %v1356
  %v1421 = vpack.c.b16 %v1357, %v1357
  %v1422 = vpack.c.b16 %v1358, %v1358
  %v1423 = vpack.c.b16 %v1359, %v1359
  %v1424 = vpack.c.b16 %v1360, %v1360
  %v1425 = vpack.c.b16 %v1361, %v1361
  %v1426 = vpack.c.b16 %v1362, %v1362
  %v1427 = vpack.c.b16 %v1363, %v1363
  %v1428 = vpack.c.b16 %v1364, %v1364
  %v1429 = vpack.c.b16 %v1365, %v1365
  %v1430 = vpack.c.b16 %v1366, %v1366
  %v1431 = vpack.c.b16 %v1367, %v1367
  %v1432 = vpack.c.b16 %v1368, %v1368
  %v1433 = vpack.c.b16 %v1369, %v1369
  %v1434 = vpack.c.b16 %v1370, %v1370
  %v1435 = vpack.c.b16 %v1371, %v1371
  %v1436 = vpack.c.b16 %v1372, %v1372
  %v1437 = vpack.c.b16 %v1373, %v1373
  %v1438 = vpack.c.b16 %v1374, %v1374
  %v1439 = vpack.c.b16 %v1375, %v1375
  %v1440 = vpack.c.b16 %v1376, %v1376
  %v1441 = vpack.c.b16 %v1377, %v1377
  %v1442 = vpack.c.b16 %v1378, %v1378
  %v1443 = vpack.c.b16 %v1379, %v1379
  %v1444 = vpack.c.b16 %v1380, %v1380
  %v1445 = vpack.c.b16 %v1381, %v1381
  %v1446 = vpack.c.b16 %v1382, %v1382
  %v1447 = vpack.c.b16 %v1383, %v1383
  %1512 = vst [vmem:[%s5] sm:$0xf] %v1384
  %1513 = vst [vmem:[%s5 + $0x4] sm:$0xf] %v1385
  %1514 = vst [vmem:[%s5 + $0x8] sm:$0xf] %v1386
  %1515 = vst [vmem:[%s5 + $0xc] sm:$0xf] %v1387
  %1516 = vst [vmem:[%s5 + $0x10] sm:$0xf] %v1388
  %1517 = vst [vmem:[%s5 + $0x14] sm:$0xf] %v1389
  %1518 = vst [vmem:[%s5 + $0x18] sm:$0xf] %v1390
  %1519 = vst [vmem:[%s5 + $0x1c] sm:$0xf] %v1391
  %1520 = vst [vmem:[%s5 + $0x20] sm:$0xf] %v1392
  %1521 = vst [vmem:[%s5 + $0x24] sm:$0xf] %v1393
  %1522 = vst [vmem:[%s5 + $0x28] sm:$0xf] %v1394
  %1523 = vst [vmem:[%s5 + $0x2c] sm:$0xf] %v1395
  %1524 = vst [vmem:[%s5 + $0x30] sm:$0xf] %v1396
  %1525 = vst [vmem:[%s5 + $0x34] sm:$0xf] %v1397
  %1526 = vst [vmem:[%s5 + $0x38] sm:$0xf] %v1398
  %1527 = vst [vmem:[%s5 + $0x3c] sm:$0xf] %v1399
  %1528 = vst [vmem:[%s5 + $0x40] sm:$0xf] %v1400
  %1529 = vst [vmem:[%s5 + $0x44] sm:$0xf] %v1401
  %1530 = vst [vmem:[%s5 + $0x48] sm:$0xf] %v1402
  %1531 = vst [vmem:[%s5 + $0x4c] sm:$0xf] %v1403
  %1532 = vst [vmem:[%s5 + $0x50] sm:$0xf] %v1404
  %1533 = vst [vmem:[%s5 + $0x54] sm:$0xf] %v1405
  %1534 = vst [vmem:[%s5 + $0x58] sm:$0xf] %v1406
  %1535 = vst [vmem:[%s5 + $0x5c] sm:$0xf] %v1407
  %1536 = vst [vmem:[%s5 + $0x60] sm:$0xf] %v1408
  %1537 = vst [vmem:[%s5 + $0x64] sm:$0xf] %v1409
  %1538 = vst [vmem:[%s5 + $0x68] sm:$0xf] %v1410
  %1539 = vst [vmem:[%s5 + $0x6c] sm:$0xf] %v1411
  %1540 = vst [vmem:[%s5 + $0x70] sm:$0xf] %v1412
  %1541 = vst [vmem:[%s5 + $0x74] sm:$0xf] %v1413
  %1542 = vst [vmem:[%s5 + $0x78] sm:$0xf] %v1414
  %1543 = vst [vmem:[%s5 + $0x7c] sm:$0xf] %v1415
  %1544 = vst [vmem:[%s5 + $0x80] sm:$0xf] %v1416
  %1545 = vst [vmem:[%s5 + $0x84] sm:$0xf] %v1417
  %1546 = vst [vmem:[%s5 + $0x88] sm:$0xf] %v1418
  %1547 = vst [vmem:[%s5 + $0x8c] sm:$0xf] %v1419
  %1548 = vst [vmem:[%s5 + $0x90] sm:$0xf] %v1420
  %1549 = vst [vmem:[%s5 + $0x94] sm:$0xf] %v1421
  %1550 = vst [vmem:[%s5 + $0x98] sm:$0xf] %v1422
  %1551 = vst [vmem:[%s5 + $0x9c] sm:$0xf] %v1423
  %1552 = vst [vmem:[%s5 + $0xa0] sm:$0xf] %v1424
  %1553 = vst [vmem:[%s5 + $0xa4] sm:$0xf] %v1425
  %1554 = vst [vmem:[%s5 + $0xa8] sm:$0xf] %v1426
  %1555 = vst [vmem:[%s5 + $0xac] sm:$0xf] %v1427
  %1556 = vst [vmem:[%s5 + $0xb0] sm:$0xf] %v1428
  %1557 = vst [vmem:[%s5 + $0xb4] sm:$0xf] %v1429
  %1558 = vst [vmem:[%s5 + $0xb8] sm:$0xf] %v1430
  %1559 = vst [vmem:[%s5 + $0xbc] sm:$0xf] %v1431
  %1560 = vst [vmem:[%s5 + $0xc0] sm:$0xf] %v1432
  %1561 = vst [vmem:[%s5 + $0xc4] sm:$0xf] %v1433
  %1562 = vst [vmem:[%s5 + $0xc8] sm:$0xf] %v1434
  %1563 = vst [vmem:[%s5 + $0xcc] sm:$0xf] %v1435
  %1564 = vst [vmem:[%s5 + $0xd0] sm:$0xf] %v1436
  %1565 = vst [vmem:[%s5 + $0xd4] sm:$0xf] %v1437
  %1566 = vst [vmem:[%s5 + $0xd8] sm:$0xf] %v1438
  %1567 = vst [vmem:[%s5 + $0xdc] sm:$0xf] %v1439
  %1568 = vst [vmem:[%s5 + $0xe0] sm:$0xf] %v1440
  %1569 = vst [vmem:[%s5 + $0xe4] sm:$0xf] %v1441
  %1570 = vst [vmem:[%s5 + $0xe8] sm:$0xf] %v1442
  %1571 = vst [vmem:[%s5 + $0xec] sm:$0xf] %v1443
  %1572 = vst [vmem:[%s5 + $0xf0] sm:$0xf] %v1444
  %1573 = vst [vmem:[%s5 + $0xf4] sm:$0xf] %v1445
  %1574 = vst [vmem:[%s5 + $0xf8] sm:$0xf] %v1446
  %1575 = vst [vmem:[%s5 + $0xfc] sm:$0xf] %v1447
  // Predicated region
  $region22: #{up_forward.8} parent=0 // pred_check
    _
  $region23: #{up_forward.8} parent=0 // pred_check_branch
    %1577 = sbr.rel (0) target = $region25
  $region24: #{up_forward.8} parent=0 // pred_region
    _
  $region25: #{up_forward.8} parent=0 // pred_fallthru
    _
  // Predicated region
  $region26: #{up_forward.8} parent=0 // pred_check
    _
  $region27: #{up_forward.8} parent=0 // pred_check_branch
    %1579 = sbr.rel (0) target = $region29
  $region28: #{up_forward.8} parent=0 // pred_region
    _
  $region29: #{up_forward.8} parent=0 // pred_fallthru
    _

// kernel: up_forward.10
$region0: #{up_forward.10}
  #allocation0 [shape = 'u32[]', space=smem, size = 0x4, offset = 0x4, fixed_abs, tag = 'smem constant byte address 0x4 - core index']
  #allocation1 [shape = 'u32[144,128]{1,0:T(1,128)}', space=vmem, size = 0x12000, scoped, tag = 'internal scratch']
  %s0 = inlined_call_operand.vmem [shape: bf16[512,128], index: 0, kind: input, shape index: {}]
  %s1 = inlined_call_operand.vmem [shape: bf16[128,128], index: 1, kind: input, shape index: {}]
  %s2 = inlined_call_operand.vmem [shape: f32[512,4], index: 2, kind: input, shape index: {}]
  %s3 = inlined_call_operand.vmem [shape: bf16[4,128], index: 3, kind: input, shape index: {}]
  %s4 = inlined_call_operand.vmem [shape: bf16[512,4], index: 4, kind: input, shape index: {}]
  %s5 = inlined_call_operand.vmem [shape: bf16[4,128], index: 5, kind: input, shape index: {}]
  %s6 = inlined_call_operand.vmem [shape: f32[1,128], index: 6, kind: input, shape index: {}]
  %s7 = inlined_call_operand.vmem [shape: bf16[512,128], index: 7, kind: output, shape index: {}]
  %s8 = sld [smem:[#allocation0]]
  $region38: #{up_forward.10} parent=0
    _
  %s10 = ssub.s32 1, %s8
  %s11 = scalar_select 0, %s10, %s8
  // Predicated region
  $region2: #{up_forward.10} parent=0 // pred_check
    _
  $region3: #{up_forward.10} parent=0 // pred_check_branch
    %13 = sbr.rel (0) target = $region5
  $region4: #{up_forward.10} parent=0 // pred_region
    _
  $region5: #{up_forward.10} parent=0 // pred_fallthru
    _
  // Predicated region
  $region6: #{up_forward.10} parent=0 // pred_check
    _
  $region7: #{up_forward.10} parent=0 // pred_check_branch
    %15 = sbr.rel (0) target = $region9
  $region8: #{up_forward.10} parent=0 // pred_region
    _
  $region9: #{up_forward.10} parent=0 // pred_fallthru
    _
  // Predicated region
  $region10: #{up_forward.10} parent=0 // pred_check
    _
  $region11: #{up_forward.10} parent=0 // pred_check_branch
    %17 = sbr.rel (0) target = $region13
  $region12: #{up_forward.10} parent=0 // pred_region
    _
  $region13: #{up_forward.10} parent=0 // pred_fallthru
    _
  // Predicated region
  $region14: #{up_forward.10} parent=0 // pred_check
    _
  $region15: #{up_forward.10} parent=0 // pred_check_branch
    %19 = sbr.rel (0) target = $region17
  $region16: #{up_forward.10} parent=0 // pred_region
    _
  $region17: #{up_forward.10} parent=0 // pred_fallthru
    _
  // Predicated region
  $region18: #{up_forward.10} parent=0 // pred_check
    _
  $region19: #{up_forward.10} parent=0 // pred_check_branch
    %21 = sbr.rel (0) target = $region21
  $region20: #{up_forward.10} parent=0 // pred_region
    _
  $region21: #{up_forward.10} parent=0 // pred_fallthru
    _
  // Predicated region
  $region22: #{up_forward.10} parent=0 // pred_check
    _
  $region23: #{up_forward.10} parent=0 // pred_check_branch
    %23 = sbr.rel (0) target = $region25
  $region24: #{up_forward.10} parent=0 // pred_region
    _
  $region25: #{up_forward.10} parent=0 // pred_fallthru
    _
  // Predicated region
  $region26: #{up_forward.10} parent=0 // pred_check
    _
  $region27: #{up_forward.10} parent=0 // pred_check_branch
    %25 = sbr.rel (0) target = $region29
  $region28: #{up_forward.10} parent=0 // pred_region
    _
  $region29: #{up_forward.10} parent=0 // pred_fallthru
    _
  %v27 = vld [vmem:[%s0] sm:$0xf]
  %v28 = vld [vmem:[%s0 + $0x4] sm:$0xf]
  %v29 = vld [vmem:[%s0 + $0x8] sm:$0xf]
  %v30 = vld [vmem:[%s0 + $0xc] sm:$0xf]
  %v31 = vld [vmem:[%s0 + $0x10] sm:$0xf]
  %v32 = vld [vmem:[%s0 + $0x14] sm:$0xf]
  %v33 = vld [vmem:[%s0 + $0x18] sm:$0xf]
  %v34 = vld [vmem:[%s0 + $0x1c] sm:$0xf]
  %v35 = vld [vmem:[%s0 + $0x20] sm:$0xf]
  %v36 = vld [vmem:[%s0 + $0x24] sm:$0xf]
  %v37 = vld [vmem:[%s0 + $0x28] sm:$0xf]
  %v38 = vld [vmem:[%s0 + $0x2c] sm:$0xf]
  %v39 = vld [vmem:[%s0 + $0x30] sm:$0xf]
  %v40 = vld [vmem:[%s0 + $0x34] sm:$0xf]
  %v41 = vld [vmem:[%s0 + $0x38] sm:$0xf]
  %v42 = vld [vmem:[%s0 + $0x3c] sm:$0xf]
  %v43 = vld [vmem:[%s0 + $0x40] sm:$0xf]
  %v44 = vld [vmem:[%s0 + $0x44] sm:$0xf]
  %v45 = vld [vmem:[%s0 + $0x48] sm:$0xf]
  %v46 = vld [vmem:[%s0 + $0x4c] sm:$0xf]
  %v47 = vld [vmem:[%s0 + $0x50] sm:$0xf]
  %v48 = vld [vmem:[%s0 + $0x54] sm:$0xf]
  %v49 = vld [vmem:[%s0 + $0x58] sm:$0xf]
  %v50 = vld [vmem:[%s0 + $0x5c] sm:$0xf]
  %v51 = vld [vmem:[%s0 + $0x60] sm:$0xf]
  %v52 = vld [vmem:[%s0 + $0x64] sm:$0xf]
  %v53 = vld [vmem:[%s0 + $0x68] sm:$0xf]
  %v54 = vld [vmem:[%s0 + $0x6c] sm:$0xf]
  %v55 = vld [vmem:[%s0 + $0x70] sm:$0xf]
  %v56 = vld [vmem:[%s0 + $0x74] sm:$0xf]
  %v57 = vld [vmem:[%s0 + $0x78] sm:$0xf]
  %v58 = vld [vmem:[%s0 + $0x7c] sm:$0xf]
  %v59 = vld [vmem:[%s0 + $0x80] sm:$0xf]
  %v60 = vld [vmem:[%s0 + $0x84] sm:$0xf]
  %v61 = vld [vmem:[%s0 + $0x88] sm:$0xf]
  %v62 = vld [vmem:[%s0 + $0x8c] sm:$0xf]
  %v63 = vld [vmem:[%s0 + $0x90] sm:$0xf]
  %v64 = vld [vmem:[%s0 + $0x94] sm:$0xf]
  %v65 = vld [vmem:[%s0 + $0x98] sm:$0xf]
  %v66 = vld [vmem:[%s0 + $0x9c] sm:$0xf]
  %v67 = vld [vmem:[%s0 + $0xa0] sm:$0xf]
  %v68 = vld [vmem:[%s0 + $0xa4] sm:$0xf]
  %v69 = vld [vmem:[%s0 + $0xa8] sm:$0xf]
  %v70 = vld [vmem:[%s0 + $0xac] sm:$0xf]
  %v71 = vld [vmem:[%s0 + $0xb0] sm:$0xf]
  %v72 = vld [vmem:[%s0 + $0xb4] sm:$0xf]
  %v73 = vld [vmem:[%s0 + $0xb8] sm:$0xf]
  %v74 = vld [vmem:[%s0 + $0xbc] sm:$0xf]
  %v75 = vld [vmem:[%s0 + $0xc0] sm:$0xf]
  %v76 = vld [vmem:[%s0 + $0xc4] sm:$0xf]
  %v77 = vld [vmem:[%s0 + $0xc8] sm:$0xf]
  %v78 = vld [vmem:[%s0 + $0xcc] sm:$0xf]
  %v79 = vld [vmem:[%s0 + $0xd0] sm:$0xf]
  %v80 = vld [vmem:[%s0 + $0xd4] sm:$0xf]
  %v81 = vld [vmem:[%s0 + $0xd8] sm:$0xf]
  %v82 = vld [vmem:[%s0 + $0xdc] sm:$0xf]
  %v83 = vld [vmem:[%s0 + $0xe0] sm:$0xf]
  %v84 = vld [vmem:[%s0 + $0xe4] sm:$0xf]
  %v85 = vld [vmem:[%s0 + $0xe8] sm:$0xf]
  %v86 = vld [vmem:[%s0 + $0xec] sm:$0xf]
  %v87 = vld [vmem:[%s0 + $0xf0] sm:$0xf]
  %v88 = vld [vmem:[%s0 + $0xf4] sm:$0xf]
  %v89 = vld [vmem:[%s0 + $0xf8] sm:$0xf]
  %v90 = vld [vmem:[%s0 + $0xfc] sm:$0xf]
  %v91 = vld [vmem:[%s1] sm:$0xf]
  %v92 = vld [vmem:[%s1 + $0x4] sm:$0xf]
  %v93 = vld [vmem:[%s1 + $0x8] sm:$0xf]
  %v94 = vld [vmem:[%s1 + $0xc] sm:$0xf]
  %v95 = vld [vmem:[%s1 + $0x10] sm:$0xf]
  %v96 = vld [vmem:[%s1 + $0x14] sm:$0xf]
  %v97 = vld [vmem:[%s1 + $0x18] sm:$0xf]
  %v98 = vld [vmem:[%s1 + $0x1c] sm:$0xf]
  %v99 = vld [vmem:[%s1 + $0x20] sm:$0xf]
  %v100 = vld [vmem:[%s1 + $0x24] sm:$0xf]
  %v101 = vld [vmem:[%s1 + $0x28] sm:$0xf]
  %v102 = vld [vmem:[%s1 + $0x2c] sm:$0xf]
  %v103 = vld [vmem:[%s1 + $0x30] sm:$0xf]
  %v104 = vld [vmem:[%s1 + $0x34] sm:$0xf]
  %v105 = vld [vmem:[%s1 + $0x38] sm:$0xf]
  %v106 = vld [vmem:[%s1 + $0x3c] sm:$0xf]
  %v107 = vld [vmem:[%s2] sm:$0xff]
  %v108 = vld [vmem:[%s2 + $0x8] sm:$0xff]
  %v109 = vld [vmem:[%s2 + $0x10] sm:$0xff]
  %v110 = vld [vmem:[%s2 + $0x18] sm:$0xff]
  %v111 = vld [vmem:[%s2 + $0x20] sm:$0xff]
  %v112 = vld [vmem:[%s2 + $0x28] sm:$0xff]
  %v113 = vld [vmem:[%s2 + $0x30] sm:$0xff]
  %v114 = vld [vmem:[%s2 + $0x38] sm:$0xff]
  %v115 = vld [vmem:[%s2 + $0x40] sm:$0xff]
  %v116 = vld [vmem:[%s2 + $0x48] sm:$0xff]
  %v117 = vld [vmem:[%s2 + $0x50] sm:$0xff]
  %v118 = vld [vmem:[%s2 + $0x58] sm:$0xff]
  %v119 = vld [vmem:[%s2 + $0x60] sm:$0xff]
  %v120 = vld [vmem:[%s2 + $0x68] sm:$0xff]
  %v121 = vld [vmem:[%s2 + $0x70] sm:$0xff]
  %v122 = vld [vmem:[%s2 + $0x78] sm:$0xff]
  %v123 = vld [vmem:[%s2 + $0x80] sm:$0xff]
  %v124 = vld [vmem:[%s2 + $0x88] sm:$0xff]
  %v125 = vld [vmem:[%s2 + $0x90] sm:$0xff]
  %v126 = vld [vmem:[%s2 + $0x98] sm:$0xff]
  %v127 = vld [vmem:[%s2 + $0xa0] sm:$0xff]
  %v128 = vld [vmem:[%s2 + $0xa8] sm:$0xff]
  %v129 = vld [vmem:[%s2 + $0xb0] sm:$0xff]
  %v130 = vld [vmem:[%s2 + $0xb8] sm:$0xff]
  %v131 = vld [vmem:[%s2 + $0xc0] sm:$0xff]
  %v132 = vld [vmem:[%s2 + $0xc8] sm:$0xff]
  %v133 = vld [vmem:[%s2 + $0xd0] sm:$0xff]
  %v134 = vld [vmem:[%s2 + $0xd8] sm:$0xff]
  %v135 = vld [vmem:[%s2 + $0xe0] sm:$0xff]
  %v136 = vld [vmem:[%s2 + $0xe8] sm:$0xff]
  %v137 = vld [vmem:[%s2 + $0xf0] sm:$0xff]
  %v138 = vld [vmem:[%s2 + $0xf8] sm:$0xff]
  %v139 = vld [vmem:[%s2 + $0x100] sm:$0xff]
  %v140 = vld [vmem:[%s2 + $0x108] sm:$0xff]
  %v141 = vld [vmem:[%s2 + $0x110] sm:$0xff]
  %v142 = vld [vmem:[%s2 + $0x118] sm:$0xff]
  %v143 = vld [vmem:[%s2 + $0x120] sm:$0xff]
  %v144 = vld [vmem:[%s2 + $0x128] sm:$0xff]
  %v145 = vld [vmem:[%s2 + $0x130] sm:$0xff]
  %v146 = vld [vmem:[%s2 + $0x138] sm:$0xff]
  %v147 = vld [vmem:[%s2 + $0x140] sm:$0xff]
  %v148 = vld [vmem:[%s2 + $0x148] sm:$0xff]
  %v149 = vld [vmem:[%s2 + $0x150] sm:$0xff]
  %v150 = vld [vmem:[%s2 + $0x158] sm:$0xff]
  %v151 = vld [vmem:[%s2 + $0x160] sm:$0xff]
  %v152 = vld [vmem:[%s2 + $0x168] sm:$0xff]
  %v153 = vld [vmem:[%s2 + $0x170] sm:$0xff]
  %v154 = vld [vmem:[%s2 + $0x178] sm:$0xff]
  %v155 = vld [vmem:[%s2 + $0x180] sm:$0xff]
  %v156 = vld [vmem:[%s2 + $0x188] sm:$0xff]
  %v157 = vld [vmem:[%s2 + $0x190] sm:$0xff]
  %v158 = vld [vmem:[%s2 + $0x198] sm:$0xff]
  %v159 = vld [vmem:[%s2 + $0x1a0] sm:$0xff]
  %v160 = vld [vmem:[%s2 + $0x1a8] sm:$0xff]
  %v161 = vld [vmem:[%s2 + $0x1b0] sm:$0xff]
  %v162 = vld [vmem:[%s2 + $0x1b8] sm:$0xff]
  %v163 = vld [vmem:[%s2 + $0x1c0] sm:$0xff]
  %v164 = vld [vmem:[%s2 + $0x1c8] sm:$0xff]
  %v165 = vld [vmem:[%s2 + $0x1d0] sm:$0xff]
  %v166 = vld [vmem:[%s2 + $0x1d8] sm:$0xff]
  %v167 = vld [vmem:[%s2 + $0x1e0] sm:$0xff]
  %v168 = vld [vmem:[%s2 + $0x1e8] sm:$0xff]
  %v169 = vld [vmem:[%s2 + $0x1f0] sm:$0xff]
  %v170 = vld [vmem:[%s2 + $0x1f8] sm:$0xff]
  %v171 = vpack.c.bf16 %v108, %v107
  %v172 = vpack.c.bf16 %v110, %v109
  %v173 = vpack.c.bf16 %v112, %v111
  %v174 = vpack.c.bf16 %v114, %v113
  %v175 = vpack.c.bf16 %v116, %v115
  %v176 = vpack.c.bf16 %v118, %v117
  %v177 = vpack.c.bf16 %v120, %v119
  %v178 = vpack.c.bf16 %v122, %v121
  %v179 = vpack.c.bf16 %v124, %v123
  %v180 = vpack.c.bf16 %v126, %v125
  %v181 = vpack.c.bf16 %v128, %v127
  %v182 = vpack.c.bf16 %v130, %v129
  %v183 = vpack.c.bf16 %v132, %v131
  %v184 = vpack.c.bf16 %v134, %v133
  %v185 = vpack.c.bf16 %v136, %v135
  %v186 = vpack.c.bf16 %v138, %v137
  %v187 = vpack.c.bf16 %v140, %v139
  %v188 = vpack.c.bf16 %v142, %v141
  %v189 = vpack.c.bf16 %v144, %v143
  %v190 = vpack.c.bf16 %v146, %v145
  %v191 = vpack.c.bf16 %v148, %v147
  %v192 = vpack.c.bf16 %v150, %v149
  %v193 = vpack.c.bf16 %v152, %v151
  %v194 = vpack.c.bf16 %v154, %v153
  %v195 = vpack.c.bf16 %v156, %v155
  %v196 = vpack.c.bf16 %v158, %v157
  %v197 = vpack.c.bf16 %v160, %v159
  %v198 = vpack.c.bf16 %v162, %v161
  %v199 = vpack.c.bf16 %v164, %v163
  %v200 = vpack.c.bf16 %v166, %v165
  %v201 = vpack.c.bf16 %v168, %v167
  %v202 = vpack.c.bf16 %v170, %v169
  %v203 = vld [vmem:[%s3] sm:$0x3]
  %vm204 = vcmask 31744
  %v206 = vsel %vm204, %v171, 0
  %v209 = vsel %vm204, %v172, 0
  %v212 = vsel %vm204, %v173, 0
  %v215 = vsel %vm204, %v174, 0
  %v218 = vsel %vm204, %v175, 0
  %v221 = vsel %vm204, %v176, 0
  %v224 = vsel %vm204, %v177, 0
  %v227 = vsel %vm204, %v178, 0
  %v230 = vsel %vm204, %v179, 0
  %v233 = vsel %vm204, %v180, 0
  %v236 = vsel %vm204, %v181, 0
  %v239 = vsel %vm204, %v182, 0
  %v242 = vsel %vm204, %v183, 0
  %v245 = vsel %vm204, %v184, 0
  %v248 = vsel %vm204, %v185, 0
  %v251 = vsel %vm204, %v186, 0
  %v254 = vsel %vm204, %v187, 0
  %v257 = vsel %vm204, %v188, 0
  %v260 = vsel %vm204, %v189, 0
  %v263 = vsel %vm204, %v190, 0
  %v266 = vsel %vm204, %v191, 0
  %v269 = vsel %vm204, %v192, 0
  %v272 = vsel %vm204, %v193, 0
  %v275 = vsel %vm204, %v194, 0
  %v278 = vsel %vm204, %v195, 0
  %v281 = vsel %vm204, %v196, 0
  %v284 = vsel %vm204, %v197, 0
  %v287 = vsel %vm204, %v198, 0
  %v290 = vsel %vm204, %v199, 0
  %v293 = vsel %vm204, %v200, 0
  %v296 = vsel %vm204, %v201, 0
  %v299 = vsel %vm204, %v202, 0
  %vm301 = vcmask 1041408
  %v303 = vsel %vm301, %v203, 0
  %305 = vmatprep.subr.bf16.mxu0 0
  %306 = vmatpush1.bf16.msra.mxu0 0
  %307 = vmatprep.subr.bf16.mxu0 0
  %308 = vmatpush1.bf16.msra.mxu0 0
  %309 = vmatprep.subr.bf16.mxu0 0
  %310 = vmatpush1.bf16.msra.mxu0 0
  %311 = vmatprep.subr.bf16.mxu0 0
  %312 = vmatpush1.bf16.msra.mxu0 0
  %313 = vmatprep.subr.bf16.mxu0 0
  %314 = vmatpush1.bf16.msra.mxu0 0
  %315 = vmatprep.subr.bf16.mxu0 0
  %316 = vmatpush1.bf16.msra.mxu0 0
  %317 = vmatprep.subr.bf16.mxu0 0
  %318 = vmatpush1.bf16.msra.mxu0 0
  %319 = vmatprep.subr.bf16.mxu0 0
  %320 = vmatpush1.bf16.msra.mxu0 %v303
  %321 = vmatprep.subr.bf16.mxu0 0
  %322 = vmatpush2.bf16.msra.mxu0 0
  %323 = vmatprep.subr.bf16.mxu0 0
  %324 = vmatpush2.bf16.msra.mxu0 0
  %325 = vmatprep.subr.bf16.mxu0 0
  %326 = vmatpush2.bf16.msra.mxu0 0
  %327 = vmatprep.subr.bf16.mxu0 0
  %328 = vmatpush2.bf16.msra.mxu0 0
  %329 = vmatprep.subr.bf16.mxu0 0
  %330 = vmatpush2.bf16.msra.mxu0 0
  %331 = vmatprep.subr.bf16.mxu0 0
  %332 = vmatpush2.bf16.msra.mxu0 0
  %333 = vmatprep.subr.bf16.mxu0 0
  %334 = vmatpush2.bf16.msra.mxu0 0
  %335 = vmatprep.subr.bf16.mxu0 0
  %336 = vmatpush2.bf16.msra.mxu0 0
  %337 = vmatprep.mubr.bf16.mxu0 0
  %338 = vmatmul.mubr.bf16.gmra.mxu0 %v206
  %v339 = vpop.f32.mrf.mxu0
  %v340 = vadd.f32 0.0, %v339
  %v341 = vpop.f32.mrf.mxu0
  %v342 = vpop.f32.mrf.mxu0
  %v343 = vadd.f32 0.0, %v342
  %v344 = vpop.f32.mrf.mxu0
  %345 = vmatprep.mubr.bf16.mxu0 0
  %346 = vmatmul.mubr.bf16.gmra.mxu0 %v209
  %v347 = vpop.f32.mrf.mxu0
  %v348 = vadd.f32 0.0, %v347
  %v349 = vpop.f32.mrf.mxu0
  %v350 = vpop.f32.mrf.mxu0
  %v351 = vadd.f32 0.0, %v350
  %v352 = vpop.f32.mrf.mxu0
  %353 = vmatprep.mubr.bf16.mxu0 0
  %354 = vmatmul.mubr.bf16.gmra.mxu0 %v212
  %v355 = vpop.f32.mrf.mxu0
  %v356 = vadd.f32 0.0, %v355
  %v357 = vpop.f32.mrf.mxu0
  %v358 = vpop.f32.mrf.mxu0
  %v359 = vadd.f32 0.0, %v358
  %v360 = vpop.f32.mrf.mxu0
  %361 = vmatprep.mubr.bf16.mxu0 0
  %362 = vmatmul.mubr.bf16.gmra.mxu0 %v215
  %v363 = vpop.f32.mrf.mxu0
  %v364 = vadd.f32 0.0, %v363
  %v365 = vpop.f32.mrf.mxu0
  %v366 = vpop.f32.mrf.mxu0
  %v367 = vadd.f32 0.0, %v366
  %v368 = vpop.f32.mrf.mxu0
  %369 = vmatprep.mubr.bf16.mxu0 0
  %370 = vmatmul.mubr.bf16.gmra.mxu0 %v218
  %v371 = vpop.f32.mrf.mxu0
  %v372 = vadd.f32 0.0, %v371
  %v373 = vpop.f32.mrf.mxu0
  %v374 = vpop.f32.mrf.mxu0
  %v375 = vadd.f32 0.0, %v374
  %v376 = vpop.f32.mrf.mxu0
  %377 = vmatprep.mubr.bf16.mxu0 0
  %378 = vmatmul.mubr.bf16.gmra.mxu0 %v221
  %v379 = vpop.f32.mrf.mxu0
  %v380 = vadd.f32 0.0, %v379
  %v381 = vpop.f32.mrf.mxu0
  %v382 = vpop.f32.mrf.mxu0
  %v383 = vadd.f32 0.0, %v382
  %v384 = vpop.f32.mrf.mxu0
  %385 = vmatprep.mubr.bf16.mxu0 0
  %386 = vmatmul.mubr.bf16.gmra.mxu0 %v224
  %v387 = vpop.f32.mrf.mxu0
  %v388 = vadd.f32 0.0, %v387
  %v389 = vpop.f32.mrf.mxu0
  %v390 = vpop.f32.mrf.mxu0
  %v391 = vadd.f32 0.0, %v390
  %v392 = vpop.f32.mrf.mxu0
  %393 = vmatprep.mubr.bf16.mxu0 0
  %394 = vmatmul.mubr.bf16.gmra.mxu0 %v227
  %v395 = vpop.f32.mrf.mxu0
  %v396 = vadd.f32 0.0, %v395
  %v397 = vpop.f32.mrf.mxu0
  %v398 = vpop.f32.mrf.mxu0
  %v399 = vadd.f32 0.0, %v398
  %v400 = vpop.f32.mrf.mxu0
  %401 = vmatprep.mubr.bf16.mxu0 0
  %402 = vmatmul.mubr.bf16.gmra.mxu0 %v230
  %v403 = vpop.f32.mrf.mxu0
  %v404 = vadd.f32 0.0, %v403
  %v405 = vpop.f32.mrf.mxu0
  %v406 = vpop.f32.mrf.mxu0
  %v407 = vadd.f32 0.0, %v406
  %v408 = vpop.f32.mrf.mxu0
  %409 = vmatprep.mubr.bf16.mxu0 0
  %410 = vmatmul.mubr.bf16.gmra.mxu0 %v233
  %v411 = vpop.f32.mrf.mxu0
  %v412 = vadd.f32 0.0, %v411
  %v413 = vpop.f32.mrf.mxu0
  %v414 = vpop.f32.mrf.mxu0
  %v415 = vadd.f32 0.0, %v414
  %v416 = vpop.f32.mrf.mxu0
  %417 = vmatprep.mubr.bf16.mxu0 0
  %418 = vmatmul.mubr.bf16.gmra.mxu0 %v236
  %v419 = vpop.f32.mrf.mxu0
  %v420 = vadd.f32 0.0, %v419
  %v421 = vpop.f32.mrf.mxu0
  %v422 = vpop.f32.mrf.mxu0
  %v423 = vadd.f32 0.0, %v422
  %v424 = vpop.f32.mrf.mxu0
  %425 = vmatprep.mubr.bf16.mxu0 0
  %426 = vmatmul.mubr.bf16.gmra.mxu0 %v239
  %v427 = vpop.f32.mrf.mxu0
  %v428 = vadd.f32 0.0, %v427
  %v429 = vpop.f32.mrf.mxu0
  %v430 = vpop.f32.mrf.mxu0
  %v431 = vadd.f32 0.0, %v430
  %v432 = vpop.f32.mrf.mxu0
  %433 = vmatprep.mubr.bf16.mxu0 0
  %434 = vmatmul.mubr.bf16.gmra.mxu0 %v242
  %v435 = vpop.f32.mrf.mxu0
  %v436 = vadd.f32 0.0, %v435
  %v437 = vpop.f32.mrf.mxu0
  %v438 = vpop.f32.mrf.mxu0
  %v439 = vadd.f32 0.0, %v438
  %v440 = vpop.f32.mrf.mxu0
  %441 = vmatprep.mubr.bf16.mxu0 0
  %442 = vmatmul.mubr.bf16.gmra.mxu0 %v245
  %v443 = vpop.f32.mrf.mxu0
  %v444 = vadd.f32 0.0, %v443
  %v445 = vpop.f32.mrf.mxu0
  %v446 = vpop.f32.mrf.mxu0
  %v447 = vadd.f32 0.0, %v446
  %v448 = vpop.f32.mrf.mxu0
  %449 = vmatprep.mubr.bf16.mxu0 0
  %450 = vmatmul.mubr.bf16.gmra.mxu0 %v248
  %v451 = vpop.f32.mrf.mxu0
  %v452 = vadd.f32 0.0, %v451
  %v453 = vpop.f32.mrf.mxu0
  %v454 = vpop.f32.mrf.mxu0
  %v455 = vadd.f32 0.0, %v454
  %v456 = vpop.f32.mrf.mxu0
  %457 = vmatprep.mubr.bf16.mxu0 0
  %458 = vmatmul.mubr.bf16.gmra.mxu0 %v251
  %v459 = vpop.f32.mrf.mxu0
  %v460 = vadd.f32 0.0, %v459
  %v461 = vpop.f32.mrf.mxu0
  %v462 = vpop.f32.mrf.mxu0
  %v463 = vadd.f32 0.0, %v462
  %v464 = vpop.f32.mrf.mxu0
  %465 = vmatprep.mubr.bf16.mxu0 0
  %466 = vmatmul.mubr.bf16.gmra.mxu0 %v254
  %v467 = vpop.f32.mrf.mxu0
  %v468 = vadd.f32 0.0, %v467
  %v469 = vpop.f32.mrf.mxu0
  %v470 = vpop.f32.mrf.mxu0
  %v471 = vadd.f32 0.0, %v470
  %v472 = vpop.f32.mrf.mxu0
  %473 = vmatprep.mubr.bf16.mxu0 0
  %474 = vmatmul.mubr.bf16.gmra.mxu0 %v257
  %v475 = vpop.f32.mrf.mxu0
  %v476 = vadd.f32 0.0, %v475
  %v477 = vpop.f32.mrf.mxu0
  %v478 = vpop.f32.mrf.mxu0
  %v479 = vadd.f32 0.0, %v478
  %v480 = vpop.f32.mrf.mxu0
  %481 = vmatprep.mubr.bf16.mxu0 0
  %482 = vmatmul.mubr.bf16.gmra.mxu0 %v260
  %v483 = vpop.f32.mrf.mxu0
  %v484 = vadd.f32 0.0, %v483
  %v485 = vpop.f32.mrf.mxu0
  %v486 = vpop.f32.mrf.mxu0
  %v487 = vadd.f32 0.0, %v486
  %v488 = vpop.f32.mrf.mxu0
  %489 = vmatprep.mubr.bf16.mxu0 0
  %490 = vmatmul.mubr.bf16.gmra.mxu0 %v263
  %v491 = vpop.f32.mrf.mxu0
  %v492 = vadd.f32 0.0, %v491
  %v493 = vpop.f32.mrf.mxu0
  %v494 = vpop.f32.mrf.mxu0
  %v495 = vadd.f32 0.0, %v494
  %v496 = vpop.f32.mrf.mxu0
  %497 = vmatprep.mubr.bf16.mxu0 0
  %498 = vmatmul.mubr.bf16.gmra.mxu0 %v266
  %v499 = vpop.f32.mrf.mxu0
  %v500 = vadd.f32 0.0, %v499
  %v501 = vpop.f32.mrf.mxu0
  %v502 = vpop.f32.mrf.mxu0
  %v503 = vadd.f32 0.0, %v502
  %v504 = vpop.f32.mrf.mxu0
  %505 = vmatprep.mubr.bf16.mxu0 0
  %506 = vmatmul.mubr.bf16.gmra.mxu0 %v269
  %v507 = vpop.f32.mrf.mxu0
  %v508 = vadd.f32 0.0, %v507
  %v509 = vpop.f32.mrf.mxu0
  %v510 = vpop.f32.mrf.mxu0
  %v511 = vadd.f32 0.0, %v510
  %v512 = vpop.f32.mrf.mxu0
  %513 = vmatprep.mubr.bf16.mxu0 0
  %514 = vmatmul.mubr.bf16.gmra.mxu0 %v272
  %v515 = vpop.f32.mrf.mxu0
  %v516 = vadd.f32 0.0, %v515
  %v517 = vpop.f32.mrf.mxu0
  %v518 = vpop.f32.mrf.mxu0
  %v519 = vadd.f32 0.0, %v518
  %v520 = vpop.f32.mrf.mxu0
  %521 = vmatprep.mubr.bf16.mxu0 0
  %522 = vmatmul.mubr.bf16.gmra.mxu0 %v275
  %v523 = vpop.f32.mrf.mxu0
  %v524 = vadd.f32 0.0, %v523
  %v525 = vpop.f32.mrf.mxu0
  %v526 = vpop.f32.mrf.mxu0
  %v527 = vadd.f32 0.0, %v526
  %v528 = vpop.f32.mrf.mxu0
  %529 = vmatprep.mubr.bf16.mxu0 0
  %530 = vmatmul.mubr.bf16.gmra.mxu0 %v278
  %v531 = vpop.f32.mrf.mxu0
  %v532 = vadd.f32 0.0, %v531
  %v533 = vpop.f32.mrf.mxu0
  %v534 = vpop.f32.mrf.mxu0
  %v535 = vadd.f32 0.0, %v534
  %v536 = vpop.f32.mrf.mxu0
  %537 = vmatprep.mubr.bf16.mxu0 0
  %538 = vmatmul.mubr.bf16.gmra.mxu0 %v281
  %v539 = vpop.f32.mrf.mxu0
  %v540 = vadd.f32 0.0, %v539
  %v541 = vpop.f32.mrf.mxu0
  %v542 = vpop.f32.mrf.mxu0
  %v543 = vadd.f32 0.0, %v542
  %v544 = vpop.f32.mrf.mxu0
  %545 = vmatprep.mubr.bf16.mxu0 0
  %546 = vmatmul.mubr.bf16.gmra.mxu0 %v284
  %v547 = vpop.f32.mrf.mxu0
  %v548 = vadd.f32 0.0, %v547
  %v549 = vpop.f32.mrf.mxu0
  %v550 = vpop.f32.mrf.mxu0
  %v551 = vadd.f32 0.0, %v550
  %v552 = vpop.f32.mrf.mxu0
  %553 = vmatprep.mubr.bf16.mxu0 0
  %554 = vmatmul.mubr.bf16.gmra.mxu0 %v287
  %v555 = vpop.f32.mrf.mxu0
  %v556 = vadd.f32 0.0, %v555
  %v557 = vpop.f32.mrf.mxu0
  %v558 = vpop.f32.mrf.mxu0
  %v559 = vadd.f32 0.0, %v558
  %v560 = vpop.f32.mrf.mxu0
  %561 = vmatprep.mubr.bf16.mxu0 0
  %562 = vmatmul.mubr.bf16.gmra.mxu0 %v290
  %v563 = vpop.f32.mrf.mxu0
  %v564 = vadd.f32 0.0, %v563
  %v565 = vpop.f32.mrf.mxu0
  %v566 = vpop.f32.mrf.mxu0
  %v567 = vadd.f32 0.0, %v566
  %v568 = vpop.f32.mrf.mxu0
  %569 = vmatprep.mubr.bf16.mxu0 0
  %570 = vmatmul.mubr.bf16.gmra.mxu0 %v293
  %v571 = vpop.f32.mrf.mxu0
  %v572 = vadd.f32 0.0, %v571
  %v573 = vpop.f32.mrf.mxu0
  %v574 = vpop.f32.mrf.mxu0
  %v575 = vadd.f32 0.0, %v574
  %v576 = vpop.f32.mrf.mxu0
  %577 = vmatprep.mubr.bf16.mxu0 0
  %578 = vmatmul.mubr.bf16.gmra.mxu0 %v296
  %v579 = vpop.f32.mrf.mxu0
  %v580 = vadd.f32 0.0, %v579
  %v581 = vpop.f32.mrf.mxu0
  %v582 = vpop.f32.mrf.mxu0
  %v583 = vadd.f32 0.0, %v582
  %v584 = vpop.f32.mrf.mxu0
  %585 = vmatprep.mubr.bf16.mxu0 0
  %586 = vmatmul.mubr.bf16.gmra.mxu0 %v299
  %v587 = vpop.f32.mrf.mxu0
  %v588 = vadd.f32 0.0, %v587
  %v589 = vpop.f32.mrf.mxu0
  %v590 = vpop.f32.mrf.mxu0
  %v591 = vadd.f32 0.0, %v590
  %v592 = vpop.f32.mrf.mxu0
  %593 = vdwg.mxu0
  %v658 = vunpack.c.l.b16 %v27
  %v659 = vunpack.c.l.b16 %v28
  %v660 = vunpack.c.l.b16 %v29
  %v661 = vunpack.c.l.b16 %v30
  %v662 = vunpack.c.l.b16 %v31
  %v663 = vunpack.c.l.b16 %v32
  %v664 = vunpack.c.l.b16 %v33
  %v665 = vunpack.c.l.b16 %v34
  %v666 = vunpack.c.l.b16 %v35
  %v667 = vunpack.c.l.b16 %v36
  %v668 = vunpack.c.l.b16 %v37
  %v669 = vunpack.c.l.b16 %v38
  %v670 = vunpack.c.l.b16 %v39
  %v671 = vunpack.c.l.b16 %v40
  %v672 = vunpack.c.l.b16 %v41
  %v673 = vunpack.c.l.b16 %v42
  %v674 = vunpack.c.l.b16 %v43
  %v675 = vunpack.c.l.b16 %v44
  %v676 = vunpack.c.l.b16 %v45
  %v677 = vunpack.c.l.b16 %v46
  %v678 = vunpack.c.l.b16 %v47
  %v679 = vunpack.c.l.b16 %v48
  %v680 = vunpack.c.l.b16 %v49
  %v681 = vunpack.c.l.b16 %v50
  %v682 = vunpack.c.l.b16 %v51
  %v683 = vunpack.c.l.b16 %v52
  %v684 = vunpack.c.l.b16 %v53
  %v685 = vunpack.c.l.b16 %v54
  %v686 = vunpack.c.l.b16 %v55
  %v687 = vunpack.c.l.b16 %v56
  %v688 = vunpack.c.l.b16 %v57
  %v689 = vunpack.c.l.b16 %v58
  %v690 = vunpack.c.l.b16 %v59
  %v691 = vunpack.c.l.b16 %v60
  %v692 = vunpack.c.l.b16 %v61
  %v693 = vunpack.c.l.b16 %v62
  %v694 = vunpack.c.l.b16 %v63
  %v695 = vunpack.c.l.b16 %v64
  %v696 = vunpack.c.l.b16 %v65
  %v697 = vunpack.c.l.b16 %v66
  %v698 = vunpack.c.l.b16 %v67
  %v699 = vunpack.c.l.b16 %v68
  %v700 = vunpack.c.l.b16 %v69
  %v701 = vunpack.c.l.b16 %v70
  %v702 = vunpack.c.l.b16 %v71
  %v703 = vunpack.c.l.b16 %v72
  %v704 = vunpack.c.l.b16 %v73
  %v705 = vunpack.c.l.b16 %v74
  %v706 = vunpack.c.l.b16 %v75
  %v707 = vunpack.c.l.b16 %v76
  %v708 = vunpack.c.l.b16 %v77
  %v709 = vunpack.c.l.b16 %v78
  %v710 = vunpack.c.l.b16 %v79
  %v711 = vunpack.c.l.b16 %v80
  %v712 = vunpack.c.l.b16 %v81
  %v713 = vunpack.c.l.b16 %v82
  %v714 = vunpack.c.l.b16 %v83
  %v715 = vunpack.c.l.b16 %v84
  %v716 = vunpack.c.l.b16 %v85
  %v717 = vunpack.c.l.b16 %v86
  %v718 = vunpack.c.l.b16 %v87
  %v719 = vunpack.c.l.b16 %v88
  %v720 = vunpack.c.l.b16 %v89
  %v721 = vunpack.c.l.b16 %v90
  %v722 = vpack.c.b16 %v659, %v658
  %v723 = vpack.c.b16 %v661, %v660
  %v724 = vpack.c.b16 %v663, %v662
  %v725 = vpack.c.b16 %v665, %v664
  %v726 = vpack.c.b16 %v667, %v666
  %v727 = vpack.c.b16 %v669, %v668
  %v728 = vpack.c.b16 %v671, %v670
  %v729 = vpack.c.b16 %v673, %v672
  %v730 = vpack.c.b16 %v675, %v674
  %v731 = vpack.c.b16 %v677, %v676
  %v732 = vpack.c.b16 %v679, %v678
  %v733 = vpack.c.b16 %v681, %v680
  %v734 = vpack.c.b16 %v683, %v682
  %v735 = vpack.c.b16 %v685, %v684
  %v736 = vpack.c.b16 %v687, %v686
  %v737 = vpack.c.b16 %v689, %v688
  %v738 = vpack.c.b16 %v691, %v690
  %v739 = vpack.c.b16 %v693, %v692
  %v740 = vpack.c.b16 %v695, %v694
  %v741 = vpack.c.b16 %v697, %v696
  %v742 = vpack.c.b16 %v699, %v698
  %v743 = vpack.c.b16 %v701, %v700
  %v744 = vpack.c.b16 %v703, %v702
  %v745 = vpack.c.b16 %v705, %v704
  %v746 = vpack.c.b16 %v707, %v706
  %v747 = vpack.c.b16 %v709, %v708
  %v748 = vpack.c.b16 %v711, %v710
  %v749 = vpack.c.b16 %v713, %v712
  %v750 = vpack.c.b16 %v715, %v714
  %v751 = vpack.c.b16 %v717, %v716
  %v752 = vpack.c.b16 %v719, %v718
  %v753 = vpack.c.b16 %v721, %v720
  %v802 = vunpack.c.l.b16 %v91
  %v803 = vunpack.c.l.b16 %v92
  %v804 = vunpack.c.l.b16 %v93
  %v805 = vunpack.c.l.b16 %v94
  %v806 = vunpack.c.l.b16 %v95
  %v807 = vunpack.c.l.b16 %v96
  %v808 = vunpack.c.l.b16 %v97
  %v809 = vunpack.c.l.b16 %v98
  %v810 = vunpack.c.l.b16 %v99
  %v811 = vunpack.c.l.b16 %v100
  %v812 = vunpack.c.l.b16 %v101
  %v813 = vunpack.c.l.b16 %v102
  %v814 = vunpack.c.l.b16 %v103
  %v815 = vunpack.c.l.b16 %v104
  %v816 = vunpack.c.l.b16 %v105
  %v817 = vunpack.c.l.b16 %v106
  %v818 = vpack.c.b16 %v803, %v802
  %v819 = vpack.c.b16 %v805, %v804
  %v820 = vpack.c.b16 %v807, %v806
  %v821 = vpack.c.b16 %v809, %v808
  %v822 = vpack.c.b16 %v811, %v810
  %v823 = vpack.c.b16 %v813, %v812
  %v824 = vpack.c.b16 %v815, %v814
  %v825 = vpack.c.b16 %v817, %v816
  %834 = vmatprep.subr.bf16.mxu0 0
  %835 = vmatpush1.bf16.msra.mxu0 %v825
  %836 = vmatprep.subr.bf16.mxu0 0
  %837 = vmatpush1.bf16.msra.mxu0 %v824
  %838 = vmatprep.subr.bf16.mxu0 0
  %839 = vmatpush1.bf16.msra.mxu0 %v823
  %840 = vmatprep.subr.bf16.mxu0 0
  %841 = vmatpush1.bf16.msra.mxu0 %v822
  %842 = vmatprep.subr.bf16.mxu0 0
  %843 = vmatpush1.bf16.msra.mxu0 %v821
  %844 = vmatprep.subr.bf16.mxu0 0
  %845 = vmatpush1.bf16.msra.mxu0 %v820
  %846 = vmatprep.subr.bf16.mxu0 0
  %847 = vmatpush1.bf16.msra.mxu0 %v819
  %848 = vmatprep.subr.bf16.mxu0 0
  %849 = vmatpush1.bf16.msra.mxu0 %v818
  %850 = vmatprep.subr.bf16.mxu0 0
  %851 = vmatpush2.bf16.msra.mxu0 0
  %852 = vmatprep.subr.bf16.mxu0 0
  %853 = vmatpush2.bf16.msra.mxu0 0
  %854 = vmatprep.subr.bf16.mxu0 0
  %855 = vmatpush2.bf16.msra.mxu0 0
  %856 = vmatprep.subr.bf16.mxu0 0
  %857 = vmatpush2.bf16.msra.mxu0 0
  %858 = vmatprep.subr.bf16.mxu0 0
  %859 = vmatpush2.bf16.msra.mxu0 0
  %860 = vmatprep.subr.bf16.mxu0 0
  %861 = vmatpush2.bf16.msra.mxu0 0
  %862 = vmatprep.subr.bf16.mxu0 0
  %863 = vmatpush2.bf16.msra.mxu0 0
  %864 = vmatprep.subr.bf16.mxu0 0
  %865 = vmatpush2.bf16.msra.mxu0 0
  %866 = vmatprep.mubr.bf16.mxu0 0
  %867 = vmatmul.mubr.bf16.gmra.mxu0 %v722
  %v868 = vpop.f32.mrf.mxu0
  %v869 = vadd.f32 %v340, %v868
  %v870 = vpop.f32.mrf.mxu0
  %v871 = vpop.f32.mrf.mxu0
  %v872 = vadd.f32 %v343, %v871
  %v873 = vpop.f32.mrf.mxu0
  %874 = vmatprep.mubr.bf16.mxu0 0
  %875 = vmatmul.mubr.bf16.gmra.mxu0 %v723
  %v876 = vpop.f32.mrf.mxu0
  %v877 = vadd.f32 %v348, %v876
  %v878 = vpop.f32.mrf.mxu0
  %v879 = vpop.f32.mrf.mxu0
  %v880 = vadd.f32 %v351, %v879
  %v881 = vpop.f32.mrf.mxu0
  %882 = vmatprep.mubr.bf16.mxu0 0
  %883 = vmatmul.mubr.bf16.gmra.mxu0 %v724
  %v884 = vpop.f32.mrf.mxu0
  %v885 = vadd.f32 %v356, %v884
  %v886 = vpop.f32.mrf.mxu0
  %v887 = vpop.f32.mrf.mxu0
  %v888 = vadd.f32 %v359, %v887
  %v889 = vpop.f32.mrf.mxu0
  %890 = vmatprep.mubr.bf16.mxu0 0
  %891 = vmatmul.mubr.bf16.gmra.mxu0 %v725
  %v892 = vpop.f32.mrf.mxu0
  %v893 = vadd.f32 %v364, %v892
  %v894 = vpop.f32.mrf.mxu0
  %v895 = vpop.f32.mrf.mxu0
  %v896 = vadd.f32 %v367, %v895
  %v897 = vpop.f32.mrf.mxu0
  %898 = vmatprep.mubr.bf16.mxu0 0
  %899 = vmatmul.mubr.bf16.gmra.mxu0 %v726
  %v900 = vpop.f32.mrf.mxu0
  %v901 = vadd.f32 %v372, %v900
  %v902 = vpop.f32.mrf.mxu0
  %v903 = vpop.f32.mrf.mxu0
  %v904 = vadd.f32 %v375, %v903
  %v905 = vpop.f32.mrf.mxu0
  %906 = vmatprep.mubr.bf16.mxu0 0
  %907 = vmatmul.mubr.bf16.gmra.mxu0 %v727
  %v908 = vpop.f32.mrf.mxu0
  %v909 = vadd.f32 %v380, %v908
  %v910 = vpop.f32.mrf.mxu0
  %v911 = vpop.f32.mrf.mxu0
  %v912 = vadd.f32 %v383, %v911
  %v913 = vpop.f32.mrf.mxu0
  %914 = vmatprep.mubr.bf16.mxu0 0
  %915 = vmatmul.mubr.bf16.gmra.mxu0 %v728
  %v916 = vpop.f32.mrf.mxu0
  %v917 = vadd.f32 %v388, %v916
  %v918 = vpop.f32.mrf.mxu0
  %v919 = vpop.f32.mrf.mxu0
  %v920 = vadd.f32 %v391, %v919
  %v921 = vpop.f32.mrf.mxu0
  %922 = vmatprep.mubr.bf16.mxu0 0
  %923 = vmatmul.mubr.bf16.gmra.mxu0 %v729
  %v924 = vpop.f32.mrf.mxu0
  %v925 = vadd.f32 %v396, %v924
  %v926 = vpop.f32.mrf.mxu0
  %v927 = vpop.f32.mrf.mxu0
  %v928 = vadd.f32 %v399, %v927
  %v929 = vpop.f32.mrf.mxu0
  %930 = vmatprep.mubr.bf16.mxu0 0
  %931 = vmatmul.mubr.bf16.gmra.mxu0 %v730
  %v932 = vpop.f32.mrf.mxu0
  %v933 = vadd.f32 %v404, %v932
  %v934 = vpop.f32.mrf.mxu0
  %v935 = vpop.f32.mrf.mxu0
  %v936 = vadd.f32 %v407, %v935
  %v937 = vpop.f32.mrf.mxu0
  %938 = vmatprep.mubr.bf16.mxu0 0
  %939 = vmatmul.mubr.bf16.gmra.mxu0 %v731
  %v940 = vpop.f32.mrf.mxu0
  %v941 = vadd.f32 %v412, %v940
  %v942 = vpop.f32.mrf.mxu0
  %v943 = vpop.f32.mrf.mxu0
  %v944 = vadd.f32 %v415, %v943
  %v945 = vpop.f32.mrf.mxu0
  %946 = vmatprep.mubr.bf16.mxu0 0
  %947 = vmatmul.mubr.bf16.gmra.mxu0 %v732
  %v948 = vpop.f32.mrf.mxu0
  %v949 = vadd.f32 %v420, %v948
  %v950 = vpop.f32.mrf.mxu0
  %v951 = vpop.f32.mrf.mxu0
  %v952 = vadd.f32 %v423, %v951
  %v953 = vpop.f32.mrf.mxu0
  %954 = vmatprep.mubr.bf16.mxu0 0
  %955 = vmatmul.mubr.bf16.gmra.mxu0 %v733
  %v956 = vpop.f32.mrf.mxu0
  %v957 = vadd.f32 %v428, %v956
  %v958 = vpop.f32.mrf.mxu0
  %v959 = vpop.f32.mrf.mxu0
  %v960 = vadd.f32 %v431, %v959
  %v961 = vpop.f32.mrf.mxu0
  %962 = vmatprep.mubr.bf16.mxu0 0
  %963 = vmatmul.mubr.bf16.gmra.mxu0 %v734
  %v964 = vpop.f32.mrf.mxu0
  %v965 = vadd.f32 %v436, %v964
  %v966 = vpop.f32.mrf.mxu0
  %v967 = vpop.f32.mrf.mxu0
  %v968 = vadd.f32 %v439, %v967
  %v969 = vpop.f32.mrf.mxu0
  %970 = vmatprep.mubr.bf16.mxu0 0
  %971 = vmatmul.mubr.bf16.gmra.mxu0 %v735
  %v972 = vpop.f32.mrf.mxu0
  %v973 = vadd.f32 %v444, %v972
  %v974 = vpop.f32.mrf.mxu0
  %v975 = vpop.f32.mrf.mxu0
  %v976 = vadd.f32 %v447, %v975
  %v977 = vpop.f32.mrf.mxu0
  %978 = vmatprep.mubr.bf16.mxu0 0
  %979 = vmatmul.mubr.bf16.gmra.mxu0 %v736
  %v980 = vpop.f32.mrf.mxu0
  %v981 = vadd.f32 %v452, %v980
  %v982 = vpop.f32.mrf.mxu0
  %v983 = vpop.f32.mrf.mxu0
  %v984 = vadd.f32 %v455, %v983
  %v985 = vpop.f32.mrf.mxu0
  %986 = vmatprep.mubr.bf16.mxu0 0
  %987 = vmatmul.mubr.bf16.gmra.mxu0 %v737
  %v988 = vpop.f32.mrf.mxu0
  %v989 = vadd.f32 %v460, %v988
  %v990 = vpop.f32.mrf.mxu0
  %v991 = vpop.f32.mrf.mxu0
  %v992 = vadd.f32 %v463, %v991
  %v993 = vpop.f32.mrf.mxu0
  %994 = vmatprep.mubr.bf16.mxu0 0
  %995 = vmatmul.mubr.bf16.gmra.mxu0 %v738
  %v996 = vpop.f32.mrf.mxu0
  %v997 = vadd.f32 %v468, %v996
  %v998 = vpop.f32.mrf.mxu0
  %v999 = vpop.f32.mrf.mxu0
  %v1000 = vadd.f32 %v471, %v999
  %v1001 = vpop.f32.mrf.mxu0
  %1002 = vmatprep.mubr.bf16.mxu0 0
  %1003 = vmatmul.mubr.bf16.gmra.mxu0 %v739
  %v1004 = vpop.f32.mrf.mxu0
  %v1005 = vadd.f32 %v476, %v1004
  %v1006 = vpop.f32.mrf.mxu0
  %v1007 = vpop.f32.mrf.mxu0
  %v1008 = vadd.f32 %v479, %v1007
  %v1009 = vpop.f32.mrf.mxu0
  %1010 = vmatprep.mubr.bf16.mxu0 0
  %1011 = vmatmul.mubr.bf16.gmra.mxu0 %v740
  %v1012 = vpop.f32.mrf.mxu0
  %v1013 = vadd.f32 %v484, %v1012
  %v1014 = vpop.f32.mrf.mxu0
  %v1015 = vpop.f32.mrf.mxu0
  %v1016 = vadd.f32 %v487, %v1015
  %v1017 = vpop.f32.mrf.mxu0
  %1018 = vmatprep.mubr.bf16.mxu0 0
  %1019 = vmatmul.mubr.bf16.gmra.mxu0 %v741
  %v1020 = vpop.f32.mrf.mxu0
  %v1021 = vadd.f32 %v492, %v1020
  %v1022 = vpop.f32.mrf.mxu0
  %v1023 = vpop.f32.mrf.mxu0
  %v1024 = vadd.f32 %v495, %v1023
  %v1025 = vpop.f32.mrf.mxu0
  %1026 = vmatprep.mubr.bf16.mxu0 0
  %1027 = vmatmul.mubr.bf16.gmra.mxu0 %v742
  %v1028 = vpop.f32.mrf.mxu0
  %v1029 = vadd.f32 %v500, %v1028
  %v1030 = vpop.f32.mrf.mxu0
  %v1031 = vpop.f32.mrf.mxu0
  %v1032 = vadd.f32 %v503, %v1031
  %v1033 = vpop.f32.mrf.mxu0
  %1034 = vmatprep.mubr.bf16.mxu0 0
  %1035 = vmatmul.mubr.bf16.gmra.mxu0 %v743
  %v1036 = vpop.f32.mrf.mxu0
  %v1037 = vadd.f32 %v508, %v1036
  %v1038 = vpop.f32.mrf.mxu0
  %v1039 = vpop.f32.mrf.mxu0
  %v1040 = vadd.f32 %v511, %v1039
  %v1041 = vpop.f32.mrf.mxu0
  %1042 = vmatprep.mubr.bf16.mxu0 0
  %1043 = vmatmul.mubr.bf16.gmra.mxu0 %v744
  %v1044 = vpop.f32.mrf.mxu0
  %v1045 = vadd.f32 %v516, %v1044
  %v1046 = vpop.f32.mrf.mxu0
  %v1047 = vpop.f32.mrf.mxu0
  %v1048 = vadd.f32 %v519, %v1047
  %v1049 = vpop.f32.mrf.mxu0
  %1050 = vmatprep.mubr.bf16.mxu0 0
  %1051 = vmatmul.mubr.bf16.gmra.mxu0 %v745
  %v1052 = vpop.f32.mrf.mxu0
  %v1053 = vadd.f32 %v524, %v1052
  %v1054 = vpop.f32.mrf.mxu0
  %v1055 = vpop.f32.mrf.mxu0
  %v1056 = vadd.f32 %v527, %v1055
  %v1057 = vpop.f32.mrf.mxu0
  %1058 = vmatprep.mubr.bf16.mxu0 0
  %1059 = vmatmul.mubr.bf16.gmra.mxu0 %v746
  %v1060 = vpop.f32.mrf.mxu0
  %v1061 = vadd.f32 %v532, %v1060
  %v1062 = vpop.f32.mrf.mxu0
  %v1063 = vpop.f32.mrf.mxu0
  %v1064 = vadd.f32 %v535, %v1063
  %v1065 = vpop.f32.mrf.mxu0
  %1066 = vmatprep.mubr.bf16.mxu0 0
  %1067 = vmatmul.mubr.bf16.gmra.mxu0 %v747
  %v1068 = vpop.f32.mrf.mxu0
  %v1069 = vadd.f32 %v540, %v1068
  %v1070 = vpop.f32.mrf.mxu0
  %v1071 = vpop.f32.mrf.mxu0
  %v1072 = vadd.f32 %v543, %v1071
  %v1073 = vpop.f32.mrf.mxu0
  %1074 = vmatprep.mubr.bf16.mxu0 0
  %1075 = vmatmul.mubr.bf16.gmra.mxu0 %v748
  %v1076 = vpop.f32.mrf.mxu0
  %v1077 = vadd.f32 %v548, %v1076
  %v1078 = vpop.f32.mrf.mxu0
  %v1079 = vpop.f32.mrf.mxu0
  %v1080 = vadd.f32 %v551, %v1079
  %v1081 = vpop.f32.mrf.mxu0
  %1082 = vmatprep.mubr.bf16.mxu0 0
  %1083 = vmatmul.mubr.bf16.gmra.mxu0 %v749
  %v1084 = vpop.f32.mrf.mxu0
  %v1085 = vadd.f32 %v556, %v1084
  %v1086 = vpop.f32.mrf.mxu0
  %v1087 = vpop.f32.mrf.mxu0
  %v1088 = vadd.f32 %v559, %v1087
  %v1089 = vpop.f32.mrf.mxu0
  %1090 = vmatprep.mubr.bf16.mxu0 0
  %1091 = vmatmul.mubr.bf16.gmra.mxu0 %v750
  %v1092 = vpop.f32.mrf.mxu0
  %v1093 = vadd.f32 %v564, %v1092
  %v1094 = vpop.f32.mrf.mxu0
  %v1095 = vpop.f32.mrf.mxu0
  %v1096 = vadd.f32 %v567, %v1095
  %v1097 = vpop.f32.mrf.mxu0
  %1098 = vmatprep.mubr.bf16.mxu0 0
  %1099 = vmatmul.mubr.bf16.gmra.mxu0 %v751
  %v1100 = vpop.f32.mrf.mxu0
  %v1101 = vadd.f32 %v572, %v1100
  %v1102 = vpop.f32.mrf.mxu0
  %v1103 = vpop.f32.mrf.mxu0
  %v1104 = vadd.f32 %v575, %v1103
  %v1105 = vpop.f32.mrf.mxu0
  %1106 = vmatprep.mubr.bf16.mxu0 0
  %1107 = vmatmul.mubr.bf16.gmra.mxu0 %v752
  %v1108 = vpop.f32.mrf.mxu0
  %v1109 = vadd.f32 %v580, %v1108
  %v1110 = vpop.f32.mrf.mxu0
  %v1111 = vpop.f32.mrf.mxu0
  %v1112 = vadd.f32 %v583, %v1111
  %v1113 = vpop.f32.mrf.mxu0
  %1114 = vmatprep.mubr.bf16.mxu0 0
  %1115 = vmatmul.mubr.bf16.gmra.mxu0 %v753
  %v1116 = vpop.f32.mrf.mxu0
  %v1117 = vadd.f32 %v588, %v1116
  %v1118 = vpop.f32.mrf.mxu0
  %v1119 = vpop.f32.mrf.mxu0
  %v1120 = vadd.f32 %v591, %v1119
  %v1121 = vpop.f32.mrf.mxu0
  %1122 = vdwg.mxu0
  %v1123 = vld [vmem:[%s4] sm:$0xf]
  %v1124 = vld [vmem:[%s4 + $0x4] sm:$0xf]
  %v1125 = vld [vmem:[%s4 + $0x8] sm:$0xf]
  %v1126 = vld [vmem:[%s4 + $0xc] sm:$0xf]
  %v1127 = vld [vmem:[%s4 + $0x10] sm:$0xf]
  %v1128 = vld [vmem:[%s4 + $0x14] sm:$0xf]
  %v1129 = vld [vmem:[%s4 + $0x18] sm:$0xf]
  %v1130 = vld [vmem:[%s4 + $0x1c] sm:$0xf]
  %v1131 = vld [vmem:[%s4 + $0x20] sm:$0xf]
  %v1132 = vld [vmem:[%s4 + $0x24] sm:$0xf]
  %v1133 = vld [vmem:[%s4 + $0x28] sm:$0xf]
  %v1134 = vld [vmem:[%s4 + $0x2c] sm:$0xf]
  %v1135 = vld [vmem:[%s4 + $0x30] sm:$0xf]
  %v1136 = vld [vmem:[%s4 + $0x34] sm:$0xf]
  %v1137 = vld [vmem:[%s4 + $0x38] sm:$0xf]
  %v1138 = vld [vmem:[%s4 + $0x3c] sm:$0xf]
  %v1139 = vld [vmem:[%s4 + $0x40] sm:$0xf]
  %v1140 = vld [vmem:[%s4 + $0x44] sm:$0xf]
  %v1141 = vld [vmem:[%s4 + $0x48] sm:$0xf]
  %v1142 = vld [vmem:[%s4 + $0x4c] sm:$0xf]
  %v1143 = vld [vmem:[%s4 + $0x50] sm:$0xf]
  %v1144 = vld [vmem:[%s4 + $0x54] sm:$0xf]
  %v1145 = vld [vmem:[%s4 + $0x58] sm:$0xf]
  %v1146 = vld [vmem:[%s4 + $0x5c] sm:$0xf]
  %v1147 = vld [vmem:[%s4 + $0x60] sm:$0xf]
  %v1148 = vld [vmem:[%s4 + $0x64] sm:$0xf]
  %v1149 = vld [vmem:[%s4 + $0x68] sm:$0xf]
  %v1150 = vld [vmem:[%s4 + $0x6c] sm:$0xf]
  %v1151 = vld [vmem:[%s4 + $0x70] sm:$0xf]
  %v1152 = vld [vmem:[%s4 + $0x74] sm:$0xf]
  %v1153 = vld [vmem:[%s4 + $0x78] sm:$0xf]
  %v1154 = vld [vmem:[%s4 + $0x7c] sm:$0xf]
  %v1155 = vld [vmem:[%s4 + $0x80] sm:$0xf]
  %v1156 = vld [vmem:[%s4 + $0x84] sm:$0xf]
  %v1157 = vld [vmem:[%s4 + $0x88] sm:$0xf]
  %v1158 = vld [vmem:[%s4 + $0x8c] sm:$0xf]
  %v1159 = vld [vmem:[%s4 + $0x90] sm:$0xf]
  %v1160 = vld [vmem:[%s4 + $0x94] sm:$0xf]
  %v1161 = vld [vmem:[%s4 + $0x98] sm:$0xf]
  %v1162 = vld [vmem:[%s4 + $0x9c] sm:$0xf]
  %v1163 = vld [vmem:[%s4 + $0xa0] sm:$0xf]
  %v1164 = vld [vmem:[%s4 + $0xa4] sm:$0xf]
  %v1165 = vld [vmem:[%s4 + $0xa8] sm:$0xf]
  %v1166 = vld [vmem:[%s4 + $0xac] sm:$0xf]
  %v1167 = vld [vmem:[%s4 + $0xb0] sm:$0xf]
  %v1168 = vld [vmem:[%s4 + $0xb4] sm:$0xf]
  %v1169 = vld [vmem:[%s4 + $0xb8] sm:$0xf]
  %v1170 = vld [vmem:[%s4 + $0xbc] sm:$0xf]
  %v1171 = vld [vmem:[%s4 + $0xc0] sm:$0xf]
  %v1172 = vld [vmem:[%s4 + $0xc4] sm:$0xf]
  %v1173 = vld [vmem:[%s4 + $0xc8] sm:$0xf]
  %v1174 = vld [vmem:[%s4 + $0xcc] sm:$0xf]
  %v1175 = vld [vmem:[%s4 + $0xd0] sm:$0xf]
  %v1176 = vld [vmem:[%s4 + $0xd4] sm:$0xf]
  %v1177 = vld [vmem:[%s4 + $0xd8] sm:$0xf]
  %v1178 = vld [vmem:[%s4 + $0xdc] sm:$0xf]
  %v1179 = vld [vmem:[%s4 + $0xe0] sm:$0xf]
  %v1180 = vld [vmem:[%s4 + $0xe4] sm:$0xf]
  %v1181 = vld [vmem:[%s4 + $0xe8] sm:$0xf]
  %v1182 = vld [vmem:[%s4 + $0xec] sm:$0xf]
  %v1183 = vld [vmem:[%s4 + $0xf0] sm:$0xf]
  %v1184 = vld [vmem:[%s4 + $0xf4] sm:$0xf]
  %v1185 = vld [vmem:[%s4 + $0xf8] sm:$0xf]
  %v1186 = vld [vmem:[%s4 + $0xfc] sm:$0xf]
  %v1187 = vld [vmem:[%s5] sm:$0x3]
  %v1252 = vunpack.c.l.b16 %v1123
  %v1253 = vunpack.c.l.b16 %v1124
  %v1254 = vunpack.c.l.b16 %v1125
  %v1255 = vunpack.c.l.b16 %v1126
  %v1256 = vunpack.c.l.b16 %v1127
  %v1257 = vunpack.c.l.b16 %v1128
  %v1258 = vunpack.c.l.b16 %v1129
  %v1259 = vunpack.c.l.b16 %v1130
  %v1260 = vunpack.c.l.b16 %v1131
  %v1261 = vunpack.c.l.b16 %v1132
  %v1262 = vunpack.c.l.b16 %v1133
  %v1263 = vunpack.c.l.b16 %v1134
  %v1264 = vunpack.c.l.b16 %v1135
  %v1265 = vunpack.c.l.b16 %v1136
  %v1266 = vunpack.c.l.b16 %v1137
  %v1267 = vunpack.c.l.b16 %v1138
  %v1268 = vunpack.c.l.b16 %v1139
  %v1269 = vunpack.c.l.b16 %v1140
  %v1270 = vunpack.c.l.b16 %v1141
  %v1271 = vunpack.c.l.b16 %v1142
  %v1272 = vunpack.c.l.b16 %v1143
  %v1273 = vunpack.c.l.b16 %v1144
  %v1274 = vunpack.c.l.b16 %v1145
  %v1275 = vunpack.c.l.b16 %v1146
  %v1276 = vunpack.c.l.b16 %v1147
  %v1277 = vunpack.c.l.b16 %v1148
  %v1278 = vunpack.c.l.b16 %v1149
  %v1279 = vunpack.c.l.b16 %v1150
  %v1280 = vunpack.c.l.b16 %v1151
  %v1281 = vunpack.c.l.b16 %v1152
  %v1282 = vunpack.c.l.b16 %v1153
  %v1283 = vunpack.c.l.b16 %v1154
  %v1284 = vunpack.c.l.b16 %v1155
  %v1285 = vunpack.c.l.b16 %v1156
  %v1286 = vunpack.c.l.b16 %v1157
  %v1287 = vunpack.c.l.b16 %v1158
  %v1288 = vunpack.c.l.b16 %v1159
  %v1289 = vunpack.c.l.b16 %v1160
  %v1290 = vunpack.c.l.b16 %v1161
  %v1291 = vunpack.c.l.b16 %v1162
  %v1292 = vunpack.c.l.b16 %v1163
  %v1293 = vunpack.c.l.b16 %v1164
  %v1294 = vunpack.c.l.b16 %v1165
  %v1295 = vunpack.c.l.b16 %v1166
  %v1296 = vunpack.c.l.b16 %v1167
  %v1297 = vunpack.c.l.b16 %v1168
  %v1298 = vunpack.c.l.b16 %v1169
  %v1299 = vunpack.c.l.b16 %v1170
  %v1300 = vunpack.c.l.b16 %v1171
  %v1301 = vunpack.c.l.b16 %v1172
  %v1302 = vunpack.c.l.b16 %v1173
  %v1303 = vunpack.c.l.b16 %v1174
  %v1304 = vunpack.c.l.b16 %v1175
  %v1305 = vunpack.c.l.b16 %v1176
  %v1306 = vunpack.c.l.b16 %v1177
  %v1307 = vunpack.c.l.b16 %v1178
  %v1308 = vunpack.c.l.b16 %v1179
  %v1309 = vunpack.c.l.b16 %v1180
  %v1310 = vunpack.c.l.b16 %v1181
  %v1311 = vunpack.c.l.b16 %v1182
  %v1312 = vunpack.c.l.b16 %v1183
  %v1313 = vunpack.c.l.b16 %v1184
  %v1314 = vunpack.c.l.b16 %v1185
  %v1315 = vunpack.c.l.b16 %v1186
  %v1316 = vpack.c.b16 %v1253, %v1252
  %v1317 = vpack.c.b16 %v1255, %v1254
  %v1318 = vpack.c.b16 %v1257, %v1256
  %v1319 = vpack.c.b16 %v1259, %v1258
  %v1320 = vpack.c.b16 %v1261, %v1260
  %v1321 = vpack.c.b16 %v1263, %v1262
  %v1322 = vpack.c.b16 %v1265, %v1264
  %v1323 = vpack.c.b16 %v1267, %v1266
  %v1324 = vpack.c.b16 %v1269, %v1268
  %v1325 = vpack.c.b16 %v1271, %v1270
  %v1326 = vpack.c.b16 %v1273, %v1272
  %v1327 = vpack.c.b16 %v1275, %v1274
  %v1328 = vpack.c.b16 %v1277, %v1276
  %v1329 = vpack.c.b16 %v1279, %v1278
  %v1330 = vpack.c.b16 %v1281, %v1280
  %v1331 = vpack.c.b16 %v1283, %v1282
  %v1332 = vpack.c.b16 %v1285, %v1284
  %v1333 = vpack.c.b16 %v1287, %v1286
  %v1334 = vpack.c.b16 %v1289, %v1288
  %v1335 = vpack.c.b16 %v1291, %v1290
  %v1336 = vpack.c.b16 %v1293, %v1292
  %v1337 = vpack.c.b16 %v1295, %v1294
  %v1338 = vpack.c.b16 %v1297, %v1296
  %v1339 = vpack.c.b16 %v1299, %v1298
  %v1340 = vpack.c.b16 %v1301, %v1300
  %v1341 = vpack.c.b16 %v1303, %v1302
  %v1342 = vpack.c.b16 %v1305, %v1304
  %v1343 = vpack.c.b16 %v1307, %v1306
  %v1344 = vpack.c.b16 %v1309, %v1308
  %v1345 = vpack.c.b16 %v1311, %v1310
  %v1346 = vpack.c.b16 %v1313, %v1312
  %v1347 = vpack.c.b16 %v1315, %v1314
  %v1349 = vsel %vm204, %v1316, 0
  %v1352 = vsel %vm204, %v1317, 0
  %v1355 = vsel %vm204, %v1318, 0
  %v1358 = vsel %vm204, %v1319, 0
  %v1361 = vsel %vm204, %v1320, 0
  %v1364 = vsel %vm204, %v1321, 0
  %v1367 = vsel %vm204, %v1322, 0
  %v1370 = vsel %vm204, %v1323, 0
  %v1373 = vsel %vm204, %v1324, 0
  %v1376 = vsel %vm204, %v1325, 0
  %v1379 = vsel %vm204, %v1326, 0
  %v1382 = vsel %vm204, %v1327, 0
  %v1385 = vsel %vm204, %v1328, 0
  %v1388 = vsel %vm204, %v1329, 0
  %v1391 = vsel %vm204, %v1330, 0
  %v1394 = vsel %vm204, %v1331, 0
  %v1397 = vsel %vm204, %v1332, 0
  %v1400 = vsel %vm204, %v1333, 0
  %v1403 = vsel %vm204, %v1334, 0
  %v1406 = vsel %vm204, %v1335, 0
  %v1409 = vsel %vm204, %v1336, 0
  %v1412 = vsel %vm204, %v1337, 0
  %v1415 = vsel %vm204, %v1338, 0
  %v1418 = vsel %vm204, %v1339, 0
  %v1421 = vsel %vm204, %v1340, 0
  %v1424 = vsel %vm204, %v1341, 0
  %v1427 = vsel %vm204, %v1342, 0
  %v1430 = vsel %vm204, %v1343, 0
  %v1433 = vsel %vm204, %v1344, 0
  %v1436 = vsel %vm204, %v1345, 0
  %v1439 = vsel %vm204, %v1346, 0
  %v1442 = vsel %vm204, %v1347, 0
  %v1445 = vsel %vm301, %v1187, 0
  %1447 = vmatprep.subr.bf16.mxu0 0
  %1448 = vmatpush1.bf16.msra.mxu0 0
  %1449 = vmatprep.subr.bf16.mxu0 0
  %1450 = vmatpush1.bf16.msra.mxu0 0
  %1451 = vmatprep.subr.bf16.mxu0 0
  %1452 = vmatpush1.bf16.msra.mxu0 0
  %1453 = vmatprep.subr.bf16.mxu0 0
  %1454 = vmatpush1.bf16.msra.mxu0 0
  %1455 = vmatprep.subr.bf16.mxu0 0
  %1456 = vmatpush1.bf16.msra.mxu0 0
  %1457 = vmatprep.subr.bf16.mxu0 0
  %1458 = vmatpush1.bf16.msra.mxu0 0
  %1459 = vmatprep.subr.bf16.mxu0 0
  %1460 = vmatpush1.bf16.msra.mxu0 0
  %1461 = vmatprep.subr.bf16.mxu0 0
  %1462 = vmatpush1.bf16.msra.mxu0 %v1445
  %1463 = vmatprep.subr.bf16.mxu0 0
  %1464 = vmatpush2.bf16.msra.mxu0 0
  %1465 = vmatprep.subr.bf16.mxu0 0
  %1466 = vmatpush2.bf16.msra.mxu0 0
  %1467 = vmatprep.subr.bf16.mxu0 0
  %1468 = vmatpush2.bf16.msra.mxu0 0
  %1469 = vmatprep.subr.bf16.mxu0 0
  %1470 = vmatpush2.bf16.msra.mxu0 0
  %1471 = vmatprep.subr.bf16.mxu0 0
  %1472 = vmatpush2.bf16.msra.mxu0 0
  %1473 = vmatprep.subr.bf16.mxu0 0
  %1474 = vmatpush2.bf16.msra.mxu0 0
  %1475 = vmatprep.subr.bf16.mxu0 0
  %1476 = vmatpush2.bf16.msra.mxu0 0
  %1477 = vmatprep.subr.bf16.mxu0 0
  %1478 = vmatpush2.bf16.msra.mxu0 0
  %1479 = vmatprep.mubr.bf16.mxu0 0
  %1480 = vmatmul.mubr.bf16.gmra.mxu0 %v1349
  %v1481 = vpop.f32.mrf.mxu0
  %v1482 = vadd.f32 0.0, %v1481
  %v1483 = vpop.f32.mrf.mxu0
  %v1484 = vpop.f32.mrf.mxu0
  %v1485 = vadd.f32 0.0, %v1484
  %v1486 = vpop.f32.mrf.mxu0
  %1487 = vmatprep.mubr.bf16.mxu0 0
  %1488 = vmatmul.mubr.bf16.gmra.mxu0 %v1352
  %v1489 = vpop.f32.mrf.mxu0
  %v1490 = vadd.f32 0.0, %v1489
  %v1491 = vpop.f32.mrf.mxu0
  %v1492 = vpop.f32.mrf.mxu0
  %v1493 = vadd.f32 0.0, %v1492
  %v1494 = vpop.f32.mrf.mxu0
  %1495 = vmatprep.mubr.bf16.mxu0 0
  %1496 = vmatmul.mubr.bf16.gmra.mxu0 %v1355
  %v1497 = vpop.f32.mrf.mxu0
  %v1498 = vadd.f32 0.0, %v1497
  %v1499 = vpop.f32.mrf.mxu0
  %v1500 = vpop.f32.mrf.mxu0
  %v1501 = vadd.f32 0.0, %v1500
  %v1502 = vpop.f32.mrf.mxu0
  %1503 = vmatprep.mubr.bf16.mxu0 0
  %1504 = vmatmul.mubr.bf16.gmra.mxu0 %v1358
  %v1505 = vpop.f32.mrf.mxu0
  %v1506 = vadd.f32 0.0, %v1505
  %v1507 = vpop.f32.mrf.mxu0
  %v1508 = vpop.f32.mrf.mxu0
  %v1509 = vadd.f32 0.0, %v1508
  %v1510 = vpop.f32.mrf.mxu0
  %1511 = vmatprep.mubr.bf16.mxu0 0
  %1512 = vmatmul.mubr.bf16.gmra.mxu0 %v1361
  %v1513 = vpop.f32.mrf.mxu0
  %v1514 = vadd.f32 0.0, %v1513
  %v1515 = vpop.f32.mrf.mxu0
  %v1516 = vpop.f32.mrf.mxu0
  %v1517 = vadd.f32 0.0, %v1516
  %v1518 = vpop.f32.mrf.mxu0
  %1519 = vmatprep.mubr.bf16.mxu0 0
  %1520 = vmatmul.mubr.bf16.gmra.mxu0 %v1364
  %v1521 = vpop.f32.mrf.mxu0
  %v1522 = vadd.f32 0.0, %v1521
  %v1523 = vpop.f32.mrf.mxu0
  %v1524 = vpop.f32.mrf.mxu0
  %v1525 = vadd.f32 0.0, %v1524
  %v1526 = vpop.f32.mrf.mxu0
  %1527 = vmatprep.mubr.bf16.mxu0 0
  %1528 = vmatmul.mubr.bf16.gmra.mxu0 %v1367
  %v1529 = vpop.f32.mrf.mxu0
  %v1530 = vadd.f32 0.0, %v1529
  %v1531 = vpop.f32.mrf.mxu0
  %v1532 = vpop.f32.mrf.mxu0
  %v1533 = vadd.f32 0.0, %v1532
  %v1534 = vpop.f32.mrf.mxu0
  %1535 = vmatprep.mubr.bf16.mxu0 0
  %1536 = vmatmul.mubr.bf16.gmra.mxu0 %v1370
  %v1537 = vpop.f32.mrf.mxu0
  %v1538 = vadd.f32 0.0, %v1537
  %v1539 = vpop.f32.mrf.mxu0
  %v1540 = vpop.f32.mrf.mxu0
  %v1541 = vadd.f32 0.0, %v1540
  %v1542 = vpop.f32.mrf.mxu0
  %1543 = vmatprep.mubr.bf16.mxu0 0
  %1544 = vmatmul.mubr.bf16.gmra.mxu0 %v1373
  %v1545 = vpop.f32.mrf.mxu0
  %v1546 = vadd.f32 0.0, %v1545
  %v1547 = vpop.f32.mrf.mxu0
  %v1548 = vpop.f32.mrf.mxu0
  %v1549 = vadd.f32 0.0, %v1548
  %v1550 = vpop.f32.mrf.mxu0
  %1551 = vmatprep.mubr.bf16.mxu0 0
  %1552 = vmatmul.mubr.bf16.gmra.mxu0 %v1376
  %v1553 = vpop.f32.mrf.mxu0
  %v1554 = vadd.f32 0.0, %v1553
  %v1555 = vpop.f32.mrf.mxu0
  %v1556 = vpop.f32.mrf.mxu0
  %v1557 = vadd.f32 0.0, %v1556
  %v1558 = vpop.f32.mrf.mxu0
  %1559 = vmatprep.mubr.bf16.mxu0 0
  %1560 = vmatmul.mubr.bf16.gmra.mxu0 %v1379
  %v1561 = vpop.f32.mrf.mxu0
  %v1562 = vadd.f32 0.0, %v1561
  %v1563 = vpop.f32.mrf.mxu0
  %v1564 = vpop.f32.mrf.mxu0
  %v1565 = vadd.f32 0.0, %v1564
  %v1566 = vpop.f32.mrf.mxu0
  %1567 = vmatprep.mubr.bf16.mxu0 0
  %1568 = vmatmul.mubr.bf16.gmra.mxu0 %v1382
  %v1569 = vpop.f32.mrf.mxu0
  %v1570 = vadd.f32 0.0, %v1569
  %v1571 = vpop.f32.mrf.mxu0
  %v1572 = vpop.f32.mrf.mxu0
  %v1573 = vadd.f32 0.0, %v1572
  %v1574 = vpop.f32.mrf.mxu0
  %1575 = vmatprep.mubr.bf16.mxu0 0
  %1576 = vmatmul.mubr.bf16.gmra.mxu0 %v1385
  %v1577 = vpop.f32.mrf.mxu0
  %v1578 = vadd.f32 0.0, %v1577
  %v1579 = vpop.f32.mrf.mxu0
  %v1580 = vpop.f32.mrf.mxu0
  %v1581 = vadd.f32 0.0, %v1580
  %v1582 = vpop.f32.mrf.mxu0
  %1583 = vmatprep.mubr.bf16.mxu0 0
  %1584 = vmatmul.mubr.bf16.gmra.mxu0 %v1388
  %v1585 = vpop.f32.mrf.mxu0
  %v1586 = vadd.f32 0.0, %v1585
  %v1587 = vpop.f32.mrf.mxu0
  %v1588 = vpop.f32.mrf.mxu0
  %v1589 = vadd.f32 0.0, %v1588
  %v1590 = vpop.f32.mrf.mxu0
  %1591 = vmatprep.mubr.bf16.mxu0 0
  %1592 = vmatmul.mubr.bf16.gmra.mxu0 %v1391
  %v1593 = vpop.f32.mrf.mxu0
  %v1594 = vadd.f32 0.0, %v1593
  %v1595 = vpop.f32.mrf.mxu0
  %v1596 = vpop.f32.mrf.mxu0
  %v1597 = vadd.f32 0.0, %v1596
  %v1598 = vpop.f32.mrf.mxu0
  %1599 = vmatprep.mubr.bf16.mxu0 0
  %1600 = vmatmul.mubr.bf16.gmra.mxu0 %v1394
  %v1601 = vpop.f32.mrf.mxu0
  %v1602 = vadd.f32 0.0, %v1601
  %v1603 = vpop.f32.mrf.mxu0
  %v1604 = vpop.f32.mrf.mxu0
  %v1605 = vadd.f32 0.0, %v1604
  %v1606 = vpop.f32.mrf.mxu0
  %1607 = vmatprep.mubr.bf16.mxu0 0
  %1608 = vmatmul.mubr.bf16.gmra.mxu0 %v1397
  %v1609 = vpop.f32.mrf.mxu0
  %v1610 = vadd.f32 0.0, %v1609
  %v1611 = vpop.f32.mrf.mxu0
  %v1612 = vpop.f32.mrf.mxu0
  %v1613 = vadd.f32 0.0, %v1612
  %v1614 = vpop.f32.mrf.mxu0
  %1615 = vmatprep.mubr.bf16.mxu0 0
  %1616 = vmatmul.mubr.bf16.gmra.mxu0 %v1400
  %v1617 = vpop.f32.mrf.mxu0
  %v1618 = vadd.f32 0.0, %v1617
  %v1619 = vpop.f32.mrf.mxu0
  %v1620 = vpop.f32.mrf.mxu0
  %v1621 = vadd.f32 0.0, %v1620
  %v1622 = vpop.f32.mrf.mxu0
  %1623 = vmatprep.mubr.bf16.mxu0 0
  %1624 = vmatmul.mubr.bf16.gmra.mxu0 %v1403
  %v1625 = vpop.f32.mrf.mxu0
  %v1626 = vadd.f32 0.0, %v1625
  %v1627 = vpop.f32.mrf.mxu0
  %v1628 = vpop.f32.mrf.mxu0
  %v1629 = vadd.f32 0.0, %v1628
  %v1630 = vpop.f32.mrf.mxu0
  %1631 = vmatprep.mubr.bf16.mxu0 0
  %1632 = vmatmul.mubr.bf16.gmra.mxu0 %v1406
  %v1633 = vpop.f32.mrf.mxu0
  %v1634 = vadd.f32 0.0, %v1633
  %v1635 = vpop.f32.mrf.mxu0
  %v1636 = vpop.f32.mrf.mxu0
  %v1637 = vadd.f32 0.0, %v1636
  %v1638 = vpop.f32.mrf.mxu0
  %1639 = vmatprep.mubr.bf16.mxu0 0
  %1640 = vmatmul.mubr.bf16.gmra.mxu0 %v1409
  %v1641 = vpop.f32.mrf.mxu0
  %v1642 = vadd.f32 0.0, %v1641
  %v1643 = vpop.f32.mrf.mxu0
  %v1644 = vpop.f32.mrf.mxu0
  %v1645 = vadd.f32 0.0, %v1644
  %v1646 = vpop.f32.mrf.mxu0
  %1647 = vmatprep.mubr.bf16.mxu0 0
  %1648 = vmatmul.mubr.bf16.gmra.mxu0 %v1412
  %v1649 = vpop.f32.mrf.mxu0
  %v1650 = vadd.f32 0.0, %v1649
  %v1651 = vpop.f32.mrf.mxu0
  %v1652 = vpop.f32.mrf.mxu0
  %v1653 = vadd.f32 0.0, %v1652
  %v1654 = vpop.f32.mrf.mxu0
  %1655 = vmatprep.mubr.bf16.mxu0 0
  %1656 = vmatmul.mubr.bf16.gmra.mxu0 %v1415
  %v1657 = vpop.f32.mrf.mxu0
  %v1658 = vadd.f32 0.0, %v1657
  %v1659 = vpop.f32.mrf.mxu0
  %v1660 = vpop.f32.mrf.mxu0
  %v1661 = vadd.f32 0.0, %v1660
  %v1662 = vpop.f32.mrf.mxu0
  %1663 = vmatprep.mubr.bf16.mxu0 0
  %1664 = vmatmul.mubr.bf16.gmra.mxu0 %v1418
  %v1665 = vpop.f32.mrf.mxu0
  %v1666 = vadd.f32 0.0, %v1665
  %v1667 = vpop.f32.mrf.mxu0
  %v1668 = vpop.f32.mrf.mxu0
  %v1669 = vadd.f32 0.0, %v1668
  %v1670 = vpop.f32.mrf.mxu0
  %1671 = vmatprep.mubr.bf16.mxu0 0
  %1672 = vmatmul.mubr.bf16.gmra.mxu0 %v1421
  %v1673 = vpop.f32.mrf.mxu0
  %v1674 = vadd.f32 0.0, %v1673
  %v1675 = vpop.f32.mrf.mxu0
  %v1676 = vpop.f32.mrf.mxu0
  %v1677 = vadd.f32 0.0, %v1676
  %v1678 = vpop.f32.mrf.mxu0
  %1679 = vmatprep.mubr.bf16.mxu0 0
  %1680 = vmatmul.mubr.bf16.gmra.mxu0 %v1424
  %v1681 = vpop.f32.mrf.mxu0
  %v1682 = vadd.f32 0.0, %v1681
  %v1683 = vpop.f32.mrf.mxu0
  %v1684 = vpop.f32.mrf.mxu0
  %v1685 = vadd.f32 0.0, %v1684
  %v1686 = vpop.f32.mrf.mxu0
  %1687 = vmatprep.mubr.bf16.mxu0 0
  %1688 = vmatmul.mubr.bf16.gmra.mxu0 %v1427
  %v1689 = vpop.f32.mrf.mxu0
  %v1690 = vadd.f32 0.0, %v1689
  %v1691 = vpop.f32.mrf.mxu0
  %v1692 = vpop.f32.mrf.mxu0
  %v1693 = vadd.f32 0.0, %v1692
  %v1694 = vpop.f32.mrf.mxu0
  %1695 = vmatprep.mubr.bf16.mxu0 0
  %1696 = vmatmul.mubr.bf16.gmra.mxu0 %v1430
  %v1697 = vpop.f32.mrf.mxu0
  %v1698 = vadd.f32 0.0, %v1697
  %v1699 = vpop.f32.mrf.mxu0
  %v1700 = vpop.f32.mrf.mxu0
  %v1701 = vadd.f32 0.0, %v1700
  %v1702 = vpop.f32.mrf.mxu0
  %1703 = vmatprep.mubr.bf16.mxu0 0
  %1704 = vmatmul.mubr.bf16.gmra.mxu0 %v1433
  %v1705 = vpop.f32.mrf.mxu0
  %v1706 = vadd.f32 0.0, %v1705
  %v1707 = vpop.f32.mrf.mxu0
  %v1708 = vpop.f32.mrf.mxu0
  %v1709 = vadd.f32 0.0, %v1708
  %v1710 = vpop.f32.mrf.mxu0
  %1711 = vmatprep.mubr.bf16.mxu0 0
  %1712 = vmatmul.mubr.bf16.gmra.mxu0 %v1436
  %v1713 = vpop.f32.mrf.mxu0
  %v1714 = vadd.f32 0.0, %v1713
  %v1715 = vpop.f32.mrf.mxu0
  %v1716 = vpop.f32.mrf.mxu0
  %v1717 = vadd.f32 0.0, %v1716
  %v1718 = vpop.f32.mrf.mxu0
  %1719 = vmatprep.mubr.bf16.mxu0 0
  %1720 = vmatmul.mubr.bf16.gmra.mxu0 %v1439
  %v1721 = vpop.f32.mrf.mxu0
  %v1722 = vadd.f32 0.0, %v1721
  %v1723 = vpop.f32.mrf.mxu0
  %v1724 = vpop.f32.mrf.mxu0
  %v1725 = vadd.f32 0.0, %v1724
  %v1726 = vpop.f32.mrf.mxu0
  %1727 = vmatprep.mubr.bf16.mxu0 0
  %1728 = vmatmul.mubr.bf16.gmra.mxu0 %v1442
  %v1729 = vpop.f32.mrf.mxu0
  %v1730 = vadd.f32 0.0, %v1729
  %v1731 = vpop.f32.mrf.mxu0
  %v1732 = vpop.f32.mrf.mxu0
  %v1733 = vadd.f32 0.0, %v1732
  %v1734 = vpop.f32.mrf.mxu0
  %1735 = vdwg.mxu0
  %v1736 = vadd.f32 %v869, %v1482
  %v1737 = vadd.f32 %v872, %v1485
  %v1738 = vadd.f32 %v877, %v1490
  %v1739 = vadd.f32 %v880, %v1493
  %v1740 = vadd.f32 %v885, %v1498
  %v1741 = vadd.f32 %v888, %v1501
  %v1742 = vadd.f32 %v893, %v1506
  %v1743 = vadd.f32 %v896, %v1509
  %v1744 = vadd.f32 %v901, %v1514
  %v1745 = vadd.f32 %v904, %v1517
  %v1746 = vadd.f32 %v909, %v1522
  %v1747 = vadd.f32 %v912, %v1525
  %v1748 = vadd.f32 %v917, %v1530
  %v1749 = vadd.f32 %v920, %v1533
  %v1750 = vadd.f32 %v925, %v1538
  %v1751 = vadd.f32 %v928, %v1541
  %v1752 = vadd.f32 %v933, %v1546
  %v1753 = vadd.f32 %v936, %v1549
  %v1754 = vadd.f32 %v941, %v1554
  %v1755 = vadd.f32 %v944, %v1557
  %v1756 = vadd.f32 %v949, %v1562
  %v1757 = vadd.f32 %v952, %v1565
  %v1758 = vadd.f32 %v957, %v1570
  %v1759 = vadd.f32 %v960, %v1573
  %v1760 = vadd.f32 %v965, %v1578
  %v1761 = vadd.f32 %v968, %v1581
  %v1762 = vadd.f32 %v973, %v1586
  %v1763 = vadd.f32 %v976, %v1589
  %v1764 = vadd.f32 %v981, %v1594
  %v1765 = vadd.f32 %v984, %v1597
  %v1766 = vadd.f32 %v989, %v1602
  %v1767 = vadd.f32 %v992, %v1605
  %v1768 = vadd.f32 %v997, %v1610
  %v1769 = vadd.f32 %v1000, %v1613
  %v1770 = vadd.f32 %v1005, %v1618
  %v1771 = vadd.f32 %v1008, %v1621
  %v1772 = vadd.f32 %v1013, %v1626
  %v1773 = vadd.f32 %v1016, %v1629
  %v1774 = vadd.f32 %v1021, %v1634
  %v1775 = vadd.f32 %v1024, %v1637
  %v1776 = vadd.f32 %v1029, %v1642
  %v1777 = vadd.f32 %v1032, %v1645
  %v1778 = vadd.f32 %v1037, %v1650
  %v1779 = vadd.f32 %v1040, %v1653
  %v1780 = vadd.f32 %v1045, %v1658
  %v1781 = vadd.f32 %v1048, %v1661
  %v1782 = vadd.f32 %v1053, %v1666
  %v1783 = vadd.f32 %v1056, %v1669
  %v1784 = vadd.f32 %v1061, %v1674
  %v1785 = vadd.f32 %v1064, %v1677
  %v1786 = vadd.f32 %v1069, %v1682
  %v1787 = vadd.f32 %v1072, %v1685
  %v1788 = vadd.f32 %v1077, %v1690
  %v1789 = vadd.f32 %v1080, %v1693
  %v1790 = vadd.f32 %v1085, %v1698
  %v1791 = vadd.f32 %v1088, %v1701
  %v1792 = vadd.f32 %v1093, %v1706
  %v1793 = vadd.f32 %v1096, %v1709
  %v1794 = vadd.f32 %v1101, %v1714
  %v1795 = vadd.f32 %v1104, %v1717
  %v1796 = vadd.f32 %v1109, %v1722
  %v1797 = vadd.f32 %v1112, %v1725
  %v1798 = vadd.f32 %v1117, %v1730
  %v1799 = vadd.f32 %v1120, %v1733
  %v1800 = vld [vmem:[%s6] sm:$0x1]
  %v1802 = vlaneseq
  %v1803 = vshrl.u32 %v1802, 7
  %v1804 = vsub.s32 0, %v1803
  %v1805 = vrot.slane %v1800, %v1804
  %v1807 = vadd.f32 %v1736, %v1805
  %v1808 = vadd.f32 %v1737, %v1805
  %v1809 = vadd.f32 %v1738, %v1805
  %v1810 = vadd.f32 %v1739, %v1805
  %v1811 = vadd.f32 %v1740, %v1805
  %v1812 = vadd.f32 %v1741, %v1805
  %v1813 = vadd.f32 %v1742, %v1805
  %v1814 = vadd.f32 %v1743, %v1805
  %v1815 = vadd.f32 %v1744, %v1805
  %v1816 = vadd.f32 %v1745, %v1805
  %v1817 = vadd.f32 %v1746, %v1805
  %v1818 = vadd.f32 %v1747, %v1805
  %v1819 = vadd.f32 %v1748, %v1805
  %v1820 = vadd.f32 %v1749, %v1805
  %v1821 = vadd.f32 %v1750, %v1805
  %v1822 = vadd.f32 %v1751, %v1805
  %v1823 = vadd.f32 %v1752, %v1805
  %v1824 = vadd.f32 %v1753, %v1805
  %v1825 = vadd.f32 %v1754, %v1805
  %v1826 = vadd.f32 %v1755, %v1805
  %v1827 = vadd.f32 %v1756, %v1805
  %v1828 = vadd.f32 %v1757, %v1805
  %v1829 = vadd.f32 %v1758, %v1805
  %v1830 = vadd.f32 %v1759, %v1805
  %v1831 = vadd.f32 %v1760, %v1805
  %v1832 = vadd.f32 %v1761, %v1805
  %v1833 = vadd.f32 %v1762, %v1805
  %v1834 = vadd.f32 %v1763, %v1805
  %v1835 = vadd.f32 %v1764, %v1805
  %v1836 = vadd.f32 %v1765, %v1805
  %v1837 = vadd.f32 %v1766, %v1805
  %v1838 = vadd.f32 %v1767, %v1805
  %v1839 = vadd.f32 %v1768, %v1805
  %v1840 = vadd.f32 %v1769, %v1805
  %v1841 = vadd.f32 %v1770, %v1805
  %v1842 = vadd.f32 %v1771, %v1805
  %v1843 = vadd.f32 %v1772, %v1805
  %v1844 = vadd.f32 %v1773, %v1805
  %v1845 = vadd.f32 %v1774, %v1805
  %v1846 = vadd.f32 %v1775, %v1805
  %v1847 = vadd.f32 %v1776, %v1805
  %v1848 = vadd.f32 %v1777, %v1805
  %v1849 = vadd.f32 %v1778, %v1805
  %v1850 = vadd.f32 %v1779, %v1805
  %v1851 = vadd.f32 %v1780, %v1805
  %v1852 = vadd.f32 %v1781, %v1805
  %v1853 = vadd.f32 %v1782, %v1805
  %v1854 = vadd.f32 %v1783, %v1805
  %v1855 = vadd.f32 %v1784, %v1805
  %v1856 = vadd.f32 %v1785, %v1805
  %v1857 = vadd.f32 %v1786, %v1805
  %v1858 = vadd.f32 %v1787, %v1805
  %v1859 = vadd.f32 %v1788, %v1805
  %v1860 = vadd.f32 %v1789, %v1805
  %v1861 = vadd.f32 %v1790, %v1805
  %v1862 = vadd.f32 %v1791, %v1805
  %v1863 = vadd.f32 %v1792, %v1805
  %v1864 = vadd.f32 %v1793, %v1805
  %v1865 = vadd.f32 %v1794, %v1805
  %v1866 = vadd.f32 %v1795, %v1805
  %v1867 = vadd.f32 %v1796, %v1805
  %v1868 = vadd.f32 %v1797, %v1805
  %v1869 = vadd.f32 %v1798, %v1805
  %v1870 = vadd.f32 %v1799, %v1805
  %v1871 = vmax.f32 %v1807, 0.0
  %v1872 = vmax.f32 %v1808, 0.0
  %v1873 = vmax.f32 %v1809, 0.0
  %v1874 = vmax.f32 %v1810, 0.0
  %v1875 = vmax.f32 %v1811, 0.0
  %v1876 = vmax.f32 %v1812, 0.0
  %v1877 = vmax.f32 %v1813, 0.0
  %v1878 = vmax.f32 %v1814, 0.0
  %v1879 = vmax.f32 %v1815, 0.0
  %v1880 = vmax.f32 %v1816, 0.0
  %v1881 = vmax.f32 %v1817, 0.0
  %v1882 = vmax.f32 %v1818, 0.0
  %v1883 = vmax.f32 %v1819, 0.0
  %v1884 = vmax.f32 %v1820, 0.0
  %v1885 = vmax.f32 %v1821, 0.0
  %v1886 = vmax.f32 %v1822, 0.0
  %v1887 = vmax.f32 %v1823, 0.0
  %v1888 = vmax.f32 %v1824, 0.0
  %v1889 = vmax.f32 %v1825, 0.0
  %v1890 = vmax.f32 %v1826, 0.0
  %v1891 = vmax.f32 %v1827, 0.0
  %v1892 = vmax.f32 %v1828, 0.0
  %v1893 = vmax.f32 %v1829, 0.0
  %v1894 = vmax.f32 %v1830, 0.0
  %v1895 = vmax.f32 %v1831, 0.0
  %v1896 = vmax.f32 %v1832, 0.0
  %v1897 = vmax.f32 %v1833, 0.0
  %v1898 = vmax.f32 %v1834, 0.0
  %v1899 = vmax.f32 %v1835, 0.0
  %v1900 = vmax.f32 %v1836, 0.0
  %v1901 = vmax.f32 %v1837, 0.0
  %v1902 = vmax.f32 %v1838, 0.0
  %v1903 = vmax.f32 %v1839, 0.0
  %v1904 = vmax.f32 %v1840, 0.0
  %v1905 = vmax.f32 %v1841, 0.0
  %v1906 = vmax.f32 %v1842, 0.0
  %v1907 = vmax.f32 %v1843, 0.0
  %v1908 = vmax.f32 %v1844, 0.0
  %v1909 = vmax.f32 %v1845, 0.0
  %v1910 = vmax.f32 %v1846, 0.0
  %v1911 = vmax.f32 %v1847, 0.0
  %v1912 = vmax.f32 %v1848, 0.0
  %v1913 = vmax.f32 %v1849, 0.0
  %v1914 = vmax.f32 %v1850, 0.0
  %v1915 = vmax.f32 %v1851, 0.0
  %v1916 = vmax.f32 %v1852, 0.0
  %v1917 = vmax.f32 %v1853, 0.0
  %v1918 = vmax.f32 %v1854, 0.0
  %v1919 = vmax.f32 %v1855, 0.0
  %v1920 = vmax.f32 %v1856, 0.0
  %v1921 = vmax.f32 %v1857, 0.0
  %v1922 = vmax.f32 %v1858, 0.0
  %v1923 = vmax.f32 %v1859, 0.0
  %v1924 = vmax.f32 %v1860, 0.0
  %v1925 = vmax.f32 %v1861, 0.0
  %v1926 = vmax.f32 %v1862, 0.0
  %v1927 = vmax.f32 %v1863, 0.0
  %v1928 = vmax.f32 %v1864, 0.0
  %v1929 = vmax.f32 %v1865, 0.0
  %v1930 = vmax.f32 %v1866, 0.0
  %v1931 = vmax.f32 %v1867, 0.0
  %v1932 = vmax.f32 %v1868, 0.0
  %v1933 = vmax.f32 %v1869, 0.0
  %v1934 = vmax.f32 %v1870, 0.0
  %v1935 = vpack.c.bf16 %v1872, %v1871
  %v1936 = vpack.c.bf16 %v1874, %v1873
  %v1937 = vpack.c.bf16 %v1876, %v1875
  %v1938 = vpack.c.bf16 %v1878, %v1877
  %v1939 = vpack.c.bf16 %v1880, %v1879
  %v1940 = vpack.c.bf16 %v1882, %v1881
  %v1941 = vpack.c.bf16 %v1884, %v1883
  %v1942 = vpack.c.bf16 %v1886, %v1885
  %v1943 = vpack.c.bf16 %v1888, %v1887
  %v1944 = vpack.c.bf16 %v1890, %v1889
  %v1945 = vpack.c.bf16 %v1892, %v1891
  %v1946 = vpack.c.bf16 %v1894, %v1893
  %v1947 = vpack.c.bf16 %v1896, %v1895
  %v1948 = vpack.c.bf16 %v1898, %v1897
  %v1949 = vpack.c.bf16 %v1900, %v1899
  %v1950 = vpack.c.bf16 %v1902, %v1901
  %v1951 = vpack.c.bf16 %v1904, %v1903
  %v1952 = vpack.c.bf16 %v1906, %v1905
  %v1953 = vpack.c.bf16 %v1908, %v1907
  %v1954 = vpack.c.bf16 %v1910, %v1909
  %v1955 = vpack.c.bf16 %v1912, %v1911
  %v1956 = vpack.c.bf16 %v1914, %v1913
  %v1957 = vpack.c.bf16 %v1916, %v1915
  %v1958 = vpack.c.bf16 %v1918, %v1917
  %v1959 = vpack.c.bf16 %v1920, %v1919
  %v1960 = vpack.c.bf16 %v1922, %v1921
  %v1961 = vpack.c.bf16 %v1924, %v1923
  %v1962 = vpack.c.bf16 %v1926, %v1925
  %v1963 = vpack.c.bf16 %v1928, %v1927
  %v1964 = vpack.c.bf16 %v1930, %v1929
  %v1965 = vpack.c.bf16 %v1932, %v1931
  %v1966 = vpack.c.bf16 %v1934, %v1933
  %v1999 = vunpack.c.l.b16 %v1935
  %v2000 = vunpack.c.h.b16 %v1935
  %v2001 = vunpack.c.l.b16 %v1936
  %v2002 = vunpack.c.h.b16 %v1936
  %v2003 = vunpack.c.l.b16 %v1937
  %v2004 = vunpack.c.h.b16 %v1937
  %v2005 = vunpack.c.l.b16 %v1938
  %v2006 = vunpack.c.h.b16 %v1938
  %v2007 = vunpack.c.l.b16 %v1939
  %v2008 = vunpack.c.h.b16 %v1939
  %v2009 = vunpack.c.l.b16 %v1940
  %v2010 = vunpack.c.h.b16 %v1940
  %v2011 = vunpack.c.l.b16 %v1941
  %v2012 = vunpack.c.h.b16 %v1941
  %v2013 = vunpack.c.l.b16 %v1942
  %v2014 = vunpack.c.h.b16 %v1942
  %v2015 = vunpack.c.l.b16 %v1943
  %v2016 = vunpack.c.h.b16 %v1943
  %v2017 = vunpack.c.l.b16 %v1944
  %v2018 = vunpack.c.h.b16 %v1944
  %v2019 = vunpack.c.l.b16 %v1945
  %v2020 = vunpack.c.h.b16 %v1945
  %v2021 = vunpack.c.l.b16 %v1946
  %v2022 = vunpack.c.h.b16 %v1946
  %v2023 = vunpack.c.l.b16 %v1947
  %v2024 = vunpack.c.h.b16 %v1947
  %v2025 = vunpack.c.l.b16 %v1948
  %v2026 = vunpack.c.h.b16 %v1948
  %v2027 = vunpack.c.l.b16 %v1949
  %v2028 = vunpack.c.h.b16 %v1949
  %v2029 = vunpack.c.l.b16 %v1950
  %v2030 = vunpack.c.h.b16 %v1950
  %v2031 = vunpack.c.l.b16 %v1951
  %v2032 = vunpack.c.h.b16 %v1951
  %v2033 = vunpack.c.l.b16 %v1952
  %v2034 = vunpack.c.h.b16 %v1952
  %v2035 = vunpack.c.l.b16 %v1953
  %v2036 = vunpack.c.h.b16 %v1953
  %v2037 = vunpack.c.l.b16 %v1954
  %v2038 = vunpack.c.h.b16 %v1954
  %v2039 = vunpack.c.l.b16 %v1955
  %v2040 = vunpack.c.h.b16 %v1955
  %v2041 = vunpack.c.l.b16 %v1956
  %v2042 = vunpack.c.h.b16 %v1956
  %v2043 = vunpack.c.l.b16 %v1957
  %v2044 = vunpack.c.h.b16 %v1957
  %v2045 = vunpack.c.l.b16 %v1958
  %v2046 = vunpack.c.h.b16 %v1958
  %v2047 = vunpack.c.l.b16 %v1959
  %v2048 = vunpack.c.h.b16 %v1959
  %v2049 = vunpack.c.l.b16 %v1960
  %v2050 = vunpack.c.h.b16 %v1960
  %v2051 = vunpack.c.l.b16 %v1961
  %v2052 = vunpack.c.h.b16 %v1961
  %v2053 = vunpack.c.l.b16 %v1962
  %v2054 = vunpack.c.h.b16 %v1962
  %v2055 = vunpack.c.l.b16 %v1963
  %v2056 = vunpack.c.h.b16 %v1963
  %v2057 = vunpack.c.l.b16 %v1964
  %v2058 = vunpack.c.h.b16 %v1964
  %v2059 = vunpack.c.l.b16 %v1965
  %v2060 = vunpack.c.h.b16 %v1965
  %v2061 = vunpack.c.l.b16 %v1966
  %v2062 = vunpack.c.h.b16 %v1966
  %v2063 = vpack.c.b16 %v1999, %v1999
  %v2064 = vpack.c.b16 %v2000, %v2000
  %v2065 = vpack.c.b16 %v2001, %v2001
  %v2066 = vpack.c.b16 %v2002, %v2002
  %v2067 = vpack.c.b16 %v2003, %v2003
  %v2068 = vpack.c.b16 %v2004, %v2004
  %v2069 = vpack.c.b16 %v2005, %v2005
  %v2070 = vpack.c.b16 %v2006, %v2006
  %v2071 = vpack.c.b16 %v2007, %v2007
  %v2072 = vpack.c.b16 %v2008, %v2008
  %v2073 = vpack.c.b16 %v2009, %v2009
  %v2074 = vpack.c.b16 %v2010, %v2010
  %v2075 = vpack.c.b16 %v2011, %v2011
  %v2076 = vpack.c.b16 %v2012, %v2012
  %v2077 = vpack.c.b16 %v2013, %v2013
  %v2078 = vpack.c.b16 %v2014, %v2014
  %v2079 = vpack.c.b16 %v2015, %v2015
  %v2080 = vpack.c.b16 %v2016, %v2016
  %v2081 = vpack.c.b16 %v2017, %v2017
  %v2082 = vpack.c.b16 %v2018, %v2018
  %v2083 = vpack.c.b16 %v2019, %v2019
  %v2084 = vpack.c.b16 %v2020, %v2020
  %v2085 = vpack.c.b16 %v2021, %v2021
  %v2086 = vpack.c.b16 %v2022, %v2022
  %v2087 = vpack.c.b16 %v2023, %v2023
  %v2088 = vpack.c.b16 %v2024, %v2024
  %v2089 = vpack.c.b16 %v2025, %v2025
  %v2090 = vpack.c.b16 %v2026, %v2026
  %v2091 = vpack.c.b16 %v2027, %v2027
  %v2092 = vpack.c.b16 %v2028, %v2028
  %v2093 = vpack.c.b16 %v2029, %v2029
  %v2094 = vpack.c.b16 %v2030, %v2030
  %v2095 = vpack.c.b16 %v2031, %v2031
  %v2096 = vpack.c.b16 %v2032, %v2032
  %v2097 = vpack.c.b16 %v2033, %v2033
  %v2098 = vpack.c.b16 %v2034, %v2034
  %v2099 = vpack.c.b16 %v2035, %v2035
  %v2100 = vpack.c.b16 %v2036, %v2036
  %v2101 = vpack.c.b16 %v2037, %v2037
  %v2102 = vpack.c.b16 %v2038, %v2038
  %v2103 = vpack.c.b16 %v2039, %v2039
  %v2104 = vpack.c.b16 %v2040, %v2040
  %v2105 = vpack.c.b16 %v2041, %v2041
  %v2106 = vpack.c.b16 %v2042, %v2042
  %v2107 = vpack.c.b16 %v2043, %v2043
  %v2108 = vpack.c.b16 %v2044, %v2044
  %v2109 = vpack.c.b16 %v2045, %v2045
  %v2110 = vpack.c.b16 %v2046, %v2046
  %v2111 = vpack.c.b16 %v2047, %v2047
  %v2112 = vpack.c.b16 %v2048, %v2048
  %v2113 = vpack.c.b16 %v2049, %v2049
  %v2114 = vpack.c.b16 %v2050, %v2050
  %v2115 = vpack.c.b16 %v2051, %v2051
  %v2116 = vpack.c.b16 %v2052, %v2052
  %v2117 = vpack.c.b16 %v2053, %v2053
  %v2118 = vpack.c.b16 %v2054, %v2054
  %v2119 = vpack.c.b16 %v2055, %v2055
  %v2120 = vpack.c.b16 %v2056, %v2056
  %v2121 = vpack.c.b16 %v2057, %v2057
  %v2122 = vpack.c.b16 %v2058, %v2058
  %v2123 = vpack.c.b16 %v2059, %v2059
  %v2124 = vpack.c.b16 %v2060, %v2060
  %v2125 = vpack.c.b16 %v2061, %v2061
  %v2126 = vpack.c.b16 %v2062, %v2062
  %2191 = vst [vmem:[%s7] sm:$0xf] %v2063
  %2192 = vst [vmem:[%s7 + $0x4] sm:$0xf] %v2064
  %2193 = vst [vmem:[%s7 + $0x8] sm:$0xf] %v2065
  %2194 = vst [vmem:[%s7 + $0xc] sm:$0xf] %v2066
  %2195 = vst [vmem:[%s7 + $0x10] sm:$0xf] %v2067
  %2196 = vst [vmem:[%s7 + $0x14] sm:$0xf] %v2068
  %2197 = vst [vmem:[%s7 + $0x18] sm:$0xf] %v2069
  %2198 = vst [vmem:[%s7 + $0x1c] sm:$0xf] %v2070
  %2199 = vst [vmem:[%s7 + $0x20] sm:$0xf] %v2071
  %2200 = vst [vmem:[%s7 + $0x24] sm:$0xf] %v2072
  %2201 = vst [vmem:[%s7 + $0x28] sm:$0xf] %v2073
  %2202 = vst [vmem:[%s7 + $0x2c] sm:$0xf] %v2074
  %2203 = vst [vmem:[%s7 + $0x30] sm:$0xf] %v2075
  %2204 = vst [vmem:[%s7 + $0x34] sm:$0xf] %v2076
  %2205 = vst [vmem:[%s7 + $0x38] sm:$0xf] %v2077
  %2206 = vst [vmem:[%s7 + $0x3c] sm:$0xf] %v2078
  %2207 = vst [vmem:[%s7 + $0x40] sm:$0xf] %v2079
  %2208 = vst [vmem:[%s7 + $0x44] sm:$0xf] %v2080
  %2209 = vst [vmem:[%s7 + $0x48] sm:$0xf] %v2081
  %2210 = vst [vmem:[%s7 + $0x4c] sm:$0xf] %v2082
  %2211 = vst [vmem:[%s7 + $0x50] sm:$0xf] %v2083
  %2212 = vst [vmem:[%s7 + $0x54] sm:$0xf] %v2084
  %2213 = vst [vmem:[%s7 + $0x58] sm:$0xf] %v2085
  %2214 = vst [vmem:[%s7 + $0x5c] sm:$0xf] %v2086
  %2215 = vst [vmem:[%s7 + $0x60] sm:$0xf] %v2087
  %2216 = vst [vmem:[%s7 + $0x64] sm:$0xf] %v2088
  %2217 = vst [vmem:[%s7 + $0x68] sm:$0xf] %v2089
  %2218 = vst [vmem:[%s7 + $0x6c] sm:$0xf] %v2090
  %2219 = vst [vmem:[%s7 + $0x70] sm:$0xf] %v2091
  %2220 = vst [vmem:[%s7 + $0x74] sm:$0xf] %v2092
  %2221 = vst [vmem:[%s7 + $0x78] sm:$0xf] %v2093
  %2222 = vst [vmem:[%s7 + $0x7c] sm:$0xf] %v2094
  %2223 = vst [vmem:[%s7 + $0x80] sm:$0xf] %v2095
  %2224 = vst [vmem:[%s7 + $0x84] sm:$0xf] %v2096
  %2225 = vst [vmem:[%s7 + $0x88] sm:$0xf] %v2097
  %2226 = vst [vmem:[%s7 + $0x8c] sm:$0xf] %v2098
  %2227 = vst [vmem:[%s7 + $0x90] sm:$0xf] %v2099
  %2228 = vst [vmem:[%s7 + $0x94] sm:$0xf] %v2100
  %2229 = vst [vmem:[%s7 + $0x98] sm:$0xf] %v2101
  %2230 = vst [vmem:[%s7 + $0x9c] sm:$0xf] %v2102
  %2231 = vst [vmem:[%s7 + $0xa0] sm:$0xf] %v2103
  %2232 = vst [vmem:[%s7 + $0xa4] sm:$0xf] %v2104
  %2233 = vst [vmem:[%s7 + $0xa8] sm:$0xf] %v2105
  %2234 = vst [vmem:[%s7 + $0xac] sm:$0xf] %v2106
  %2235 = vst [vmem:[%s7 + $0xb0] sm:$0xf] %v2107
  %2236 = vst [vmem:[%s7 + $0xb4] sm:$0xf] %v2108
  %2237 = vst [vmem:[%s7 + $0xb8] sm:$0xf] %v2109
  %2238 = vst [vmem:[%s7 + $0xbc] sm:$0xf] %v2110
  %2239 = vst [vmem:[%s7 + $0xc0] sm:$0xf] %v2111
  %2240 = vst [vmem:[%s7 + $0xc4] sm:$0xf] %v2112
  %2241 = vst [vmem:[%s7 + $0xc8] sm:$0xf] %v2113
  %2242 = vst [vmem:[%s7 + $0xcc] sm:$0xf] %v2114
  %2243 = vst [vmem:[%s7 + $0xd0] sm:$0xf] %v2115
  %2244 = vst [vmem:[%s7 + $0xd4] sm:$0xf] %v2116
  %2245 = vst [vmem:[%s7 + $0xd8] sm:$0xf] %v2117
  %2246 = vst [vmem:[%s7 + $0xdc] sm:$0xf] %v2118
  %2247 = vst [vmem:[%s7 + $0xe0] sm:$0xf] %v2119
  %2248 = vst [vmem:[%s7 + $0xe4] sm:$0xf] %v2120
  %2249 = vst [vmem:[%s7 + $0xe8] sm:$0xf] %v2121
  %2250 = vst [vmem:[%s7 + $0xec] sm:$0xf] %v2122
  %2251 = vst [vmem:[%s7 + $0xf0] sm:$0xf] %v2123
  %2252 = vst [vmem:[%s7 + $0xf4] sm:$0xf] %v2124
  %2253 = vst [vmem:[%s7 + $0xf8] sm:$0xf] %v2125
  %2254 = vst [vmem:[%s7 + $0xfc] sm:$0xf] %v2126
  // Predicated region
  $region30: #{up_forward.10} parent=0 // pred_check
    _
  $region31: #{up_forward.10} parent=0 // pred_check_branch
    %2256 = sbr.rel (0) target = $region33
  $region32: #{up_forward.10} parent=0 // pred_region
    _
  $region33: #{up_forward.10} parent=0 // pred_fallthru
    _
  // Predicated region
  $region34: #{up_forward.10} parent=0 // pred_check
    _
  $region35: #{up_forward.10} parent=0 // pred_check_branch
    %2258 = sbr.rel (0) target = $region37
  $region36: #{up_forward.10} parent=0 // pred_region
    _
  $region37: #{up_forward.10} parent=0 // pred_fallthru
    _

// kernel: up_forward.11
$region0: #{up_forward.11}
  #allocation0 [shape = 'u32[]', space=smem, size = 0x4, offset = 0x4, fixed_abs, tag = 'smem constant byte address 0x4 - core index']
  #allocation1 [shape = 'u32[144,128]{1,0:T(1,128)}', space=vmem, size = 0x12000, scoped, tag = 'internal scratch']
  %s0 = inlined_call_operand.vmem [shape: bf16[512,128], index: 0, kind: input, shape index: {}]
  %s1 = inlined_call_operand.vmem [shape: bf16[128,128], index: 1, kind: input, shape index: {}]
  %s2 = inlined_call_operand.vmem [shape: f32[1,128], index: 2, kind: input, shape index: {}]
  %s3 = inlined_call_operand.vmem [shape: bf16[512,128], index: 3, kind: output, shape index: {}]
  %s4 = sld [smem:[#allocation0]]
  $region22: #{up_forward.11} parent=0
    _
  %s6 = ssub.s32 1, %s4
  %s7 = scalar_select 0, %s6, %s4
  // Predicated region
  $region2: #{up_forward.11} parent=0 // pred_check
    _
  $region3: #{up_forward.11} parent=0 // pred_check_branch
    %9 = sbr.rel (0) target = $region5
  $region4: #{up_forward.11} parent=0 // pred_region
    _
  $region5: #{up_forward.11} parent=0 // pred_fallthru
    _
  // Predicated region
  $region6: #{up_forward.11} parent=0 // pred_check
    _
  $region7: #{up_forward.11} parent=0 // pred_check_branch
    %11 = sbr.rel (0) target = $region9
  $region8: #{up_forward.11} parent=0 // pred_region
    _
  $region9: #{up_forward.11} parent=0 // pred_fallthru
    _
  // Predicated region
  $region10: #{up_forward.11} parent=0 // pred_check
    _
  $region11: #{up_forward.11} parent=0 // pred_check_branch
    %13 = sbr.rel (0) target = $region13
  $region12: #{up_forward.11} parent=0 // pred_region
    _
  $region13: #{up_forward.11} parent=0 // pred_fallthru
    _
  %v15 = vld [vmem:[%s0] sm:$0xf]
  %v16 = vld [vmem:[%s0 + $0x4] sm:$0xf]
  %v17 = vld [vmem:[%s0 + $0x8] sm:$0xf]
  %v18 = vld [vmem:[%s0 + $0xc] sm:$0xf]
  %v19 = vld [vmem:[%s0 + $0x10] sm:$0xf]
  %v20 = vld [vmem:[%s0 + $0x14] sm:$0xf]
  %v21 = vld [vmem:[%s0 + $0x18] sm:$0xf]
  %v22 = vld [vmem:[%s0 + $0x1c] sm:$0xf]
  %v23 = vld [vmem:[%s0 + $0x20] sm:$0xf]
  %v24 = vld [vmem:[%s0 + $0x24] sm:$0xf]
  %v25 = vld [vmem:[%s0 + $0x28] sm:$0xf]
  %v26 = vld [vmem:[%s0 + $0x2c] sm:$0xf]
  %v27 = vld [vmem:[%s0 + $0x30] sm:$0xf]
  %v28 = vld [vmem:[%s0 + $0x34] sm:$0xf]
  %v29 = vld [vmem:[%s0 + $0x38] sm:$0xf]
  %v30 = vld [vmem:[%s0 + $0x3c] sm:$0xf]
  %v31 = vld [vmem:[%s0 + $0x40] sm:$0xf]
  %v32 = vld [vmem:[%s0 + $0x44] sm:$0xf]
  %v33 = vld [vmem:[%s0 + $0x48] sm:$0xf]
  %v34 = vld [vmem:[%s0 + $0x4c] sm:$0xf]
  %v35 = vld [vmem:[%s0 + $0x50] sm:$0xf]
  %v36 = vld [vmem:[%s0 + $0x54] sm:$0xf]
  %v37 = vld [vmem:[%s0 + $0x58] sm:$0xf]
  %v38 = vld [vmem:[%s0 + $0x5c] sm:$0xf]
  %v39 = vld [vmem:[%s0 + $0x60] sm:$0xf]
  %v40 = vld [vmem:[%s0 + $0x64] sm:$0xf]
  %v41 = vld [vmem:[%s0 + $0x68] sm:$0xf]
  %v42 = vld [vmem:[%s0 + $0x6c] sm:$0xf]
  %v43 = vld [vmem:[%s0 + $0x70] sm:$0xf]
  %v44 = vld [vmem:[%s0 + $0x74] sm:$0xf]
  %v45 = vld [vmem:[%s0 + $0x78] sm:$0xf]
  %v46 = vld [vmem:[%s0 + $0x7c] sm:$0xf]
  %v47 = vld [vmem:[%s0 + $0x80] sm:$0xf]
  %v48 = vld [vmem:[%s0 + $0x84] sm:$0xf]
  %v49 = vld [vmem:[%s0 + $0x88] sm:$0xf]
  %v50 = vld [vmem:[%s0 + $0x8c] sm:$0xf]
  %v51 = vld [vmem:[%s0 + $0x90] sm:$0xf]
  %v52 = vld [vmem:[%s0 + $0x94] sm:$0xf]
  %v53 = vld [vmem:[%s0 + $0x98] sm:$0xf]
  %v54 = vld [vmem:[%s0 + $0x9c] sm:$0xf]
  %v55 = vld [vmem:[%s0 + $0xa0] sm:$0xf]
  %v56 = vld [vmem:[%s0 + $0xa4] sm:$0xf]
  %v57 = vld [vmem:[%s0 + $0xa8] sm:$0xf]
  %v58 = vld [vmem:[%s0 + $0xac] sm:$0xf]
  %v59 = vld [vmem:[%s0 + $0xb0] sm:$0xf]
  %v60 = vld [vmem:[%s0 + $0xb4] sm:$0xf]
  %v61 = vld [vmem:[%s0 + $0xb8] sm:$0xf]
  %v62 = vld [vmem:[%s0 + $0xbc] sm:$0xf]
  %v63 = vld [vmem:[%s0 + $0xc0] sm:$0xf]
  %v64 = vld [vmem:[%s0 + $0xc4] sm:$0xf]
  %v65 = vld [vmem:[%s0 + $0xc8] sm:$0xf]
  %v66 = vld [vmem:[%s0 + $0xcc] sm:$0xf]
  %v67 = vld [vmem:[%s0 + $0xd0] sm:$0xf]
  %v68 = vld [vmem:[%s0 + $0xd4] sm:$0xf]
  %v69 = vld [vmem:[%s0 + $0xd8] sm:$0xf]
  %v70 = vld [vmem:[%s0 + $0xdc] sm:$0xf]
  %v71 = vld [vmem:[%s0 + $0xe0] sm:$0xf]
  %v72 = vld [vmem:[%s0 + $0xe4] sm:$0xf]
  %v73 = vld [vmem:[%s0 + $0xe8] sm:$0xf]
  %v74 = vld [vmem:[%s0 + $0xec] sm:$0xf]
  %v75 = vld [vmem:[%s0 + $0xf0] sm:$0xf]
  %v76 = vld [vmem:[%s0 + $0xf4] sm:$0xf]
  %v77 = vld [vmem:[%s0 + $0xf8] sm:$0xf]
  %v78 = vld [vmem:[%s0 + $0xfc] sm:$0xf]
  %v79 = vld [vmem:[%s1] sm:$0xf]
  %v80 = vld [vmem:[%s1 + $0x4] sm:$0xf]
  %v81 = vld [vmem:[%s1 + $0x8] sm:$0xf]
  %v82 = vld [vmem:[%s1 + $0xc] sm:$0xf]
  %v83 = vld [vmem:[%s1 + $0x10] sm:$0xf]
  %v84 = vld [vmem:[%s1 + $0x14] sm:$0xf]
  %v85 = vld [vmem:[%s1 + $0x18] sm:$0xf]
  %v86 = vld [vmem:[%s1 + $0x1c] sm:$0xf]
  %v87 = vld [vmem:[%s1 + $0x20] sm:$0xf]
  %v88 = vld [vmem:[%s1 + $0x24] sm:$0xf]
  %v89 = vld [vmem:[%s1 + $0x28] sm:$0xf]
  %v90 = vld [vmem:[%s1 + $0x2c] sm:$0xf]
  %v91 = vld [vmem:[%s1 + $0x30] sm:$0xf]
  %v92 = vld [vmem:[%s1 + $0x34] sm:$0xf]
  %v93 = vld [vmem:[%s1 + $0x38] sm:$0xf]
  %v94 = vld [vmem:[%s1 + $0x3c] sm:$0xf]
  %v95 = vld [vmem:[%s2] sm:$0x1]
  %v97 = vlaneseq
  %v98 = vshrl.u32 %v97, 7
  %v99 = vsub.s32 0, %v98
  %v100 = vrot.slane %v95, %v99
  %v166 = vunpack.c.l.b16 %v15
  %v167 = vunpack.c.l.b16 %v16
  %v168 = vunpack.c.l.b16 %v17
  %v169 = vunpack.c.l.b16 %v18
  %v170 = vunpack.c.l.b16 %v19
  %v171 = vunpack.c.l.b16 %v20
  %v172 = vunpack.c.l.b16 %v21
  %v173 = vunpack.c.l.b16 %v22
  %v174 = vunpack.c.l.b16 %v23
  %v175 = vunpack.c.l.b16 %v24
  %v176 = vunpack.c.l.b16 %v25
  %v177 = vunpack.c.l.b16 %v26
  %v178 = vunpack.c.l.b16 %v27
  %v179 = vunpack.c.l.b16 %v28
  %v180 = vunpack.c.l.b16 %v29
  %v181 = vunpack.c.l.b16 %v30
  %v182 = vunpack.c.l.b16 %v31
  %v183 = vunpack.c.l.b16 %v32
  %v184 = vunpack.c.l.b16 %v33
  %v185 = vunpack.c.l.b16 %v34
  %v186 = vunpack.c.l.b16 %v35
  %v187 = vunpack.c.l.b16 %v36
  %v188 = vunpack.c.l.b16 %v37
  %v189 = vunpack.c.l.b16 %v38
  %v190 = vunpack.c.l.b16 %v39
  %v191 = vunpack.c.l.b16 %v40
  %v192 = vunpack.c.l.b16 %v41
  %v193 = vunpack.c.l.b16 %v42
  %v194 = vunpack.c.l.b16 %v43
  %v195 = vunpack.c.l.b16 %v44
  %v196 = vunpack.c.l.b16 %v45
  %v197 = vunpack.c.l.b16 %v46
  %v198 = vunpack.c.l.b16 %v47
  %v199 = vunpack.c.l.b16 %v48
  %v200 = vunpack.c.l.b16 %v49
  %v201 = vunpack.c.l.b16 %v50
  %v202 = vunpack.c.l.b16 %v51
  %v203 = vunpack.c.l.b16 %v52
  %v204 = vunpack.c.l.b16 %v53
  %v205 = vunpack.c.l.b16 %v54
  %v206 = vunpack.c.l.b16 %v55
  %v207 = vunpack.c.l.b16 %v56
  %v208 = vunpack.c.l.b16 %v57
  %v209 = vunpack.c.l.b16 %v58
  %v210 = vunpack.c.l.b16 %v59
  %v211 = vunpack.c.l.b16 %v60
  %v212 = vunpack.c.l.b16 %v61
  %v213 = vunpack.c.l.b16 %v62
  %v214 = vunpack.c.l.b16 %v63
  %v215 = vunpack.c.l.b16 %v64
  %v216 = vunpack.c.l.b16 %v65
  %v217 = vunpack.c.l.b16 %v66
  %v218 = vunpack.c.l.b16 %v67
  %v219 = vunpack.c.l.b16 %v68
  %v220 = vunpack.c.l.b16 %v69
  %v221 = vunpack.c.l.b16 %v70
  %v222 = vunpack.c.l.b16 %v71
  %v223 = vunpack.c.l.b16 %v72
  %v224 = vunpack.c.l.b16 %v73
  %v225 = vunpack.c.l.b16 %v74
  %v226 = vunpack.c.l.b16 %v75
  %v227 = vunpack.c.l.b16 %v76
  %v228 = vunpack.c.l.b16 %v77
  %v229 = vunpack.c.l.b16 %v78
  %v230 = vpack.c.b16 %v167, %v166
  %v231 = vpack.c.b16 %v169, %v168
  %v232 = vpack.c.b16 %v171, %v170
  %v233 = vpack.c.b16 %v173, %v172
  %v234 = vpack.c.b16 %v175, %v174
  %v235 = vpack.c.b16 %v177, %v176
  %v236 = vpack.c.b16 %v179, %v178
  %v237 = vpack.c.b16 %v181, %v180
  %v238 = vpack.c.b16 %v183, %v182
  %v239 = vpack.c.b16 %v185, %v184
  %v240 = vpack.c.b16 %v187, %v186
  %v241 = vpack.c.b16 %v189, %v188
  %v242 = vpack.c.b16 %v191, %v190
  %v243 = vpack.c.b16 %v193, %v192
  %v244 = vpack.c.b16 %v195, %v194
  %v245 = vpack.c.b16 %v197, %v196
  %v246 = vpack.c.b16 %v199, %v198
  %v247 = vpack.c.b16 %v201, %v200
  %v248 = vpack.c.b16 %v203, %v202
  %v249 = vpack.c.b16 %v205, %v204
  %v250 = vpack.c.b16 %v207, %v206
  %v251 = vpack.c.b16 %v209, %v208
  %v252 = vpack.c.b16 %v211, %v210
  %v253 = vpack.c.b16 %v213, %v212
  %v254 = vpack.c.b16 %v215, %v214
  %v255 = vpack.c.b16 %v217, %v216
  %v256 = vpack.c.b16 %v219, %v218
  %v257 = vpack.c.b16 %v221, %v220
  %v258 = vpack.c.b16 %v223, %v222
  %v259 = vpack.c.b16 %v225, %v224
  %v260 = vpack.c.b16 %v227, %v226
  %v261 = vpack.c.b16 %v229, %v228
  %v310 = vunpack.c.l.b16 %v79
  %v311 = vunpack.c.l.b16 %v80
  %v312 = vunpack.c.l.b16 %v81
  %v313 = vunpack.c.l.b16 %v82
  %v314 = vunpack.c.l.b16 %v83
  %v315 = vunpack.c.l.b16 %v84
  %v316 = vunpack.c.l.b16 %v85
  %v317 = vunpack.c.l.b16 %v86
  %v318 = vunpack.c.l.b16 %v87
  %v319 = vunpack.c.l.b16 %v88
  %v320 = vunpack.c.l.b16 %v89
  %v321 = vunpack.c.l.b16 %v90
  %v322 = vunpack.c.l.b16 %v91
  %v323 = vunpack.c.l.b16 %v92
  %v324 = vunpack.c.l.b16 %v93
  %v325 = vunpack.c.l.b16 %v94
  %v326 = vpack.c.b16 %v311, %v310
  %v327 = vpack.c.b16 %v313, %v312
  %v328 = vpack.c.b16 %v315, %v314
  %v329 = vpack.c.b16 %v317, %v316
  %v330 = vpack.c.b16 %v319, %v318
  %v331 = vpack.c.b16 %v321, %v320
  %v332 = vpack.c.b16 %v323, %v322
  %v333 = vpack.c.b16 %v325, %v324
  %342 = vmatprep.subr.bf16.mxu0 0
  %343 = vmatpush1.bf16.msra.mxu0 %v333
  %344 = vmatprep.subr.bf16.mxu0 0
  %345 = vmatpush1.bf16.msra.mxu0 %v332
  %346 = vmatprep.subr.bf16.mxu0 0
  %347 = vmatpush1.bf16.msra.mxu0 %v331
  %348 = vmatprep.subr.bf16.mxu0 0
  %349 = vmatpush1.bf16.msra.mxu0 %v330
  %350 = vmatprep.subr.bf16.mxu0 0
  %351 = vmatpush1.bf16.msra.mxu0 %v329
  %352 = vmatprep.subr.bf16.mxu0 0
  %353 = vmatpush1.bf16.msra.mxu0 %v328
  %354 = vmatprep.subr.bf16.mxu0 0
  %355 = vmatpush1.bf16.msra.mxu0 %v327
  %356 = vmatprep.subr.bf16.mxu0 0
  %357 = vmatpush1.bf16.msra.mxu0 %v326
  %358 = vmatprep.subr.bf16.mxu0 0
  %359 = vmatpush2.bf16.msra.mxu0 0
  %360 = vmatprep.subr.bf16.mxu0 0
  %361 = vmatpush2.bf16.msra.mxu0 0
  %362 = vmatprep.subr.bf16.mxu0 0
  %363 = vmatpush2.bf16.msra.mxu0 0
  %364 = vmatprep.subr.bf16.mxu0 0
  %365 = vmatpush2.bf16.msra.mxu0 0
  %366 = vmatprep.subr.bf16.mxu0 0
  %367 = vmatpush2.bf16.msra.mxu0 0
  %368 = vmatprep.subr.bf16.mxu0 0
  %369 = vmatpush2.bf16.msra.mxu0 0
  %370 = vmatprep.subr.bf16.mxu0 0
  %371 = vmatpush2.bf16.msra.mxu0 0
  %372 = vmatprep.subr.bf16.mxu0 0
  %373 = vmatpush2.bf16.msra.mxu0 0
  %374 = vmatprep.mubr.bf16.mxu0 0
  %375 = vmatmul.mubr.bf16.gmra.mxu0 %v230
  %v376 = vpop.f32.mrf.mxu0
  %v377 = vadd.f32 %v100, %v376
  %v378 = vpop.f32.mrf.mxu0
  %v379 = vpop.f32.mrf.mxu0
  %v380 = vadd.f32 %v100, %v379
  %v381 = vpop.f32.mrf.mxu0
  %382 = vmatprep.mubr.bf16.mxu0 0
  %383 = vmatmul.mubr.bf16.gmra.mxu0 %v231
  %v384 = vpop.f32.mrf.mxu0
  %v385 = vadd.f32 %v100, %v384
  %v386 = vpop.f32.mrf.mxu0
  %v387 = vpop.f32.mrf.mxu0
  %v388 = vadd.f32 %v100, %v387
  %v389 = vpop.f32.mrf.mxu0
  %390 = vmatprep.mubr.bf16.mxu0 0
  %391 = vmatmul.mubr.bf16.gmra.mxu0 %v232
  %v392 = vpop.f32.mrf.mxu0
  %v393 = vadd.f32 %v100, %v392
  %v394 = vpop.f32.mrf.mxu0
  %v395 = vpop.f32.mrf.mxu0
  %v396 = vadd.f32 %v100, %v395
  %v397 = vpop.f32.mrf.mxu0
  %398 = vmatprep.mubr.bf16.mxu0 0
  %399 = vmatmul.mubr.bf16.gmra.mxu0 %v233
  %v400 = vpop.f32.mrf.mxu0
  %v401 = vadd.f32 %v100, %v400
  %v402 = vpop.f32.mrf.mxu0
  %v403 = vpop.f32.mrf.mxu0
  %v404 = vadd.f32 %v100, %v403
  %v405 = vpop.f32.mrf.mxu0
  %406 = vmatprep.mubr.bf16.mxu0 0
  %407 = vmatmul.mubr.bf16.gmra.mxu0 %v234
  %v408 = vpop.f32.mrf.mxu0
  %v409 = vadd.f32 %v100, %v408
  %v410 = vpop.f32.mrf.mxu0
  %v411 = vpop.f32.mrf.mxu0
  %v412 = vadd.f32 %v100, %v411
  %v413 = vpop.f32.mrf.mxu0
  %414 = vmatprep.mubr.bf16.mxu0 0
  %415 = vmatmul.mubr.bf16.gmra.mxu0 %v235
  %v416 = vpop.f32.mrf.mxu0
  %v417 = vadd.f32 %v100, %v416
  %v418 = vpop.f32.mrf.mxu0
  %v419 = vpop.f32.mrf.mxu0
  %v420 = vadd.f32 %v100, %v419
  %v421 = vpop.f32.mrf.mxu0
  %422 = vmatprep.mubr.bf16.mxu0 0
  %423 = vmatmul.mubr.bf16.gmra.mxu0 %v236
  %v424 = vpop.f32.mrf.mxu0
  %v425 = vadd.f32 %v100, %v424
  %v426 = vpop.f32.mrf.mxu0
  %v427 = vpop.f32.mrf.mxu0
  %v428 = vadd.f32 %v100, %v427
  %v429 = vpop.f32.mrf.mxu0
  %430 = vmatprep.mubr.bf16.mxu0 0
  %431 = vmatmul.mubr.bf16.gmra.mxu0 %v237
  %v432 = vpop.f32.mrf.mxu0
  %v433 = vadd.f32 %v100, %v432
  %v434 = vpop.f32.mrf.mxu0
  %v435 = vpop.f32.mrf.mxu0
  %v436 = vadd.f32 %v100, %v435
  %v437 = vpop.f32.mrf.mxu0
  %438 = vmatprep.mubr.bf16.mxu0 0
  %439 = vmatmul.mubr.bf16.gmra.mxu0 %v238
  %v440 = vpop.f32.mrf.mxu0
  %v441 = vadd.f32 %v100, %v440
  %v442 = vpop.f32.mrf.mxu0
  %v443 = vpop.f32.mrf.mxu0
  %v444 = vadd.f32 %v100, %v443
  %v445 = vpop.f32.mrf.mxu0
  %446 = vmatprep.mubr.bf16.mxu0 0
  %447 = vmatmul.mubr.bf16.gmra.mxu0 %v239
  %v448 = vpop.f32.mrf.mxu0
  %v449 = vadd.f32 %v100, %v448
  %v450 = vpop.f32.mrf.mxu0
  %v451 = vpop.f32.mrf.mxu0
  %v452 = vadd.f32 %v100, %v451
  %v453 = vpop.f32.mrf.mxu0
  %454 = vmatprep.mubr.bf16.mxu0 0
  %455 = vmatmul.mubr.bf16.gmra.mxu0 %v240
  %v456 = vpop.f32.mrf.mxu0
  %v457 = vadd.f32 %v100, %v456
  %v458 = vpop.f32.mrf.mxu0
  %v459 = vpop.f32.mrf.mxu0
  %v460 = vadd.f32 %v100, %v459
  %v461 = vpop.f32.mrf.mxu0
  %462 = vmatprep.mubr.bf16.mxu0 0
  %463 = vmatmul.mubr.bf16.gmra.mxu0 %v241
  %v464 = vpop.f32.mrf.mxu0
  %v465 = vadd.f32 %v100, %v464
  %v466 = vpop.f32.mrf.mxu0
  %v467 = vpop.f32.mrf.mxu0
  %v468 = vadd.f32 %v100, %v467
  %v469 = vpop.f32.mrf.mxu0
  %470 = vmatprep.mubr.bf16.mxu0 0
  %471 = vmatmul.mubr.bf16.gmra.mxu0 %v242
  %v472 = vpop.f32.mrf.mxu0
  %v473 = vadd.f32 %v100, %v472
  %v474 = vpop.f32.mrf.mxu0
  %v475 = vpop.f32.mrf.mxu0
  %v476 = vadd.f32 %v100, %v475
  %v477 = vpop.f32.mrf.mxu0
  %478 = vmatprep.mubr.bf16.mxu0 0
  %479 = vmatmul.mubr.bf16.gmra.mxu0 %v243
  %v480 = vpop.f32.mrf.mxu0
  %v481 = vadd.f32 %v100, %v480
  %v482 = vpop.f32.mrf.mxu0
  %v483 = vpop.f32.mrf.mxu0
  %v484 = vadd.f32 %v100, %v483
  %v485 = vpop.f32.mrf.mxu0
  %486 = vmatprep.mubr.bf16.mxu0 0
  %487 = vmatmul.mubr.bf16.gmra.mxu0 %v244
  %v488 = vpop.f32.mrf.mxu0
  %v489 = vadd.f32 %v100, %v488
  %v490 = vpop.f32.mrf.mxu0
  %v491 = vpop.f32.mrf.mxu0
  %v492 = vadd.f32 %v100, %v491
  %v493 = vpop.f32.mrf.mxu0
  %494 = vmatprep.mubr.bf16.mxu0 0
  %495 = vmatmul.mubr.bf16.gmra.mxu0 %v245
  %v496 = vpop.f32.mrf.mxu0
  %v497 = vadd.f32 %v100, %v496
  %v498 = vpop.f32.mrf.mxu0
  %v499 = vpop.f32.mrf.mxu0
  %v500 = vadd.f32 %v100, %v499
  %v501 = vpop.f32.mrf.mxu0
  %502 = vmatprep.mubr.bf16.mxu0 0
  %503 = vmatmul.mubr.bf16.gmra.mxu0 %v246
  %v504 = vpop.f32.mrf.mxu0
  %v505 = vadd.f32 %v100, %v504
  %v506 = vpop.f32.mrf.mxu0
  %v507 = vpop.f32.mrf.mxu0
  %v508 = vadd.f32 %v100, %v507
  %v509 = vpop.f32.mrf.mxu0
  %510 = vmatprep.mubr.bf16.mxu0 0
  %511 = vmatmul.mubr.bf16.gmra.mxu0 %v247
  %v512 = vpop.f32.mrf.mxu0
  %v513 = vadd.f32 %v100, %v512
  %v514 = vpop.f32.mrf.mxu0
  %v515 = vpop.f32.mrf.mxu0
  %v516 = vadd.f32 %v100, %v515
  %v517 = vpop.f32.mrf.mxu0
  %518 = vmatprep.mubr.bf16.mxu0 0
  %519 = vmatmul.mubr.bf16.gmra.mxu0 %v248
  %v520 = vpop.f32.mrf.mxu0
  %v521 = vadd.f32 %v100, %v520
  %v522 = vpop.f32.mrf.mxu0
  %v523 = vpop.f32.mrf.mxu0
  %v524 = vadd.f32 %v100, %v523
  %v525 = vpop.f32.mrf.mxu0
  %526 = vmatprep.mubr.bf16.mxu0 0
  %527 = vmatmul.mubr.bf16.gmra.mxu0 %v249
  %v528 = vpop.f32.mrf.mxu0
  %v529 = vadd.f32 %v100, %v528
  %v530 = vpop.f32.mrf.mxu0
  %v531 = vpop.f32.mrf.mxu0
  %v532 = vadd.f32 %v100, %v531
  %v533 = vpop.f32.mrf.mxu0
  %534 = vmatprep.mubr.bf16.mxu0 0
  %535 = vmatmul.mubr.bf16.gmra.mxu0 %v250
  %v536 = vpop.f32.mrf.mxu0
  %v537 = vadd.f32 %v100, %v536
  %v538 = vpop.f32.mrf.mxu0
  %v539 = vpop.f32.mrf.mxu0
  %v540 = vadd.f32 %v100, %v539
  %v541 = vpop.f32.mrf.mxu0
  %542 = vmatprep.mubr.bf16.mxu0 0
  %543 = vmatmul.mubr.bf16.gmra.mxu0 %v251
  %v544 = vpop.f32.mrf.mxu0
  %v545 = vadd.f32 %v100, %v544
  %v546 = vpop.f32.mrf.mxu0
  %v547 = vpop.f32.mrf.mxu0
  %v548 = vadd.f32 %v100, %v547
  %v549 = vpop.f32.mrf.mxu0
  %550 = vmatprep.mubr.bf16.mxu0 0
  %551 = vmatmul.mubr.bf16.gmra.mxu0 %v252
  %v552 = vpop.f32.mrf.mxu0
  %v553 = vadd.f32 %v100, %v552
  %v554 = vpop.f32.mrf.mxu0
  %v555 = vpop.f32.mrf.mxu0
  %v556 = vadd.f32 %v100, %v555
  %v557 = vpop.f32.mrf.mxu0
  %558 = vmatprep.mubr.bf16.mxu0 0
  %559 = vmatmul.mubr.bf16.gmra.mxu0 %v253
  %v560 = vpop.f32.mrf.mxu0
  %v561 = vadd.f32 %v100, %v560
  %v562 = vpop.f32.mrf.mxu0
  %v563 = vpop.f32.mrf.mxu0
  %v564 = vadd.f32 %v100, %v563
  %v565 = vpop.f32.mrf.mxu0
  %566 = vmatprep.mubr.bf16.mxu0 0
  %567 = vmatmul.mubr.bf16.gmra.mxu0 %v254
  %v568 = vpop.f32.mrf.mxu0
  %v569 = vadd.f32 %v100, %v568
  %v570 = vpop.f32.mrf.mxu0
  %v571 = vpop.f32.mrf.mxu0
  %v572 = vadd.f32 %v100, %v571
  %v573 = vpop.f32.mrf.mxu0
  %574 = vmatprep.mubr.bf16.mxu0 0
  %575 = vmatmul.mubr.bf16.gmra.mxu0 %v255
  %v576 = vpop.f32.mrf.mxu0
  %v577 = vadd.f32 %v100, %v576
  %v578 = vpop.f32.mrf.mxu0
  %v579 = vpop.f32.mrf.mxu0
  %v580 = vadd.f32 %v100, %v579
  %v581 = vpop.f32.mrf.mxu0
  %582 = vmatprep.mubr.bf16.mxu0 0
  %583 = vmatmul.mubr.bf16.gmra.mxu0 %v256
  %v584 = vpop.f32.mrf.mxu0
  %v585 = vadd.f32 %v100, %v584
  %v586 = vpop.f32.mrf.mxu0
  %v587 = vpop.f32.mrf.mxu0
  %v588 = vadd.f32 %v100, %v587
  %v589 = vpop.f32.mrf.mxu0
  %590 = vmatprep.mubr.bf16.mxu0 0
  %591 = vmatmul.mubr.bf16.gmra.mxu0 %v257
  %v592 = vpop.f32.mrf.mxu0
  %v593 = vadd.f32 %v100, %v592
  %v594 = vpop.f32.mrf.mxu0
  %v595 = vpop.f32.mrf.mxu0
  %v596 = vadd.f32 %v100, %v595
  %v597 = vpop.f32.mrf.mxu0
  %598 = vmatprep.mubr.bf16.mxu0 0
  %599 = vmatmul.mubr.bf16.gmra.mxu0 %v258
  %v600 = vpop.f32.mrf.mxu0
  %v601 = vadd.f32 %v100, %v600
  %v602 = vpop.f32.mrf.mxu0
  %v603 = vpop.f32.mrf.mxu0
  %v604 = vadd.f32 %v100, %v603
  %v605 = vpop.f32.mrf.mxu0
  %606 = vmatprep.mubr.bf16.mxu0 0
  %607 = vmatmul.mubr.bf16.gmra.mxu0 %v259
  %v608 = vpop.f32.mrf.mxu0
  %v609 = vadd.f32 %v100, %v608
  %v610 = vpop.f32.mrf.mxu0
  %v611 = vpop.f32.mrf.mxu0
  %v612 = vadd.f32 %v100, %v611
  %v613 = vpop.f32.mrf.mxu0
  %614 = vmatprep.mubr.bf16.mxu0 0
  %615 = vmatmul.mubr.bf16.gmra.mxu0 %v260
  %v616 = vpop.f32.mrf.mxu0
  %v617 = vadd.f32 %v100, %v616
  %v618 = vpop.f32.mrf.mxu0
  %v619 = vpop.f32.mrf.mxu0
  %v620 = vadd.f32 %v100, %v619
  %v621 = vpop.f32.mrf.mxu0
  %622 = vmatprep.mubr.bf16.mxu0 0
  %623 = vmatmul.mubr.bf16.gmra.mxu0 %v261
  %v624 = vpop.f32.mrf.mxu0
  %v625 = vadd.f32 %v100, %v624
  %v626 = vpop.f32.mrf.mxu0
  %v627 = vpop.f32.mrf.mxu0
  %v628 = vadd.f32 %v100, %v627
  %v629 = vpop.f32.mrf.mxu0
  %630 = vdwg.mxu0
  %v631 = vmax.f32 %v377, 0.0
  %v632 = vmax.f32 %v380, 0.0
  %v633 = vmax.f32 %v385, 0.0
  %v634 = vmax.f32 %v388, 0.0
  %v635 = vmax.f32 %v393, 0.0
  %v636 = vmax.f32 %v396, 0.0
  %v637 = vmax.f32 %v401, 0.0
  %v638 = vmax.f32 %v404, 0.0
  %v639 = vmax.f32 %v409, 0.0
  %v640 = vmax.f32 %v412, 0.0
  %v641 = vmax.f32 %v417, 0.0
  %v642 = vmax.f32 %v420, 0.0
  %v643 = vmax.f32 %v425, 0.0
  %v644 = vmax.f32 %v428, 0.0
  %v645 = vmax.f32 %v433, 0.0
  %v646 = vmax.f32 %v436, 0.0
  %v647 = vmax.f32 %v441, 0.0
  %v648 = vmax.f32 %v444, 0.0
  %v649 = vmax.f32 %v449, 0.0
  %v650 = vmax.f32 %v452, 0.0
  %v651 = vmax.f32 %v457, 0.0
  %v652 = vmax.f32 %v460, 0.0
  %v653 = vmax.f32 %v465, 0.0
  %v654 = vmax.f32 %v468, 0.0
  %v655 = vmax.f32 %v473, 0.0
  %v656 = vmax.f32 %v476, 0.0
  %v657 = vmax.f32 %v481, 0.0
  %v658 = vmax.f32 %v484, 0.0
  %v659 = vmax.f32 %v489, 0.0
  %v660 = vmax.f32 %v492, 0.0
  %v661 = vmax.f32 %v497, 0.0
  %v662 = vmax.f32 %v500, 0.0
  %v663 = vmax.f32 %v505, 0.0
  %v664 = vmax.f32 %v508, 0.0
  %v665 = vmax.f32 %v513, 0.0
  %v666 = vmax.f32 %v516, 0.0
  %v667 = vmax.f32 %v521, 0.0
  %v668 = vmax.f32 %v524, 0.0
  %v669 = vmax.f32 %v529, 0.0
  %v670 = vmax.f32 %v532, 0.0
  %v671 = vmax.f32 %v537, 0.0
  %v672 = vmax.f32 %v540, 0.0
  %v673 = vmax.f32 %v545, 0.0
  %v674 = vmax.f32 %v548, 0.0
  %v675 = vmax.f32 %v553, 0.0
  %v676 = vmax.f32 %v556, 0.0
  %v677 = vmax.f32 %v561, 0.0
  %v678 = vmax.f32 %v564, 0.0
  %v679 = vmax.f32 %v569, 0.0
  %v680 = vmax.f32 %v572, 0.0
  %v681 = vmax.f32 %v577, 0.0
  %v682 = vmax.f32 %v580, 0.0
  %v683 = vmax.f32 %v585, 0.0
  %v684 = vmax.f32 %v588, 0.0
  %v685 = vmax.f32 %v593, 0.0
  %v686 = vmax.f32 %v596, 0.0
  %v687 = vmax.f32 %v601, 0.0
  %v688 = vmax.f32 %v604, 0.0
  %v689 = vmax.f32 %v609, 0.0
  %v690 = vmax.f32 %v612, 0.0
  %v691 = vmax.f32 %v617, 0.0
  %v692 = vmax.f32 %v620, 0.0
  %v693 = vmax.f32 %v625, 0.0
  %v694 = vmax.f32 %v628, 0.0
  %v695 = vpack.c.bf16 %v632, %v631
  %v696 = vpack.c.bf16 %v634, %v633
  %v697 = vpack.c.bf16 %v636, %v635
  %v698 = vpack.c.bf16 %v638, %v637
  %v699 = vpack.c.bf16 %v640, %v639
  %v700 = vpack.c.bf16 %v642, %v641
  %v701 = vpack.c.bf16 %v644, %v643
  %v702 = vpack.c.bf16 %v646, %v645
  %v703 = vpack.c.bf16 %v648, %v647
  %v704 = vpack.c.bf16 %v650, %v649
  %v705 = vpack.c.bf16 %v652, %v651
  %v706 = vpack.c.bf16 %v654, %v653
  %v707 = vpack.c.bf16 %v656, %v655
  %v708 = vpack.c.bf16 %v658, %v657
  %v709 = vpack.c.bf16 %v660, %v659
  %v710 = vpack.c.bf16 %v662, %v661
  %v711 = vpack.c.bf16 %v664, %v663
  %v712 = vpack.c.bf16 %v666, %v665
  %v713 = vpack.c.bf16 %v668, %v667
  %v714 = vpack.c.bf16 %v670, %v669
  %v715 = vpack.c.bf16 %v672, %v671
  %v716 = vpack.c.bf16 %v674, %v673
  %v717 = vpack.c.bf16 %v676, %v675
  %v718 = vpack.c.bf16 %v678, %v677
  %v719 = vpack.c.bf16 %v680, %v679
  %v720 = vpack.c.bf16 %v682, %v681
  %v721 = vpack.c.bf16 %v684, %v683
  %v722 = vpack.c.bf16 %v686, %v685
  %v723 = vpack.c.bf16 %v688, %v687
  %v724 = vpack.c.bf16 %v690, %v689
  %v725 = vpack.c.bf16 %v692, %v691
  %v726 = vpack.c.bf16 %v694, %v693
  %v759 = vunpack.c.l.b16 %v695
  %v760 = vunpack.c.h.b16 %v695
  %v761 = vunpack.c.l.b16 %v696
  %v762 = vunpack.c.h.b16 %v696
  %v763 = vunpack.c.l.b16 %v697
  %v764 = vunpack.c.h.b16 %v697
  %v765 = vunpack.c.l.b16 %v698
  %v766 = vunpack.c.h.b16 %v698
  %v767 = vunpack.c.l.b16 %v699
  %v768 = vunpack.c.h.b16 %v699
  %v769 = vunpack.c.l.b16 %v700
  %v770 = vunpack.c.h.b16 %v700
  %v771 = vunpack.c.l.b16 %v701
  %v772 = vunpack.c.h.b16 %v701
  %v773 = vunpack.c.l.b16 %v702
  %v774 = vunpack.c.h.b16 %v702
  %v775 = vunpack.c.l.b16 %v703
  %v776 = vunpack.c.h.b16 %v703
  %v777 = vunpack.c.l.b16 %v704
  %v778 = vunpack.c.h.b16 %v704
  %v779 = vunpack.c.l.b16 %v705
  %v780 = vunpack.c.h.b16 %v705
  %v781 = vunpack.c.l.b16 %v706
  %v782 = vunpack.c.h.b16 %v706
  %v783 = vunpack.c.l.b16 %v707
  %v784 = vunpack.c.h.b16 %v707
  %v785 = vunpack.c.l.b16 %v708
  %v786 = vunpack.c.h.b16 %v708
  %v787 = vunpack.c.l.b16 %v709
  %v788 = vunpack.c.h.b16 %v709
  %v789 = vunpack.c.l.b16 %v710
  %v790 = vunpack.c.h.b16 %v710
  %v791 = vunpack.c.l.b16 %v711
  %v792 = vunpack.c.h.b16 %v711
  %v793 = vunpack.c.l.b16 %v712
  %v794 = vunpack.c.h.b16 %v712
  %v795 = vunpack.c.l.b16 %v713
  %v796 = vunpack.c.h.b16 %v713
  %v797 = vunpack.c.l.b16 %v714
  %v798 = vunpack.c.h.b16 %v714
  %v799 = vunpack.c.l.b16 %v715
  %v800 = vunpack.c.h.b16 %v715
  %v801 = vunpack.c.l.b16 %v716
  %v802 = vunpack.c.h.b16 %v716
  %v803 = vunpack.c.l.b16 %v717
  %v804 = vunpack.c.h.b16 %v717
  %v805 = vunpack.c.l.b16 %v718
  %v806 = vunpack.c.h.b16 %v718
  %v807 = vunpack.c.l.b16 %v719
  %v808 = vunpack.c.h.b16 %v719
  %v809 = vunpack.c.l.b16 %v720
  %v810 = vunpack.c.h.b16 %v720
  %v811 = vunpack.c.l.b16 %v721
  %v812 = vunpack.c.h.b16 %v721
  %v813 = vunpack.c.l.b16 %v722
  %v814 = vunpack.c.h.b16 %v722
  %v815 = vunpack.c.l.b16 %v723
  %v816 = vunpack.c.h.b16 %v723
  %v817 = vunpack.c.l.b16 %v724
  %v818 = vunpack.c.h.b16 %v724
  %v819 = vunpack.c.l.b16 %v725
  %v820 = vunpack.c.h.b16 %v725
  %v821 = vunpack.c.l.b16 %v726
  %v822 = vunpack.c.h.b16 %v726
  %v823 = vpack.c.b16 %v759, %v759
  %v824 = vpack.c.b16 %v760, %v760
  %v825 = vpack.c.b16 %v761, %v761
  %v826 = vpack.c.b16 %v762, %v762
  %v827 = vpack.c.b16 %v763, %v763
  %v828 = vpack.c.b16 %v764, %v764
  %v829 = vpack.c.b16 %v765, %v765
  %v830 = vpack.c.b16 %v766, %v766
  %v831 = vpack.c.b16 %v767, %v767
  %v832 = vpack.c.b16 %v768, %v768
  %v833 = vpack.c.b16 %v769, %v769
  %v834 = vpack.c.b16 %v770, %v770
  %v835 = vpack.c.b16 %v771, %v771
  %v836 = vpack.c.b16 %v772, %v772
  %v837 = vpack.c.b16 %v773, %v773
  %v838 = vpack.c.b16 %v774, %v774
  %v839 = vpack.c.b16 %v775, %v775
  %v840 = vpack.c.b16 %v776, %v776
  %v841 = vpack.c.b16 %v777, %v777
  %v842 = vpack.c.b16 %v778, %v778
  %v843 = vpack.c.b16 %v779, %v779
  %v844 = vpack.c.b16 %v780, %v780
  %v845 = vpack.c.b16 %v781, %v781
  %v846 = vpack.c.b16 %v782, %v782
  %v847 = vpack.c.b16 %v783, %v783
  %v848 = vpack.c.b16 %v784, %v784
  %v849 = vpack.c.b16 %v785, %v785
  %v850 = vpack.c.b16 %v786, %v786
  %v851 = vpack.c.b16 %v787, %v787
  %v852 = vpack.c.b16 %v788, %v788
  %v853 = vpack.c.b16 %v789, %v789
  %v854 = vpack.c.b16 %v790, %v790
  %v855 = vpack.c.b16 %v791, %v791
  %v856 = vpack.c.b16 %v792, %v792
  %v857 = vpack.c.b16 %v793, %v793
  %v858 = vpack.c.b16 %v794, %v794
  %v859 = vpack.c.b16 %v795, %v795
  %v860 = vpack.c.b16 %v796, %v796
  %v861 = vpack.c.b16 %v797, %v797
  %v862 = vpack.c.b16 %v798, %v798
  %v863 = vpack.c.b16 %v799, %v799
  %v864 = vpack.c.b16 %v800, %v800
  %v865 = vpack.c.b16 %v801, %v801
  %v866 = vpack.c.b16 %v802, %v802
  %v867 = vpack.c.b16 %v803, %v803
  %v868 = vpack.c.b16 %v804, %v804
  %v869 = vpack.c.b16 %v805, %v805
  %v870 = vpack.c.b16 %v806, %v806
  %v871 = vpack.c.b16 %v807, %v807
  %v872 = vpack.c.b16 %v808, %v808
  %v873 = vpack.c.b16 %v809, %v809
  %v874 = vpack.c.b16 %v810, %v810
  %v875 = vpack.c.b16 %v811, %v811
  %v876 = vpack.c.b16 %v812, %v812
  %v877 = vpack.c.b16 %v813, %v813
  %v878 = vpack.c.b16 %v814, %v814
  %v879 = vpack.c.b16 %v815, %v815
  %v880 = vpack.c.b16 %v816, %v816
  %v881 = vpack.c.b16 %v817, %v817
  %v882 = vpack.c.b16 %v818, %v818
  %v883 = vpack.c.b16 %v819, %v819
  %v884 = vpack.c.b16 %v820, %v820
  %v885 = vpack.c.b16 %v821, %v821
  %v886 = vpack.c.b16 %v822, %v822
  %951 = vst [vmem:[%s3] sm:$0xf] %v823
  %952 = vst [vmem:[%s3 + $0x4] sm:$0xf] %v824
  %953 = vst [vmem:[%s3 + $0x8] sm:$0xf] %v825
  %954 = vst [vmem:[%s3 + $0xc] sm:$0xf] %v826
  %955 = vst [vmem:[%s3 + $0x10] sm:$0xf] %v827
  %956 = vst [vmem:[%s3 + $0x14] sm:$0xf] %v828
  %957 = vst [vmem:[%s3 + $0x18] sm:$0xf] %v829
  %958 = vst [vmem:[%s3 + $0x1c] sm:$0xf] %v830
  %959 = vst [vmem:[%s3 + $0x20] sm:$0xf] %v831
  %960 = vst [vmem:[%s3 + $0x24] sm:$0xf] %v832
  %961 = vst [vmem:[%s3 + $0x28] sm:$0xf] %v833
  %962 = vst [vmem:[%s3 + $0x2c] sm:$0xf] %v834
  %963 = vst [vmem:[%s3 + $0x30] sm:$0xf] %v835
  %964 = vst [vmem:[%s3 + $0x34] sm:$0xf] %v836
  %965 = vst [vmem:[%s3 + $0x38] sm:$0xf] %v837
  %966 = vst [vmem:[%s3 + $0x3c] sm:$0xf] %v838
  %967 = vst [vmem:[%s3 + $0x40] sm:$0xf] %v839
  %968 = vst [vmem:[%s3 + $0x44] sm:$0xf] %v840
  %969 = vst [vmem:[%s3 + $0x48] sm:$0xf] %v841
  %970 = vst [vmem:[%s3 + $0x4c] sm:$0xf] %v842
  %971 = vst [vmem:[%s3 + $0x50] sm:$0xf] %v843
  %972 = vst [vmem:[%s3 + $0x54] sm:$0xf] %v844
  %973 = vst [vmem:[%s3 + $0x58] sm:$0xf] %v845
  %974 = vst [vmem:[%s3 + $0x5c] sm:$0xf] %v846
  %975 = vst [vmem:[%s3 + $0x60] sm:$0xf] %v847
  %976 = vst [vmem:[%s3 + $0x64] sm:$0xf] %v848
  %977 = vst [vmem:[%s3 + $0x68] sm:$0xf] %v849
  %978 = vst [vmem:[%s3 + $0x6c] sm:$0xf] %v850
  %979 = vst [vmem:[%s3 + $0x70] sm:$0xf] %v851
  %980 = vst [vmem:[%s3 + $0x74] sm:$0xf] %v852
  %981 = vst [vmem:[%s3 + $0x78] sm:$0xf] %v853
  %982 = vst [vmem:[%s3 + $0x7c] sm:$0xf] %v854
  %983 = vst [vmem:[%s3 + $0x80] sm:$0xf] %v855
  %984 = vst [vmem:[%s3 + $0x84] sm:$0xf] %v856
  %985 = vst [vmem:[%s3 + $0x88] sm:$0xf] %v857
  %986 = vst [vmem:[%s3 + $0x8c] sm:$0xf] %v858
  %987 = vst [vmem:[%s3 + $0x90] sm:$0xf] %v859
  %988 = vst [vmem:[%s3 + $0x94] sm:$0xf] %v860
  %989 = vst [vmem:[%s3 + $0x98] sm:$0xf] %v861
  %990 = vst [vmem:[%s3 + $0x9c] sm:$0xf] %v862
  %991 = vst [vmem:[%s3 + $0xa0] sm:$0xf] %v863
  %992 = vst [vmem:[%s3 + $0xa4] sm:$0xf] %v864
  %993 = vst [vmem:[%s3 + $0xa8] sm:$0xf] %v865
  %994 = vst [vmem:[%s3 + $0xac] sm:$0xf] %v866
  %995 = vst [vmem:[%s3 + $0xb0] sm:$0xf] %v867
  %996 = vst [vmem:[%s3 + $0xb4] sm:$0xf] %v868
  %997 = vst [vmem:[%s3 + $0xb8] sm:$0xf] %v869
  %998 = vst [vmem:[%s3 + $0xbc] sm:$0xf] %v870
  %999 = vst [vmem:[%s3 + $0xc0] sm:$0xf] %v871
  %1000 = vst [vmem:[%s3 + $0xc4] sm:$0xf] %v872
  %1001 = vst [vmem:[%s3 + $0xc8] sm:$0xf] %v873
  %1002 = vst [vmem:[%s3 + $0xcc] sm:$0xf] %v874
  %1003 = vst [vmem:[%s3 + $0xd0] sm:$0xf] %v875
  %1004 = vst [vmem:[%s3 + $0xd4] sm:$0xf] %v876
  %1005 = vst [vmem:[%s3 + $0xd8] sm:$0xf] %v877
  %1006 = vst [vmem:[%s3 + $0xdc] sm:$0xf] %v878
  %1007 = vst [vmem:[%s3 + $0xe0] sm:$0xf] %v879
  %1008 = vst [vmem:[%s3 + $0xe4] sm:$0xf] %v880
  %1009 = vst [vmem:[%s3 + $0xe8] sm:$0xf] %v881
  %1010 = vst [vmem:[%s3 + $0xec] sm:$0xf] %v882
  %1011 = vst [vmem:[%s3 + $0xf0] sm:$0xf] %v883
  %1012 = vst [vmem:[%s3 + $0xf4] sm:$0xf] %v884
  %1013 = vst [vmem:[%s3 + $0xf8] sm:$0xf] %v885
  %1014 = vst [vmem:[%s3 + $0xfc] sm:$0xf] %v886
  // Predicated region
  $region14: #{up_forward.11} parent=0 // pred_check
    _
  $region15: #{up_forward.11} parent=0 // pred_check_branch
    %1016 = sbr.rel (0) target = $region17
  $region16: #{up_forward.11} parent=0 // pred_region
    _
  $region17: #{up_forward.11} parent=0 // pred_fallthru
    _
  // Predicated region
  $region18: #{up_forward.11} parent=0 // pred_check
    _
  $region19: #{up_forward.11} parent=0 // pred_check_branch
    %1018 = sbr.rel (0) target = $region21
  $region20: #{up_forward.11} parent=0 // pred_region
    _
  $region21: #{up_forward.11} parent=0 // pred_fallthru
    _

// kernel: up_forward.13
$region0: #{up_forward.13}
  #allocation0 [shape = 'u32[]', space=smem, size = 0x4, offset = 0x4, fixed_abs, tag = 'smem constant byte address 0x4 - core index']
  #allocation1 [shape = 'u32[144,128]{1,0:T(1,128)}', space=vmem, size = 0x12000, scoped, tag = 'internal scratch']
  %s0 = inlined_call_operand.vmem [shape: bf16[512,128], index: 0, kind: input, shape index: {}]
  %s1 = inlined_call_operand.vmem [shape: bf16[128,128], index: 1, kind: input, shape index: {}]
  %s2 = inlined_call_operand.vmem [shape: bf16[512,128], index: 2, kind: input, shape index: {}]
  %s3 = inlined_call_operand.vmem [shape: bf16[128,128], index: 3, kind: input, shape index: {}]
  %s4 = inlined_call_operand.vmem [shape: f32[1,128], index: 4, kind: input, shape index: {}]
  %s5 = inlined_call_operand.vmem [shape: f32[512,128], index: 5, kind: output, shape index: {}]
  %s6 = sld [smem:[#allocation0]]
  $region30: #{up_forward.13} parent=0
    _
  %s8 = ssub.s32 1, %s6
  %s9 = scalar_select 0, %s8, %s6
  // Predicated region
  $region2: #{up_forward.13} parent=0 // pred_check
    _
  $region3: #{up_forward.13} parent=0 // pred_check_branch
    %11 = sbr.rel (0) target = $region5
  $region4: #{up_forward.13} parent=0 // pred_region
    _
  $region5: #{up_forward.13} parent=0 // pred_fallthru
    _
  // Predicated region
  $region6: #{up_forward.13} parent=0 // pred_check
    _
  $region7: #{up_forward.13} parent=0 // pred_check_branch
    %13 = sbr.rel (0) target = $region9
  $region8: #{up_forward.13} parent=0 // pred_region
    _
  $region9: #{up_forward.13} parent=0 // pred_fallthru
    _
  // Predicated region
  $region10: #{up_forward.13} parent=0 // pred_check
    _
  $region11: #{up_forward.13} parent=0 // pred_check_branch
    %15 = sbr.rel (0) target = $region13
  $region12: #{up_forward.13} parent=0 // pred_region
    _
  $region13: #{up_forward.13} parent=0 // pred_fallthru
    _
  // Predicated region
  $region14: #{up_forward.13} parent=0 // pred_check
    _
  $region15: #{up_forward.13} parent=0 // pred_check_branch
    %17 = sbr.rel (0) target = $region17
  $region16: #{up_forward.13} parent=0 // pred_region
    _
  $region17: #{up_forward.13} parent=0 // pred_fallthru
    _
  // Predicated region
  $region18: #{up_forward.13} parent=0 // pred_check
    _
  $region19: #{up_forward.13} parent=0 // pred_check_branch
    %19 = sbr.rel (0) target = $region21
  $region20: #{up_forward.13} parent=0 // pred_region
    _
  $region21: #{up_forward.13} parent=0 // pred_fallthru
    _
  %v21 = vld [vmem:[%s0] sm:$0xf]
  %v22 = vld [vmem:[%s0 + $0x4] sm:$0xf]
  %v23 = vld [vmem:[%s0 + $0x8] sm:$0xf]
  %v24 = vld [vmem:[%s0 + $0xc] sm:$0xf]
  %v25 = vld [vmem:[%s0 + $0x10] sm:$0xf]
  %v26 = vld [vmem:[%s0 + $0x14] sm:$0xf]
  %v27 = vld [vmem:[%s0 + $0x18] sm:$0xf]
  %v28 = vld [vmem:[%s0 + $0x1c] sm:$0xf]
  %v29 = vld [vmem:[%s0 + $0x20] sm:$0xf]
  %v30 = vld [vmem:[%s0 + $0x24] sm:$0xf]
  %v31 = vld [vmem:[%s0 + $0x28] sm:$0xf]
  %v32 = vld [vmem:[%s0 + $0x2c] sm:$0xf]
  %v33 = vld [vmem:[%s0 + $0x30] sm:$0xf]
  %v34 = vld [vmem:[%s0 + $0x34] sm:$0xf]
  %v35 = vld [vmem:[%s0 + $0x38] sm:$0xf]
  %v36 = vld [vmem:[%s0 + $0x3c] sm:$0xf]
  %v37 = vld [vmem:[%s0 + $0x40] sm:$0xf]
  %v38 = vld [vmem:[%s0 + $0x44] sm:$0xf]
  %v39 = vld [vmem:[%s0 + $0x48] sm:$0xf]
  %v40 = vld [vmem:[%s0 + $0x4c] sm:$0xf]
  %v41 = vld [vmem:[%s0 + $0x50] sm:$0xf]
  %v42 = vld [vmem:[%s0 + $0x54] sm:$0xf]
  %v43 = vld [vmem:[%s0 + $0x58] sm:$0xf]
  %v44 = vld [vmem:[%s0 + $0x5c] sm:$0xf]
  %v45 = vld [vmem:[%s0 + $0x60] sm:$0xf]
  %v46 = vld [vmem:[%s0 + $0x64] sm:$0xf]
  %v47 = vld [vmem:[%s0 + $0x68] sm:$0xf]
  %v48 = vld [vmem:[%s0 + $0x6c] sm:$0xf]
  %v49 = vld [vmem:[%s0 + $0x70] sm:$0xf]
  %v50 = vld [vmem:[%s0 + $0x74] sm:$0xf]
  %v51 = vld [vmem:[%s0 + $0x78] sm:$0xf]
  %v52 = vld [vmem:[%s0 + $0x7c] sm:$0xf]
  %v53 = vld [vmem:[%s0 + $0x80] sm:$0xf]
  %v54 = vld [vmem:[%s0 + $0x84] sm:$0xf]
  %v55 = vld [vmem:[%s0 + $0x88] sm:$0xf]
  %v56 = vld [vmem:[%s0 + $0x8c] sm:$0xf]
  %v57 = vld [vmem:[%s0 + $0x90] sm:$0xf]
  %v58 = vld [vmem:[%s0 + $0x94] sm:$0xf]
  %v59 = vld [vmem:[%s0 + $0x98] sm:$0xf]
  %v60 = vld [vmem:[%s0 + $0x9c] sm:$0xf]
  %v61 = vld [vmem:[%s0 + $0xa0] sm:$0xf]
  %v62 = vld [vmem:[%s0 + $0xa4] sm:$0xf]
  %v63 = vld [vmem:[%s0 + $0xa8] sm:$0xf]
  %v64 = vld [vmem:[%s0 + $0xac] sm:$0xf]
  %v65 = vld [vmem:[%s0 + $0xb0] sm:$0xf]
  %v66 = vld [vmem:[%s0 + $0xb4] sm:$0xf]
  %v67 = vld [vmem:[%s0 + $0xb8] sm:$0xf]
  %v68 = vld [vmem:[%s0 + $0xbc] sm:$0xf]
  %v69 = vld [vmem:[%s0 + $0xc0] sm:$0xf]
  %v70 = vld [vmem:[%s0 + $0xc4] sm:$0xf]
  %v71 = vld [vmem:[%s0 + $0xc8] sm:$0xf]
  %v72 = vld [vmem:[%s0 + $0xcc] sm:$0xf]
  %v73 = vld [vmem:[%s0 + $0xd0] sm:$0xf]
  %v74 = vld [vmem:[%s0 + $0xd4] sm:$0xf]
  %v75 = vld [vmem:[%s0 + $0xd8] sm:$0xf]
  %v76 = vld [vmem:[%s0 + $0xdc] sm:$0xf]
  %v77 = vld [vmem:[%s0 + $0xe0] sm:$0xf]
  %v78 = vld [vmem:[%s0 + $0xe4] sm:$0xf]
  %v79 = vld [vmem:[%s0 + $0xe8] sm:$0xf]
  %v80 = vld [vmem:[%s0 + $0xec] sm:$0xf]
  %v81 = vld [vmem:[%s0 + $0xf0] sm:$0xf]
  %v82 = vld [vmem:[%s0 + $0xf4] sm:$0xf]
  %v83 = vld [vmem:[%s0 + $0xf8] sm:$0xf]
  %v84 = vld [vmem:[%s0 + $0xfc] sm:$0xf]
  %v85 = vld [vmem:[%s1] sm:$0xf]
  %v86 = vld [vmem:[%s1 + $0x4] sm:$0xf]
  %v87 = vld [vmem:[%s1 + $0x8] sm:$0xf]
  %v88 = vld [vmem:[%s1 + $0xc] sm:$0xf]
  %v89 = vld [vmem:[%s1 + $0x10] sm:$0xf]
  %v90 = vld [vmem:[%s1 + $0x14] sm:$0xf]
  %v91 = vld [vmem:[%s1 + $0x18] sm:$0xf]
  %v92 = vld [vmem:[%s1 + $0x1c] sm:$0xf]
  %v93 = vld [vmem:[%s1 + $0x20] sm:$0xf]
  %v94 = vld [vmem:[%s1 + $0x24] sm:$0xf]
  %v95 = vld [vmem:[%s1 + $0x28] sm:$0xf]
  %v96 = vld [vmem:[%s1 + $0x2c] sm:$0xf]
  %v97 = vld [vmem:[%s1 + $0x30] sm:$0xf]
  %v98 = vld [vmem:[%s1 + $0x34] sm:$0xf]
  %v99 = vld [vmem:[%s1 + $0x38] sm:$0xf]
  %v100 = vld [vmem:[%s1 + $0x3c] sm:$0xf]
  %v101 = vld [vmem:[%s2] sm:$0xf]
  %v102 = vld [vmem:[%s2 + $0x4] sm:$0xf]
  %v103 = vld [vmem:[%s2 + $0x8] sm:$0xf]
  %v104 = vld [vmem:[%s2 + $0xc] sm:$0xf]
  %v105 = vld [vmem:[%s2 + $0x10] sm:$0xf]
  %v106 = vld [vmem:[%s2 + $0x14] sm:$0xf]
  %v107 = vld [vmem:[%s2 + $0x18] sm:$0xf]
  %v108 = vld [vmem:[%s2 + $0x1c] sm:$0xf]
  %v109 = vld [vmem:[%s2 + $0x20] sm:$0xf]
  %v110 = vld [vmem:[%s2 + $0x24] sm:$0xf]
  %v111 = vld [vmem:[%s2 + $0x28] sm:$0xf]
  %v112 = vld [vmem:[%s2 + $0x2c] sm:$0xf]
  %v113 = vld [vmem:[%s2 + $0x30] sm:$0xf]
  %v114 = vld [vmem:[%s2 + $0x34] sm:$0xf]
  %v115 = vld [vmem:[%s2 + $0x38] sm:$0xf]
  %v116 = vld [vmem:[%s2 + $0x3c] sm:$0xf]
  %v117 = vld [vmem:[%s2 + $0x40] sm:$0xf]
  %v118 = vld [vmem:[%s2 + $0x44] sm:$0xf]
  %v119 = vld [vmem:[%s2 + $0x48] sm:$0xf]
  %v120 = vld [vmem:[%s2 + $0x4c] sm:$0xf]
  %v121 = vld [vmem:[%s2 + $0x50] sm:$0xf]
  %v122 = vld [vmem:[%s2 + $0x54] sm:$0xf]
  %v123 = vld [vmem:[%s2 + $0x58] sm:$0xf]
  %v124 = vld [vmem:[%s2 + $0x5c] sm:$0xf]
  %v125 = vld [vmem:[%s2 + $0x60] sm:$0xf]
  %v126 = vld [vmem:[%s2 + $0x64] sm:$0xf]
  %v127 = vld [vmem:[%s2 + $0x68] sm:$0xf]
  %v128 = vld [vmem:[%s2 + $0x6c] sm:$0xf]
  %v129 = vld [vmem:[%s2 + $0x70] sm:$0xf]
  %v130 = vld [vmem:[%s2 + $0x74] sm:$0xf]
  %v131 = vld [vmem:[%s2 + $0x78] sm:$0xf]
  %v132 = vld [vmem:[%s2 + $0x7c] sm:$0xf]
  %v133 = vld [vmem:[%s2 + $0x80] sm:$0xf]
  %v134 = vld [vmem:[%s2 + $0x84] sm:$0xf]
  %v135 = vld [vmem:[%s2 + $0x88] sm:$0xf]
  %v136 = vld [vmem:[%s2 + $0x8c] sm:$0xf]
  %v137 = vld [vmem:[%s2 + $0x90] sm:$0xf]
  %v138 = vld [vmem:[%s2 + $0x94] sm:$0xf]
  %v139 = vld [vmem:[%s2 + $0x98] sm:$0xf]
  %v140 = vld [vmem:[%s2 + $0x9c] sm:$0xf]
  %v141 = vld [vmem:[%s2 + $0xa0] sm:$0xf]
  %v142 = vld [vmem:[%s2 + $0xa4] sm:$0xf]
  %v143 = vld [vmem:[%s2 + $0xa8] sm:$0xf]
  %v144 = vld [vmem:[%s2 + $0xac] sm:$0xf]
  %v145 = vld [vmem:[%s2 + $0xb0] sm:$0xf]
  %v146 = vld [vmem:[%s2 + $0xb4] sm:$0xf]
  %v147 = vld [vmem:[%s2 + $0xb8] sm:$0xf]
  %v148 = vld [vmem:[%s2 + $0xbc] sm:$0xf]
  %v149 = vld [vmem:[%s2 + $0xc0] sm:$0xf]
  %v150 = vld [vmem:[%s2 + $0xc4] sm:$0xf]
  %v151 = vld [vmem:[%s2 + $0xc8] sm:$0xf]
  %v152 = vld [vmem:[%s2 + $0xcc] sm:$0xf]
  %v153 = vld [vmem:[%s2 + $0xd0] sm:$0xf]
  %v154 = vld [vmem:[%s2 + $0xd4] sm:$0xf]
  %v155 = vld [vmem:[%s2 + $0xd8] sm:$0xf]
  %v156 = vld [vmem:[%s2 + $0xdc] sm:$0xf]
  %v157 = vld [vmem:[%s2 + $0xe0] sm:$0xf]
  %v158 = vld [vmem:[%s2 + $0xe4] sm:$0xf]
  %v159 = vld [vmem:[%s2 + $0xe8] sm:$0xf]
  %v160 = vld [vmem:[%s2 + $0xec] sm:$0xf]
  %v161 = vld [vmem:[%s2 + $0xf0] sm:$0xf]
  %v162 = vld [vmem:[%s2 + $0xf4] sm:$0xf]
  %v163 = vld [vmem:[%s2 + $0xf8] sm:$0xf]
  %v164 = vld [vmem:[%s2 + $0xfc] sm:$0xf]
  %v165 = vld [vmem:[%s3] sm:$0xf]
  %v166 = vld [vmem:[%s3 + $0x4] sm:$0xf]
  %v167 = vld [vmem:[%s3 + $0x8] sm:$0xf]
  %v168 = vld [vmem:[%s3 + $0xc] sm:$0xf]
  %v169 = vld [vmem:[%s3 + $0x10] sm:$0xf]
  %v170 = vld [vmem:[%s3 + $0x14] sm:$0xf]
  %v171 = vld [vmem:[%s3 + $0x18] sm:$0xf]
  %v172 = vld [vmem:[%s3 + $0x1c] sm:$0xf]
  %v173 = vld [vmem:[%s3 + $0x20] sm:$0xf]
  %v174 = vld [vmem:[%s3 + $0x24] sm:$0xf]
  %v175 = vld [vmem:[%s3 + $0x28] sm:$0xf]
  %v176 = vld [vmem:[%s3 + $0x2c] sm:$0xf]
  %v177 = vld [vmem:[%s3 + $0x30] sm:$0xf]
  %v178 = vld [vmem:[%s3 + $0x34] sm:$0xf]
  %v179 = vld [vmem:[%s3 + $0x38] sm:$0xf]
  %v180 = vld [vmem:[%s3 + $0x3c] sm:$0xf]
  %v245 = vunpack.c.l.b16 %v101
  %v246 = vunpack.c.l.b16 %v102
  %v247 = vunpack.c.l.b16 %v103
  %v248 = vunpack.c.l.b16 %v104
  %v249 = vunpack.c.l.b16 %v105
  %v250 = vunpack.c.l.b16 %v106
  %v251 = vunpack.c.l.b16 %v107
  %v252 = vunpack.c.l.b16 %v108
  %v253 = vunpack.c.l.b16 %v109
  %v254 = vunpack.c.l.b16 %v110
  %v255 = vunpack.c.l.b16 %v111
  %v256 = vunpack.c.l.b16 %v112
  %v257 = vunpack.c.l.b16 %v113
  %v258 = vunpack.c.l.b16 %v114
  %v259 = vunpack.c.l.b16 %v115
  %v260 = vunpack.c.l.b16 %v116
  %v261 = vunpack.c.l.b16 %v117
  %v262 = vunpack.c.l.b16 %v118
  %v263 = vunpack.c.l.b16 %v119
  %v264 = vunpack.c.l.b16 %v120
  %v265 = vunpack.c.l.b16 %v121
  %v266 = vunpack.c.l.b16 %v122
  %v267 = vunpack.c.l.b16 %v123
  %v268 = vunpack.c.l.b16 %v124
  %v269 = vunpack.c.l.b16 %v125
  %v270 = vunpack.c.l.b16 %v126
  %v271 = vunpack.c.l.b16 %v127
  %v272 = vunpack.c.l.b16 %v128
  %v273 = vunpack.c.l.b16 %v129
  %v274 = vunpack.c.l.b16 %v130
  %v275 = vunpack.c.l.b16 %v131
  %v276 = vunpack.c.l.b16 %v132
  %v277 = vunpack.c.l.b16 %v133
  %v278 = vunpack.c.l.b16 %v134
  %v279 = vunpack.c.l.b16 %v135
  %v280 = vunpack.c.l.b16 %v136
  %v281 = vunpack.c.l.b16 %v137
  %v282 = vunpack.c.l.b16 %v138
  %v283 = vunpack.c.l.b16 %v139
  %v284 = vunpack.c.l.b16 %v140
  %v285 = vunpack.c.l.b16 %v141
  %v286 = vunpack.c.l.b16 %v142
  %v287 = vunpack.c.l.b16 %v143
  %v288 = vunpack.c.l.b16 %v144
  %v289 = vunpack.c.l.b16 %v145
  %v290 = vunpack.c.l.b16 %v146
  %v291 = vunpack.c.l.b16 %v147
  %v292 = vunpack.c.l.b16 %v148
  %v293 = vunpack.c.l.b16 %v149
  %v294 = vunpack.c.l.b16 %v150
  %v295 = vunpack.c.l.b16 %v151
  %v296 = vunpack.c.l.b16 %v152
  %v297 = vunpack.c.l.b16 %v153
  %v298 = vunpack.c.l.b16 %v154
  %v299 = vunpack.c.l.b16 %v155
  %v300 = vunpack.c.l.b16 %v156
  %v301 = vunpack.c.l.b16 %v157
  %v302 = vunpack.c.l.b16 %v158
  %v303 = vunpack.c.l.b16 %v159
  %v304 = vunpack.c.l.b16 %v160
  %v305 = vunpack.c.l.b16 %v161
  %v306 = vunpack.c.l.b16 %v162
  %v307 = vunpack.c.l.b16 %v163
  %v308 = vunpack.c.l.b16 %v164
  %v309 = vpack.c.b16 %v246, %v245
  %v310 = vpack.c.b16 %v248, %v247
  %v311 = vpack.c.b16 %v250, %v249
  %v312 = vpack.c.b16 %v252, %v251
  %v313 = vpack.c.b16 %v254, %v253
  %v314 = vpack.c.b16 %v256, %v255
  %v315 = vpack.c.b16 %v258, %v257
  %v316 = vpack.c.b16 %v260, %v259
  %v317 = vpack.c.b16 %v262, %v261
  %v318 = vpack.c.b16 %v264, %v263
  %v319 = vpack.c.b16 %v266, %v265
  %v320 = vpack.c.b16 %v268, %v267
  %v321 = vpack.c.b16 %v270, %v269
  %v322 = vpack.c.b16 %v272, %v271
  %v323 = vpack.c.b16 %v274, %v273
  %v324 = vpack.c.b16 %v276, %v275
  %v325 = vpack.c.b16 %v278, %v277
  %v326 = vpack.c.b16 %v280, %v279
  %v327 = vpack.c.b16 %v282, %v281
  %v328 = vpack.c.b16 %v284, %v283
  %v329 = vpack.c.b16 %v286, %v285
  %v330 = vpack.c.b16 %v288, %v287
  %v331 = vpack.c.b16 %v290, %v289
  %v332 = vpack.c.b16 %v292, %v291
  %v333 = vpack.c.b16 %v294, %v293
  %v334 = vpack.c.b16 %v296, %v295
  %v335 = vpack.c.b16 %v298, %v297
  %v336 = vpack.c.b16 %v300, %v299
  %v337 = vpack.c.b16 %v302, %v301
  %v338 = vpack.c.b16 %v304, %v303
  %v339 = vpack.c.b16 %v306, %v305
  %v340 = vpack.c.b16 %v308, %v307
  %v389 = vunpack.c.l.b16 %v165
  %v390 = vunpack.c.l.b16 %v166
  %v391 = vunpack.c.l.b16 %v167
  %v392 = vunpack.c.l.b16 %v168
  %v393 = vunpack.c.l.b16 %v169
  %v394 = vunpack.c.l.b16 %v170
  %v395 = vunpack.c.l.b16 %v171
  %v396 = vunpack.c.l.b16 %v172
  %v397 = vunpack.c.l.b16 %v173
  %v398 = vunpack.c.l.b16 %v174
  %v399 = vunpack.c.l.b16 %v175
  %v400 = vunpack.c.l.b16 %v176
  %v401 = vunpack.c.l.b16 %v177
  %v402 = vunpack.c.l.b16 %v178
  %v403 = vunpack.c.l.b16 %v179
  %v404 = vunpack.c.l.b16 %v180
  %v405 = vpack.c.b16 %v390, %v389
  %v406 = vpack.c.b16 %v392, %v391
  %v407 = vpack.c.b16 %v394, %v393
  %v408 = vpack.c.b16 %v396, %v395
  %v409 = vpack.c.b16 %v398, %v397
  %v410 = vpack.c.b16 %v400, %v399
  %v411 = vpack.c.b16 %v402, %v401
  %v412 = vpack.c.b16 %v404, %v403
  %421 = vmatprep.subr.bf16.mxu0 0
  %422 = vmatpush1.bf16.msra.mxu0 %v412
  %423 = vmatprep.subr.bf16.mxu0 0
  %424 = vmatpush1.bf16.msra.mxu0 %v411
  %425 = vmatprep.subr.bf16.mxu0 0
  %426 = vmatpush1.bf16.msra.mxu0 %v410
  %427 = vmatprep.subr.bf16.mxu0 0
  %428 = vmatpush1.bf16.msra.mxu0 %v409
  %429 = vmatprep.subr.bf16.mxu0 0
  %430 = vmatpush1.bf16.msra.mxu0 %v408
  %431 = vmatprep.subr.bf16.mxu0 0
  %432 = vmatpush1.bf16.msra.mxu0 %v407
  %433 = vmatprep.subr.bf16.mxu0 0
  %434 = vmatpush1.bf16.msra.mxu0 %v406
  %435 = vmatprep.subr.bf16.mxu0 0
  %436 = vmatpush1.bf16.msra.mxu0 %v405
  %437 = vmatprep.subr.bf16.mxu0 0
  %438 = vmatpush2.bf16.msra.mxu0 0
  %439 = vmatprep.subr.bf16.mxu0 0
  %440 = vmatpush2.bf16.msra.mxu0 0
  %441 = vmatprep.subr.bf16.mxu0 0
  %442 = vmatpush2.bf16.msra.mxu0 0
  %443 = vmatprep.subr.bf16.mxu0 0
  %444 = vmatpush2.bf16.msra.mxu0 0
  %445 = vmatprep.subr.bf16.mxu0 0
  %446 = vmatpush2.bf16.msra.mxu0 0
  %447 = vmatprep.subr.bf16.mxu0 0
  %448 = vmatpush2.bf16.msra.mxu0 0
  %449 = vmatprep.subr.bf16.mxu0 0
  %450 = vmatpush2.bf16.msra.mxu0 0
  %451 = vmatprep.subr.bf16.mxu0 0
  %452 = vmatpush2.bf16.msra.mxu0 0
  %453 = vmatprep.mubr.bf16.mxu0 0
  %454 = vmatmul.mubr.bf16.gmra.mxu0 %v309
  %v455 = vpop.f32.mrf.mxu0
  %v456 = vadd.f32 0.0, %v455
  %v457 = vpop.f32.mrf.mxu0
  %v458 = vpop.f32.mrf.mxu0
  %v459 = vadd.f32 0.0, %v458
  %v460 = vpop.f32.mrf.mxu0
  %461 = vmatprep.mubr.bf16.mxu0 0
  %462 = vmatmul.mubr.bf16.gmra.mxu0 %v310
  %v463 = vpop.f32.mrf.mxu0
  %v464 = vadd.f32 0.0, %v463
  %v465 = vpop.f32.mrf.mxu0
  %v466 = vpop.f32.mrf.mxu0
  %v467 = vadd.f32 0.0, %v466
  %v468 = vpop.f32.mrf.mxu0
  %469 = vmatprep.mubr.bf16.mxu0 0
  %470 = vmatmul.mubr.bf16.gmra.mxu0 %v311
  %v471 = vpop.f32.mrf.mxu0
  %v472 = vadd.f32 0.0, %v471
  %v473 = vpop.f32.mrf.mxu0
  %v474 = vpop.f32.mrf.mxu0
  %v475 = vadd.f32 0.0, %v474
  %v476 = vpop.f32.mrf.mxu0
  %477 = vmatprep.mubr.bf16.mxu0 0
  %478 = vmatmul.mubr.bf16.gmra.mxu0 %v312
  %v479 = vpop.f32.mrf.mxu0
  %v480 = vadd.f32 0.0, %v479
  %v481 = vpop.f32.mrf.mxu0
  %v482 = vpop.f32.mrf.mxu0
  %v483 = vadd.f32 0.0, %v482
  %v484 = vpop.f32.mrf.mxu0
  %485 = vmatprep.mubr.bf16.mxu0 0
  %486 = vmatmul.mubr.bf16.gmra.mxu0 %v313
  %v487 = vpop.f32.mrf.mxu0
  %v488 = vadd.f32 0.0, %v487
  %v489 = vpop.f32.mrf.mxu0
  %v490 = vpop.f32.mrf.mxu0
  %v491 = vadd.f32 0.0, %v490
  %v492 = vpop.f32.mrf.mxu0
  %493 = vmatprep.mubr.bf16.mxu0 0
  %494 = vmatmul.mubr.bf16.gmra.mxu0 %v314
  %v495 = vpop.f32.mrf.mxu0
  %v496 = vadd.f32 0.0, %v495
  %v497 = vpop.f32.mrf.mxu0
  %v498 = vpop.f32.mrf.mxu0
  %v499 = vadd.f32 0.0, %v498
  %v500 = vpop.f32.mrf.mxu0
  %501 = vmatprep.mubr.bf16.mxu0 0
  %502 = vmatmul.mubr.bf16.gmra.mxu0 %v315
  %v503 = vpop.f32.mrf.mxu0
  %v504 = vadd.f32 0.0, %v503
  %v505 = vpop.f32.mrf.mxu0
  %v506 = vpop.f32.mrf.mxu0
  %v507 = vadd.f32 0.0, %v506
  %v508 = vpop.f32.mrf.mxu0
  %509 = vmatprep.mubr.bf16.mxu0 0
  %510 = vmatmul.mubr.bf16.gmra.mxu0 %v316
  %v511 = vpop.f32.mrf.mxu0
  %v512 = vadd.f32 0.0, %v511
  %v513 = vpop.f32.mrf.mxu0
  %v514 = vpop.f32.mrf.mxu0
  %v515 = vadd.f32 0.0, %v514
  %v516 = vpop.f32.mrf.mxu0
  %517 = vmatprep.mubr.bf16.mxu0 0
  %518 = vmatmul.mubr.bf16.gmra.mxu0 %v317
  %v519 = vpop.f32.mrf.mxu0
  %v520 = vadd.f32 0.0, %v519
  %v521 = vpop.f32.mrf.mxu0
  %v522 = vpop.f32.mrf.mxu0
  %v523 = vadd.f32 0.0, %v522
  %v524 = vpop.f32.mrf.mxu0
  %525 = vmatprep.mubr.bf16.mxu0 0
  %526 = vmatmul.mubr.bf16.gmra.mxu0 %v318
  %v527 = vpop.f32.mrf.mxu0
  %v528 = vadd.f32 0.0, %v527
  %v529 = vpop.f32.mrf.mxu0
  %v530 = vpop.f32.mrf.mxu0
  %v531 = vadd.f32 0.0, %v530
  %v532 = vpop.f32.mrf.mxu0
  %533 = vmatprep.mubr.bf16.mxu0 0
  %534 = vmatmul.mubr.bf16.gmra.mxu0 %v319
  %v535 = vpop.f32.mrf.mxu0
  %v536 = vadd.f32 0.0, %v535
  %v537 = vpop.f32.mrf.mxu0
  %v538 = vpop.f32.mrf.mxu0
  %v539 = vadd.f32 0.0, %v538
  %v540 = vpop.f32.mrf.mxu0
  %541 = vmatprep.mubr.bf16.mxu0 0
  %542 = vmatmul.mubr.bf16.gmra.mxu0 %v320
  %v543 = vpop.f32.mrf.mxu0
  %v544 = vadd.f32 0.0, %v543
  %v545 = vpop.f32.mrf.mxu0
  %v546 = vpop.f32.mrf.mxu0
  %v547 = vadd.f32 0.0, %v546
  %v548 = vpop.f32.mrf.mxu0
  %549 = vmatprep.mubr.bf16.mxu0 0
  %550 = vmatmul.mubr.bf16.gmra.mxu0 %v321
  %v551 = vpop.f32.mrf.mxu0
  %v552 = vadd.f32 0.0, %v551
  %v553 = vpop.f32.mrf.mxu0
  %v554 = vpop.f32.mrf.mxu0
  %v555 = vadd.f32 0.0, %v554
  %v556 = vpop.f32.mrf.mxu0
  %557 = vmatprep.mubr.bf16.mxu0 0
  %558 = vmatmul.mubr.bf16.gmra.mxu0 %v322
  %v559 = vpop.f32.mrf.mxu0
  %v560 = vadd.f32 0.0, %v559
  %v561 = vpop.f32.mrf.mxu0
  %v562 = vpop.f32.mrf.mxu0
  %v563 = vadd.f32 0.0, %v562
  %v564 = vpop.f32.mrf.mxu0
  %565 = vmatprep.mubr.bf16.mxu0 0
  %566 = vmatmul.mubr.bf16.gmra.mxu0 %v323
  %v567 = vpop.f32.mrf.mxu0
  %v568 = vadd.f32 0.0, %v567
  %v569 = vpop.f32.mrf.mxu0
  %v570 = vpop.f32.mrf.mxu0
  %v571 = vadd.f32 0.0, %v570
  %v572 = vpop.f32.mrf.mxu0
  %573 = vmatprep.mubr.bf16.mxu0 0
  %574 = vmatmul.mubr.bf16.gmra.mxu0 %v324
  %v575 = vpop.f32.mrf.mxu0
  %v576 = vadd.f32 0.0, %v575
  %v577 = vpop.f32.mrf.mxu0
  %v578 = vpop.f32.mrf.mxu0
  %v579 = vadd.f32 0.0, %v578
  %v580 = vpop.f32.mrf.mxu0
  %581 = vmatprep.mubr.bf16.mxu0 0
  %582 = vmatmul.mubr.bf16.gmra.mxu0 %v325
  %v583 = vpop.f32.mrf.mxu0
  %v584 = vadd.f32 0.0, %v583
  %v585 = vpop.f32.mrf.mxu0
  %v586 = vpop.f32.mrf.mxu0
  %v587 = vadd.f32 0.0, %v586
  %v588 = vpop.f32.mrf.mxu0
  %589 = vmatprep.mubr.bf16.mxu0 0
  %590 = vmatmul.mubr.bf16.gmra.mxu0 %v326
  %v591 = vpop.f32.mrf.mxu0
  %v592 = vadd.f32 0.0, %v591
  %v593 = vpop.f32.mrf.mxu0
  %v594 = vpop.f32.mrf.mxu0
  %v595 = vadd.f32 0.0, %v594
  %v596 = vpop.f32.mrf.mxu0
  %597 = vmatprep.mubr.bf16.mxu0 0
  %598 = vmatmul.mubr.bf16.gmra.mxu0 %v327
  %v599 = vpop.f32.mrf.mxu0
  %v600 = vadd.f32 0.0, %v599
  %v601 = vpop.f32.mrf.mxu0
  %v602 = vpop.f32.mrf.mxu0
  %v603 = vadd.f32 0.0, %v602
  %v604 = vpop.f32.mrf.mxu0
  %605 = vmatprep.mubr.bf16.mxu0 0
  %606 = vmatmul.mubr.bf16.gmra.mxu0 %v328
  %v607 = vpop.f32.mrf.mxu0
  %v608 = vadd.f32 0.0, %v607
  %v609 = vpop.f32.mrf.mxu0
  %v610 = vpop.f32.mrf.mxu0
  %v611 = vadd.f32 0.0, %v610
  %v612 = vpop.f32.mrf.mxu0
  %613 = vmatprep.mubr.bf16.mxu0 0
  %614 = vmatmul.mubr.bf16.gmra.mxu0 %v329
  %v615 = vpop.f32.mrf.mxu0
  %v616 = vadd.f32 0.0, %v615
  %v617 = vpop.f32.mrf.mxu0
  %v618 = vpop.f32.mrf.mxu0
  %v619 = vadd.f32 0.0, %v618
  %v620 = vpop.f32.mrf.mxu0
  %621 = vmatprep.mubr.bf16.mxu0 0
  %622 = vmatmul.mubr.bf16.gmra.mxu0 %v330
  %v623 = vpop.f32.mrf.mxu0
  %v624 = vadd.f32 0.0, %v623
  %v625 = vpop.f32.mrf.mxu0
  %v626 = vpop.f32.mrf.mxu0
  %v627 = vadd.f32 0.0, %v626
  %v628 = vpop.f32.mrf.mxu0
  %629 = vmatprep.mubr.bf16.mxu0 0
  %630 = vmatmul.mubr.bf16.gmra.mxu0 %v331
  %v631 = vpop.f32.mrf.mxu0
  %v632 = vadd.f32 0.0, %v631
  %v633 = vpop.f32.mrf.mxu0
  %v634 = vpop.f32.mrf.mxu0
  %v635 = vadd.f32 0.0, %v634
  %v636 = vpop.f32.mrf.mxu0
  %637 = vmatprep.mubr.bf16.mxu0 0
  %638 = vmatmul.mubr.bf16.gmra.mxu0 %v332
  %v639 = vpop.f32.mrf.mxu0
  %v640 = vadd.f32 0.0, %v639
  %v641 = vpop.f32.mrf.mxu0
  %v642 = vpop.f32.mrf.mxu0
  %v643 = vadd.f32 0.0, %v642
  %v644 = vpop.f32.mrf.mxu0
  %645 = vmatprep.mubr.bf16.mxu0 0
  %646 = vmatmul.mubr.bf16.gmra.mxu0 %v333
  %v647 = vpop.f32.mrf.mxu0
  %v648 = vadd.f32 0.0, %v647
  %v649 = vpop.f32.mrf.mxu0
  %v650 = vpop.f32.mrf.mxu0
  %v651 = vadd.f32 0.0, %v650
  %v652 = vpop.f32.mrf.mxu0
  %653 = vmatprep.mubr.bf16.mxu0 0
  %654 = vmatmul.mubr.bf16.gmra.mxu0 %v334
  %v655 = vpop.f32.mrf.mxu0
  %v656 = vadd.f32 0.0, %v655
  %v657 = vpop.f32.mrf.mxu0
  %v658 = vpop.f32.mrf.mxu0
  %v659 = vadd.f32 0.0, %v658
  %v660 = vpop.f32.mrf.mxu0
  %661 = vmatprep.mubr.bf16.mxu0 0
  %662 = vmatmul.mubr.bf16.gmra.mxu0 %v335
  %v663 = vpop.f32.mrf.mxu0
  %v664 = vadd.f32 0.0, %v663
  %v665 = vpop.f32.mrf.mxu0
  %v666 = vpop.f32.mrf.mxu0
  %v667 = vadd.f32 0.0, %v666
  %v668 = vpop.f32.mrf.mxu0
  %669 = vmatprep.mubr.bf16.mxu0 0
  %670 = vmatmul.mubr.bf16.gmra.mxu0 %v336
  %v671 = vpop.f32.mrf.mxu0
  %v672 = vadd.f32 0.0, %v671
  %v673 = vpop.f32.mrf.mxu0
  %v674 = vpop.f32.mrf.mxu0
  %v675 = vadd.f32 0.0, %v674
  %v676 = vpop.f32.mrf.mxu0
  %677 = vmatprep.mubr.bf16.mxu0 0
  %678 = vmatmul.mubr.bf16.gmra.mxu0 %v337
  %v679 = vpop.f32.mrf.mxu0
  %v680 = vadd.f32 0.0, %v679
  %v681 = vpop.f32.mrf.mxu0
  %v682 = vpop.f32.mrf.mxu0
  %v683 = vadd.f32 0.0, %v682
  %v684 = vpop.f32.mrf.mxu0
  %685 = vmatprep.mubr.bf16.mxu0 0
  %686 = vmatmul.mubr.bf16.gmra.mxu0 %v338
  %v687 = vpop.f32.mrf.mxu0
  %v688 = vadd.f32 0.0, %v687
  %v689 = vpop.f32.mrf.mxu0
  %v690 = vpop.f32.mrf.mxu0
  %v691 = vadd.f32 0.0, %v690
  %v692 = vpop.f32.mrf.mxu0
  %693 = vmatprep.mubr.bf16.mxu0 0
  %694 = vmatmul.mubr.bf16.gmra.mxu0 %v339
  %v695 = vpop.f32.mrf.mxu0
  %v696 = vadd.f32 0.0, %v695
  %v697 = vpop.f32.mrf.mxu0
  %v698 = vpop.f32.mrf.mxu0
  %v699 = vadd.f32 0.0, %v698
  %v700 = vpop.f32.mrf.mxu0
  %701 = vmatprep.mubr.bf16.mxu0 0
  %702 = vmatmul.mubr.bf16.gmra.mxu0 %v340
  %v703 = vpop.f32.mrf.mxu0
  %v704 = vadd.f32 0.0, %v703
  %v705 = vpop.f32.mrf.mxu0
  %v706 = vpop.f32.mrf.mxu0
  %v707 = vadd.f32 0.0, %v706
  %v708 = vpop.f32.mrf.mxu0
  %709 = vdwg.mxu0
  %v774 = vunpack.c.l.b16 %v21
  %v775 = vunpack.c.l.b16 %v22
  %v776 = vunpack.c.l.b16 %v23
  %v777 = vunpack.c.l.b16 %v24
  %v778 = vunpack.c.l.b16 %v25
  %v779 = vunpack.c.l.b16 %v26
  %v780 = vunpack.c.l.b16 %v27
  %v781 = vunpack.c.l.b16 %v28
  %v782 = vunpack.c.l.b16 %v29
  %v783 = vunpack.c.l.b16 %v30
  %v784 = vunpack.c.l.b16 %v31
  %v785 = vunpack.c.l.b16 %v32
  %v786 = vunpack.c.l.b16 %v33
  %v787 = vunpack.c.l.b16 %v34
  %v788 = vunpack.c.l.b16 %v35
  %v789 = vunpack.c.l.b16 %v36
  %v790 = vunpack.c.l.b16 %v37
  %v791 = vunpack.c.l.b16 %v38
  %v792 = vunpack.c.l.b16 %v39
  %v793 = vunpack.c.l.b16 %v40
  %v794 = vunpack.c.l.b16 %v41
  %v795 = vunpack.c.l.b16 %v42
  %v796 = vunpack.c.l.b16 %v43
  %v797 = vunpack.c.l.b16 %v44
  %v798 = vunpack.c.l.b16 %v45
  %v799 = vunpack.c.l.b16 %v46
  %v800 = vunpack.c.l.b16 %v47
  %v801 = vunpack.c.l.b16 %v48
  %v802 = vunpack.c.l.b16 %v49
  %v803 = vunpack.c.l.b16 %v50
  %v804 = vunpack.c.l.b16 %v51
  %v805 = vunpack.c.l.b16 %v52
  %v806 = vunpack.c.l.b16 %v53
  %v807 = vunpack.c.l.b16 %v54
  %v808 = vunpack.c.l.b16 %v55
  %v809 = vunpack.c.l.b16 %v56
  %v810 = vunpack.c.l.b16 %v57
  %v811 = vunpack.c.l.b16 %v58
  %v812 = vunpack.c.l.b16 %v59
  %v813 = vunpack.c.l.b16 %v60
  %v814 = vunpack.c.l.b16 %v61
  %v815 = vunpack.c.l.b16 %v62
  %v816 = vunpack.c.l.b16 %v63
  %v817 = vunpack.c.l.b16 %v64
  %v818 = vunpack.c.l.b16 %v65
  %v819 = vunpack.c.l.b16 %v66
  %v820 = vunpack.c.l.b16 %v67
  %v821 = vunpack.c.l.b16 %v68
  %v822 = vunpack.c.l.b16 %v69
  %v823 = vunpack.c.l.b16 %v70
  %v824 = vunpack.c.l.b16 %v71
  %v825 = vunpack.c.l.b16 %v72
  %v826 = vunpack.c.l.b16 %v73
  %v827 = vunpack.c.l.b16 %v74
  %v828 = vunpack.c.l.b16 %v75
  %v829 = vunpack.c.l.b16 %v76
  %v830 = vunpack.c.l.b16 %v77
  %v831 = vunpack.c.l.b16 %v78
  %v832 = vunpack.c.l.b16 %v79
  %v833 = vunpack.c.l.b16 %v80
  %v834 = vunpack.c.l.b16 %v81
  %v835 = vunpack.c.l.b16 %v82
  %v836 = vunpack.c.l.b16 %v83
  %v837 = vunpack.c.l.b16 %v84
  %v838 = vpack.c.b16 %v775, %v774
  %v839 = vpack.c.b16 %v777, %v776
  %v840 = vpack.c.b16 %v779, %v778
  %v841 = vpack.c.b16 %v781, %v780
  %v842 = vpack.c.b16 %v783, %v782
  %v843 = vpack.c.b16 %v785, %v784
  %v844 = vpack.c.b16 %v787, %v786
  %v845 = vpack.c.b16 %v789, %v788
  %v846 = vpack.c.b16 %v791, %v790
  %v847 = vpack.c.b16 %v793, %v792
  %v848 = vpack.c.b16 %v795, %v794
  %v849 = vpack.c.b16 %v797, %v796
  %v850 = vpack.c.b16 %v799, %v798
  %v851 = vpack.c.b16 %v801, %v800
  %v852 = vpack.c.b16 %v803, %v802
  %v853 = vpack.c.b16 %v805, %v804
  %v854 = vpack.c.b16 %v807, %v806
  %v855 = vpack.c.b16 %v809, %v808
  %v856 = vpack.c.b16 %v811, %v810
  %v857 = vpack.c.b16 %v813, %v812
  %v858 = vpack.c.b16 %v815, %v814
  %v859 = vpack.c.b16 %v817, %v816
  %v860 = vpack.c.b16 %v819, %v818
  %v861 = vpack.c.b16 %v821, %v820
  %v862 = vpack.c.b16 %v823, %v822
  %v863 = vpack.c.b16 %v825, %v824
  %v864 = vpack.c.b16 %v827, %v826
  %v865 = vpack.c.b16 %v829, %v828
  %v866 = vpack.c.b16 %v831, %v830
  %v867 = vpack.c.b16 %v833, %v832
  %v868 = vpack.c.b16 %v835, %v834
  %v869 = vpack.c.b16 %v837, %v836
  %v918 = vunpack.c.l.b16 %v85
  %v919 = vunpack.c.l.b16 %v86
  %v920 = vunpack.c.l.b16 %v87
  %v921 = vunpack.c.l.b16 %v88
  %v922 = vunpack.c.l.b16 %v89
  %v923 = vunpack.c.l.b16 %v90
  %v924 = vunpack.c.l.b16 %v91
  %v925 = vunpack.c.l.b16 %v92
  %v926 = vunpack.c.l.b16 %v93
  %v927 = vunpack.c.l.b16 %v94
  %v928 = vunpack.c.l.b16 %v95
  %v929 = vunpack.c.l.b16 %v96
  %v930 = vunpack.c.l.b16 %v97
  %v931 = vunpack.c.l.b16 %v98
  %v932 = vunpack.c.l.b16 %v99
  %v933 = vunpack.c.l.b16 %v100
  %v934 = vpack.c.b16 %v919, %v918
  %v935 = vpack.c.b16 %v921, %v920
  %v936 = vpack.c.b16 %v923, %v922
  %v937 = vpack.c.b16 %v925, %v924
  %v938 = vpack.c.b16 %v927, %v926
  %v939 = vpack.c.b16 %v929, %v928
  %v940 = vpack.c.b16 %v931, %v930
  %v941 = vpack.c.b16 %v933, %v932
  %950 = vmatprep.subr.bf16.mxu0 0
  %951 = vmatpush1.bf16.msra.mxu0 %v941
  %952 = vmatprep.subr.bf16.mxu0 0
  %953 = vmatpush1.bf16.msra.mxu0 %v940
  %954 = vmatprep.subr.bf16.mxu0 0
  %955 = vmatpush1.bf16.msra.mxu0 %v939
  %956 = vmatprep.subr.bf16.mxu0 0
  %957 = vmatpush1.bf16.msra.mxu0 %v938
  %958 = vmatprep.subr.bf16.mxu0 0
  %959 = vmatpush1.bf16.msra.mxu0 %v937
  %960 = vmatprep.subr.bf16.mxu0 0
  %961 = vmatpush1.bf16.msra.mxu0 %v936
  %962 = vmatprep.subr.bf16.mxu0 0
  %963 = vmatpush1.bf16.msra.mxu0 %v935
  %964 = vmatprep.subr.bf16.mxu0 0
  %965 = vmatpush1.bf16.msra.mxu0 %v934
  %966 = vmatprep.subr.bf16.mxu0 0
  %967 = vmatpush2.bf16.msra.mxu0 0
  %968 = vmatprep.subr.bf16.mxu0 0
  %969 = vmatpush2.bf16.msra.mxu0 0
  %970 = vmatprep.subr.bf16.mxu0 0
  %971 = vmatpush2.bf16.msra.mxu0 0
  %972 = vmatprep.subr.bf16.mxu0 0
  %973 = vmatpush2.bf16.msra.mxu0 0
  %974 = vmatprep.subr.bf16.mxu0 0
  %975 = vmatpush2.bf16.msra.mxu0 0
  %976 = vmatprep.subr.bf16.mxu0 0
  %977 = vmatpush2.bf16.msra.mxu0 0
  %978 = vmatprep.subr.bf16.mxu0 0
  %979 = vmatpush2.bf16.msra.mxu0 0
  %980 = vmatprep.subr.bf16.mxu0 0
  %981 = vmatpush2.bf16.msra.mxu0 0
  %982 = vmatprep.mubr.bf16.mxu0 0
  %983 = vmatmul.mubr.bf16.gmra.mxu0 %v838
  %v984 = vpop.f32.mrf.mxu0
  %v985 = vadd.f32 %v456, %v984
  %v986 = vpop.f32.mrf.mxu0
  %v987 = vpop.f32.mrf.mxu0
  %v988 = vadd.f32 %v459, %v987
  %v989 = vpop.f32.mrf.mxu0
  %990 = vmatprep.mubr.bf16.mxu0 0
  %991 = vmatmul.mubr.bf16.gmra.mxu0 %v839
  %v992 = vpop.f32.mrf.mxu0
  %v993 = vadd.f32 %v464, %v992
  %v994 = vpop.f32.mrf.mxu0
  %v995 = vpop.f32.mrf.mxu0
  %v996 = vadd.f32 %v467, %v995
  %v997 = vpop.f32.mrf.mxu0
  %998 = vmatprep.mubr.bf16.mxu0 0
  %999 = vmatmul.mubr.bf16.gmra.mxu0 %v840
  %v1000 = vpop.f32.mrf.mxu0
  %v1001 = vadd.f32 %v472, %v1000
  %v1002 = vpop.f32.mrf.mxu0
  %v1003 = vpop.f32.mrf.mxu0
  %v1004 = vadd.f32 %v475, %v1003
  %v1005 = vpop.f32.mrf.mxu0
  %1006 = vmatprep.mubr.bf16.mxu0 0
  %1007 = vmatmul.mubr.bf16.gmra.mxu0 %v841
  %v1008 = vpop.f32.mrf.mxu0
  %v1009 = vadd.f32 %v480, %v1008
  %v1010 = vpop.f32.mrf.mxu0
  %v1011 = vpop.f32.mrf.mxu0
  %v1012 = vadd.f32 %v483, %v1011
  %v1013 = vpop.f32.mrf.mxu0
  %1014 = vmatprep.mubr.bf16.mxu0 0
  %1015 = vmatmul.mubr.bf16.gmra.mxu0 %v842
  %v1016 = vpop.f32.mrf.mxu0
  %v1017 = vadd.f32 %v488, %v1016
  %v1018 = vpop.f32.mrf.mxu0
  %v1019 = vpop.f32.mrf.mxu0
  %v1020 = vadd.f32 %v491, %v1019
  %v1021 = vpop.f32.mrf.mxu0
  %1022 = vmatprep.mubr.bf16.mxu0 0
  %1023 = vmatmul.mubr.bf16.gmra.mxu0 %v843
  %v1024 = vpop.f32.mrf.mxu0
  %v1025 = vadd.f32 %v496, %v1024
  %v1026 = vpop.f32.mrf.mxu0
  %v1027 = vpop.f32.mrf.mxu0
  %v1028 = vadd.f32 %v499, %v1027
  %v1029 = vpop.f32.mrf.mxu0
  %1030 = vmatprep.mubr.bf16.mxu0 0
  %1031 = vmatmul.mubr.bf16.gmra.mxu0 %v844
  %v1032 = vpop.f32.mrf.mxu0
  %v1033 = vadd.f32 %v504, %v1032
  %v1034 = vpop.f32.mrf.mxu0
  %v1035 = vpop.f32.mrf.mxu0
  %v1036 = vadd.f32 %v507, %v1035
  %v1037 = vpop.f32.mrf.mxu0
  %1038 = vmatprep.mubr.bf16.mxu0 0
  %1039 = vmatmul.mubr.bf16.gmra.mxu0 %v845
  %v1040 = vpop.f32.mrf.mxu0
  %v1041 = vadd.f32 %v512, %v1040
  %v1042 = vpop.f32.mrf.mxu0
  %v1043 = vpop.f32.mrf.mxu0
  %v1044 = vadd.f32 %v515, %v1043
  %v1045 = vpop.f32.mrf.mxu0
  %1046 = vmatprep.mubr.bf16.mxu0 0
  %1047 = vmatmul.mubr.bf16.gmra.mxu0 %v846
  %v1048 = vpop.f32.mrf.mxu0
  %v1049 = vadd.f32 %v520, %v1048
  %v1050 = vpop.f32.mrf.mxu0
  %v1051 = vpop.f32.mrf.mxu0
  %v1052 = vadd.f32 %v523, %v1051
  %v1053 = vpop.f32.mrf.mxu0
  %1054 = vmatprep.mubr.bf16.mxu0 0
  %1055 = vmatmul.mubr.bf16.gmra.mxu0 %v847
  %v1056 = vpop.f32.mrf.mxu0
  %v1057 = vadd.f32 %v528, %v1056
  %v1058 = vpop.f32.mrf.mxu0
  %v1059 = vpop.f32.mrf.mxu0
  %v1060 = vadd.f32 %v531, %v1059
  %v1061 = vpop.f32.mrf.mxu0
  %1062 = vmatprep.mubr.bf16.mxu0 0
  %1063 = vmatmul.mubr.bf16.gmra.mxu0 %v848
  %v1064 = vpop.f32.mrf.mxu0
  %v1065 = vadd.f32 %v536, %v1064
  %v1066 = vpop.f32.mrf.mxu0
  %v1067 = vpop.f32.mrf.mxu0
  %v1068 = vadd.f32 %v539, %v1067
  %v1069 = vpop.f32.mrf.mxu0
  %1070 = vmatprep.mubr.bf16.mxu0 0
  %1071 = vmatmul.mubr.bf16.gmra.mxu0 %v849
  %v1072 = vpop.f32.mrf.mxu0
  %v1073 = vadd.f32 %v544, %v1072
  %v1074 = vpop.f32.mrf.mxu0
  %v1075 = vpop.f32.mrf.mxu0
  %v1076 = vadd.f32 %v547, %v1075
  %v1077 = vpop.f32.mrf.mxu0
  %1078 = vmatprep.mubr.bf16.mxu0 0
  %1079 = vmatmul.mubr.bf16.gmra.mxu0 %v850
  %v1080 = vpop.f32.mrf.mxu0
  %v1081 = vadd.f32 %v552, %v1080
  %v1082 = vpop.f32.mrf.mxu0
  %v1083 = vpop.f32.mrf.mxu0
  %v1084 = vadd.f32 %v555, %v1083
  %v1085 = vpop.f32.mrf.mxu0
  %1086 = vmatprep.mubr.bf16.mxu0 0
  %1087 = vmatmul.mubr.bf16.gmra.mxu0 %v851
  %v1088 = vpop.f32.mrf.mxu0
  %v1089 = vadd.f32 %v560, %v1088
  %v1090 = vpop.f32.mrf.mxu0
  %v1091 = vpop.f32.mrf.mxu0
  %v1092 = vadd.f32 %v563, %v1091
  %v1093 = vpop.f32.mrf.mxu0
  %1094 = vmatprep.mubr.bf16.mxu0 0
  %1095 = vmatmul.mubr.bf16.gmra.mxu0 %v852
  %v1096 = vpop.f32.mrf.mxu0
  %v1097 = vadd.f32 %v568, %v1096
  %v1098 = vpop.f32.mrf.mxu0
  %v1099 = vpop.f32.mrf.mxu0
  %v1100 = vadd.f32 %v571, %v1099
  %v1101 = vpop.f32.mrf.mxu0
  %1102 = vmatprep.mubr.bf16.mxu0 0
  %1103 = vmatmul.mubr.bf16.gmra.mxu0 %v853
  %v1104 = vpop.f32.mrf.mxu0
  %v1105 = vadd.f32 %v576, %v1104
  %v1106 = vpop.f32.mrf.mxu0
  %v1107 = vpop.f32.mrf.mxu0
  %v1108 = vadd.f32 %v579, %v1107
  %v1109 = vpop.f32.mrf.mxu0
  %1110 = vmatprep.mubr.bf16.mxu0 0
  %1111 = vmatmul.mubr.bf16.gmra.mxu0 %v854
  %v1112 = vpop.f32.mrf.mxu0
  %v1113 = vadd.f32 %v584, %v1112
  %v1114 = vpop.f32.mrf.mxu0
  %v1115 = vpop.f32.mrf.mxu0
  %v1116 = vadd.f32 %v587, %v1115
  %v1117 = vpop.f32.mrf.mxu0
  %1118 = vmatprep.mubr.bf16.mxu0 0
  %1119 = vmatmul.mubr.bf16.gmra.mxu0 %v855
  %v1120 = vpop.f32.mrf.mxu0
  %v1121 = vadd.f32 %v592, %v1120
  %v1122 = vpop.f32.mrf.mxu0
  %v1123 = vpop.f32.mrf.mxu0
  %v1124 = vadd.f32 %v595, %v1123
  %v1125 = vpop.f32.mrf.mxu0
  %1126 = vmatprep.mubr.bf16.mxu0 0
  %1127 = vmatmul.mubr.bf16.gmra.mxu0 %v856
  %v1128 = vpop.f32.mrf.mxu0
  %v1129 = vadd.f32 %v600, %v1128
  %v1130 = vpop.f32.mrf.mxu0
  %v1131 = vpop.f32.mrf.mxu0
  %v1132 = vadd.f32 %v603, %v1131
  %v1133 = vpop.f32.mrf.mxu0
  %1134 = vmatprep.mubr.bf16.mxu0 0
  %1135 = vmatmul.mubr.bf16.gmra.mxu0 %v857
  %v1136 = vpop.f32.mrf.mxu0
  %v1137 = vadd.f32 %v608, %v1136
  %v1138 = vpop.f32.mrf.mxu0
  %v1139 = vpop.f32.mrf.mxu0
  %v1140 = vadd.f32 %v611, %v1139
  %v1141 = vpop.f32.mrf.mxu0
  %1142 = vmatprep.mubr.bf16.mxu0 0
  %1143 = vmatmul.mubr.bf16.gmra.mxu0 %v858
  %v1144 = vpop.f32.mrf.mxu0
  %v1145 = vadd.f32 %v616, %v1144
  %v1146 = vpop.f32.mrf.mxu0
  %v1147 = vpop.f32.mrf.mxu0
  %v1148 = vadd.f32 %v619, %v1147
  %v1149 = vpop.f32.mrf.mxu0
  %1150 = vmatprep.mubr.bf16.mxu0 0
  %1151 = vmatmul.mubr.bf16.gmra.mxu0 %v859
  %v1152 = vpop.f32.mrf.mxu0
  %v1153 = vadd.f32 %v624, %v1152
  %v1154 = vpop.f32.mrf.mxu0
  %v1155 = vpop.f32.mrf.mxu0
  %v1156 = vadd.f32 %v627, %v1155
  %v1157 = vpop.f32.mrf.mxu0
  %1158 = vmatprep.mubr.bf16.mxu0 0
  %1159 = vmatmul.mubr.bf16.gmra.mxu0 %v860
  %v1160 = vpop.f32.mrf.mxu0
  %v1161 = vadd.f32 %v632, %v1160
  %v1162 = vpop.f32.mrf.mxu0
  %v1163 = vpop.f32.mrf.mxu0
  %v1164 = vadd.f32 %v635, %v1163
  %v1165 = vpop.f32.mrf.mxu0
  %1166 = vmatprep.mubr.bf16.mxu0 0
  %1167 = vmatmul.mubr.bf16.gmra.mxu0 %v861
  %v1168 = vpop.f32.mrf.mxu0
  %v1169 = vadd.f32 %v640, %v1168
  %v1170 = vpop.f32.mrf.mxu0
  %v1171 = vpop.f32.mrf.mxu0
  %v1172 = vadd.f32 %v643, %v1171
  %v1173 = vpop.f32.mrf.mxu0
  %1174 = vmatprep.mubr.bf16.mxu0 0
  %1175 = vmatmul.mubr.bf16.gmra.mxu0 %v862
  %v1176 = vpop.f32.mrf.mxu0
  %v1177 = vadd.f32 %v648, %v1176
  %v1178 = vpop.f32.mrf.mxu0
  %v1179 = vpop.f32.mrf.mxu0
  %v1180 = vadd.f32 %v651, %v1179
  %v1181 = vpop.f32.mrf.mxu0
  %1182 = vmatprep.mubr.bf16.mxu0 0
  %1183 = vmatmul.mubr.bf16.gmra.mxu0 %v863
  %v1184 = vpop.f32.mrf.mxu0
  %v1185 = vadd.f32 %v656, %v1184
  %v1186 = vpop.f32.mrf.mxu0
  %v1187 = vpop.f32.mrf.mxu0
  %v1188 = vadd.f32 %v659, %v1187
  %v1189 = vpop.f32.mrf.mxu0
  %1190 = vmatprep.mubr.bf16.mxu0 0
  %1191 = vmatmul.mubr.bf16.gmra.mxu0 %v864
  %v1192 = vpop.f32.mrf.mxu0
  %v1193 = vadd.f32 %v664, %v1192
  %v1194 = vpop.f32.mrf.mxu0
  %v1195 = vpop.f32.mrf.mxu0
  %v1196 = vadd.f32 %v667, %v1195
  %v1197 = vpop.f32.mrf.mxu0
  %1198 = vmatprep.mubr.bf16.mxu0 0
  %1199 = vmatmul.mubr.bf16.gmra.mxu0 %v865
  %v1200 = vpop.f32.mrf.mxu0
  %v1201 = vadd.f32 %v672, %v1200
  %v1202 = vpop.f32.mrf.mxu0
  %v1203 = vpop.f32.mrf.mxu0
  %v1204 = vadd.f32 %v675, %v1203
  %v1205 = vpop.f32.mrf.mxu0
  %1206 = vmatprep.mubr.bf16.mxu0 0
  %1207 = vmatmul.mubr.bf16.gmra.mxu0 %v866
  %v1208 = vpop.f32.mrf.mxu0
  %v1209 = vadd.f32 %v680, %v1208
  %v1210 = vpop.f32.mrf.mxu0
  %v1211 = vpop.f32.mrf.mxu0
  %v1212 = vadd.f32 %v683, %v1211
  %v1213 = vpop.f32.mrf.mxu0
  %1214 = vmatprep.mubr.bf16.mxu0 0
  %1215 = vmatmul.mubr.bf16.gmra.mxu0 %v867
  %v1216 = vpop.f32.mrf.mxu0
  %v1217 = vadd.f32 %v688, %v1216
  %v1218 = vpop.f32.mrf.mxu0
  %v1219 = vpop.f32.mrf.mxu0
  %v1220 = vadd.f32 %v691, %v1219
  %v1221 = vpop.f32.mrf.mxu0
  %1222 = vmatprep.mubr.bf16.mxu0 0
  %1223 = vmatmul.mubr.bf16.gmra.mxu0 %v868
  %v1224 = vpop.f32.mrf.mxu0
  %v1225 = vadd.f32 %v696, %v1224
  %v1226 = vpop.f32.mrf.mxu0
  %v1227 = vpop.f32.mrf.mxu0
  %v1228 = vadd.f32 %v699, %v1227
  %v1229 = vpop.f32.mrf.mxu0
  %1230 = vmatprep.mubr.bf16.mxu0 0
  %1231 = vmatmul.mubr.bf16.gmra.mxu0 %v869
  %v1232 = vpop.f32.mrf.mxu0
  %v1233 = vadd.f32 %v704, %v1232
  %v1234 = vpop.f32.mrf.mxu0
  %v1235 = vpop.f32.mrf.mxu0
  %v1236 = vadd.f32 %v707, %v1235
  %v1237 = vpop.f32.mrf.mxu0
  %1238 = vdwg.mxu0
  %v1239 = vld [vmem:[%s4] sm:$0x1]
  %v1241 = vlaneseq
  %v1242 = vshrl.u32 %v1241, 7
  %v1243 = vsub.s32 0, %v1242
  %v1244 = vrot.slane %v1239, %v1243
  %v1246 = vadd.f32 %v985, %v1244
  %v1247 = vadd.f32 %v988, %v1244
  %v1248 = vadd.f32 %v993, %v1244
  %v1249 = vadd.f32 %v996, %v1244
  %v1250 = vadd.f32 %v1001, %v1244
  %v1251 = vadd.f32 %v1004, %v1244
  %v1252 = vadd.f32 %v1009, %v1244
  %v1253 = vadd.f32 %v1012, %v1244
  %v1254 = vadd.f32 %v1017, %v1244
  %v1255 = vadd.f32 %v1020, %v1244
  %v1256 = vadd.f32 %v1025, %v1244
  %v1257 = vadd.f32 %v1028, %v1244
  %v1258 = vadd.f32 %v1033, %v1244
  %v1259 = vadd.f32 %v1036, %v1244
  %v1260 = vadd.f32 %v1041, %v1244
  %v1261 = vadd.f32 %v1044, %v1244
  %v1262 = vadd.f32 %v1049, %v1244
  %v1263 = vadd.f32 %v1052, %v1244
  %v1264 = vadd.f32 %v1057, %v1244
  %v1265 = vadd.f32 %v1060, %v1244
  %v1266 = vadd.f32 %v1065, %v1244
  %v1267 = vadd.f32 %v1068, %v1244
  %v1268 = vadd.f32 %v1073, %v1244
  %v1269 = vadd.f32 %v1076, %v1244
  %v1270 = vadd.f32 %v1081, %v1244
  %v1271 = vadd.f32 %v1084, %v1244
  %v1272 = vadd.f32 %v1089, %v1244
  %v1273 = vadd.f32 %v1092, %v1244
  %v1274 = vadd.f32 %v1097, %v1244
  %v1275 = vadd.f32 %v1100, %v1244
  %v1276 = vadd.f32 %v1105, %v1244
  %v1277 = vadd.f32 %v1108, %v1244
  %v1278 = vadd.f32 %v1113, %v1244
  %v1279 = vadd.f32 %v1116, %v1244
  %v1280 = vadd.f32 %v1121, %v1244
  %v1281 = vadd.f32 %v1124, %v1244
  %v1282 = vadd.f32 %v1129, %v1244
  %v1283 = vadd.f32 %v1132, %v1244
  %v1284 = vadd.f32 %v1137, %v1244
  %v1285 = vadd.f32 %v1140, %v1244
  %v1286 = vadd.f32 %v1145, %v1244
  %v1287 = vadd.f32 %v1148, %v1244
  %v1288 = vadd.f32 %v1153, %v1244
  %v1289 = vadd.f32 %v1156, %v1244
  %v1290 = vadd.f32 %v1161, %v1244
  %v1291 = vadd.f32 %v1164, %v1244
  %v1292 = vadd.f32 %v1169, %v1244
  %v1293 = vadd.f32 %v1172, %v1244
  %v1294 = vadd.f32 %v1177, %v1244
  %v1295 = vadd.f32 %v1180, %v1244
  %v1296 = vadd.f32 %v1185, %v1244
  %v1297 = vadd.f32 %v1188, %v1244
  %v1298 = vadd.f32 %v1193, %v1244
  %v1299 = vadd.f32 %v1196, %v1244
  %v1300 = vadd.f32 %v1201, %v1244
  %v1301 = vadd.f32 %v1204, %v1244
  %v1302 = vadd.f32 %v1209, %v1244
  %v1303 = vadd.f32 %v1212, %v1244
  %v1304 = vadd.f32 %v1217, %v1244
  %v1305 = vadd.f32 %v1220, %v1244
  %v1306 = vadd.f32 %v1225, %v1244
  %v1307 = vadd.f32 %v1228, %v1244
  %v1308 = vadd.f32 %v1233, %v1244
  %v1309 = vadd.f32 %v1236, %v1244
  %v1310 = vmax.f32 %v1246, 0.0
  %v1311 = vmax.f32 %v1247, 0.0
  %v1312 = vmax.f32 %v1248, 0.0
  %v1313 = vmax.f32 %v1249, 0.0
  %v1314 = vmax.f32 %v1250, 0.0
  %v1315 = vmax.f32 %v1251, 0.0
  %v1316 = vmax.f32 %v1252, 0.0
  %v1317 = vmax.f32 %v1253, 0.0
  %v1318 = vmax.f32 %v1254, 0.0
  %v1319 = vmax.f32 %v1255, 0.0
  %v1320 = vmax.f32 %v1256, 0.0
  %v1321 = vmax.f32 %v1257, 0.0
  %v1322 = vmax.f32 %v1258, 0.0
  %v1323 = vmax.f32 %v1259, 0.0
  %v1324 = vmax.f32 %v1260, 0.0
  %v1325 = vmax.f32 %v1261, 0.0
  %v1326 = vmax.f32 %v1262, 0.0
  %v1327 = vmax.f32 %v1263, 0.0
  %v1328 = vmax.f32 %v1264, 0.0
  %v1329 = vmax.f32 %v1265, 0.0
  %v1330 = vmax.f32 %v1266, 0.0
  %v1331 = vmax.f32 %v1267, 0.0
  %v1332 = vmax.f32 %v1268, 0.0
  %v1333 = vmax.f32 %v1269, 0.0
  %v1334 = vmax.f32 %v1270, 0.0
  %v1335 = vmax.f32 %v1271, 0.0
  %v1336 = vmax.f32 %v1272, 0.0
  %v1337 = vmax.f32 %v1273, 0.0
  %v1338 = vmax.f32 %v1274, 0.0
  %v1339 = vmax.f32 %v1275, 0.0
  %v1340 = vmax.f32 %v1276, 0.0
  %v1341 = vmax.f32 %v1277, 0.0
  %v1342 = vmax.f32 %v1278, 0.0
  %v1343 = vmax.f32 %v1279, 0.0
  %v1344 = vmax.f32 %v1280, 0.0
  %v1345 = vmax.f32 %v1281, 0.0
  %v1346 = vmax.f32 %v1282, 0.0
  %v1347 = vmax.f32 %v1283, 0.0
  %v1348 = vmax.f32 %v1284, 0.0
  %v1349 = vmax.f32 %v1285, 0.0
  %v1350 = vmax.f32 %v1286, 0.0
  %v1351 = vmax.f32 %v1287, 0.0
  %v1352 = vmax.f32 %v1288, 0.0
  %v1353 = vmax.f32 %v1289, 0.0
  %v1354 = vmax.f32 %v1290, 0.0
  %v1355 = vmax.f32 %v1291, 0.0
  %v1356 = vmax.f32 %v1292, 0.0
  %v1357 = vmax.f32 %v1293, 0.0
  %v1358 = vmax.f32 %v1294, 0.0
  %v1359 = vmax.f32 %v1295, 0.0
  %v1360 = vmax.f32 %v1296, 0.0
  %v1361 = vmax.f32 %v1297, 0.0
  %v1362 = vmax.f32 %v1298, 0.0
  %v1363 = vmax.f32 %v1299, 0.0
  %v1364 = vmax.f32 %v1300, 0.0
  %v1365 = vmax.f32 %v1301, 0.0
  %v1366 = vmax.f32 %v1302, 0.0
  %v1367 = vmax.f32 %v1303, 0.0
  %v1368 = vmax.f32 %v1304, 0.0
  %v1369 = vmax.f32 %v1305, 0.0
  %v1370 = vmax.f32 %v1306, 0.0
  %v1371 = vmax.f32 %v1307, 0.0
  %v1372 = vmax.f32 %v1308, 0.0
  %v1373 = vmax.f32 %v1309, 0.0
  %1374 = vst [vmem:[%s5] sm:$0xff] %v1310
  %1375 = vst [vmem:[%s5 + $0x8] sm:$0xff] %v1311
  %1376 = vst [vmem:[%s5 + $0x10] sm:$0xff] %v1312
  %1377 = vst [vmem:[%s5 + $0x18] sm:$0xff] %v1313
  %1378 = vst [vmem:[%s5 + $0x20] sm:$0xff] %v1314
  %1379 = vst [vmem:[%s5 + $0x28] sm:$0xff] %v1315
  %1380 = vst [vmem:[%s5 + $0x30] sm:$0xff] %v1316
  %1381 = vst [vmem:[%s5 + $0x38] sm:$0xff] %v1317
  %1382 = vst [vmem:[%s5 + $0x40] sm:$0xff] %v1318
  %1383 = vst [vmem:[%s5 + $0x48] sm:$0xff] %v1319
  %1384 = vst [vmem:[%s5 + $0x50] sm:$0xff] %v1320
  %1385 = vst [vmem:[%s5 + $0x58] sm:$0xff] %v1321
  %1386 = vst [vmem:[%s5 + $0x60] sm:$0xff] %v1322
  %1387 = vst [vmem:[%s5 + $0x68] sm:$0xff] %v1323
  %1388 = vst [vmem:[%s5 + $0x70] sm:$0xff] %v1324
  %1389 = vst [vmem:[%s5 + $0x78] sm:$0xff] %v1325
  %1390 = vst [vmem:[%s5 + $0x80] sm:$0xff] %v1326
  %1391 = vst [vmem:[%s5 + $0x88] sm:$0xff] %v1327
  %1392 = vst [vmem:[%s5 + $0x90] sm:$0xff] %v1328
  %1393 = vst [vmem:[%s5 + $0x98] sm:$0xff] %v1329
  %1394 = vst [vmem:[%s5 + $0xa0] sm:$0xff] %v1330
  %1395 = vst [vmem:[%s5 + $0xa8] sm:$0xff] %v1331
  %1396 = vst [vmem:[%s5 + $0xb0] sm:$0xff] %v1332
  %1397 = vst [vmem:[%s5 + $0xb8] sm:$0xff] %v1333
  %1398 = vst [vmem:[%s5 + $0xc0] sm:$0xff] %v1334
  %1399 = vst [vmem:[%s5 + $0xc8] sm:$0xff] %v1335
  %1400 = vst [vmem:[%s5 + $0xd0] sm:$0xff] %v1336
  %1401 = vst [vmem:[%s5 + $0xd8] sm:$0xff] %v1337
  %1402 = vst [vmem:[%s5 + $0xe0] sm:$0xff] %v1338
  %1403 = vst [vmem:[%s5 + $0xe8] sm:$0xff] %v1339
  %1404 = vst [vmem:[%s5 + $0xf0] sm:$0xff] %v1340
  %1405 = vst [vmem:[%s5 + $0xf8] sm:$0xff] %v1341
  %1406 = vst [vmem:[%s5 + $0x100] sm:$0xff] %v1342
  %1407 = vst [vmem:[%s5 + $0x108] sm:$0xff] %v1343
  %1408 = vst [vmem:[%s5 + $0x110] sm:$0xff] %v1344
  %1409 = vst [vmem:[%s5 + $0x118] sm:$0xff] %v1345
  %1410 = vst [vmem:[%s5 + $0x120] sm:$0xff] %v1346
  %1411 = vst [vmem:[%s5 + $0x128] sm:$0xff] %v1347
  %1412 = vst [vmem:[%s5 + $0x130] sm:$0xff] %v1348
  %1413 = vst [vmem:[%s5 + $0x138] sm:$0xff] %v1349
  %1414 = vst [vmem:[%s5 + $0x140] sm:$0xff] %v1350
  %1415 = vst [vmem:[%s5 + $0x148] sm:$0xff] %v1351
  %1416 = vst [vmem:[%s5 + $0x150] sm:$0xff] %v1352
  %1417 = vst [vmem:[%s5 + $0x158] sm:$0xff] %v1353
  %1418 = vst [vmem:[%s5 + $0x160] sm:$0xff] %v1354
  %1419 = vst [vmem:[%s5 + $0x168] sm:$0xff] %v1355
  %1420 = vst [vmem:[%s5 + $0x170] sm:$0xff] %v1356
  %1421 = vst [vmem:[%s5 + $0x178] sm:$0xff] %v1357
  %1422 = vst [vmem:[%s5 + $0x180] sm:$0xff] %v1358
  %1423 = vst [vmem:[%s5 + $0x188] sm:$0xff] %v1359
  %1424 = vst [vmem:[%s5 + $0x190] sm:$0xff] %v1360
  %1425 = vst [vmem:[%s5 + $0x198] sm:$0xff] %v1361
  %1426 = vst [vmem:[%s5 + $0x1a0] sm:$0xff] %v1362
  %1427 = vst [vmem:[%s5 + $0x1a8] sm:$0xff] %v1363
  %1428 = vst [vmem:[%s5 + $0x1b0] sm:$0xff] %v1364
  %1429 = vst [vmem:[%s5 + $0x1b8] sm:$0xff] %v1365
  %1430 = vst [vmem:[%s5 + $0x1c0] sm:$0xff] %v1366
  %1431 = vst [vmem:[%s5 + $0x1c8] sm:$0xff] %v1367
  %1432 = vst [vmem:[%s5 + $0x1d0] sm:$0xff] %v1368
  %1433 = vst [vmem:[%s5 + $0x1d8] sm:$0xff] %v1369
  %1434 = vst [vmem:[%s5 + $0x1e0] sm:$0xff] %v1370
  %1435 = vst [vmem:[%s5 + $0x1e8] sm:$0xff] %v1371
  %1436 = vst [vmem:[%s5 + $0x1f0] sm:$0xff] %v1372
  %1437 = vst [vmem:[%s5 + $0x1f8] sm:$0xff] %v1373
  // Predicated region
  $region22: #{up_forward.13} parent=0 // pred_check
    _
  $region23: #{up_forward.13} parent=0 // pred_check_branch
    %1439 = sbr.rel (0) target = $region25
  $region24: #{up_forward.13} parent=0 // pred_region
    _
  $region25: #{up_forward.13} parent=0 // pred_fallthru
    _
  // Predicated region
  $region26: #{up_forward.13} parent=0 // pred_check
    _
  $region27: #{up_forward.13} parent=0 // pred_check_branch
    %1441 = sbr.rel (0) target = $region29
  $region28: #{up_forward.13} parent=0 // pred_region
    _
  $region29: #{up_forward.13} parent=0 // pred_fallthru
    _

// kernel: up_forward.9
$region0: #{up_forward.9}
  #allocation0 [shape = 'u32[]', space=smem, size = 0x4, offset = 0x4, fixed_abs, tag = 'smem constant byte address 0x4 - core index']
  #allocation1 [shape = 'u32[144,128]{1,0:T(1,128)}', space=vmem, size = 0x12000, scoped, tag = 'internal scratch']
  #allocation2 [shape = 'bf16[18,18,128]{2,1,0:T(8,128)(2,1)}', space=vmem, size = 0x1b000, scoped, tag = 'scratch operand']
  %s0 = inlined_call_operand.vmem [shape: bf16[2,16,16,128], index: 0, kind: input, shape index: {}]
  %s1 = inlined_call_operand.vmem [shape: bf16[9,128,128], index: 1, kind: input, shape index: {}]
  %s2 = inlined_call_operand.vmem [shape: f32[1,128], index: 2, kind: input, shape index: {}]
  %s3 = inlined_call_operand.vmem [shape: bf16[2,16,16,128], index: 3, kind: output, shape index: {}]
  %s4 = sld [smem:[#allocation0]]
  $region49: #{up_forward.9} parent=0
    _
  %s6 = ssub.s32 1, %s4
  %s7 = scalar_select 0, %s6, %s4
  loop: start=0, step=1, limit=6
  $region2: #{up_forward.9} parent=0 // loop_pre_header
    _
  $region3: #{up_forward.9} parent=0 // loop_header
    %s9 = sphi 0, %s13
    %p10 = scmp.ge.s32.totalorder %s9, 6
    %s16 = sphi 0, %s28
    %s17 = sphi 0, %s24
    %s18 = sphi 0, %s16
    %s19 = sphi 0, %s17
    %s20 = sphi 0, %s18
    %s21 = sphi 0, %s19
    %s31 = sphi 0, %s33
    %s34 = sphi 0, %s31
    %s35 = sphi 0, %s34
    %s51 = sphi 0, %s35
    %s55 = sphi 0, %s55
    %s57 = sphi 0, %s55
    %s58 = sphi 0, %s57
    %s72 = sphi 0, %s58
    %s76 = sphi 0, %s76
    %s78 = sphi 0, %s76
    %s79 = sphi 0, %s78
    %s93 = sphi 0, %s79
    %s101 = sphi 0, %s103
    %s104 = sphi 0, %s101
    %s105 = sphi 0, %s104
    %s121 = sphi 0, %s105
  $region4: #{up_forward.9} parent=0 // loop_header_branch
    %12 = sbr.rel (%p10) target = $region8
  $region5: #{up_forward.9} parent=0 // loop_body
    %s14 = ssub.s32 %s9, 1
    %s15 = ssub.s32 %s9, 2
    %s22 = sadd.s32 1, %s17
    %p23 = scmp.ge.s32.totalorder %s22, 2
    %s24 = scalar_select %p23, 0, %s22
    %s25 = sadd.s32 1, %s16
    %s26 = scalar_select %p23, %s25, %s16
    %p27 = scmp.ge.s32.totalorder %s26, 2
    %s28 = scalar_select %p27, 0, %s26
    %s29 = ssub.s32 %s16, %s28
    %p30 = scmp.eq.s32.totalorder %s29, 0
    %s32 = sadd.s32 %s31, 1
    %s33 = scalar_select %p30, %s31, %s32
    %p36 = pneg %p30
    %p37 = scmp.eq.s32.totalorder %s9, 3
    %p38 = por %p36, %p37
    %p39 = scmp.ne.s32.totalorder %s31, %s34
    %p40 = scmp.eq.s32.totalorder %s9, 0
    %p41 = por %p39, %p40
    %p42 = scmp.ne.s32.totalorder %s31, %s34
    %p43 = scmp.eq.s32.totalorder %s14, 3
    %p44 = por %p42, %p43
    %p45 = scmp.ne.s32.totalorder %s34, %s35
    %p46 = scmp.eq.s32.totalorder %s14, 0
    %p47 = por %p45, %p46
    %p48 = scmp.ne.s32.totalorder %s34, %s35
    %p49 = scmp.eq.s32.totalorder %s15, 3
    %p50 = por %p48, %p49
    %p52 = scmp.ne.s32.totalorder %s35, %s51
    %p53 = scmp.eq.s32.totalorder %s15, 0
    %p54 = por %p52, %p53
    %s56 = sadd.s32 %s55, 1
    %p59 = scmp.eq.s32.totalorder %s9, 3
    %p60 = scmp.ne.s32.totalorder %s55, %s57
    %p61 = scmp.eq.s32.totalorder %s9, 0
    %p62 = por %p60, %p61
    %p63 = scmp.ne.s32.totalorder %s55, %s57
    %p64 = scmp.eq.s32.totalorder %s14, 3
    %p65 = por %p63, %p64
    %p66 = scmp.ne.s32.totalorder %s57, %s58
    %p67 = scmp.eq.s32.totalorder %s14, 0
    %p68 = por %p66, %p67
    %p69 = scmp.ne.s32.totalorder %s57, %s58
    %p70 = scmp.eq.s32.totalorder %s15, 3
    %p71 = por %p69, %p70
    %p73 = scmp.ne.s32.totalorder %s58, %s72
    %p74 = scmp.eq.s32.totalorder %s15, 0
    %p75 = por %p73, %p74
    %s77 = sadd.s32 %s76, 1
    %p80 = scmp.eq.s32.totalorder %s9, 3
    %p81 = scmp.ne.s32.totalorder %s76, %s78
    %p82 = scmp.eq.s32.totalorder %s9, 0
    %p83 = por %p81, %p82
    %p84 = scmp.ne.s32.totalorder %s76, %s78
    %p85 = scmp.eq.s32.totalorder %s14, 3
    %p86 = por %p84, %p85
    %p87 = scmp.ne.s32.totalorder %s78, %s79
    %p88 = scmp.eq.s32.totalorder %s14, 0
    %p89 = por %p87, %p88
    %p90 = scmp.ne.s32.totalorder %s78, %s79
    %p91 = scmp.eq.s32.totalorder %s15, 3
    %p92 = por %p90, %p91
    %p94 = scmp.ne.s32.totalorder %s79, %s93
    %p95 = scmp.eq.s32.totalorder %s15, 0
    %p96 = por %p94, %p95
    %s97 = ssub.s32 %s16, %s28
    %s98 = ssub.s32 %s17, %s24
    %s99 = sor.u32 %s97, %s98
    %p100 = scmp.eq.s32.totalorder %s99, 0
    %s102 = sadd.s32 %s101, 1
    %s103 = scalar_select %p100, %s101, %s102
    %p106 = pneg %p100
    %p107 = scmp.eq.s32.totalorder %s9, 3
    %p108 = por %p106, %p107
    %p109 = scmp.ne.s32.totalorder %s101, %s104
    %p110 = scmp.eq.s32.totalorder %s9, 0
    %p111 = por %p109, %p110
    %p112 = scmp.ne.s32.totalorder %s101, %s104
    %p113 = scmp.eq.s32.totalorder %s14, 3
    %p114 = por %p112, %p113
    %p115 = scmp.ne.s32.totalorder %s104, %s105
    %p116 = scmp.eq.s32.totalorder %s14, 0
    %p117 = por %p115, %p116
    %p118 = scmp.ne.s32.totalorder %s104, %s105
    %p119 = scmp.eq.s32.totalorder %s15, 3
    %p120 = por %p118, %p119
    %p122 = scmp.ne.s32.totalorder %s105, %s121
    %p123 = scmp.eq.s32.totalorder %s15, 0
    %p124 = por %p122, %p123
    %p125 = scmp.le.s32.totalorder 1, %s9
    %p126 = scmp.lt.s32.totalorder %s9, 5
    %p127 = pnand %p125, %p126
    %p128 = pneg %p127
    // Predicated region
    $region9: #{up_forward.9} parent=5 // pred_check
      _
    $region10: #{up_forward.9} parent=5 // pred_check_branch
      %130 = sbr.rel (%p127) target = $region12
    $region11: #{up_forward.9} parent=5 // pred_region
      %s131 = ssub.s32 %s9, 1
      // Predicated region
      $region13: #{up_forward.9} parent=11 // pred_check
        %p132 = pneg %p68
      $region14: #{up_forward.9} parent=11 // pred_check_branch
        %134 = sbr.rel (%p132) target = $region16
      $region15: #{up_forward.9} parent=11 // pred_region
        _
      $region16: #{up_forward.9} parent=11 // pred_fallthru
        _
      // Predicated region
      $region17: #{up_forward.9} parent=11 // pred_check
        %p135 = pneg %p89
      $region18: #{up_forward.9} parent=11 // pred_check_branch
        %137 = sbr.rel (%p135) target = $region20
      $region19: #{up_forward.9} parent=11 // pred_region
        _
      $region20: #{up_forward.9} parent=11 // pred_fallthru
        _
    $region12: #{up_forward.9} parent=5 // pred_fallthru
      _
    %p138 = scmp.lt.s32.totalorder %s9, 4
    // Predicated region
    $region21: #{up_forward.9} parent=5 // pred_check
      %p139 = pneg %p138
    $region22: #{up_forward.9} parent=5 // pred_check_branch
      %141 = sbr.rel (%p139) target = $region24
    $region23: #{up_forward.9} parent=5 // pred_region
      // Predicated region
      $region25: #{up_forward.9} parent=23 // pred_check
        %p142 = pneg %p41
      $region26: #{up_forward.9} parent=23 // pred_check_branch
        %144 = sbr.rel (%p142) target = $region28
      $region27: #{up_forward.9} parent=23 // pred_region
        %p145 = scmp.lt.s32.totalorder %s16, 1
        %s146 = scalar_select %p145, %s16, 1
        %s147 = smul.addr %s146, 32
        %s148 = smul.addr %s147, 4
        %s149 = scalar_lea.vmem %s0, %s148
      $region28: #{up_forward.9} parent=23 // pred_fallthru
        _
    $region24: #{up_forward.9} parent=5 // pred_fallthru
      _
    %p150 = scmp.le.s32.totalorder 1, %s9
    %p151 = scmp.lt.s32.totalorder %s9, 5
    %p152 = pnand %p150, %p151
    %p153 = pneg %p152
    // Predicated region
    $region29: #{up_forward.9} parent=5 // pred_check
      _
    $region30: #{up_forward.9} parent=5 // pred_check_branch
      %155 = sbr.rel (%p152) target = $region32
    $region31: #{up_forward.9} parent=5 // pred_region
      %s156 = ssub.s32 %s9, 1
      %p157 = scmp.lt.s32.totalorder %s18, 1
      %s158 = scalar_select %p157, %s18, 1
      %s159 = smul.addr %s158, 32
      %s160 = smul.addr %s159, 4
      %s161 = scalar_lea.vmem %s0, %s160
      %p162 = pneg %p47
      %p163 = pneg %p44
      %p164 = pneg %p68
      %p165 = pneg %p65
      %p166 = pneg %p89
      %p167 = pneg %p86
      %p168 = pneg %p117
      %p169 = pneg %p114
      %s170 = smul.u32 8, %s19
      %p171 = scmp.lt.s32.totalorder %s18, 1
      %s172 = scalar_select %p171, %s18, 1
      %p173 = scmp.lt.s32.totalorder %s170, 15
      %s174 = scalar_select %p173, %s170, 15
      %s175 = smul.addr %s174, 2
      %s176 = smul.addr %s172, 32
      %s177 = sadd.s32 %s175, %s176
      %s178 = smul.addr %s177, 4
      %s179 = scalar_lea.vmem %s3, %s178
      %p180 = scmp.lt.s32.totalorder %s18, 1
      %s181 = scalar_select %p180, %s18, 1
      %s182 = smul.addr %s181, 32
      %s183 = smul.addr %s182, 4
      %s184 = scalar_lea.vmem %s0, %s183
      %s185 = smul.u32 8, %s19
      %p186 = scmp.lt.s32.totalorder %s18, 1
      %s187 = scalar_select %p186, %s18, 1
      %p188 = scmp.lt.s32.totalorder %s185, 15
      %s189 = scalar_select %p188, %s185, 15
      %s190 = smul.addr %s189, 2
      %s191 = smul.addr %s187, 32
      %s192 = sadd.s32 %s190, %s191
      %s193 = smul.addr %s192, 4
      %s194 = scalar_lea.vmem %s3, %s193
      %s195 = smul.u32 8, %s19
      %p197 = scmp.eq.s32.totalorder %s19, 0
      // Predicated region
      $region33: #{up_forward.9} parent=31 // pred_check
        %p198 = pneg %p197
      $region34: #{up_forward.9} parent=31 // pred_check_branch
        %200 = sbr.rel (%p198) target = $region36
      $region35: #{up_forward.9} parent=31 // pred_region
        %201 = vst [vmem:[#allocation2] sm:$0xf] 0
        %202 = vst [vmem:[#allocation2 + $0x4] sm:$0xf] 0
        %203 = vst [vmem:[#allocation2 + $0x8] sm:$0x1] 0
        %204 = vst [vmem:[#allocation2 + $0xc] sm:$0xf] 0
        %205 = vst [vmem:[#allocation2 + $0x10] sm:$0xf] 0
        %206 = vst [vmem:[#allocation2 + $0x14] sm:$0x1] 0
        %207 = vst [vmem:[#allocation2 + $0x18] sm:$0xf] 0
        %208 = vst [vmem:[#allocation2 + $0x1c] sm:$0xf] 0
        %209 = vst [vmem:[#allocation2 + $0x20] sm:$0x1] 0
        %210 = vst [vmem:[#allocation2 + $0x24] sm:$0xf] 0
        %211 = vst [vmem:[#allocation2 + $0x28] sm:$0xf] 0
        %212 = vst [vmem:[#allocation2 + $0x2c] sm:$0x1] 0
        %213 = vst [vmem:[#allocation2 + $0x30] sm:$0xf] 0
        %214 = vst [vmem:[#allocation2 + $0x34] sm:$0xf] 0
        %215 = vst [vmem:[#allocation2 + $0x38] sm:$0x1] 0
        %216 = vst [vmem:[#allocation2 + $0x3c] sm:$0xf] 0
        %217 = vst [vmem:[#allocation2 + $0x40] sm:$0xf] 0
        %218 = vst [vmem:[#allocation2 + $0x44] sm:$0x1] 0
        %219 = vst [vmem:[#allocation2 + $0x48] sm:$0xf] 0
        %220 = vst [vmem:[#allocation2 + $0x4c] sm:$0xf] 0
        %221 = vst [vmem:[#allocation2 + $0x50] sm:$0x1] 0
        %222 = vst [vmem:[#allocation2 + $0x54] sm:$0xf] 0
        %223 = vst [vmem:[#allocation2 + $0x58] sm:$0xf] 0
        %224 = vst [vmem:[#allocation2 + $0x5c] sm:$0x1] 0
        %225 = vst [vmem:[#allocation2 + $0x60] sm:$0xf] 0
        %226 = vst [vmem:[#allocation2 + $0x64] sm:$0xf] 0
        %227 = vst [vmem:[#allocation2 + $0x68] sm:$0x1] 0
        %228 = vst [vmem:[#allocation2 + $0x6c] sm:$0xf] 0
        %229 = vst [vmem:[#allocation2 + $0x70] sm:$0xf] 0
        %230 = vst [vmem:[#allocation2 + $0x74] sm:$0x1] 0
        %231 = vst [vmem:[#allocation2 + $0x78] sm:$0xf] 0
        %232 = vst [vmem:[#allocation2 + $0x7c] sm:$0xf] 0
        %233 = vst [vmem:[#allocation2 + $0x80] sm:$0x1] 0
        %234 = vst [vmem:[#allocation2 + $0x84] sm:$0xf] 0
        %235 = vst [vmem:[#allocation2 + $0x88] sm:$0xf] 0
        %236 = vst [vmem:[#allocation2 + $0x8c] sm:$0x1] 0
        %237 = vst [vmem:[#allocation2 + $0x90] sm:$0xf] 0
        %238 = vst [vmem:[#allocation2 + $0x94] sm:$0xf] 0
        %239 = vst [vmem:[#allocation2 + $0x98] sm:$0x1] 0
        %240 = vst [vmem:[#allocation2 + $0x9c] sm:$0xf] 0
        %241 = vst [vmem:[#allocation2 + $0xa0] sm:$0xf] 0
        %242 = vst [vmem:[#allocation2 + $0xa4] sm:$0x1] 0
        %243 = vst [vmem:[#allocation2 + $0xa8] sm:$0xf] 0
        %244 = vst [vmem:[#allocation2 + $0xac] sm:$0xf] 0
        %245 = vst [vmem:[#allocation2 + $0xb0] sm:$0x1] 0
        %246 = vst [vmem:[#allocation2 + $0xb4] sm:$0xf] 0
        %247 = vst [vmem:[#allocation2 + $0xb8] sm:$0xf] 0
        %248 = vst [vmem:[#allocation2 + $0xbc] sm:$0x1] 0
        %249 = vst [vmem:[#allocation2 + $0xc0] sm:$0xf] 0
        %250 = vst [vmem:[#allocation2 + $0xc4] sm:$0xf] 0
        %251 = vst [vmem:[#allocation2 + $0xc8] sm:$0x1] 0
        %252 = vst [vmem:[#allocation2 + $0xcc] sm:$0xf] 0
        %253 = vst [vmem:[#allocation2 + $0xd0] sm:$0xf] 0
        %254 = vst [vmem:[#allocation2 + $0xd4] sm:$0x1] 0
        %v255 = vld [vmem:[%s184] sm:$0xf]
        %v256 = vld [vmem:[%s184 + $0x4] sm:$0xf]
        %v257 = vld [vmem:[%s184 + $0x8] sm:$0xf]
        %v258 = vld [vmem:[%s184 + $0xc] sm:$0xf]
        %v259 = vld [vmem:[%s184 + $0x10] sm:$0xf]
        %v260 = vld [vmem:[%s184 + $0x14] sm:$0xf]
        %v261 = vld [vmem:[%s184 + $0x18] sm:$0xf]
        %v262 = vld [vmem:[%s184 + $0x1c] sm:$0xf]
        %v263 = vld [vmem:[%s184 + $0x20] sm:$0xf]
        %v264 = vld [vmem:[%s184 + $0x24] sm:$0xf]
        %v265 = vld [vmem:[%s184 + $0x28] sm:$0xf]
        %v266 = vld [vmem:[%s184 + $0x2c] sm:$0xf]
        %v267 = vld [vmem:[%s184 + $0x30] sm:$0xf]
        %v268 = vld [vmem:[%s184 + $0x34] sm:$0xf]
        %v269 = vld [vmem:[%s184 + $0x38] sm:$0xf]
        %v270 = vld [vmem:[%s184 + $0x3c] sm:$0xf]
        %v271 = vld [vmem:[%s184 + $0x40] sm:$0xf]
        %v272 = vld [vmem:[%s184 + $0x44] sm:$0xf]
        %v273 = vld [vmem:[%s184 + $0x48] sm:$0xf]
        %v274 = vld [vmem:[%s184 + $0x4c] sm:$0xf]
        %v275 = vld [vmem:[%s184 + $0x50] sm:$0xf]
        %v276 = vld [vmem:[%s184 + $0x54] sm:$0xf]
        %v277 = vld [vmem:[%s184 + $0x58] sm:$0xf]
        %v278 = vld [vmem:[%s184 + $0x5c] sm:$0xf]
        %v279 = vld [vmem:[%s184 + $0x60] sm:$0xf]
        %v280 = vld [vmem:[%s184 + $0x64] sm:$0xf]
        %v281 = vld [vmem:[%s184 + $0x68] sm:$0xf]
        %v282 = vld [vmem:[%s184 + $0x6c] sm:$0xf]
        %v283 = vld [vmem:[%s184 + $0x70] sm:$0xf]
        %v284 = vld [vmem:[%s184 + $0x74] sm:$0xf]
        %v285 = vld [vmem:[%s184 + $0x78] sm:$0xf]
        %v286 = vld [vmem:[%s184 + $0x7c] sm:$0xf]
        %vm287 = vsmask.f32 256
        %vm288 = vsmask.f32 4368
        %vm289 = vmor %vm287, %vm288
        %v291 = vshrl.u32 %v255, 16
        %v293 = vrot.slane %v291, 7
        %v294 = vshll.u32 %v255, 16
        %v296 = vor.u32 %v293, %v294
        %v297 = vrot.slane %v293, 4
        %v299 = vshrl.u32 %v256, 16
        %v301 = vrot.slane %v299, 7
        %v302 = vshll.u32 %v256, 16
        %v304 = vor.u32 %v301, %v302
        %v305 = vsel %vm289, %v297, %v304
        %v306 = vrot.slane %v301, 4
        %v308 = vshrl.u32 %v257, 16
        %v310 = vrot.slane %v308, 7
        %v311 = vshll.u32 %v257, 16
        %v313 = vor.u32 %v310, %v311
        %v314 = vrot.slane %v310, 4
        %v316 = vshrl.u32 %v258, 16
        %v318 = vrot.slane %v316, 7
        %v319 = vshll.u32 %v258, 16
        %v321 = vor.u32 %v318, %v319
        %v322 = vsel %vm289, %v314, %v321
        %v323 = vrot.slane %v318, 4
        %v325 = vshrl.u32 %v259, 16
        %v327 = vrot.slane %v325, 7
        %v328 = vshll.u32 %v259, 16
        %v330 = vor.u32 %v327, %v328
        %v331 = vrot.slane %v327, 4
        %v333 = vshrl.u32 %v260, 16
        %v335 = vrot.slane %v333, 7
        %v336 = vshll.u32 %v260, 16
        %v338 = vor.u32 %v335, %v336
        %v339 = vsel %vm289, %v331, %v338
        %v340 = vrot.slane %v335, 4
        %v342 = vshrl.u32 %v261, 16
        %v344 = vrot.slane %v342, 7
        %v345 = vshll.u32 %v261, 16
        %v347 = vor.u32 %v344, %v345
        %v348 = vrot.slane %v344, 4
        %v350 = vshrl.u32 %v262, 16
        %v352 = vrot.slane %v350, 7
        %v353 = vshll.u32 %v262, 16
        %v355 = vor.u32 %v352, %v353
        %v356 = vsel %vm289, %v348, %v355
        %v357 = vrot.slane %v352, 4
        %v359 = vshrl.u32 %v263, 16
        %v361 = vrot.slane %v359, 7
        %v362 = vshll.u32 %v263, 16
        %v364 = vor.u32 %v361, %v362
        %v365 = vrot.slane %v361, 4
        %v367 = vshrl.u32 %v264, 16
        %v369 = vrot.slane %v367, 7
        %v370 = vshll.u32 %v264, 16
        %v372 = vor.u32 %v369, %v370
        %v373 = vsel %vm289, %v365, %v372
        %v374 = vrot.slane %v369, 4
        %v376 = vshrl.u32 %v265, 16
        %v378 = vrot.slane %v376, 7
        %v379 = vshll.u32 %v265, 16
        %v381 = vor.u32 %v378, %v379
        %v382 = vrot.slane %v378, 4
        %v384 = vshrl.u32 %v266, 16
        %v386 = vrot.slane %v384, 7
        %v387 = vshll.u32 %v266, 16
        %v389 = vor.u32 %v386, %v387
        %v390 = vsel %vm289, %v382, %v389
        %v391 = vrot.slane %v386, 4
        %v393 = vshrl.u32 %v267, 16
        %v395 = vrot.slane %v393, 7
        %v396 = vshll.u32 %v267, 16
        %v398 = vor.u32 %v395, %v396
        %v399 = vrot.slane %v395, 4
        %v401 = vshrl.u32 %v268, 16
        %v403 = vrot.slane %v401, 7
        %v404 = vshll.u32 %v268, 16
        %v406 = vor.u32 %v403, %v404
        %v407 = vsel %vm289, %v399, %v406
        %v408 = vrot.slane %v403, 4
        %v410 = vshrl.u32 %v269, 16
        %v412 = vrot.slane %v410, 7
        %v413 = vshll.u32 %v269, 16
        %v415 = vor.u32 %v412, %v413
        %v416 = vrot.slane %v412, 4
        %v418 = vshrl.u32 %v270, 16
        %v420 = vrot.slane %v418, 7
        %v421 = vshll.u32 %v270, 16
        %v423 = vor.u32 %v420, %v421
        %v424 = vsel %vm289, %v416, %v423
        %v425 = vrot.slane %v420, 4
        %v427 = vshrl.u32 %v271, 16
        %v429 = vrot.slane %v427, 7
        %v430 = vshll.u32 %v271, 16
        %v432 = vor.u32 %v429, %v430
        %v433 = vrot.slane %v429, 4
        %v435 = vshrl.u32 %v272, 16
        %v437 = vrot.slane %v435, 7
        %v438 = vshll.u32 %v272, 16
        %v440 = vor.u32 %v437, %v438
        %v441 = vsel %vm289, %v433, %v440
        %v442 = vrot.slane %v437, 4
        %v444 = vshrl.u32 %v273, 16
        %v446 = vrot.slane %v444, 7
        %v447 = vshll.u32 %v273, 16
        %v449 = vor.u32 %v446, %v447
        %v450 = vrot.slane %v446, 4
        %v452 = vshrl.u32 %v274, 16
        %v454 = vrot.slane %v452, 7
        %v455 = vshll.u32 %v274, 16
        %v457 = vor.u32 %v454, %v455
        %v458 = vsel %vm289, %v450, %v457
        %v459 = vrot.slane %v454, 4
        %v461 = vshrl.u32 %v275, 16
        %v463 = vrot.slane %v461, 7
        %v464 = vshll.u32 %v275, 16
        %v466 = vor.u32 %v463, %v464
        %v467 = vrot.slane %v463, 4
        %v469 = vshrl.u32 %v276, 16
        %v471 = vrot.slane %v469, 7
        %v472 = vshll.u32 %v276, 16
        %v474 = vor.u32 %v471, %v472
        %v475 = vsel %vm289, %v467, %v474
        %v476 = vrot.slane %v471, 4
        %v478 = vshrl.u32 %v277, 16
        %v480 = vrot.slane %v478, 7
        %v481 = vshll.u32 %v277, 16
        %v483 = vor.u32 %v480, %v481
        %v484 = vrot.slane %v480, 4
        %v486 = vshrl.u32 %v278, 16
        %v488 = vrot.slane %v486, 7
        %v489 = vshll.u32 %v278, 16
        %v491 = vor.u32 %v488, %v489
        %v492 = vsel %vm289, %v484, %v491
        %v493 = vrot.slane %v488, 4
        %v495 = vshrl.u32 %v279, 16
        %v497 = vrot.slane %v495, 7
        %v498 = vshll.u32 %v279, 16
        %v500 = vor.u32 %v497, %v498
        %v501 = vrot.slane %v497, 4
        %v503 = vshrl.u32 %v280, 16
        %v505 = vrot.slane %v503, 7
        %v506 = vshll.u32 %v280, 16
        %v508 = vor.u32 %v505, %v506
        %v509 = vsel %vm289, %v501, %v508
        %v510 = vrot.slane %v505, 4
        %v512 = vshrl.u32 %v281, 16
        %v514 = vrot.slane %v512, 7
        %v515 = vshll.u32 %v281, 16
        %v517 = vor.u32 %v514, %v515
        %v518 = vrot.slane %v514, 4
        %v520 = vshrl.u32 %v282, 16
        %v522 = vrot.slane %v520, 7
        %v523 = vshll.u32 %v282, 16
        %v525 = vor.u32 %v522, %v523
        %v526 = vsel %vm289, %v518, %v525
        %v527 = vrot.slane %v522, 4
        %v529 = vshrl.u32 %v283, 16
        %v531 = vrot.slane %v529, 7
        %v532 = vshll.u32 %v283, 16
        %v534 = vor.u32 %v531, %v532
        %v535 = vrot.slane %v531, 4
        %v537 = vshrl.u32 %v284, 16
        %v539 = vrot.slane %v537, 7
        %v540 = vshll.u32 %v284, 16
        %v542 = vor.u32 %v539, %v540
        %v543 = vsel %vm289, %v535, %v542
        %v544 = vrot.slane %v539, 4
        %v546 = vshrl.u32 %v285, 16
        %v548 = vrot.slane %v546, 7
        %v549 = vshll.u32 %v285, 16
        %v551 = vor.u32 %v548, %v549
        %v552 = vrot.slane %v548, 4
        %v554 = vshrl.u32 %v286, 16
        %v556 = vrot.slane %v554, 7
        %v557 = vshll.u32 %v286, 16
        %v559 = vor.u32 %v556, %v557
        %v560 = vsel %vm289, %v552, %v559
        %v561 = vrot.slane %v556, 4
        %s610 = scalar_lea.vmem [#allocation2], 12
        %vm611 = vcmask 1043456
        %vm612 = vsmask.f32 7938
        %vm613 = vmand %vm611, %vm612
        %v614 = vld [vmem:[%s610] sm:$0xf]
        %v615 = vsel %vm613, %v296, %v614
        %616 = vst [vmem:[%s610] sm:$0xf] %v615
        %617 = vst [vmem:[%s610 + $0x4] sm:$0xf] %v305
        %vm618 = vcmask 1040384
        %vm619 = vmand %vm618, %vm287
        %v620 = vld [vmem:[%s610 + $0x8] sm:$0x1]
        %v621 = vsel %vm619, %v306, %v620
        %622 = vst [vmem:[%s610 + $0x8] sm:$0x1] %v621
        %v623 = vld [vmem:[%s610 + $0xc] sm:$0xf]
        %v624 = vsel %vm613, %v313, %v623
        %625 = vst [vmem:[%s610 + $0xc] sm:$0xf] %v624
        %626 = vst [vmem:[%s610 + $0x10] sm:$0xf] %v322
        %v627 = vld [vmem:[%s610 + $0x14] sm:$0x1]
        %v628 = vsel %vm619, %v323, %v627
        %629 = vst [vmem:[%s610 + $0x14] sm:$0x1] %v628
        %v630 = vld [vmem:[%s610 + $0x18] sm:$0xf]
        %v631 = vsel %vm613, %v330, %v630
        %632 = vst [vmem:[%s610 + $0x18] sm:$0xf] %v631
        %633 = vst [vmem:[%s610 + $0x1c] sm:$0xf] %v339
        %v634 = vld [vmem:[%s610 + $0x20] sm:$0x1]
        %v635 = vsel %vm619, %v340, %v634
        %636 = vst [vmem:[%s610 + $0x20] sm:$0x1] %v635
        %v637 = vld [vmem:[%s610 + $0x24] sm:$0xf]
        %v638 = vsel %vm613, %v347, %v637
        %639 = vst [vmem:[%s610 + $0x24] sm:$0xf] %v638
        %640 = vst [vmem:[%s610 + $0x28] sm:$0xf] %v356
        %v641 = vld [vmem:[%s610 + $0x2c] sm:$0x1]
        %v642 = vsel %vm619, %v357, %v641
        %643 = vst [vmem:[%s610 + $0x2c] sm:$0x1] %v642
        %v644 = vld [vmem:[%s610 + $0x30] sm:$0xf]
        %v645 = vsel %vm613, %v364, %v644
        %646 = vst [vmem:[%s610 + $0x30] sm:$0xf] %v645
        %647 = vst [vmem:[%s610 + $0x34] sm:$0xf] %v373
        %v648 = vld [vmem:[%s610 + $0x38] sm:$0x1]
        %v649 = vsel %vm619, %v374, %v648
        %650 = vst [vmem:[%s610 + $0x38] sm:$0x1] %v649
        %v651 = vld [vmem:[%s610 + $0x3c] sm:$0xf]
        %v652 = vsel %vm613, %v381, %v651
        %653 = vst [vmem:[%s610 + $0x3c] sm:$0xf] %v652
        %654 = vst [vmem:[%s610 + $0x40] sm:$0xf] %v390
        %v655 = vld [vmem:[%s610 + $0x44] sm:$0x1]
        %v656 = vsel %vm619, %v391, %v655
        %657 = vst [vmem:[%s610 + $0x44] sm:$0x1] %v656
        %v658 = vld [vmem:[%s610 + $0x48] sm:$0xf]
        %v659 = vsel %vm613, %v398, %v658
        %660 = vst [vmem:[%s610 + $0x48] sm:$0xf] %v659
        %661 = vst [vmem:[%s610 + $0x4c] sm:$0xf] %v407
        %v662 = vld [vmem:[%s610 + $0x50] sm:$0x1]
        %v663 = vsel %vm619, %v408, %v662
        %664 = vst [vmem:[%s610 + $0x50] sm:$0x1] %v663
        %v665 = vld [vmem:[%s610 + $0x54] sm:$0xf]
        %v666 = vsel %vm613, %v415, %v665
        %667 = vst [vmem:[%s610 + $0x54] sm:$0xf] %v666
        %668 = vst [vmem:[%s610 + $0x58] sm:$0xf] %v424
        %v669 = vld [vmem:[%s610 + $0x5c] sm:$0x1]
        %v670 = vsel %vm619, %v425, %v669
        %671 = vst [vmem:[%s610 + $0x5c] sm:$0x1] %v670
        %v672 = vld [vmem:[%s610 + $0x60] sm:$0xf]
        %v673 = vsel %vm613, %v432, %v672
        %674 = vst [vmem:[%s610 + $0x60] sm:$0xf] %v673
        %675 = vst [vmem:[%s610 + $0x64] sm:$0xf] %v441
        %v676 = vld [vmem:[%s610 + $0x68] sm:$0x1]
        %v677 = vsel %vm619, %v442, %v676
        %678 = vst [vmem:[%s610 + $0x68] sm:$0x1] %v677
        %v679 = vld [vmem:[%s610 + $0x6c] sm:$0xf]
        %v680 = vsel %vm613, %v449, %v679
        %681 = vst [vmem:[%s610 + $0x6c] sm:$0xf] %v680
        %682 = vst [vmem:[%s610 + $0x70] sm:$0xf] %v458
        %v683 = vld [vmem:[%s610 + $0x74] sm:$0x1]
        %v684 = vsel %vm619, %v459, %v683
        %685 = vst [vmem:[%s610 + $0x74] sm:$0x1] %v684
        %v686 = vld [vmem:[%s610 + $0x78] sm:$0xf]
        %v687 = vsel %vm613, %v466, %v686
        %688 = vst [vmem:[%s610 + $0x78] sm:$0xf] %v687
        %689 = vst [vmem:[%s610 + $0x7c] sm:$0xf] %v475
        %v690 = vld [vmem:[%s610 + $0x80] sm:$0x1]
        %v691 = vsel %vm619, %v476, %v690
        %692 = vst [vmem:[%s610 + $0x80] sm:$0x1] %v691
        %v693 = vld [vmem:[%s610 + $0x84] sm:$0xf]
        %v694 = vsel %vm613, %v483, %v693
        %695 = vst [vmem:[%s610 + $0x84] sm:$0xf] %v694
        %696 = vst [vmem:[%s610 + $0x88] sm:$0xf] %v492
        %v697 = vld [vmem:[%s610 + $0x8c] sm:$0x1]
        %v698 = vsel %vm619, %v493, %v697
        %699 = vst [vmem:[%s610 + $0x8c] sm:$0x1] %v698
        %v700 = vld [vmem:[%s610 + $0x90] sm:$0xf]
        %v701 = vsel %vm613, %v500, %v700
        %702 = vst [vmem:[%s610 + $0x90] sm:$0xf] %v701
        %703 = vst [vmem:[%s610 + $0x94] sm:$0xf] %v509
        %v704 = vld [vmem:[%s610 + $0x98] sm:$0x1]
        %v705 = vsel %vm619, %v510, %v704
        %706 = vst [vmem:[%s610 + $0x98] sm:$0x1] %v705
        %v707 = vld [vmem:[%s610 + $0x9c] sm:$0xf]
        %v708 = vsel %vm613, %v517, %v707
        %709 = vst [vmem:[%s610 + $0x9c] sm:$0xf] %v708
        %710 = vst [vmem:[%s610 + $0xa0] sm:$0xf] %v526
        %v711 = vld [vmem:[%s610 + $0xa4] sm:$0x1]
        %v712 = vsel %vm619, %v527, %v711
        %713 = vst [vmem:[%s610 + $0xa4] sm:$0x1] %v712
        %v714 = vld [vmem:[%s610 + $0xa8] sm:$0xf]
        %v715 = vsel %vm613, %v534, %v714
        %716 = vst [vmem:[%s610 + $0xa8] sm:$0xf] %v715
        %717 = vst [vmem:[%s610 + $0xac] sm:$0xf] %v543
        %v718 = vld [vmem:[%s610 + $0xb0] sm:$0x1]
        %v719 = vsel %vm619, %v544, %v718
        %720 = vst [vmem:[%s610 + $0xb0] sm:$0x1] %v719
        %v721 = vld [vmem:[%s610 + $0xb4] sm:$0xf]
        %v722 = vsel %vm613, %v551, %v721
        %723 = vst [vmem:[%s610 + $0xb4] sm:$0xf] %v722
        %724 = vst [vmem:[%s610 + $0xb8] sm:$0xf] %v560
        %v725 = vld [vmem:[%s610 + $0xbc] sm:$0x1]
        %v726 = vsel %vm619, %v561, %v725
        %727 = vst [vmem:[%s610 + $0xbc] sm:$0x1] %v726
      $region36: #{up_forward.9} parent=31 // pred_fallthru
        _
      %s728 = smul.u32 %s19, 8
      %s729 = smul.u32 %s728, 3
      %s730 = smul.addr %s729, 4
      %s731 = scalar_lea.vmem [#allocation2], %s730
      %v732 = vld [vmem:[%s731] sm:$0xf]
      %v733 = vld [vmem:[%s731 + $0x4] sm:$0xf]
      %v734 = vld [vmem:[%s731 + $0xc] sm:$0xf]
      %v735 = vld [vmem:[%s731 + $0x10] sm:$0xf]
      %v736 = vld [vmem:[%s731 + $0x18] sm:$0xf]
      %v737 = vld [vmem:[%s731 + $0x1c] sm:$0xf]
      %v738 = vld [vmem:[%s731 + $0x24] sm:$0xf]
      %v739 = vld [vmem:[%s731 + $0x28] sm:$0xf]
      %v740 = vld [vmem:[%s731 + $0x30] sm:$0xf]
      %v741 = vld [vmem:[%s731 + $0x34] sm:$0xf]
      %v742 = vld [vmem:[%s731 + $0x3c] sm:$0xf]
      %v743 = vld [vmem:[%s731 + $0x40] sm:$0xf]
      %v744 = vld [vmem:[%s731 + $0x48] sm:$0xf]
      %v745 = vld [vmem:[%s731 + $0x4c] sm:$0xf]
      %v746 = vld [vmem:[%s731 + $0x54] sm:$0xf]
      %v747 = vld [vmem:[%s731 + $0x58] sm:$0xf]
      %v748 = vld [vmem:[%s1] sm:$0xf]
      %v749 = vld [vmem:[%s1 + $0x4] sm:$0xf]
      %v750 = vld [vmem:[%s1 + $0x8] sm:$0xf]
      %v751 = vld [vmem:[%s1 + $0xc] sm:$0xf]
      %v752 = vld [vmem:[%s1 + $0x10] sm:$0xf]
      %v753 = vld [vmem:[%s1 + $0x14] sm:$0xf]
      %v754 = vld [vmem:[%s1 + $0x18] sm:$0xf]
      %v755 = vld [vmem:[%s1 + $0x1c] sm:$0xf]
      %v756 = vld [vmem:[%s1 + $0x20] sm:$0xf]
      %v757 = vld [vmem:[%s1 + $0x24] sm:$0xf]
      %v758 = vld [vmem:[%s1 + $0x28] sm:$0xf]
      %v759 = vld [vmem:[%s1 + $0x2c] sm:$0xf]
      %v760 = vld [vmem:[%s1 + $0x30] sm:$0xf]
      %v761 = vld [vmem:[%s1 + $0x34] sm:$0xf]
      %v762 = vld [vmem:[%s1 + $0x38] sm:$0xf]
      %v763 = vld [vmem:[%s1 + $0x3c] sm:$0xf]
      %v764 = vld [vmem:[%s731 + $0x8] sm:$0x1]
      %v765 = vld [vmem:[%s731 + $0x14] sm:$0x1]
      %v766 = vld [vmem:[%s731 + $0x20] sm:$0x1]
      %v767 = vld [vmem:[%s731 + $0x2c] sm:$0x1]
      %v768 = vld [vmem:[%s731 + $0x38] sm:$0x1]
      %v769 = vld [vmem:[%s731 + $0x44] sm:$0x1]
      %v770 = vld [vmem:[%s731 + $0x50] sm:$0x1]
      %v771 = vld [vmem:[%s731 + $0x5c] sm:$0x1]
      %vm772 = vsmask.f32 3328
      %vm773 = vsmask.f32 7440
      %vm774 = vmor %vm772, %vm773
      %v776 = vshrl.u32 %v732, 16
      %v778 = vrot.slane %v776, 4
      %v779 = vshll.u32 %v732, 16
      %v781 = vrot.slane %v779, 5
      %v782 = vor.u32 %v778, %v781
      %v783 = vrot.slane %v782, 4
      %v785 = vshll.u32 %v733, 16
      %v787 = vrot.slane %v785, 5
      %v788 = vsel %vm774, %v783, %v787
      %v789 = vshrl.u32 %v733, 16
      %v791 = vrot.slane %v789, 4
      %v792 = vor.u32 %v791, %v787
      %v793 = vrot.slane %v792, 4
      %v795 = vshll.u32 %v764, 16
      %v797 = vrot.slane %v795, 5
      %v798 = vsel %vm774, %v793, %v797
      %v800 = vshrl.u32 %v734, 16
      %v802 = vrot.slane %v800, 4
      %v803 = vshll.u32 %v734, 16
      %v805 = vrot.slane %v803, 5
      %v806 = vor.u32 %v802, %v805
      %v807 = vrot.slane %v806, 4
      %v809 = vshll.u32 %v735, 16
      %v811 = vrot.slane %v809, 5
      %v812 = vsel %vm774, %v807, %v811
      %v813 = vshrl.u32 %v735, 16
      %v815 = vrot.slane %v813, 4
      %v816 = vor.u32 %v815, %v811
      %v817 = vrot.slane %v816, 4
      %v819 = vshll.u32 %v765, 16
      %v821 = vrot.slane %v819, 5
      %v822 = vsel %vm774, %v817, %v821
      %v824 = vshrl.u32 %v736, 16
      %v826 = vrot.slane %v824, 4
      %v827 = vshll.u32 %v736, 16
      %v829 = vrot.slane %v827, 5
      %v830 = vor.u32 %v826, %v829
      %v831 = vrot.slane %v830, 4
      %v833 = vshll.u32 %v737, 16
      %v835 = vrot.slane %v833, 5
      %v836 = vsel %vm774, %v831, %v835
      %v837 = vshrl.u32 %v737, 16
      %v839 = vrot.slane %v837, 4
      %v840 = vor.u32 %v839, %v835
      %v841 = vrot.slane %v840, 4
      %v843 = vshll.u32 %v766, 16
      %v845 = vrot.slane %v843, 5
      %v846 = vsel %vm774, %v841, %v845
      %v848 = vshrl.u32 %v738, 16
      %v850 = vrot.slane %v848, 4
      %v851 = vshll.u32 %v738, 16
      %v853 = vrot.slane %v851, 5
      %v854 = vor.u32 %v850, %v853
      %v855 = vrot.slane %v854, 4
      %v857 = vshll.u32 %v739, 16
      %v859 = vrot.slane %v857, 5
      %v860 = vsel %vm774, %v855, %v859
      %v861 = vshrl.u32 %v739, 16
      %v863 = vrot.slane %v861, 4
      %v864 = vor.u32 %v863, %v859
      %v865 = vrot.slane %v864, 4
      %v867 = vshll.u32 %v767, 16
      %v869 = vrot.slane %v867, 5
      %v870 = vsel %vm774, %v865, %v869
      %v872 = vshrl.u32 %v740, 16
      %v874 = vrot.slane %v872, 4
      %v875 = vshll.u32 %v740, 16
      %v877 = vrot.slane %v875, 5
      %v878 = vor.u32 %v874, %v877
      %v879 = vrot.slane %v878, 4
      %v881 = vshll.u32 %v741, 16
      %v883 = vrot.slane %v881, 5
      %v884 = vsel %vm774, %v879, %v883
      %v885 = vshrl.u32 %v741, 16
      %v887 = vrot.slane %v885, 4
      %v888 = vor.u32 %v887, %v883
      %v889 = vrot.slane %v888, 4
      %v891 = vshll.u32 %v768, 16
      %v893 = vrot.slane %v891, 5
      %v894 = vsel %vm774, %v889, %v893
      %v896 = vshrl.u32 %v742, 16
      %v898 = vrot.slane %v896, 4
      %v899 = vshll.u32 %v742, 16
      %v901 = vrot.slane %v899, 5
      %v902 = vor.u32 %v898, %v901
      %v903 = vrot.slane %v902, 4
      %v905 = vshll.u32 %v743, 16
      %v907 = vrot.slane %v905, 5
      %v908 = vsel %vm774, %v903, %v907
      %v909 = vshrl.u32 %v743, 16
      %v911 = vrot.slane %v909, 4
      %v912 = vor.u32 %v911, %v907
      %v913 = vrot.slane %v912, 4
      %v915 = vshll.u32 %v769, 16
      %v917 = vrot.slane %v915, 5
      %v918 = vsel %vm774, %v913, %v917
      %v920 = vshrl.u32 %v744, 16
      %v922 = vrot.slane %v920, 4
      %v923 = vshll.u32 %v744, 16
      %v925 = vrot.slane %v923, 5
      %v926 = vor.u32 %v922, %v925
      %v927 = vrot.slane %v926, 4
      %v929 = vshll.u32 %v745, 16
      %v931 = vrot.slane %v929, 5
      %v932 = vsel %vm774, %v927, %v931
      %v933 = vshrl.u32 %v745, 16
      %v935 = vrot.slane %v933, 4
      %v936 = vor.u32 %v935, %v931
      %v937 = vrot.slane %v936, 4
      %v939 = vshll.u32 %v770, 16
      %v941 = vrot.slane %v939, 5
      %v942 = vsel %vm774, %v937, %v941
      %v944 = vshrl.u32 %v746, 16
      %v946 = vrot.slane %v944, 4
      %v947 = vshll.u32 %v746, 16
      %v949 = vrot.slane %v947, 5
      %v950 = vor.u32 %v946, %v949
      %v951 = vrot.slane %v950, 4
      %v953 = vshll.u32 %v747, 16
      %v955 = vrot.slane %v953, 5
      %v956 = vsel %vm774, %v951, %v955
      %v957 = vshrl.u32 %v747, 16
      %v959 = vrot.slane %v957, 4
      %v960 = vor.u32 %v959, %v955
      %v961 = vrot.slane %v960, 4
      %v963 = vshll.u32 %v771, 16
      %v965 = vrot.slane %v963, 5
      %v966 = vsel %vm774, %v961, %v965
      %s967 = scalar_lea.vmem %s1, 64
      %v968 = vld [vmem:[%s967] sm:$0xf]
      %v969 = vld [vmem:[%s967 + $0x4] sm:$0xf]
      %v970 = vld [vmem:[%s967 + $0x8] sm:$0xf]
      %v971 = vld [vmem:[%s967 + $0xc] sm:$0xf]
      %v972 = vld [vmem:[%s967 + $0x10] sm:$0xf]
      %v973 = vld [vmem:[%s967 + $0x14] sm:$0xf]
      %v974 = vld [vmem:[%s967 + $0x18] sm:$0xf]
      %v975 = vld [vmem:[%s967 + $0x1c] sm:$0xf]
      %v976 = vld [vmem:[%s967 + $0x20] sm:$0xf]
      %v977 = vld [vmem:[%s967 + $0x24] sm:$0xf]
      %v978 = vld [vmem:[%s967 + $0x28] sm:$0xf]
      %v979 = vld [vmem:[%s967 + $0x2c] sm:$0xf]
      %v980 = vld [vmem:[%s967 + $0x30] sm:$0xf]
      %v981 = vld [vmem:[%s967 + $0x34] sm:$0xf]
      %v982 = vld [vmem:[%s967 + $0x38] sm:$0xf]
      %v983 = vld [vmem:[%s967 + $0x3c] sm:$0xf]
      %v984 = vunpack.c.l.b16 %v788
      %v985 = vunpack.c.l.b16 %v798
      %v986 = vunpack.c.l.b16 %v812
      %v987 = vunpack.c.l.b16 %v822
      %v988 = vunpack.c.l.b16 %v836
      %v989 = vunpack.c.l.b16 %v846
      %v990 = vunpack.c.l.b16 %v860
      %v991 = vunpack.c.l.b16 %v870
      %v992 = vunpack.c.l.b16 %v884
      %v993 = vunpack.c.l.b16 %v894
      %v994 = vunpack.c.l.b16 %v908
      %v995 = vunpack.c.l.b16 %v918
      %v996 = vunpack.c.l.b16 %v932
      %v997 = vunpack.c.l.b16 %v942
      %v998 = vunpack.c.l.b16 %v956
      %v999 = vunpack.c.l.b16 %v966
      %v1000 = vpack.c.b16 %v985, %v984
      %v1001 = vpack.c.b16 %v987, %v986
      %v1002 = vpack.c.b16 %v989, %v988
      %v1003 = vpack.c.b16 %v991, %v990
      %v1004 = vpack.c.b16 %v993, %v992
      %v1005 = vpack.c.b16 %v995, %v994
      %v1006 = vpack.c.b16 %v997, %v996
      %v1007 = vpack.c.b16 %v999, %v998
      %v1032 = vunpack.c.l.b16 %v968
      %v1033 = vunpack.c.l.b16 %v969
      %v1034 = vunpack.c.l.b16 %v970
      %v1035 = vunpack.c.l.b16 %v971
      %v1036 = vunpack.c.l.b16 %v972
      %v1037 = vunpack.c.l.b16 %v973
      %v1038 = vunpack.c.l.b16 %v974
      %v1039 = vunpack.c.l.b16 %v975
      %v1040 = vunpack.c.l.b16 %v976
      %v1041 = vunpack.c.l.b16 %v977
      %v1042 = vunpack.c.l.b16 %v978
      %v1043 = vunpack.c.l.b16 %v979
      %v1044 = vunpack.c.l.b16 %v980
      %v1045 = vunpack.c.l.b16 %v981
      %v1046 = vunpack.c.l.b16 %v982
      %v1047 = vunpack.c.l.b16 %v983
      %v1048 = vpack.c.b16 %v1033, %v1032
      %v1049 = vpack.c.b16 %v1035, %v1034
      %v1050 = vpack.c.b16 %v1037, %v1036
      %v1051 = vpack.c.b16 %v1039, %v1038
      %v1052 = vpack.c.b16 %v1041, %v1040
      %v1053 = vpack.c.b16 %v1043, %v1042
      %v1054 = vpack.c.b16 %v1045, %v1044
      %v1055 = vpack.c.b16 %v1047, %v1046
      %1064 = vmatprep.subr.bf16.mxu0 0
      %1065 = vmatpush1.bf16.msra.mxu0 %v1055
      %1066 = vmatprep.subr.bf16.mxu0 0
      %1067 = vmatpush1.bf16.msra.mxu0 %v1054
      %1068 = vmatprep.subr.bf16.mxu0 0
      %1069 = vmatpush1.bf16.msra.mxu0 %v1053
      %1070 = vmatprep.subr.bf16.mxu0 0
      %1071 = vmatpush1.bf16.msra.mxu0 %v1052
      %1072 = vmatprep.subr.bf16.mxu0 0
      %1073 = vmatpush1.bf16.msra.mxu0 %v1051
      %1074 = vmatprep.subr.bf16.mxu0 0
      %1075 = vmatpush1.bf16.msra.mxu0 %v1050
      %1076 = vmatprep.subr.bf16.mxu0 0
      %1077 = vmatpush1.bf16.msra.mxu0 %v1049
      %1078 = vmatprep.subr.bf16.mxu0 0
      %1079 = vmatpush1.bf16.msra.mxu0 %v1048
      %1080 = vmatprep.subr.bf16.mxu0 0
      %1081 = vmatpush2.bf16.msra.mxu0 0
      %1082 = vmatprep.subr.bf16.mxu0 0
      %1083 = vmatpush2.bf16.msra.mxu0 0
      %1084 = vmatprep.subr.bf16.mxu0 0
      %1085 = vmatpush2.bf16.msra.mxu0 0
      %1086 = vmatprep.subr.bf16.mxu0 0
      %1087 = vmatpush2.bf16.msra.mxu0 0
      %1088 = vmatprep.subr.bf16.mxu0 0
      %1089 = vmatpush2.bf16.msra.mxu0 0
      %1090 = vmatprep.subr.bf16.mxu0 0
      %1091 = vmatpush2.bf16.msra.mxu0 0
      %1092 = vmatprep.subr.bf16.mxu0 0
      %1093 = vmatpush2.bf16.msra.mxu0 0
      %1094 = vmatprep.subr.bf16.mxu0 0
      %1095 = vmatpush2.bf16.msra.mxu0 0
      %1096 = vmatprep.mubr.bf16.mxu0 0
      %1097 = vmatmul.mubr.bf16.gmra.mxu0 %v1000
      %v1098 = vpop.f32.mrf.mxu0
      %v1099 = vadd.f32 0.0, %v1098
      %v1100 = vpop.f32.mrf.mxu0
      %v1101 = vpop.f32.mrf.mxu0
      %v1102 = vadd.f32 0.0, %v1101
      %v1103 = vpop.f32.mrf.mxu0
      %1104 = vmatprep.mubr.bf16.mxu0 0
      %1105 = vmatmul.mubr.bf16.gmra.mxu0 %v1001
      %v1106 = vpop.f32.mrf.mxu0
      %v1107 = vadd.f32 0.0, %v1106
      %v1108 = vpop.f32.mrf.mxu0
      %v1109 = vpop.f32.mrf.mxu0
      %v1110 = vadd.f32 0.0, %v1109
      %v1111 = vpop.f32.mrf.mxu0
      %1112 = vmatprep.mubr.bf16.mxu0 0
      %1113 = vmatmul.mubr.bf16.gmra.mxu0 %v1002
      %v1114 = vpop.f32.mrf.mxu0
      %v1115 = vadd.f32 0.0, %v1114
      %v1116 = vpop.f32.mrf.mxu0
      %v1117 = vpop.f32.mrf.mxu0
      %v1118 = vadd.f32 0.0, %v1117
      %v1119 = vpop.f32.mrf.mxu0
      %1120 = vmatprep.mubr.bf16.mxu0 0
      %1121 = vmatmul.mubr.bf16.gmra.mxu0 %v1003
      %v1122 = vpop.f32.mrf.mxu0
      %v1123 = vadd.f32 0.0, %v1122
      %v1124 = vpop.f32.mrf.mxu0
      %v1125 = vpop.f32.mrf.mxu0
      %v1126 = vadd.f32 0.0, %v1125
      %v1127 = vpop.f32.mrf.mxu0
      %1128 = vmatprep.mubr.bf16.mxu0 0
      %1129 = vmatmul.mubr.bf16.gmra.mxu0 %v1004
      %v1130 = vpop.f32.mrf.mxu0
      %v1131 = vadd.f32 0.0, %v1130
      %v1132 = vpop.f32.mrf.mxu0
      %v1133 = vpop.f32.mrf.mxu0
      %v1134 = vadd.f32 0.0, %v1133
      %v1135 = vpop.f32.mrf.mxu0
      %1136 = vmatprep.mubr.bf16.mxu0 0
      %1137 = vmatmul.mubr.bf16.gmra.mxu0 %v1005
      %v1138 = vpop.f32.mrf.mxu0
      %v1139 = vadd.f32 0.0, %v1138
      %v1140 = vpop.f32.mrf.mxu0
      %v1141 = vpop.f32.mrf.mxu0
      %v1142 = vadd.f32 0.0, %v1141
      %v1143 = vpop.f32.mrf.mxu0
      %1144 = vmatprep.mubr.bf16.mxu0 0
      %1145 = vmatmul.mubr.bf16.gmra.mxu0 %v1006
      %v1146 = vpop.f32.mrf.mxu0
      %v1147 = vadd.f32 0.0, %v1146
      %v1148 = vpop.f32.mrf.mxu0
      %v1149 = vpop.f32.mrf.mxu0
      %v1150 = vadd.f32 0.0, %v1149
      %v1151 = vpop.f32.mrf.mxu0
      %1152 = vmatprep.mubr.bf16.mxu0 0
      %1153 = vmatmul.mubr.bf16.gmra.mxu0 %v1007
      %v1154 = vpop.f32.mrf.mxu0
      %v1155 = vadd.f32 0.0, %v1154
      %v1156 = vpop.f32.mrf.mxu0
      %v1157 = vpop.f32.mrf.mxu0
      %v1158 = vadd.f32 0.0, %v1157
      %v1159 = vpop.f32.mrf.mxu0
      %1160 = vdwg.mxu0
      %v1177 = vunpack.c.l.b16 %v732
      %v1178 = vunpack.c.l.b16 %v733
      %v1179 = vunpack.c.l.b16 %v734
      %v1180 = vunpack.c.l.b16 %v735
      %v1181 = vunpack.c.l.b16 %v736
      %v1182 = vunpack.c.l.b16 %v737
      %v1183 = vunpack.c.l.b16 %v738
      %v1184 = vunpack.c.l.b16 %v739
      %v1185 = vunpack.c.l.b16 %v740
      %v1186 = vunpack.c.l.b16 %v741
      %v1187 = vunpack.c.l.b16 %v742
      %v1188 = vunpack.c.l.b16 %v743
      %v1189 = vunpack.c.l.b16 %v744
      %v1190 = vunpack.c.l.b16 %v745
      %v1191 = vunpack.c.l.b16 %v746
      %v1192 = vunpack.c.l.b16 %v747
      %v1193 = vpack.c.b16 %v1178, %v1177
      %v1194 = vpack.c.b16 %v1180, %v1179
      %v1195 = vpack.c.b16 %v1182, %v1181
      %v1196 = vpack.c.b16 %v1184, %v1183
      %v1197 = vpack.c.b16 %v1186, %v1185
      %v1198 = vpack.c.b16 %v1188, %v1187
      %v1199 = vpack.c.b16 %v1190, %v1189
      %v1200 = vpack.c.b16 %v1192, %v1191
      %v1225 = vunpack.c.l.b16 %v748
      %v1226 = vunpack.c.l.b16 %v749
      %v1227 = vunpack.c.l.b16 %v750
      %v1228 = vunpack.c.l.b16 %v751
      %v1229 = vunpack.c.l.b16 %v752
      %v1230 = vunpack.c.l.b16 %v753
      %v1231 = vunpack.c.l.b16 %v754
      %v1232 = vunpack.c.l.b16 %v755
      %v1233 = vunpack.c.l.b16 %v756
      %v1234 = vunpack.c.l.b16 %v757
      %v1235 = vunpack.c.l.b16 %v758
      %v1236 = vunpack.c.l.b16 %v759
      %v1237 = vunpack.c.l.b16 %v760
      %v1238 = vunpack.c.l.b16 %v761
      %v1239 = vunpack.c.l.b16 %v762
      %v1240 = vunpack.c.l.b16 %v763
      %v1241 = vpack.c.b16 %v1226, %v1225
      %v1242 = vpack.c.b16 %v1228, %v1227
      %v1243 = vpack.c.b16 %v1230, %v1229
      %v1244 = vpack.c.b16 %v1232, %v1231
      %v1245 = vpack.c.b16 %v1234, %v1233
      %v1246 = vpack.c.b16 %v1236, %v1235
      %v1247 = vpack.c.b16 %v1238, %v1237
      %v1248 = vpack.c.b16 %v1240, %v1239
      %1257 = vmatprep.subr.bf16.mxu0 0
      %1258 = vmatpush1.bf16.msra.mxu0 %v1248
      %1259 = vmatprep.subr.bf16.mxu0 0
      %1260 = vmatpush1.bf16.msra.mxu0 %v1247
      %1261 = vmatprep.subr.bf16.mxu0 0
      %1262 = vmatpush1.bf16.msra.mxu0 %v1246
      %1263 = vmatprep.subr.bf16.mxu0 0
      %1264 = vmatpush1.bf16.msra.mxu0 %v1245
      %1265 = vmatprep.subr.bf16.mxu0 0
      %1266 = vmatpush1.bf16.msra.mxu0 %v1244
      %1267 = vmatprep.subr.bf16.mxu0 0
      %1268 = vmatpush1.bf16.msra.mxu0 %v1243
      %1269 = vmatprep.subr.bf16.mxu0 0
      %1270 = vmatpush1.bf16.msra.mxu0 %v1242
      %1271 = vmatprep.subr.bf16.mxu0 0
      %1272 = vmatpush1.bf16.msra.mxu0 %v1241
      %1273 = vmatprep.subr.bf16.mxu0 0
      %1274 = vmatpush2.bf16.msra.mxu0 0
      %1275 = vmatprep.subr.bf16.mxu0 0
      %1276 = vmatpush2.bf16.msra.mxu0 0
      %1277 = vmatprep.subr.bf16.mxu0 0
      %1278 = vmatpush2.bf16.msra.mxu0 0
      %1279 = vmatprep.subr.bf16.mxu0 0
      %1280 = vmatpush2.bf16.msra.mxu0 0
      %1281 = vmatprep.subr.bf16.mxu0 0
      %1282 = vmatpush2.bf16.msra.mxu0 0
      %1283 = vmatprep.subr.bf16.mxu0 0
      %1284 = vmatpush2.bf16.msra.mxu0 0
      %1285 = vmatprep.subr.bf16.mxu0 0
      %1286 = vmatpush2.bf16.msra.mxu0 0
      %1287 = vmatprep.subr.bf16.mxu0 0
      %1288 = vmatpush2.bf16.msra.mxu0 0
      %1289 = vmatprep.mubr.bf16.mxu0 0
      %1290 = vmatmul.mubr.bf16.gmra.mxu0 %v1193
      %v1291 = vpop.f32.mrf.mxu0
      %v1292 = vadd.f32 %v1099, %v1291
      %v1293 = vpop.f32.mrf.mxu0
      %v1294 = vpop.f32.mrf.mxu0
      %v1295 = vadd.f32 %v1102, %v1294
      %v1296 = vpop.f32.mrf.mxu0
      %1297 = vmatprep.mubr.bf16.mxu0 0
      %1298 = vmatmul.mubr.bf16.gmra.mxu0 %v1194
      %v1299 = vpop.f32.mrf.mxu0
      %v1300 = vadd.f32 %v1107, %v1299
      %v1301 = vpop.f32.mrf.mxu0
      %v1302 = vpop.f32.mrf.mxu0
      %v1303 = vadd.f32 %v1110, %v1302
      %v1304 = vpop.f32.mrf.mxu0
      %1305 = vmatprep.mubr.bf16.mxu0 0
      %1306 = vmatmul.mubr.bf16.gmra.mxu0 %v1195
      %v1307 = vpop.f32.mrf.mxu0
      %v1308 = vadd.f32 %v1115, %v1307
      %v1309 = vpop.f32.mrf.mxu0
      %v1310 = vpop.f32.mrf.mxu0
      %v1311 = vadd.f32 %v1118, %v1310
      %v1312 = vpop.f32.mrf.mxu0
      %1313 = vmatprep.mubr.bf16.mxu0 0
      %1314 = vmatmul.mubr.bf16.gmra.mxu0 %v1196
      %v1315 = vpop.f32.mrf.mxu0
      %v1316 = vadd.f32 %v1123, %v1315
      %v1317 = vpop.f32.mrf.mxu0
      %v1318 = vpop.f32.mrf.mxu0
      %v1319 = vadd.f32 %v1126, %v1318
      %v1320 = vpop.f32.mrf.mxu0
      %1321 = vmatprep.mubr.bf16.mxu0 0
      %1322 = vmatmul.mubr.bf16.gmra.mxu0 %v1197
      %v1323 = vpop.f32.mrf.mxu0
      %v1324 = vadd.f32 %v1131, %v1323
      %v1325 = vpop.f32.mrf.mxu0
      %v1326 = vpop.f32.mrf.mxu0
      %v1327 = vadd.f32 %v1134, %v1326
      %v1328 = vpop.f32.mrf.mxu0
      %1329 = vmatprep.mubr.bf16.mxu0 0
      %1330 = vmatmul.mubr.bf16.gmra.mxu0 %v1198
      %v1331 = vpop.f32.mrf.mxu0
      %v1332 = vadd.f32 %v1139, %v1331
      %v1333 = vpop.f32.mrf.mxu0
      %v1334 = vpop.f32.mrf.mxu0
      %v1335 = vadd.f32 %v1142, %v1334
      %v1336 = vpop.f32.mrf.mxu0
      %1337 = vmatprep.mubr.bf16.mxu0 0
      %1338 = vmatmul.mubr.bf16.gmra.mxu0 %v1199
      %v1339 = vpop.f32.mrf.mxu0
      %v1340 = vadd.f32 %v1147, %v1339
      %v1341 = vpop.f32.mrf.mxu0
      %v1342 = vpop.f32.mrf.mxu0
      %v1343 = vadd.f32 %v1150, %v1342
      %v1344 = vpop.f32.mrf.mxu0
      %1345 = vmatprep.mubr.bf16.mxu0 0
      %1346 = vmatmul.mubr.bf16.gmra.mxu0 %v1200
      %v1347 = vpop.f32.mrf.mxu0
      %v1348 = vadd.f32 %v1155, %v1347
      %v1349 = vpop.f32.mrf.mxu0
      %v1350 = vpop.f32.mrf.mxu0
      %v1351 = vadd.f32 %v1158, %v1350
      %v1352 = vpop.f32.mrf.mxu0
      %1353 = vdwg.mxu0
      %v1354 = vld [vmem:[%s731] sm:$0xe]
      %v1355 = vld [vmem:[%s731 + $0xc] sm:$0xe]
      %v1356 = vld [vmem:[%s731 + $0x18] sm:$0xe]
      %v1357 = vld [vmem:[%s731 + $0x24] sm:$0xe]
      %v1358 = vld [vmem:[%s731 + $0x30] sm:$0xe]
      %v1359 = vld [vmem:[%s731 + $0x3c] sm:$0xe]
      %v1360 = vld [vmem:[%s731 + $0x48] sm:$0xe]
      %v1361 = vld [vmem:[%s731 + $0x54] sm:$0xe]
      %vm1378 = vcmask 1042432
      %vm1379 = vcmask 1046532
      %vm1380 = vmor %vm1378, %vm1379
      %v1381 = vrot.slane %v1354, 5
      %v1382 = vrot.slane %v1381, 4
      %v1383 = vrot.slane %v733, 5
      %v1384 = vsel %vm1380, %v1382, %v1383
      %v1385 = vrot.slane %v1383, 4
      %v1386 = vrot.slane %v764, 5
      %v1387 = vsel %vm1380, %v1385, %v1386
      %v1388 = vrot.slane %v1355, 5
      %v1389 = vrot.slane %v1388, 4
      %v1390 = vrot.slane %v735, 5
      %v1391 = vsel %vm1380, %v1389, %v1390
      %v1392 = vrot.slane %v1390, 4
      %v1393 = vrot.slane %v765, 5
      %v1394 = vsel %vm1380, %v1392, %v1393
      %v1395 = vrot.slane %v1356, 5
      %v1396 = vrot.slane %v1395, 4
      %v1397 = vrot.slane %v737, 5
      %v1398 = vsel %vm1380, %v1396, %v1397
      %v1399 = vrot.slane %v1397, 4
      %v1400 = vrot.slane %v766, 5
      %v1401 = vsel %vm1380, %v1399, %v1400
      %v1402 = vrot.slane %v1357, 5
      %v1403 = vrot.slane %v1402, 4
      %v1404 = vrot.slane %v739, 5
      %v1405 = vsel %vm1380, %v1403, %v1404
      %v1406 = vrot.slane %v1404, 4
      %v1407 = vrot.slane %v767, 5
      %v1408 = vsel %vm1380, %v1406, %v1407
      %v1409 = vrot.slane %v1358, 5
      %v1410 = vrot.slane %v1409, 4
      %v1411 = vrot.slane %v741, 5
      %v1412 = vsel %vm1380, %v1410, %v1411
      %v1413 = vrot.slane %v1411, 4
      %v1414 = vrot.slane %v768, 5
      %v1415 = vsel %vm1380, %v1413, %v1414
      %v1416 = vrot.slane %v1359, 5
      %v1417 = vrot.slane %v1416, 4
      %v1418 = vrot.slane %v743, 5
      %v1419 = vsel %vm1380, %v1417, %v1418
      %v1420 = vrot.slane %v1418, 4
      %v1421 = vrot.slane %v769, 5
      %v1422 = vsel %vm1380, %v1420, %v1421
      %v1423 = vrot.slane %v1360, 5
      %v1424 = vrot.slane %v1423, 4
      %v1425 = vrot.slane %v745, 5
      %v1426 = vsel %vm1380, %v1424, %v1425
      %v1427 = vrot.slane %v1425, 4
      %v1428 = vrot.slane %v770, 5
      %v1429 = vsel %vm1380, %v1427, %v1428
      %v1430 = vrot.slane %v1361, 5
      %v1431 = vrot.slane %v1430, 4
      %v1432 = vrot.slane %v747, 5
      %v1433 = vsel %vm1380, %v1431, %v1432
      %v1434 = vrot.slane %v1432, 4
      %v1435 = vrot.slane %v771, 5
      %v1436 = vsel %vm1380, %v1434, %v1435
      %s1437 = scalar_lea.vmem %s1, 128
      %v1438 = vld [vmem:[%s1437] sm:$0xf]
      %v1439 = vld [vmem:[%s1437 + $0x4] sm:$0xf]
      %v1440 = vld [vmem:[%s1437 + $0x8] sm:$0xf]
      %v1441 = vld [vmem:[%s1437 + $0xc] sm:$0xf]
      %v1442 = vld [vmem:[%s1437 + $0x10] sm:$0xf]
      %v1443 = vld [vmem:[%s1437 + $0x14] sm:$0xf]
      %v1444 = vld [vmem:[%s1437 + $0x18] sm:$0xf]
      %v1445 = vld [vmem:[%s1437 + $0x1c] sm:$0xf]
      %v1446 = vld [vmem:[%s1437 + $0x20] sm:$0xf]
      %v1447 = vld [vmem:[%s1437 + $0x24] sm:$0xf]
      %v1448 = vld [vmem:[%s1437 + $0x28] sm:$0xf]
      %v1449 = vld [vmem:[%s1437 + $0x2c] sm:$0xf]
      %v1450 = vld [vmem:[%s1437 + $0x30] sm:$0xf]
      %v1451 = vld [vmem:[%s1437 + $0x34] sm:$0xf]
      %v1452 = vld [vmem:[%s1437 + $0x38] sm:$0xf]
      %v1453 = vld [vmem:[%s1437 + $0x3c] sm:$0xf]
      %v1454 = vunpack.c.l.b16 %v1384
      %v1455 = vunpack.c.l.b16 %v1387
      %v1456 = vunpack.c.l.b16 %v1391
      %v1457 = vunpack.c.l.b16 %v1394
      %v1458 = vunpack.c.l.b16 %v1398
      %v1459 = vunpack.c.l.b16 %v1401
      %v1460 = vunpack.c.l.b16 %v1405
      %v1461 = vunpack.c.l.b16 %v1408
      %v1462 = vunpack.c.l.b16 %v1412
      %v1463 = vunpack.c.l.b16 %v1415
      %v1464 = vunpack.c.l.b16 %v1419
      %v1465 = vunpack.c.l.b16 %v1422
      %v1466 = vunpack.c.l.b16 %v1426
      %v1467 = vunpack.c.l.b16 %v1429
      %v1468 = vunpack.c.l.b16 %v1433
      %v1469 = vunpack.c.l.b16 %v1436
      %v1470 = vpack.c.b16 %v1455, %v1454
      %v1471 = vpack.c.b16 %v1457, %v1456
      %v1472 = vpack.c.b16 %v1459, %v1458
      %v1473 = vpack.c.b16 %v1461, %v1460
      %v1474 = vpack.c.b16 %v1463, %v1462
      %v1475 = vpack.c.b16 %v1465, %v1464
      %v1476 = vpack.c.b16 %v1467, %v1466
      %v1477 = vpack.c.b16 %v1469, %v1468
      %v1502 = vunpack.c.l.b16 %v1438
      %v1503 = vunpack.c.l.b16 %v1439
      %v1504 = vunpack.c.l.b16 %v1440
      %v1505 = vunpack.c.l.b16 %v1441
      %v1506 = vunpack.c.l.b16 %v1442
      %v1507 = vunpack.c.l.b16 %v1443
      %v1508 = vunpack.c.l.b16 %v1444
      %v1509 = vunpack.c.l.b16 %v1445
      %v1510 = vunpack.c.l.b16 %v1446
      %v1511 = vunpack.c.l.b16 %v1447
      %v1512 = vunpack.c.l.b16 %v1448
      %v1513 = vunpack.c.l.b16 %v1449
      %v1514 = vunpack.c.l.b16 %v1450
      %v1515 = vunpack.c.l.b16 %v1451
      %v1516 = vunpack.c.l.b16 %v1452
      %v1517 = vunpack.c.l.b16 %v1453
      %v1518 = vpack.c.b16 %v1503, %v1502
      %v1519 = vpack.c.b16 %v1505, %v1504
      %v1520 = vpack.c.b16 %v1507, %v1506
      %v1521 = vpack.c.b16 %v1509, %v1508
      %v1522 = vpack.c.b16 %v1511, %v1510
      %v1523 = vpack.c.b16 %v1513, %v1512
      %v1524 = vpack.c.b16 %v1515, %v1514
      %v1525 = vpack.c.b16 %v1517, %v1516
      %1534 = vmatprep.subr.bf16.mxu0 0
      %1535 = vmatpush1.bf16.msra.mxu0 %v1525
      %1536 = vmatprep.subr.bf16.mxu0 0
      %1537 = vmatpush1.bf16.msra.mxu0 %v1524
      %1538 = vmatprep.subr.bf16.mxu0 0
      %1539 = vmatpush1.bf16.msra.mxu0 %v1523
      %1540 = vmatprep.subr.bf16.mxu0 0
      %1541 = vmatpush1.bf16.msra.mxu0 %v1522
      %1542 = vmatprep.subr.bf16.mxu0 0
      %1543 = vmatpush1.bf16.msra.mxu0 %v1521
      %1544 = vmatprep.subr.bf16.mxu0 0
      %1545 = vmatpush1.bf16.msra.mxu0 %v1520
      %1546 = vmatprep.subr.bf16.mxu0 0
      %1547 = vmatpush1.bf16.msra.mxu0 %v1519
      %1548 = vmatprep.subr.bf16.mxu0 0
      %1549 = vmatpush1.bf16.msra.mxu0 %v1518
      %1550 = vmatprep.subr.bf16.mxu0 0
      %1551 = vmatpush2.bf16.msra.mxu0 0
      %1552 = vmatprep.subr.bf16.mxu0 0
      %1553 = vmatpush2.bf16.msra.mxu0 0
      %1554 = vmatprep.subr.bf16.mxu0 0
      %1555 = vmatpush2.bf16.msra.mxu0 0
      %1556 = vmatprep.subr.bf16.mxu0 0
      %1557 = vmatpush2.bf16.msra.mxu0 0
      %1558 = vmatprep.subr.bf16.mxu0 0
      %1559 = vmatpush2.bf16.msra.mxu0 0
      %1560 = vmatprep.subr.bf16.mxu0 0
      %1561 = vmatpush2.bf16.msra.mxu0 0
      %1562 = vmatprep.subr.bf16.mxu0 0
      %1563 = vmatpush2.bf16.msra.mxu0 0
      %1564 = vmatprep.subr.bf16.mxu0 0
      %1565 = vmatpush2.bf16.msra.mxu0 0
      %1566 = vmatprep.mubr.bf16.mxu0 0
      %1567 = vmatmul.mubr.bf16.gmra.mxu0 %v1470
      %v1568 = vpop.f32.mrf.mxu0
      %v1569 = vadd.f32 0.0, %v1568
      %v1570 = vpop.f32.mrf.mxu0
      %v1571 = vpop.f32.mrf.mxu0
      %v1572 = vadd.f32 0.0, %v1571
      %v1573 = vpop.f32.mrf.mxu0
      %1574 = vmatprep.mubr.bf16.mxu0 0
      %1575 = vmatmul.mubr.bf16.gmra.mxu0 %v1471
      %v1576 = vpop.f32.mrf.mxu0
      %v1577 = vadd.f32 0.0, %v1576
      %v1578 = vpop.f32.mrf.mxu0
      %v1579 = vpop.f32.mrf.mxu0
      %v1580 = vadd.f32 0.0, %v1579
      %v1581 = vpop.f32.mrf.mxu0
      %1582 = vmatprep.mubr.bf16.mxu0 0
      %1583 = vmatmul.mubr.bf16.gmra.mxu0 %v1472
      %v1584 = vpop.f32.mrf.mxu0
      %v1585 = vadd.f32 0.0, %v1584
      %v1586 = vpop.f32.mrf.mxu0
      %v1587 = vpop.f32.mrf.mxu0
      %v1588 = vadd.f32 0.0, %v1587
      %v1589 = vpop.f32.mrf.mxu0
      %1590 = vmatprep.mubr.bf16.mxu0 0
      %1591 = vmatmul.mubr.bf16.gmra.mxu0 %v1473
      %v1592 = vpop.f32.mrf.mxu0
      %v1593 = vadd.f32 0.0, %v1592
      %v1594 = vpop.f32.mrf.mxu0
      %v1595 = vpop.f32.mrf.mxu0
      %v1596 = vadd.f32 0.0, %v1595
      %v1597 = vpop.f32.mrf.mxu0
      %1598 = vmatprep.mubr.bf16.mxu0 0
      %1599 = vmatmul.mubr.bf16.gmra.mxu0 %v1474
      %v1600 = vpop.f32.mrf.mxu0
      %v1601 = vadd.f32 0.0, %v1600
      %v1602 = vpop.f32.mrf.mxu0
      %v1603 = vpop.f32.mrf.mxu0
      %v1604 = vadd.f32 0.0, %v1603
      %v1605 = vpop.f32.mrf.mxu0
      %1606 = vmatprep.mubr.bf16.mxu0 0
      %1607 = vmatmul.mubr.bf16.gmra.mxu0 %v1475
      %v1608 = vpop.f32.mrf.mxu0
      %v1609 = vadd.f32 0.0, %v1608
      %v1610 = vpop.f32.mrf.mxu0
      %v1611 = vpop.f32.mrf.mxu0
      %v1612 = vadd.f32 0.0, %v1611
      %v1613 = vpop.f32.mrf.mxu0
      %1614 = vmatprep.mubr.bf16.mxu0 0
      %1615 = vmatmul.mubr.bf16.gmra.mxu0 %v1476
      %v1616 = vpop.f32.mrf.mxu0
      %v1617 = vadd.f32 0.0, %v1616
      %v1618 = vpop.f32.mrf.mxu0
      %v1619 = vpop.f32.mrf.mxu0
      %v1620 = vadd.f32 0.0, %v1619
      %v1621 = vpop.f32.mrf.mxu0
      %1622 = vmatprep.mubr.bf16.mxu0 0
      %1623 = vmatmul.mubr.bf16.gmra.mxu0 %v1477
      %v1624 = vpop.f32.mrf.mxu0
      %v1625 = vadd.f32 0.0, %v1624
      %v1626 = vpop.f32.mrf.mxu0
      %v1627 = vpop.f32.mrf.mxu0
      %v1628 = vadd.f32 0.0, %v1627
      %v1629 = vpop.f32.mrf.mxu0
      %1630 = vdwg.mxu0
      %v1631 = vadd.f32 %v1292, %v1569
      %v1632 = vadd.f32 %v1295, %v1572
      %v1633 = vadd.f32 %v1300, %v1577
      %v1634 = vadd.f32 %v1303, %v1580
      %v1635 = vadd.f32 %v1308, %v1585
      %v1636 = vadd.f32 %v1311, %v1588
      %v1637 = vadd.f32 %v1316, %v1593
      %v1638 = vadd.f32 %v1319, %v1596
      %v1639 = vadd.f32 %v1324, %v1601
      %v1640 = vadd.f32 %v1327, %v1604
      %v1641 = vadd.f32 %v1332, %v1609
      %v1642 = vadd.f32 %v1335, %v1612
      %v1643 = vadd.f32 %v1340, %v1617
      %v1644 = vadd.f32 %v1343, %v1620
      %v1645 = vadd.f32 %v1348, %v1625
      %v1646 = vadd.f32 %v1351, %v1628
      %s1647 = sadd.s32 %s728, 1
      %s1648 = smul.u32 %s1647, 3
      %s1649 = smul.addr %s1648, 4
      %s1650 = scalar_lea.vmem [#allocation2], %s1649
      %v1651 = vld [vmem:[%s1650] sm:$0xf]
      %v1652 = vld [vmem:[%s1650 + $0x4] sm:$0xf]
      %v1653 = vld [vmem:[%s1650 + $0xc] sm:$0xf]
      %v1654 = vld [vmem:[%s1650 + $0x10] sm:$0xf]
      %v1655 = vld [vmem:[%s1650 + $0x18] sm:$0xf]
      %v1656 = vld [vmem:[%s1650 + $0x1c] sm:$0xf]
      %v1657 = vld [vmem:[%s1650 + $0x24] sm:$0xf]
      %v1658 = vld [vmem:[%s1650 + $0x28] sm:$0xf]
      %v1659 = vld [vmem:[%s1650 + $0x30] sm:$0xf]
      %v1660 = vld [vmem:[%s1650 + $0x34] sm:$0xf]
      %v1661 = vld [vmem:[%s1650 + $0x3c] sm:$0xf]
      %v1662 = vld [vmem:[%s1650 + $0x40] sm:$0xf]
      %v1663 = vld [vmem:[%s1650 + $0x48] sm:$0xf]
      %v1664 = vld [vmem:[%s1650 + $0x4c] sm:$0xf]
      %v1665 = vld [vmem:[%s1650 + $0x54] sm:$0xf]
      %v1666 = vld [vmem:[%s1650 + $0x58] sm:$0xf]
      %s1667 = scalar_lea.vmem %s1, 192
      %v1668 = vld [vmem:[%s1667] sm:$0xf]
      %v1669 = vld [vmem:[%s1667 + $0x4] sm:$0xf]
      %v1670 = vld [vmem:[%s1667 + $0x8] sm:$0xf]
      %v1671 = vld [vmem:[%s1667 + $0xc] sm:$0xf]
      %v1672 = vld [vmem:[%s1667 + $0x10] sm:$0xf]
      %v1673 = vld [vmem:[%s1667 + $0x14] sm:$0xf]
      %v1674 = vld [vmem:[%s1667 + $0x18] sm:$0xf]
      %v1675 = vld [vmem:[%s1667 + $0x1c] sm:$0xf]
      %v1676 = vld [vmem:[%s1667 + $0x20] sm:$0xf]
      %v1677 = vld [vmem:[%s1667 + $0x24] sm:$0xf]
      %v1678 = vld [vmem:[%s1667 + $0x28] sm:$0xf]
      %v1679 = vld [vmem:[%s1667 + $0x2c] sm:$0xf]
      %v1680 = vld [vmem:[%s1667 + $0x30] sm:$0xf]
      %v1681 = vld [vmem:[%s1667 + $0x34] sm:$0xf]
      %v1682 = vld [vmem:[%s1667 + $0x38] sm:$0xf]
      %v1683 = vld [vmem:[%s1667 + $0x3c] sm:$0xf]
      %v1700 = vunpack.c.l.b16 %v1651
      %v1701 = vunpack.c.l.b16 %v1652
      %v1702 = vunpack.c.l.b16 %v1653
      %v1703 = vunpack.c.l.b16 %v1654
      %v1704 = vunpack.c.l.b16 %v1655
      %v1705 = vunpack.c.l.b16 %v1656
      %v1706 = vunpack.c.l.b16 %v1657
      %v1707 = vunpack.c.l.b16 %v1658
      %v1708 = vunpack.c.l.b16 %v1659
      %v1709 = vunpack.c.l.b16 %v1660
      %v1710 = vunpack.c.l.b16 %v1661
      %v1711 = vunpack.c.l.b16 %v1662
      %v1712 = vunpack.c.l.b16 %v1663
      %v1713 = vunpack.c.l.b16 %v1664
      %v1714 = vunpack.c.l.b16 %v1665
      %v1715 = vunpack.c.l.b16 %v1666
      %v1716 = vpack.c.b16 %v1701, %v1700
      %v1717 = vpack.c.b16 %v1703, %v1702
      %v1718 = vpack.c.b16 %v1705, %v1704
      %v1719 = vpack.c.b16 %v1707, %v1706
      %v1720 = vpack.c.b16 %v1709, %v1708
      %v1721 = vpack.c.b16 %v1711, %v1710
      %v1722 = vpack.c.b16 %v1713, %v1712
      %v1723 = vpack.c.b16 %v1715, %v1714
      %v1748 = vunpack.c.l.b16 %v1668
      %v1749 = vunpack.c.l.b16 %v1669
      %v1750 = vunpack.c.l.b16 %v1670
      %v1751 = vunpack.c.l.b16 %v1671
      %v1752 = vunpack.c.l.b16 %v1672
      %v1753 = vunpack.c.l.b16 %v1673
      %v1754 = vunpack.c.l.b16 %v1674
      %v1755 = vunpack.c.l.b16 %v1675
      %v1756 = vunpack.c.l.b16 %v1676
      %v1757 = vunpack.c.l.b16 %v1677
      %v1758 = vunpack.c.l.b16 %v1678
      %v1759 = vunpack.c.l.b16 %v1679
      %v1760 = vunpack.c.l.b16 %v1680
      %v1761 = vunpack.c.l.b16 %v1681
      %v1762 = vunpack.c.l.b16 %v1682
      %v1763 = vunpack.c.l.b16 %v1683
      %v1764 = vpack.c.b16 %v1749, %v1748
      %v1765 = vpack.c.b16 %v1751, %v1750
      %v1766 = vpack.c.b16 %v1753, %v1752
      %v1767 = vpack.c.b16 %v1755, %v1754
      %v1768 = vpack.c.b16 %v1757, %v1756
      %v1769 = vpack.c.b16 %v1759, %v1758
      %v1770 = vpack.c.b16 %v1761, %v1760
      %v1771 = vpack.c.b16 %v1763, %v1762
      %1780 = vmatprep.subr.bf16.mxu0 0
      %1781 = vmatpush1.bf16.msra.mxu0 %v1771
      %1782 = vmatprep.subr.bf16.mxu0 0
      %1783 = vmatpush1.bf16.msra.mxu0 %v1770
      %1784 = vmatprep.subr.bf16.mxu0 0
      %1785 = vmatpush1.bf16.msra.mxu0 %v1769
      %1786 = vmatprep.subr.bf16.mxu0 0
      %1787 = vmatpush1.bf16.msra.mxu0 %v1768
      %1788 = vmatprep.subr.bf16.mxu0 0
      %1789 = vmatpush1.bf16.msra.mxu0 %v1767
      %1790 = vmatprep.subr.bf16.mxu0 0
      %1791 = vmatpush1.bf16.msra.mxu0 %v1766
      %1792 = vmatprep.subr.bf16.mxu0 0
      %1793 = vmatpush1.bf16.msra.mxu0 %v1765
      %1794 = vmatprep.subr.bf16.mxu0 0
      %1795 = vmatpush1.bf16.msra.mxu0 %v1764
      %1796 = vmatprep.subr.bf16.mxu0 0
      %1797 = vmatpush2.bf16.msra.mxu0 0
      %1798 = vmatprep.subr.bf16.mxu0 0
      %1799 = vmatpush2.bf16.msra.mxu0 0
      %1800 = vmatprep.subr.bf16.mxu0 0
      %1801 = vmatpush2.bf16.msra.mxu0 0
      %1802 = vmatprep.subr.bf16.mxu0 0
      %1803 = vmatpush2.bf16.msra.mxu0 0
      %1804 = vmatprep.subr.bf16.mxu0 0
      %1805 = vmatpush2.bf16.msra.mxu0 0
      %1806 = vmatprep.subr.bf16.mxu0 0
      %1807 = vmatpush2.bf16.msra.mxu0 0
      %1808 = vmatprep.subr.bf16.mxu0 0
      %1809 = vmatpush2.bf16.msra.mxu0 0
      %1810 = vmatprep.subr.bf16.mxu0 0
      %1811 = vmatpush2.bf16.msra.mxu0 0
      %1812 = vmatprep.mubr.bf16.mxu0 0
      %1813 = vmatmul.mubr.bf16.gmra.mxu0 %v1716
      %v1814 = vpop.f32.mrf.mxu0
      %v1815 = vadd.f32 0.0, %v1814
      %v1816 = vpop.f32.mrf.mxu0
      %v1817 = vpop.f32.mrf.mxu0
      %v1818 = vadd.f32 0.0, %v1817
      %v1819 = vpop.f32.mrf.mxu0
      %1820 = vmatprep.mubr.bf16.mxu0 0
      %1821 = vmatmul.mubr.bf16.gmra.mxu0 %v1717
      %v1822 = vpop.f32.mrf.mxu0
      %v1823 = vadd.f32 0.0, %v1822
      %v1824 = vpop.f32.mrf.mxu0
      %v1825 = vpop.f32.mrf.mxu0
      %v1826 = vadd.f32 0.0, %v1825
      %v1827 = vpop.f32.mrf.mxu0
      %1828 = vmatprep.mubr.bf16.mxu0 0
      %1829 = vmatmul.mubr.bf16.gmra.mxu0 %v1718
      %v1830 = vpop.f32.mrf.mxu0
      %v1831 = vadd.f32 0.0, %v1830
      %v1832 = vpop.f32.mrf.mxu0
      %v1833 = vpop.f32.mrf.mxu0
      %v1834 = vadd.f32 0.0, %v1833
      %v1835 = vpop.f32.mrf.mxu0
      %1836 = vmatprep.mubr.bf16.mxu0 0
      %1837 = vmatmul.mubr.bf16.gmra.mxu0 %v1719
      %v1838 = vpop.f32.mrf.mxu0
      %v1839 = vadd.f32 0.0, %v1838
      %v1840 = vpop.f32.mrf.mxu0
      %v1841 = vpop.f32.mrf.mxu0
      %v1842 = vadd.f32 0.0, %v1841
      %v1843 = vpop.f32.mrf.mxu0
      %1844 = vmatprep.mubr.bf16.mxu0 0
      %1845 = vmatmul.mubr.bf16.gmra.mxu0 %v1720
      %v1846 = vpop.f32.mrf.mxu0
      %v1847 = vadd.f32 0.0, %v1846
      %v1848 = vpop.f32.mrf.mxu0
      %v1849 = vpop.f32.mrf.mxu0
      %v1850 = vadd.f32 0.0, %v1849
      %v1851 = vpop.f32.mrf.mxu0
      %1852 = vmatprep.mubr.bf16.mxu0 0
      %1853 = vmatmul.mubr.bf16.gmra.mxu0 %v1721
      %v1854 = vpop.f32.mrf.mxu0
      %v1855 = vadd.f32 0.0, %v1854
      %v1856 = vpop.f32.mrf.mxu0
      %v1857 = vpop.f32.mrf.mxu0
      %v1858 = vadd.f32 0.0, %v1857
      %v1859 = vpop.f32.mrf.mxu0
      %1860 = vmatprep.mubr.bf16.mxu0 0
      %1861 = vmatmul.mubr.bf16.gmra.mxu0 %v1722
      %v1862 = vpop.f32.mrf.mxu0
      %v1863 = vadd.f32 0.0, %v1862
      %v1864 = vpop.f32.mrf.mxu0
      %v1865 = vpop.f32.mrf.mxu0
      %v1866 = vadd.f32 0.0, %v1865
      %v1867 = vpop.f32.mrf.mxu0
      %1868 = vmatprep.mubr.bf16.mxu0 0
      %1869 = vmatmul.mubr.bf16.gmra.mxu0 %v1723
      %v1870 = vpop.f32.mrf.mxu0
      %v1871 = vadd.f32 0.0, %v1870
      %v1872 = vpop.f32.mrf.mxu0
      %v1873 = vpop.f32.mrf.mxu0
      %v1874 = vadd.f32 0.0, %v1873
      %v1875 = vpop.f32.mrf.mxu0
      %1876 = vdwg.mxu0
      %v1877 = vadd.f32 %v1631, %v1815
      %v1878 = vadd.f32 %v1632, %v1818
      %v1879 = vadd.f32 %v1633, %v1823
      %v1880 = vadd.f32 %v1634, %v1826
      %v1881 = vadd.f32 %v1635, %v1831
      %v1882 = vadd.f32 %v1636, %v1834
      %v1883 = vadd.f32 %v1637, %v1839
      %v1884 = vadd.f32 %v1638, %v1842
      %v1885 = vadd.f32 %v1639, %v1847
      %v1886 = vadd.f32 %v1640, %v1850
      %v1887 = vadd.f32 %v1641, %v1855
      %v1888 = vadd.f32 %v1642, %v1858
      %v1889 = vadd.f32 %v1643, %v1863
      %v1890 = vadd.f32 %v1644, %v1866
      %v1891 = vadd.f32 %v1645, %v1871
      %v1892 = vadd.f32 %v1646, %v1874
      %v1893 = vld [vmem:[%s1650] sm:$0xf]
      %v1894 = vld [vmem:[%s1650 + $0x4] sm:$0xf]
      %v1895 = vld [vmem:[%s1650 + $0x8] sm:$0x1]
      %v1896 = vld [vmem:[%s1650 + $0xc] sm:$0xf]
      %v1897 = vld [vmem:[%s1650 + $0x10] sm:$0xf]
      %v1898 = vld [vmem:[%s1650 + $0x14] sm:$0x1]
      %v1899 = vld [vmem:[%s1650 + $0x18] sm:$0xf]
      %v1900 = vld [vmem:[%s1650 + $0x1c] sm:$0xf]
      %v1901 = vld [vmem:[%s1650 + $0x20] sm:$0x1]
      %v1902 = vld [vmem:[%s1650 + $0x24] sm:$0xf]
      %v1903 = vld [vmem:[%s1650 + $0x28] sm:$0xf]
      %v1904 = vld [vmem:[%s1650 + $0x2c] sm:$0x1]
      %v1905 = vld [vmem:[%s1650 + $0x30] sm:$0xf]
      %v1906 = vld [vmem:[%s1650 + $0x34] sm:$0xf]
      %v1907 = vld [vmem:[%s1650 + $0x38] sm:$0x1]
      %v1908 = vld [vmem:[%s1650 + $0x3c] sm:$0xf]
      %v1909 = vld [vmem:[%s1650 + $0x40] sm:$0xf]
      %v1910 = vld [vmem:[%s1650 + $0x44] sm:$0x1]
      %v1911 = vld [vmem:[%s1650 + $0x48] sm:$0xf]
      %v1912 = vld [vmem:[%s1650 + $0x4c] sm:$0xf]
      %v1913 = vld [vmem:[%s1650 + $0x50] sm:$0x1]
      %v1914 = vld [vmem:[%s1650 + $0x54] sm:$0xf]
      %v1915 = vld [vmem:[%s1650 + $0x58] sm:$0xf]
      %v1916 = vld [vmem:[%s1650 + $0x5c] sm:$0x1]
      %v1918 = vshrl.u32 %v1893, 16
      %v1920 = vrot.slane %v1918, 4
      %v1921 = vshll.u32 %v1893, 16
      %v1923 = vrot.slane %v1921, 5
      %v1924 = vor.u32 %v1920, %v1923
      %v1925 = vrot.slane %v1924, 4
      %v1927 = vshll.u32 %v1894, 16
      %v1929 = vrot.slane %v1927, 5
      %v1930 = vsel %vm774, %v1925, %v1929
      %v1931 = vshrl.u32 %v1894, 16
      %v1933 = vrot.slane %v1931, 4
      %v1934 = vor.u32 %v1933, %v1929
      %v1935 = vrot.slane %v1934, 4
      %v1937 = vshll.u32 %v1895, 16
      %v1939 = vrot.slane %v1937, 5
      %v1940 = vsel %vm774, %v1935, %v1939
      %v1942 = vshrl.u32 %v1896, 16
      %v1944 = vrot.slane %v1942, 4
      %v1945 = vshll.u32 %v1896, 16
      %v1947 = vrot.slane %v1945, 5
      %v1948 = vor.u32 %v1944, %v1947
      %v1949 = vrot.slane %v1948, 4
      %v1951 = vshll.u32 %v1897, 16
      %v1953 = vrot.slane %v1951, 5
      %v1954 = vsel %vm774, %v1949, %v1953
      %v1955 = vshrl.u32 %v1897, 16
      %v1957 = vrot.slane %v1955, 4
      %v1958 = vor.u32 %v1957, %v1953
      %v1959 = vrot.slane %v1958, 4
      %v1961 = vshll.u32 %v1898, 16
      %v1963 = vrot.slane %v1961, 5
      %v1964 = vsel %vm774, %v1959, %v1963
      %v1966 = vshrl.u32 %v1899, 16
      %v1968 = vrot.slane %v1966, 4
      %v1969 = vshll.u32 %v1899, 16
      %v1971 = vrot.slane %v1969, 5
      %v1972 = vor.u32 %v1968, %v1971
      %v1973 = vrot.slane %v1972, 4
      %v1975 = vshll.u32 %v1900, 16
      %v1977 = vrot.slane %v1975, 5
      %v1978 = vsel %vm774, %v1973, %v1977
      %v1979 = vshrl.u32 %v1900, 16
      %v1981 = vrot.slane %v1979, 4
      %v1982 = vor.u32 %v1981, %v1977
      %v1983 = vrot.slane %v1982, 4
      %v1985 = vshll.u32 %v1901, 16
      %v1987 = vrot.slane %v1985, 5
      %v1988 = vsel %vm774, %v1983, %v1987
      %v1990 = vshrl.u32 %v1902, 16
      %v1992 = vrot.slane %v1990, 4
      %v1993 = vshll.u32 %v1902, 16
      %v1995 = vrot.slane %v1993, 5
      %v1996 = vor.u32 %v1992, %v1995
      %v1997 = vrot.slane %v1996, 4
      %v1999 = vshll.u32 %v1903, 16
      %v2001 = vrot.slane %v1999, 5
      %v2002 = vsel %vm774, %v1997, %v2001
      %v2003 = vshrl.u32 %v1903, 16
      %v2005 = vrot.slane %v2003, 4
      %v2006 = vor.u32 %v2005, %v2001
      %v2007 = vrot.slane %v2006, 4
      %v2009 = vshll.u32 %v1904, 16
      %v2011 = vrot.slane %v2009, 5
      %v2012 = vsel %vm774, %v2007, %v2011
      %v2014 = vshrl.u32 %v1905, 16
      %v2016 = vrot.slane %v2014, 4
      %v2017 = vshll.u32 %v1905, 16
      %v2019 = vrot.slane %v2017, 5
      %v2020 = vor.u32 %v2016, %v2019
      %v2021 = vrot.slane %v2020, 4
      %v2023 = vshll.u32 %v1906, 16
      %v2025 = vrot.slane %v2023, 5
      %v2026 = vsel %vm774, %v2021, %v2025
      %v2027 = vshrl.u32 %v1906, 16
      %v2029 = vrot.slane %v2027, 4
      %v2030 = vor.u32 %v2029, %v2025
      %v2031 = vrot.slane %v2030, 4
      %v2033 = vshll.u32 %v1907, 16
      %v2035 = vrot.slane %v2033, 5
      %v2036 = vsel %vm774, %v2031, %v2035
      %v2038 = vshrl.u32 %v1908, 16
      %v2040 = vrot.slane %v2038, 4
      %v2041 = vshll.u32 %v1908, 16
      %v2043 = vrot.slane %v2041, 5
      %v2044 = vor.u32 %v2040, %v2043
      %v2045 = vrot.slane %v2044, 4
      %v2047 = vshll.u32 %v1909, 16
      %v2049 = vrot.slane %v2047, 5
      %v2050 = vsel %vm774, %v2045, %v2049
      %v2051 = vshrl.u32 %v1909, 16
      %v2053 = vrot.slane %v2051, 4
      %v2054 = vor.u32 %v2053, %v2049
      %v2055 = vrot.slane %v2054, 4
      %v2057 = vshll.u32 %v1910, 16
      %v2059 = vrot.slane %v2057, 5
      %v2060 = vsel %vm774, %v2055, %v2059
      %v2062 = vshrl.u32 %v1911, 16
      %v2064 = vrot.slane %v2062, 4
      %v2065 = vshll.u32 %v1911, 16
      %v2067 = vrot.slane %v2065, 5
      %v2068 = vor.u32 %v2064, %v2067
      %v2069 = vrot.slane %v2068, 4
      %v2071 = vshll.u32 %v1912, 16
      %v2073 = vrot.slane %v2071, 5
      %v2074 = vsel %vm774, %v2069, %v2073
      %v2075 = vshrl.u32 %v1912, 16
      %v2077 = vrot.slane %v2075, 4
      %v2078 = vor.u32 %v2077, %v2073
      %v2079 = vrot.slane %v2078, 4
      %v2081 = vshll.u32 %v1913, 16
      %v2083 = vrot.slane %v2081, 5
      %v2084 = vsel %vm774, %v2079, %v2083
      %v2086 = vshrl.u32 %v1914, 16
      %v2088 = vrot.slane %v2086, 4
      %v2089 = vshll.u32 %v1914, 16
      %v2091 = vrot.slane %v2089, 5
      %v2092 = vor.u32 %v2088, %v2091
      %v2093 = vrot.slane %v2092, 4
      %v2095 = vshll.u32 %v1915, 16
      %v2097 = vrot.slane %v2095, 5
      %v2098 = vsel %vm774, %v2093, %v2097
      %v2099 = vshrl.u32 %v1915, 16
      %v2101 = vrot.slane %v2099, 4
      %v2102 = vor.u32 %v2101, %v2097
      %v2103 = vrot.slane %v2102, 4
      %v2105 = vshll.u32 %v1916, 16
      %v2107 = vrot.slane %v2105, 5
      %v2108 = vsel %vm774, %v2103, %v2107
      %s2109 = scalar_lea.vmem %s1, 256
      %v2110 = vld [vmem:[%s2109] sm:$0xf]
      %v2111 = vld [vmem:[%s2109 + $0x4] sm:$0xf]
      %v2112 = vld [vmem:[%s2109 + $0x8] sm:$0xf]
      %v2113 = vld [vmem:[%s2109 + $0xc] sm:$0xf]
      %v2114 = vld [vmem:[%s2109 + $0x10] sm:$0xf]
      %v2115 = vld [vmem:[%s2109 + $0x14] sm:$0xf]
      %v2116 = vld [vmem:[%s2109 + $0x18] sm:$0xf]
      %v2117 = vld [vmem:[%s2109 + $0x1c] sm:$0xf]
      %v2118 = vld [vmem:[%s2109 + $0x20] sm:$0xf]
      %v2119 = vld [vmem:[%s2109 + $0x24] sm:$0xf]
      %v2120 = vld [vmem:[%s2109 + $0x28] sm:$0xf]
      %v2121 = vld [vmem:[%s2109 + $0x2c] sm:$0xf]
      %v2122 = vld [vmem:[%s2109 + $0x30] sm:$0xf]
      %v2123 = vld [vmem:[%s2109 + $0x34] sm:$0xf]
      %v2124 = vld [vmem:[%s2109 + $0x38] sm:$0xf]
      %v2125 = vld [vmem:[%s2109 + $0x3c] sm:$0xf]
      %v2126 = vunpack.c.l.b16 %v1930
      %v2127 = vunpack.c.l.b16 %v1940
      %v2128 = vunpack.c.l.b16 %v1954
      %v2129 = vunpack.c.l.b16 %v1964
      %v2130 = vunpack.c.l.b16 %v1978
      %v2131 = vunpack.c.l.b16 %v1988
      %v2132 = vunpack.c.l.b16 %v2002
      %v2133 = vunpack.c.l.b16 %v2012
      %v2134 = vunpack.c.l.b16 %v2026
      %v2135 = vunpack.c.l.b16 %v2036
      %v2136 = vunpack.c.l.b16 %v2050
      %v2137 = vunpack.c.l.b16 %v2060
      %v2138 = vunpack.c.l.b16 %v2074
      %v2139 = vunpack.c.l.b16 %v2084
      %v2140 = vunpack.c.l.b16 %v2098
      %v2141 = vunpack.c.l.b16 %v2108
      %v2142 = vpack.c.b16 %v2127, %v2126
      %v2143 = vpack.c.b16 %v2129, %v2128
      %v2144 = vpack.c.b16 %v2131, %v2130
      %v2145 = vpack.c.b16 %v2133, %v2132
      %v2146 = vpack.c.b16 %v2135, %v2134
      %v2147 = vpack.c.b16 %v2137, %v2136
      %v2148 = vpack.c.b16 %v2139, %v2138
      %v2149 = vpack.c.b16 %v2141, %v2140
      %v2174 = vunpack.c.l.b16 %v2110
      %v2175 = vunpack.c.l.b16 %v2111
      %v2176 = vunpack.c.l.b16 %v2112
      %v2177 = vunpack.c.l.b16 %v2113
      %v2178 = vunpack.c.l.b16 %v2114
      %v2179 = vunpack.c.l.b16 %v2115
      %v2180 = vunpack.c.l.b16 %v2116
      %v2181 = vunpack.c.l.b16 %v2117
      %v2182 = vunpack.c.l.b16 %v2118
      %v2183 = vunpack.c.l.b16 %v2119
      %v2184 = vunpack.c.l.b16 %v2120
      %v2185 = vunpack.c.l.b16 %v2121
      %v2186 = vunpack.c.l.b16 %v2122
      %v2187 = vunpack.c.l.b16 %v2123
      %v2188 = vunpack.c.l.b16 %v2124
      %v2189 = vunpack.c.l.b16 %v2125
      %v2190 = vpack.c.b16 %v2175, %v2174
      %v2191 = vpack.c.b16 %v2177, %v2176
      %v2192 = vpack.c.b16 %v2179, %v2178
      %v2193 = vpack.c.b16 %v2181, %v2180
      %v2194 = vpack.c.b16 %v2183, %v2182
      %v2195 = vpack.c.b16 %v2185, %v2184
      %v2196 = vpack.c.b16 %v2187, %v2186
      %v2197 = vpack.c.b16 %v2189, %v2188
      %2206 = vmatprep.subr.bf16.mxu0 0
      %2207 = vmatpush1.bf16.msra.mxu0 %v2197
      %2208 = vmatprep.subr.bf16.mxu0 0
      %2209 = vmatpush1.bf16.msra.mxu0 %v2196
      %2210 = vmatprep.subr.bf16.mxu0 0
      %2211 = vmatpush1.bf16.msra.mxu0 %v2195
      %2212 = vmatprep.subr.bf16.mxu0 0
      %2213 = vmatpush1.bf16.msra.mxu0 %v2194
      %2214 = vmatprep.subr.bf16.mxu0 0
      %2215 = vmatpush1.bf16.msra.mxu0 %v2193
      %2216 = vmatprep.subr.bf16.mxu0 0
      %2217 = vmatpush1.bf16.msra.mxu0 %v2192
      %2218 = vmatprep.subr.bf16.mxu0 0
      %2219 = vmatpush1.bf16.msra.mxu0 %v2191
      %2220 = vmatprep.subr.bf16.mxu0 0
      %2221 = vmatpush1.bf16.msra.mxu0 %v2190
      %2222 = vmatprep.subr.bf16.mxu0 0
      %2223 = vmatpush2.bf16.msra.mxu0 0
      %2224 = vmatprep.subr.bf16.mxu0 0
      %2225 = vmatpush2.bf16.msra.mxu0 0
      %2226 = vmatprep.subr.bf16.mxu0 0
      %2227 = vmatpush2.bf16.msra.mxu0 0
      %2228 = vmatprep.subr.bf16.mxu0 0
      %2229 = vmatpush2.bf16.msra.mxu0 0
      %2230 = vmatprep.subr.bf16.mxu0 0
      %2231 = vmatpush2.bf16.msra.mxu0 0
      %2232 = vmatprep.subr.bf16.mxu0 0
      %2233 = vmatpush2.bf16.msra.mxu0 0
      %2234 = vmatprep.subr.bf16.mxu0 0
      %2235 = vmatpush2.bf16.msra.mxu0 0
      %2236 = vmatprep.subr.bf16.mxu0 0
      %2237 = vmatpush2.bf16.msra.mxu0 0
      %2238 = vmatprep.mubr.bf16.mxu0 0
      %2239 = vmatmul.mubr.bf16.gmra.mxu0 %v2142
      %v2240 = vpop.f32.mrf.mxu0
      %v2241 = vadd.f32 0.0, %v2240
      %v2242 = vpop.f32.mrf.mxu0
      %v2243 = vpop.f32.mrf.mxu0
      %v2244 = vadd.f32 0.0, %v2243
      %v2245 = vpop.f32.mrf.mxu0
      %2246 = vmatprep.mubr.bf16.mxu0 0
      %2247 = vmatmul.mubr.bf16.gmra.mxu0 %v2143
      %v2248 = vpop.f32.mrf.mxu0
      %v2249 = vadd.f32 0.0, %v2248
      %v2250 = vpop.f32.mrf.mxu0
      %v2251 = vpop.f32.mrf.mxu0
      %v2252 = vadd.f32 0.0, %v2251
      %v2253 = vpop.f32.mrf.mxu0
      %2254 = vmatprep.mubr.bf16.mxu0 0
      %2255 = vmatmul.mubr.bf16.gmra.mxu0 %v2144
      %v2256 = vpop.f32.mrf.mxu0
      %v2257 = vadd.f32 0.0, %v2256
      %v2258 = vpop.f32.mrf.mxu0
      %v2259 = vpop.f32.mrf.mxu0
      %v2260 = vadd.f32 0.0, %v2259
      %v2261 = vpop.f32.mrf.mxu0
      %2262 = vmatprep.mubr.bf16.mxu0 0
      %2263 = vmatmul.mubr.bf16.gmra.mxu0 %v2145
      %v2264 = vpop.f32.mrf.mxu0
      %v2265 = vadd.f32 0.0, %v2264
      %v2266 = vpop.f32.mrf.mxu0
      %v2267 = vpop.f32.mrf.mxu0
      %v2268 = vadd.f32 0.0, %v2267
      %v2269 = vpop.f32.mrf.mxu0
      %2270 = vmatprep.mubr.bf16.mxu0 0
      %2271 = vmatmul.mubr.bf16.gmra.mxu0 %v2146
      %v2272 = vpop.f32.mrf.mxu0
      %v2273 = vadd.f32 0.0, %v2272
      %v2274 = vpop.f32.mrf.mxu0
      %v2275 = vpop.f32.mrf.mxu0
      %v2276 = vadd.f32 0.0, %v2275
      %v2277 = vpop.f32.mrf.mxu0
      %2278 = vmatprep.mubr.bf16.mxu0 0
      %2279 = vmatmul.mubr.bf16.gmra.mxu0 %v2147
      %v2280 = vpop.f32.mrf.mxu0
      %v2281 = vadd.f32 0.0, %v2280
      %v2282 = vpop.f32.mrf.mxu0
      %v2283 = vpop.f32.mrf.mxu0
      %v2284 = vadd.f32 0.0, %v2283
      %v2285 = vpop.f32.mrf.mxu0
      %2286 = vmatprep.mubr.bf16.mxu0 0
      %2287 = vmatmul.mubr.bf16.gmra.mxu0 %v2148
      %v2288 = vpop.f32.mrf.mxu0
      %v2289 = vadd.f32 0.0, %v2288
      %v2290 = vpop.f32.mrf.mxu0
      %v2291 = vpop.f32.mrf.mxu0
      %v2292 = vadd.f32 0.0, %v2291
      %v2293 = vpop.f32.mrf.mxu0
      %2294 = vmatprep.mubr.bf16.mxu0 0
      %2295 = vmatmul.mubr.bf16.gmra.mxu0 %v2149
      %v2296 = vpop.f32.mrf.mxu0
      %v2297 = vadd.f32 0.0, %v2296
      %v2298 = vpop.f32.mrf.mxu0
      %v2299 = vpop.f32.mrf.mxu0
      %v2300 = vadd.f32 0.0, %v2299
      %v2301 = vpop.f32.mrf.mxu0
      %2302 = vdwg.mxu0
      %v2303 = vadd.f32 %v1877, %v2241
      %v2304 = vadd.f32 %v1878, %v2244
      %v2305 = vadd.f32 %v1879, %v2249
      %v2306 = vadd.f32 %v1880, %v2252
      %v2307 = vadd.f32 %v1881, %v2257
      %v2308 = vadd.f32 %v1882, %v2260
      %v2309 = vadd.f32 %v1883, %v2265
      %v2310 = vadd.f32 %v1884, %v2268
      %v2311 = vadd.f32 %v1885, %v2273
      %v2312 = vadd.f32 %v1886, %v2276
      %v2313 = vadd.f32 %v1887, %v2281
      %v2314 = vadd.f32 %v1888, %v2284
      %v2315 = vadd.f32 %v1889, %v2289
      %v2316 = vadd.f32 %v1890, %v2292
      %v2317 = vadd.f32 %v1891, %v2297
      %v2318 = vadd.f32 %v1892, %v2300
      %v2319 = vld [vmem:[%s1650] sm:$0xe]
      %v2320 = vld [vmem:[%s1650 + $0xc] sm:$0xe]
      %v2321 = vld [vmem:[%s1650 + $0x18] sm:$0xe]
      %v2322 = vld [vmem:[%s1650 + $0x24] sm:$0xe]
      %v2323 = vld [vmem:[%s1650 + $0x30] sm:$0xe]
      %v2324 = vld [vmem:[%s1650 + $0x3c] sm:$0xe]
      %v2325 = vld [vmem:[%s1650 + $0x48] sm:$0xe]
      %v2326 = vld [vmem:[%s1650 + $0x54] sm:$0xe]
      %v2351 = vrot.slane %v2319, 5
      %v2352 = vrot.slane %v2351, 4
      %v2353 = vrot.slane %v1894, 5
      %v2354 = vsel %vm1380, %v2352, %v2353
      %v2355 = vrot.slane %v2353, 4
      %v2356 = vrot.slane %v1895, 5
      %v2357 = vsel %vm1380, %v2355, %v2356
      %v2358 = vrot.slane %v2320, 5
      %v2359 = vrot.slane %v2358, 4
      %v2360 = vrot.slane %v1897, 5
      %v2361 = vsel %vm1380, %v2359, %v2360
      %v2362 = vrot.slane %v2360, 4
      %v2363 = vrot.slane %v1898, 5
      %v2364 = vsel %vm1380, %v2362, %v2363
      %v2365 = vrot.slane %v2321, 5
      %v2366 = vrot.slane %v2365, 4
      %v2367 = vrot.slane %v1900, 5
      %v2368 = vsel %vm1380, %v2366, %v2367
      %v2369 = vrot.slane %v2367, 4
      %v2370 = vrot.slane %v1901, 5
      %v2371 = vsel %vm1380, %v2369, %v2370
      %v2372 = vrot.slane %v2322, 5
      %v2373 = vrot.slane %v2372, 4
      %v2374 = vrot.slane %v1903, 5
      %v2375 = vsel %vm1380, %v2373, %v2374
      %v2376 = vrot.slane %v2374, 4
      %v2377 = vrot.slane %v1904, 5
      %v2378 = vsel %vm1380, %v2376, %v2377
      %v2379 = vrot.slane %v2323, 5
      %v2380 = vrot.slane %v2379, 4
      %v2381 = vrot.slane %v1906, 5
      %v2382 = vsel %vm1380, %v2380, %v2381
      %v2383 = vrot.slane %v2381, 4
      %v2384 = vrot.slane %v1907, 5
      %v2385 = vsel %vm1380, %v2383, %v2384
      %v2386 = vrot.slane %v2324, 5
      %v2387 = vrot.slane %v2386, 4
      %v2388 = vrot.slane %v1909, 5
      %v2389 = vsel %vm1380, %v2387, %v2388
      %v2390 = vrot.slane %v2388, 4
      %v2391 = vrot.slane %v1910, 5
      %v2392 = vsel %vm1380, %v2390, %v2391
      %v2393 = vrot.slane %v2325, 5
      %v2394 = vrot.slane %v2393, 4
      %v2395 = vrot.slane %v1912, 5
      %v2396 = vsel %vm1380, %v2394, %v2395
      %v2397 = vrot.slane %v2395, 4
      %v2398 = vrot.slane %v1913, 5
      %v2399 = vsel %vm1380, %v2397, %v2398
      %v2400 = vrot.slane %v2326, 5
      %v2401 = vrot.slane %v2400, 4
      %v2402 = vrot.slane %v1915, 5
      %v2403 = vsel %vm1380, %v2401, %v2402
      %v2404 = vrot.slane %v2402, 4
      %v2405 = vrot.slane %v1916, 5
      %v2406 = vsel %vm1380, %v2404, %v2405
      %s2407 = scalar_lea.vmem %s1, 320
      %v2408 = vld [vmem:[%s2407] sm:$0xf]
      %v2409 = vld [vmem:[%s2407 + $0x4] sm:$0xf]
      %v2410 = vld [vmem:[%s2407 + $0x8] sm:$0xf]
      %v2411 = vld [vmem:[%s2407 + $0xc] sm:$0xf]
      %v2412 = vld [vmem:[%s2407 + $0x10] sm:$0xf]
      %v2413 = vld [vmem:[%s2407 + $0x14] sm:$0xf]
      %v2414 = vld [vmem:[%s2407 + $0x18] sm:$0xf]
      %v2415 = vld [vmem:[%s2407 + $0x1c] sm:$0xf]
      %v2416 = vld [vmem:[%s2407 + $0x20] sm:$0xf]
      %v2417 = vld [vmem:[%s2407 + $0x24] sm:$0xf]
      %v2418 = vld [vmem:[%s2407 + $0x28] sm:$0xf]
      %v2419 = vld [vmem:[%s2407 + $0x2c] sm:$0xf]
      %v2420 = vld [vmem:[%s2407 + $0x30] sm:$0xf]
      %v2421 = vld [vmem:[%s2407 + $0x34] sm:$0xf]
      %v2422 = vld [vmem:[%s2407 + $0x38] sm:$0xf]
      %v2423 = vld [vmem:[%s2407 + $0x3c] sm:$0xf]
      %v2424 = vunpack.c.l.b16 %v2354
      %v2425 = vunpack.c.l.b16 %v2357
      %v2426 = vunpack.c.l.b16 %v2361
      %v2427 = vunpack.c.l.b16 %v2364
      %v2428 = vunpack.c.l.b16 %v2368
      %v2429 = vunpack.c.l.b16 %v2371
      %v2430 = vunpack.c.l.b16 %v2375
      %v2431 = vunpack.c.l.b16 %v2378
      %v2432 = vunpack.c.l.b16 %v2382
      %v2433 = vunpack.c.l.b16 %v2385
      %v2434 = vunpack.c.l.b16 %v2389
      %v2435 = vunpack.c.l.b16 %v2392
      %v2436 = vunpack.c.l.b16 %v2396
      %v2437 = vunpack.c.l.b16 %v2399
      %v2438 = vunpack.c.l.b16 %v2403
      %v2439 = vunpack.c.l.b16 %v2406
      %v2440 = vpack.c.b16 %v2425, %v2424
      %v2441 = vpack.c.b16 %v2427, %v2426
      %v2442 = vpack.c.b16 %v2429, %v2428
      %v2443 = vpack.c.b16 %v2431, %v2430
      %v2444 = vpack.c.b16 %v2433, %v2432
      %v2445 = vpack.c.b16 %v2435, %v2434
      %v2446 = vpack.c.b16 %v2437, %v2436
      %v2447 = vpack.c.b16 %v2439, %v2438
      %v2472 = vunpack.c.l.b16 %v2408
      %v2473 = vunpack.c.l.b16 %v2409
      %v2474 = vunpack.c.l.b16 %v2410
      %v2475 = vunpack.c.l.b16 %v2411
      %v2476 = vunpack.c.l.b16 %v2412
      %v2477 = vunpack.c.l.b16 %v2413
      %v2478 = vunpack.c.l.b16 %v2414
      %v2479 = vunpack.c.l.b16 %v2415
      %v2480 = vunpack.c.l.b16 %v2416
      %v2481 = vunpack.c.l.b16 %v2417
      %v2482 = vunpack.c.l.b16 %v2418
      %v2483 = vunpack.c.l.b16 %v2419
      %v2484 = vunpack.c.l.b16 %v2420
      %v2485 = vunpack.c.l.b16 %v2421
      %v2486 = vunpack.c.l.b16 %v2422
      %v2487 = vunpack.c.l.b16 %v2423
      %v2488 = vpack.c.b16 %v2473, %v2472
      %v2489 = vpack.c.b16 %v2475, %v2474
      %v2490 = vpack.c.b16 %v2477, %v2476
      %v2491 = vpack.c.b16 %v2479, %v2478
      %v2492 = vpack.c.b16 %v2481, %v2480
      %v2493 = vpack.c.b16 %v2483, %v2482
      %v2494 = vpack.c.b16 %v2485, %v2484
      %v2495 = vpack.c.b16 %v2487, %v2486
      %2504 = vmatprep.subr.bf16.mxu0 0
      %2505 = vmatpush1.bf16.msra.mxu0 %v2495
      %2506 = vmatprep.subr.bf16.mxu0 0
      %2507 = vmatpush1.bf16.msra.mxu0 %v2494
      %2508 = vmatprep.subr.bf16.mxu0 0
      %2509 = vmatpush1.bf16.msra.mxu0 %v2493
      %2510 = vmatprep.subr.bf16.mxu0 0
      %2511 = vmatpush1.bf16.msra.mxu0 %v2492
      %2512 = vmatprep.subr.bf16.mxu0 0
      %2513 = vmatpush1.bf16.msra.mxu0 %v2491
      %2514 = vmatprep.subr.bf16.mxu0 0
      %2515 = vmatpush1.bf16.msra.mxu0 %v2490
      %2516 = vmatprep.subr.bf16.mxu0 0
      %2517 = vmatpush1.bf16.msra.mxu0 %v2489
      %2518 = vmatprep.subr.bf16.mxu0 0
      %2519 = vmatpush1.bf16.msra.mxu0 %v2488
      %2520 = vmatprep.subr.bf16.mxu0 0
      %2521 = vmatpush2.bf16.msra.mxu0 0
      %2522 = vmatprep.subr.bf16.mxu0 0
      %2523 = vmatpush2.bf16.msra.mxu0 0
      %2524 = vmatprep.subr.bf16.mxu0 0
      %2525 = vmatpush2.bf16.msra.mxu0 0
      %2526 = vmatprep.subr.bf16.mxu0 0
      %2527 = vmatpush2.bf16.msra.mxu0 0
      %2528 = vmatprep.subr.bf16.mxu0 0
      %2529 = vmatpush2.bf16.msra.mxu0 0
      %2530 = vmatprep.subr.bf16.mxu0 0
      %2531 = vmatpush2.bf16.msra.mxu0 0
      %2532 = vmatprep.subr.bf16.mxu0 0
      %2533 = vmatpush2.bf16.msra.mxu0 0
      %2534 = vmatprep.subr.bf16.mxu0 0
      %2535 = vmatpush2.bf16.msra.mxu0 0
      %2536 = vmatprep.mubr.bf16.mxu0 0
      %2537 = vmatmul.mubr.bf16.gmra.mxu0 %v2440
      %v2538 = vpop.f32.mrf.mxu0
      %v2539 = vadd.f32 0.0, %v2538
      %v2540 = vpop.f32.mrf.mxu0
      %v2541 = vpop.f32.mrf.mxu0
      %v2542 = vadd.f32 0.0, %v2541
      %v2543 = vpop.f32.mrf.mxu0
      %2544 = vmatprep.mubr.bf16.mxu0 0
      %2545 = vmatmul.mubr.bf16.gmra.mxu0 %v2441
      %v2546 = vpop.f32.mrf.mxu0
      %v2547 = vadd.f32 0.0, %v2546
      %v2548 = vpop.f32.mrf.mxu0
      %v2549 = vpop.f32.mrf.mxu0
      %v2550 = vadd.f32 0.0, %v2549
      %v2551 = vpop.f32.mrf.mxu0
      %2552 = vmatprep.mubr.bf16.mxu0 0
      %2553 = vmatmul.mubr.bf16.gmra.mxu0 %v2442
      %v2554 = vpop.f32.mrf.mxu0
      %v2555 = vadd.f32 0.0, %v2554
      %v2556 = vpop.f32.mrf.mxu0
      %v2557 = vpop.f32.mrf.mxu0
      %v2558 = vadd.f32 0.0, %v2557
      %v2559 = vpop.f32.mrf.mxu0
      %2560 = vmatprep.mubr.bf16.mxu0 0
      %2561 = vmatmul.mubr.bf16.gmra.mxu0 %v2443
      %v2562 = vpop.f32.mrf.mxu0
      %v2563 = vadd.f32 0.0, %v2562
      %v2564 = vpop.f32.mrf.mxu0
      %v2565 = vpop.f32.mrf.mxu0
      %v2566 = vadd.f32 0.0, %v2565
      %v2567 = vpop.f32.mrf.mxu0
      %2568 = vmatprep.mubr.bf16.mxu0 0
      %2569 = vmatmul.mubr.bf16.gmra.mxu0 %v2444
      %v2570 = vpop.f32.mrf.mxu0
      %v2571 = vadd.f32 0.0, %v2570
      %v2572 = vpop.f32.mrf.mxu0
      %v2573 = vpop.f32.mrf.mxu0
      %v2574 = vadd.f32 0.0, %v2573
      %v2575 = vpop.f32.mrf.mxu0
      %2576 = vmatprep.mubr.bf16.mxu0 0
      %2577 = vmatmul.mubr.bf16.gmra.mxu0 %v2445
      %v2578 = vpop.f32.mrf.mxu0
      %v2579 = vadd.f32 0.0, %v2578
      %v2580 = vpop.f32.mrf.mxu0
      %v2581 = vpop.f32.mrf.mxu0
      %v2582 = vadd.f32 0.0, %v2581
      %v2583 = vpop.f32.mrf.mxu0
      %2584 = vmatprep.mubr.bf16.mxu0 0
      %2585 = vmatmul.mubr.bf16.gmra.mxu0 %v2446
      %v2586 = vpop.f32.mrf.mxu0
      %v2587 = vadd.f32 0.0, %v2586
      %v2588 = vpop.f32.mrf.mxu0
      %v2589 = vpop.f32.mrf.mxu0
      %v2590 = vadd.f32 0.0, %v2589
      %v2591 = vpop.f32.mrf.mxu0
      %2592 = vmatprep.mubr.bf16.mxu0 0
      %2593 = vmatmul.mubr.bf16.gmra.mxu0 %v2447
      %v2594 = vpop.f32.mrf.mxu0
      %v2595 = vadd.f32 0.0, %v2594
      %v2596 = vpop.f32.mrf.mxu0
      %v2597 = vpop.f32.mrf.mxu0
      %v2598 = vadd.f32 0.0, %v2597
      %v2599 = vpop.f32.mrf.mxu0
      %2600 = vdwg.mxu0
      %v2601 = vadd.f32 %v2303, %v2539
      %v2602 = vadd.f32 %v2304, %v2542
      %v2603 = vadd.f32 %v2305, %v2547
      %v2604 = vadd.f32 %v2306, %v2550
      %v2605 = vadd.f32 %v2307, %v2555
      %v2606 = vadd.f32 %v2308, %v2558
      %v2607 = vadd.f32 %v2309, %v2563
      %v2608 = vadd.f32 %v2310, %v2566
      %v2609 = vadd.f32 %v2311, %v2571
      %v2610 = vadd.f32 %v2312, %v2574
      %v2611 = vadd.f32 %v2313, %v2579
      %v2612 = vadd.f32 %v2314, %v2582
      %v2613 = vadd.f32 %v2315, %v2587
      %v2614 = vadd.f32 %v2316, %v2590
      %v2615 = vadd.f32 %v2317, %v2595
      %v2616 = vadd.f32 %v2318, %v2598
      %s2617 = sadd.s32 %s728, 2
      %s2618 = smul.u32 %s2617, 3
      %s2619 = smul.addr %s2618, 4
      %s2620 = scalar_lea.vmem [#allocation2], %s2619
      %v2621 = vld [vmem:[%s2620] sm:$0xf]
      %v2622 = vld [vmem:[%s2620 + $0x4] sm:$0xf]
      %v2623 = vld [vmem:[%s2620 + $0xc] sm:$0xf]
      %v2624 = vld [vmem:[%s2620 + $0x10] sm:$0xf]
      %v2625 = vld [vmem:[%s2620 + $0x18] sm:$0xf]
      %v2626 = vld [vmem:[%s2620 + $0x1c] sm:$0xf]
      %v2627 = vld [vmem:[%s2620 + $0x24] sm:$0xf]
      %v2628 = vld [vmem:[%s2620 + $0x28] sm:$0xf]
      %v2629 = vld [vmem:[%s2620 + $0x30] sm:$0xf]
      %v2630 = vld [vmem:[%s2620 + $0x34] sm:$0xf]
      %v2631 = vld [vmem:[%s2620 + $0x3c] sm:$0xf]
      %v2632 = vld [vmem:[%s2620 + $0x40] sm:$0xf]
      %v2633 = vld [vmem:[%s2620 + $0x48] sm:$0xf]
      %v2634 = vld [vmem:[%s2620 + $0x4c] sm:$0xf]
      %v2635 = vld [vmem:[%s2620 + $0x54] sm:$0xf]
      %v2636 = vld [vmem:[%s2620 + $0x58] sm:$0xf]
      %s2637 = scalar_lea.vmem %s1, 384
      %v2638 = vld [vmem:[%s2637] sm:$0xf]
      %v2639 = vld [vmem:[%s2637 + $0x4] sm:$0xf]
      %v2640 = vld [vmem:[%s2637 + $0x8] sm:$0xf]
      %v2641 = vld [vmem:[%s2637 + $0xc] sm:$0xf]
      %v2642 = vld [vmem:[%s2637 + $0x10] sm:$0xf]
      %v2643 = vld [vmem:[%s2637 + $0x14] sm:$0xf]
      %v2644 = vld [vmem:[%s2637 + $0x18] sm:$0xf]
      %v2645 = vld [vmem:[%s2637 + $0x1c] sm:$0xf]
      %v2646 = vld [vmem:[%s2637 + $0x20] sm:$0xf]
      %v2647 = vld [vmem:[%s2637 + $0x24] sm:$0xf]
      %v2648 = vld [vmem:[%s2637 + $0x28] sm:$0xf]
      %v2649 = vld [vmem:[%s2637 + $0x2c] sm:$0xf]
      %v2650 = vld [vmem:[%s2637 + $0x30] sm:$0xf]
      %v2651 = vld [vmem:[%s2637 + $0x34] sm:$0xf]
      %v2652 = vld [vmem:[%s2637 + $0x38] sm:$0xf]
      %v2653 = vld [vmem:[%s2637 + $0x3c] sm:$0xf]
      %v2670 = vunpack.c.l.b16 %v2621
      %v2671 = vunpack.c.l.b16 %v2622
      %v2672 = vunpack.c.l.b16 %v2623
      %v2673 = vunpack.c.l.b16 %v2624
      %v2674 = vunpack.c.l.b16 %v2625
      %v2675 = vunpack.c.l.b16 %v2626
      %v2676 = vunpack.c.l.b16 %v2627
      %v2677 = vunpack.c.l.b16 %v2628
      %v2678 = vunpack.c.l.b16 %v2629
      %v2679 = vunpack.c.l.b16 %v2630
      %v2680 = vunpack.c.l.b16 %v2631
      %v2681 = vunpack.c.l.b16 %v2632
      %v2682 = vunpack.c.l.b16 %v2633
      %v2683 = vunpack.c.l.b16 %v2634
      %v2684 = vunpack.c.l.b16 %v2635
      %v2685 = vunpack.c.l.b16 %v2636
      %v2686 = vpack.c.b16 %v2671, %v2670
      %v2687 = vpack.c.b16 %v2673, %v2672
      %v2688 = vpack.c.b16 %v2675, %v2674
      %v2689 = vpack.c.b16 %v2677, %v2676
      %v2690 = vpack.c.b16 %v2679, %v2678
      %v2691 = vpack.c.b16 %v2681, %v2680
      %v2692 = vpack.c.b16 %v2683, %v2682
      %v2693 = vpack.c.b16 %v2685, %v2684
      %v2718 = vunpack.c.l.b16 %v2638
      %v2719 = vunpack.c.l.b16 %v2639
      %v2720 = vunpack.c.l.b16 %v2640
      %v2721 = vunpack.c.l.b16 %v2641
      %v2722 = vunpack.c.l.b16 %v2642
      %v2723 = vunpack.c.l.b16 %v2643
      %v2724 = vunpack.c.l.b16 %v2644
      %v2725 = vunpack.c.l.b16 %v2645
      %v2726 = vunpack.c.l.b16 %v2646
      %v2727 = vunpack.c.l.b16 %v2647
      %v2728 = vunpack.c.l.b16 %v2648
      %v2729 = vunpack.c.l.b16 %v2649
      %v2730 = vunpack.c.l.b16 %v2650
      %v2731 = vunpack.c.l.b16 %v2651
      %v2732 = vunpack.c.l.b16 %v2652
      %v2733 = vunpack.c.l.b16 %v2653
      %v2734 = vpack.c.b16 %v2719, %v2718
      %v2735 = vpack.c.b16 %v2721, %v2720
      %v2736 = vpack.c.b16 %v2723, %v2722
      %v2737 = vpack.c.b16 %v2725, %v2724
      %v2738 = vpack.c.b16 %v2727, %v2726
      %v2739 = vpack.c.b16 %v2729, %v2728
      %v2740 = vpack.c.b16 %v2731, %v2730
      %v2741 = vpack.c.b16 %v2733, %v2732
      %2750 = vmatprep.subr.bf16.mxu0 0
      %2751 = vmatpush1.bf16.msra.mxu0 %v2741
      %2752 = vmatprep.subr.bf16.mxu0 0
      %2753 = vmatpush1.bf16.msra.mxu0 %v2740
      %2754 = vmatprep.subr.bf16.mxu0 0
      %2755 = vmatpush1.bf16.msra.mxu0 %v2739
      %2756 = vmatprep.subr.bf16.mxu0 0
      %2757 = vmatpush1.bf16.msra.mxu0 %v2738
      %2758 = vmatprep.subr.bf16.mxu0 0
      %2759 = vmatpush1.bf16.msra.mxu0 %v2737
      %2760 = vmatprep.subr.bf16.mxu0 0
      %2761 = vmatpush1.bf16.msra.mxu0 %v2736
      %2762 = vmatprep.subr.bf16.mxu0 0
      %2763 = vmatpush1.bf16.msra.mxu0 %v2735
      %2764 = vmatprep.subr.bf16.mxu0 0
      %2765 = vmatpush1.bf16.msra.mxu0 %v2734
      %2766 = vmatprep.subr.bf16.mxu0 0
      %2767 = vmatpush2.bf16.msra.mxu0 0
      %2768 = vmatprep.subr.bf16.mxu0 0
      %2769 = vmatpush2.bf16.msra.mxu0 0
      %2770 = vmatprep.subr.bf16.mxu0 0
      %2771 = vmatpush2.bf16.msra.mxu0 0
      %2772 = vmatprep.subr.bf16.mxu0 0
      %2773 = vmatpush2.bf16.msra.mxu0 0
      %2774 = vmatprep.subr.bf16.mxu0 0
      %2775 = vmatpush2.bf16.msra.mxu0 0
      %2776 = vmatprep.subr.bf16.mxu0 0
      %2777 = vmatpush2.bf16.msra.mxu0 0
      %2778 = vmatprep.subr.bf16.mxu0 0
      %2779 = vmatpush2.bf16.msra.mxu0 0
      %2780 = vmatprep.subr.bf16.mxu0 0
      %2781 = vmatpush2.bf16.msra.mxu0 0
      %2782 = vmatprep.mubr.bf16.mxu0 0
      %2783 = vmatmul.mubr.bf16.gmra.mxu0 %v2686
      %v2784 = vpop.f32.mrf.mxu0
      %v2785 = vadd.f32 0.0, %v2784
      %v2786 = vpop.f32.mrf.mxu0
      %v2787 = vpop.f32.mrf.mxu0
      %v2788 = vadd.f32 0.0, %v2787
      %v2789 = vpop.f32.mrf.mxu0
      %2790 = vmatprep.mubr.bf16.mxu0 0
      %2791 = vmatmul.mubr.bf16.gmra.mxu0 %v2687
      %v2792 = vpop.f32.mrf.mxu0
      %v2793 = vadd.f32 0.0, %v2792
      %v2794 = vpop.f32.mrf.mxu0
      %v2795 = vpop.f32.mrf.mxu0
      %v2796 = vadd.f32 0.0, %v2795
      %v2797 = vpop.f32.mrf.mxu0
      %2798 = vmatprep.mubr.bf16.mxu0 0
      %2799 = vmatmul.mubr.bf16.gmra.mxu0 %v2688
      %v2800 = vpop.f32.mrf.mxu0
      %v2801 = vadd.f32 0.0, %v2800
      %v2802 = vpop.f32.mrf.mxu0
      %v2803 = vpop.f32.mrf.mxu0
      %v2804 = vadd.f32 0.0, %v2803
      %v2805 = vpop.f32.mrf.mxu0
      %2806 = vmatprep.mubr.bf16.mxu0 0
      %2807 = vmatmul.mubr.bf16.gmra.mxu0 %v2689
      %v2808 = vpop.f32.mrf.mxu0
      %v2809 = vadd.f32 0.0, %v2808
      %v2810 = vpop.f32.mrf.mxu0
      %v2811 = vpop.f32.mrf.mxu0
      %v2812 = vadd.f32 0.0, %v2811
      %v2813 = vpop.f32.mrf.mxu0
      %2814 = vmatprep.mubr.bf16.mxu0 0
      %2815 = vmatmul.mubr.bf16.gmra.mxu0 %v2690
      %v2816 = vpop.f32.mrf.mxu0
      %v2817 = vadd.f32 0.0, %v2816
      %v2818 = vpop.f32.mrf.mxu0
      %v2819 = vpop.f32.mrf.mxu0
      %v2820 = vadd.f32 0.0, %v2819
      %v2821 = vpop.f32.mrf.mxu0
      %2822 = vmatprep.mubr.bf16.mxu0 0
      %2823 = vmatmul.mubr.bf16.gmra.mxu0 %v2691
      %v2824 = vpop.f32.mrf.mxu0
      %v2825 = vadd.f32 0.0, %v2824
      %v2826 = vpop.f32.mrf.mxu0
      %v2827 = vpop.f32.mrf.mxu0
      %v2828 = vadd.f32 0.0, %v2827
      %v2829 = vpop.f32.mrf.mxu0
      %2830 = vmatprep.mubr.bf16.mxu0 0
      %2831 = vmatmul.mubr.bf16.gmra.mxu0 %v2692
      %v2832 = vpop.f32.mrf.mxu0
      %v2833 = vadd.f32 0.0, %v2832
      %v2834 = vpop.f32.mrf.mxu0
      %v2835 = vpop.f32.mrf.mxu0
      %v2836 = vadd.f32 0.0, %v2835
      %v2837 = vpop.f32.mrf.mxu0
      %2838 = vmatprep.mubr.bf16.mxu0 0
      %2839 = vmatmul.mubr.bf16.gmra.mxu0 %v2693
      %v2840 = vpop.f32.mrf.mxu0
      %v2841 = vadd.f32 0.0, %v2840
      %v2842 = vpop.f32.mrf.mxu0
      %v2843 = vpop.f32.mrf.mxu0
      %v2844 = vadd.f32 0.0, %v2843
      %v2845 = vpop.f32.mrf.mxu0
      %2846 = vdwg.mxu0
      %v2847 = vadd.f32 %v2601, %v2785
      %v2848 = vadd.f32 %v2602, %v2788
      %v2849 = vadd.f32 %v2603, %v2793
      %v2850 = vadd.f32 %v2604, %v2796
      %v2851 = vadd.f32 %v2605, %v2801
      %v2852 = vadd.f32 %v2606, %v2804
      %v2853 = vadd.f32 %v2607, %v2809
      %v2854 = vadd.f32 %v2608, %v2812
      %v2855 = vadd.f32 %v2609, %v2817
      %v2856 = vadd.f32 %v2610, %v2820
      %v2857 = vadd.f32 %v2611, %v2825
      %v2858 = vadd.f32 %v2612, %v2828
      %v2859 = vadd.f32 %v2613, %v2833
      %v2860 = vadd.f32 %v2614, %v2836
      %v2861 = vadd.f32 %v2615, %v2841
      %v2862 = vadd.f32 %v2616, %v2844
      %v2863 = vld [vmem:[%s2620] sm:$0xf]
      %v2864 = vld [vmem:[%s2620 + $0x4] sm:$0xf]
      %v2865 = vld [vmem:[%s2620 + $0x8] sm:$0x1]
      %v2866 = vld [vmem:[%s2620 + $0xc] sm:$0xf]
      %v2867 = vld [vmem:[%s2620 + $0x10] sm:$0xf]
      %v2868 = vld [vmem:[%s2620 + $0x14] sm:$0x1]
      %v2869 = vld [vmem:[%s2620 + $0x18] sm:$0xf]
      %v2870 = vld [vmem:[%s2620 + $0x1c] sm:$0xf]
      %v2871 = vld [vmem:[%s2620 + $0x20] sm:$0x1]
      %v2872 = vld [vmem:[%s2620 + $0x24] sm:$0xf]
      %v2873 = vld [vmem:[%s2620 + $0x28] sm:$0xf]
      %v2874 = vld [vmem:[%s2620 + $0x2c] sm:$0x1]
      %v2875 = vld [vmem:[%s2620 + $0x30] sm:$0xf]
      %v2876 = vld [vmem:[%s2620 + $0x34] sm:$0xf]
      %v2877 = vld [vmem:[%s2620 + $0x38] sm:$0x1]
      %v2878 = vld [vmem:[%s2620 + $0x3c] sm:$0xf]
      %v2879 = vld [vmem:[%s2620 + $0x40] sm:$0xf]
      %v2880 = vld [vmem:[%s2620 + $0x44] sm:$0x1]
      %v2881 = vld [vmem:[%s2620 + $0x48] sm:$0xf]
      %v2882 = vld [vmem:[%s2620 + $0x4c] sm:$0xf]
      %v2883 = vld [vmem:[%s2620 + $0x50] sm:$0x1]
      %v2884 = vld [vmem:[%s2620 + $0x54] sm:$0xf]
      %v2885 = vld [vmem:[%s2620 + $0x58] sm:$0xf]
      %v2886 = vld [vmem:[%s2620 + $0x5c] sm:$0x1]
      %v2888 = vshrl.u32 %v2863, 16
      %v2890 = vrot.slane %v2888, 4
      %v2891 = vshll.u32 %v2863, 16
      %v2893 = vrot.slane %v2891, 5
      %v2894 = vor.u32 %v2890, %v2893
      %v2895 = vrot.slane %v2894, 4
      %v2897 = vshll.u32 %v2864, 16
      %v2899 = vrot.slane %v2897, 5
      %v2900 = vsel %vm774, %v2895, %v2899
      %v2901 = vshrl.u32 %v2864, 16
      %v2903 = vrot.slane %v2901, 4
      %v2904 = vor.u32 %v2903, %v2899
      %v2905 = vrot.slane %v2904, 4
      %v2907 = vshll.u32 %v2865, 16
      %v2909 = vrot.slane %v2907, 5
      %v2910 = vsel %vm774, %v2905, %v2909
      %v2912 = vshrl.u32 %v2866, 16
      %v2914 = vrot.slane %v2912, 4
      %v2915 = vshll.u32 %v2866, 16
      %v2917 = vrot.slane %v2915, 5
      %v2918 = vor.u32 %v2914, %v2917
      %v2919 = vrot.slane %v2918, 4
      %v2921 = vshll.u32 %v2867, 16
      %v2923 = vrot.slane %v2921, 5
      %v2924 = vsel %vm774, %v2919, %v2923
      %v2925 = vshrl.u32 %v2867, 16
      %v2927 = vrot.slane %v2925, 4
      %v2928 = vor.u32 %v2927, %v2923
      %v2929 = vrot.slane %v2928, 4
      %v2931 = vshll.u32 %v2868, 16
      %v2933 = vrot.slane %v2931, 5
      %v2934 = vsel %vm774, %v2929, %v2933
      %v2936 = vshrl.u32 %v2869, 16
      %v2938 = vrot.slane %v2936, 4
      %v2939 = vshll.u32 %v2869, 16
      %v2941 = vrot.slane %v2939, 5
      %v2942 = vor.u32 %v2938, %v2941
      %v2943 = vrot.slane %v2942, 4
      %v2945 = vshll.u32 %v2870, 16
      %v2947 = vrot.slane %v2945, 5
      %v2948 = vsel %vm774, %v2943, %v2947
      %v2949 = vshrl.u32 %v2870, 16
      %v2951 = vrot.slane %v2949, 4
      %v2952 = vor.u32 %v2951, %v2947
      %v2953 = vrot.slane %v2952, 4
      %v2955 = vshll.u32 %v2871, 16
      %v2957 = vrot.slane %v2955, 5
      %v2958 = vsel %vm774, %v2953, %v2957
      %v2960 = vshrl.u32 %v2872, 16
      %v2962 = vrot.slane %v2960, 4
      %v2963 = vshll.u32 %v2872, 16
      %v2965 = vrot.slane %v2963, 5
      %v2966 = vor.u32 %v2962, %v2965
      %v2967 = vrot.slane %v2966, 4
      %v2969 = vshll.u32 %v2873, 16
      %v2971 = vrot.slane %v2969, 5
      %v2972 = vsel %vm774, %v2967, %v2971
      %v2973 = vshrl.u32 %v2873, 16
      %v2975 = vrot.slane %v2973, 4
      %v2976 = vor.u32 %v2975, %v2971
      %v2977 = vrot.slane %v2976, 4
      %v2979 = vshll.u32 %v2874, 16
      %v2981 = vrot.slane %v2979, 5
      %v2982 = vsel %vm774, %v2977, %v2981
      %v2984 = vshrl.u32 %v2875, 16
      %v2986 = vrot.slane %v2984, 4
      %v2987 = vshll.u32 %v2875, 16
      %v2989 = vrot.slane %v2987, 5
      %v2990 = vor.u32 %v2986, %v2989
      %v2991 = vrot.slane %v2990, 4
      %v2993 = vshll.u32 %v2876, 16
      %v2995 = vrot.slane %v2993, 5
      %v2996 = vsel %vm774, %v2991, %v2995
      %v2997 = vshrl.u32 %v2876, 16
      %v2999 = vrot.slane %v2997, 4
      %v3000 = vor.u32 %v2999, %v2995
      %v3001 = vrot.slane %v3000, 4
      %v3003 = vshll.u32 %v2877, 16
      %v3005 = vrot.slane %v3003, 5
      %v3006 = vsel %vm774, %v3001, %v3005
      %v3008 = vshrl.u32 %v2878, 16
      %v3010 = vrot.slane %v3008, 4
      %v3011 = vshll.u32 %v2878, 16
      %v3013 = vrot.slane %v3011, 5
      %v3014 = vor.u32 %v3010, %v3013
      %v3015 = vrot.slane %v3014, 4
      %v3017 = vshll.u32 %v2879, 16
      %v3019 = vrot.slane %v3017, 5
      %v3020 = vsel %vm774, %v3015, %v3019
      %v3021 = vshrl.u32 %v2879, 16
      %v3023 = vrot.slane %v3021, 4
      %v3024 = vor.u32 %v3023, %v3019
      %v3025 = vrot.slane %v3024, 4
      %v3027 = vshll.u32 %v2880, 16
      %v3029 = vrot.slane %v3027, 5
      %v3030 = vsel %vm774, %v3025, %v3029
      %v3032 = vshrl.u32 %v2881, 16
      %v3034 = vrot.slane %v3032, 4
      %v3035 = vshll.u32 %v2881, 16
      %v3037 = vrot.slane %v3035, 5
      %v3038 = vor.u32 %v3034, %v3037
      %v3039 = vrot.slane %v3038, 4
      %v3041 = vshll.u32 %v2882, 16
      %v3043 = vrot.slane %v3041, 5
      %v3044 = vsel %vm774, %v3039, %v3043
      %v3045 = vshrl.u32 %v2882, 16
      %v3047 = vrot.slane %v3045, 4
      %v3048 = vor.u32 %v3047, %v3043
      %v3049 = vrot.slane %v3048, 4
      %v3051 = vshll.u32 %v2883, 16
      %v3053 = vrot.slane %v3051, 5
      %v3054 = vsel %vm774, %v3049, %v3053
      %v3056 = vshrl.u32 %v2884, 16
      %v3058 = vrot.slane %v3056, 4
      %v3059 = vshll.u32 %v2884, 16
      %v3061 = vrot.slane %v3059, 5
      %v3062 = vor.u32 %v3058, %v3061
      %v3063 = vrot.slane %v3062, 4
      %v3065 = vshll.u32 %v2885, 16
      %v3067 = vrot.slane %v3065, 5
      %v3068 = vsel %vm774, %v3063, %v3067
      %v3069 = vshrl.u32 %v2885, 16
      %v3071 = vrot.slane %v3069, 4
      %v3072 = vor.u32 %v3071, %v3067
      %v3073 = vrot.slane %v3072, 4
      %v3075 = vshll.u32 %v2886, 16
      %v3077 = vrot.slane %v3075, 5
      %v3078 = vsel %vm774, %v3073, %v3077
      %s3079 = scalar_lea.vmem %s1, 448
      %v3080 = vld [vmem:[%s3079] sm:$0xf]
      %v3081 = vld [vmem:[%s3079 + $0x4] sm:$0xf]
      %v3082 = vld [vmem:[%s3079 + $0x8] sm:$0xf]
      %v3083 = vld [vmem:[%s3079 + $0xc] sm:$0xf]
      %v3084 = vld [vmem:[%s3079 + $0x10] sm:$0xf]
      %v3085 = vld [vmem:[%s3079 + $0x14] sm:$0xf]
      %v3086 = vld [vmem:[%s3079 + $0x18] sm:$0xf]
      %v3087 = vld [vmem:[%s3079 + $0x1c] sm:$0xf]
      %v3088 = vld [vmem:[%s3079 + $0x20] sm:$0xf]
      %v3089 = vld [vmem:[%s3079 + $0x24] sm:$0xf]
      %v3090 = vld [vmem:[%s3079 + $0x28] sm:$0xf]
      %v3091 = vld [vmem:[%s3079 + $0x2c] sm:$0xf]
      %v3092 = vld [vmem:[%s3079 + $0x30] sm:$0xf]
      %v3093 = vld [vmem:[%s3079 + $0x34] sm:$0xf]
      %v3094 = vld [vmem:[%s3079 + $0x38] sm:$0xf]
      %v3095 = vld [vmem:[%s3079 + $0x3c] sm:$0xf]
      %v3096 = vunpack.c.l.b16 %v2900
      %v3097 = vunpack.c.l.b16 %v2910
      %v3098 = vunpack.c.l.b16 %v2924
      %v3099 = vunpack.c.l.b16 %v2934
      %v3100 = vunpack.c.l.b16 %v2948
      %v3101 = vunpack.c.l.b16 %v2958
      %v3102 = vunpack.c.l.b16 %v2972
      %v3103 = vunpack.c.l.b16 %v2982
      %v3104 = vunpack.c.l.b16 %v2996
      %v3105 = vunpack.c.l.b16 %v3006
      %v3106 = vunpack.c.l.b16 %v3020
      %v3107 = vunpack.c.l.b16 %v3030
      %v3108 = vunpack.c.l.b16 %v3044
      %v3109 = vunpack.c.l.b16 %v3054
      %v3110 = vunpack.c.l.b16 %v3068
      %v3111 = vunpack.c.l.b16 %v3078
      %v3112 = vpack.c.b16 %v3097, %v3096
      %v3113 = vpack.c.b16 %v3099, %v3098
      %v3114 = vpack.c.b16 %v3101, %v3100
      %v3115 = vpack.c.b16 %v3103, %v3102
      %v3116 = vpack.c.b16 %v3105, %v3104
      %v3117 = vpack.c.b16 %v3107, %v3106
      %v3118 = vpack.c.b16 %v3109, %v3108
      %v3119 = vpack.c.b16 %v3111, %v3110
      %v3144 = vunpack.c.l.b16 %v3080
      %v3145 = vunpack.c.l.b16 %v3081
      %v3146 = vunpack.c.l.b16 %v3082
      %v3147 = vunpack.c.l.b16 %v3083
      %v3148 = vunpack.c.l.b16 %v3084
      %v3149 = vunpack.c.l.b16 %v3085
      %v3150 = vunpack.c.l.b16 %v3086
      %v3151 = vunpack.c.l.b16 %v3087
      %v3152 = vunpack.c.l.b16 %v3088
      %v3153 = vunpack.c.l.b16 %v3089
      %v3154 = vunpack.c.l.b16 %v3090
      %v3155 = vunpack.c.l.b16 %v3091
      %v3156 = vunpack.c.l.b16 %v3092
      %v3157 = vunpack.c.l.b16 %v3093
      %v3158 = vunpack.c.l.b16 %v3094
      %v3159 = vunpack.c.l.b16 %v3095
      %v3160 = vpack.c.b16 %v3145, %v3144
      %v3161 = vpack.c.b16 %v3147, %v3146
      %v3162 = vpack.c.b16 %v3149, %v3148
      %v3163 = vpack.c.b16 %v3151, %v3150
      %v3164 = vpack.c.b16 %v3153, %v3152
      %v3165 = vpack.c.b16 %v3155, %v3154
      %v3166 = vpack.c.b16 %v3157, %v3156
      %v3167 = vpack.c.b16 %v3159, %v3158
      %3176 = vmatprep.subr.bf16.mxu0 0
      %3177 = vmatpush1.bf16.msra.mxu0 %v3167
      %3178 = vmatprep.subr.bf16.mxu0 0
      %3179 = vmatpush1.bf16.msra.mxu0 %v3166
      %3180 = vmatprep.subr.bf16.mxu0 0
      %3181 = vmatpush1.bf16.msra.mxu0 %v3165
      %3182 = vmatprep.subr.bf16.mxu0 0
      %3183 = vmatpush1.bf16.msra.mxu0 %v3164
      %3184 = vmatprep.subr.bf16.mxu0 0
      %3185 = vmatpush1.bf16.msra.mxu0 %v3163
      %3186 = vmatprep.subr.bf16.mxu0 0
      %3187 = vmatpush1.bf16.msra.mxu0 %v3162
      %3188 = vmatprep.subr.bf16.mxu0 0
      %3189 = vmatpush1.bf16.msra.mxu0 %v3161
      %3190 = vmatprep.subr.bf16.mxu0 0
      %3191 = vmatpush1.bf16.msra.mxu0 %v3160
      %3192 = vmatprep.subr.bf16.mxu0 0
      %3193 = vmatpush2.bf16.msra.mxu0 0
      %3194 = vmatprep.subr.bf16.mxu0 0
      %3195 = vmatpush2.bf16.msra.mxu0 0
      %3196 = vmatprep.subr.bf16.mxu0 0
      %3197 = vmatpush2.bf16.msra.mxu0 0
      %3198 = vmatprep.subr.bf16.mxu0 0
      %3199 = vmatpush2.bf16.msra.mxu0 0
      %3200 = vmatprep.subr.bf16.mxu0 0
      %3201 = vmatpush2.bf16.msra.mxu0 0
      %3202 = vmatprep.subr.bf16.mxu0 0
      %3203 = vmatpush2.bf16.msra.mxu0 0
      %3204 = vmatprep.subr.bf16.mxu0 0
      %3205 = vmatpush2.bf16.msra.mxu0 0
      %3206 = vmatprep.subr.bf16.mxu0 0
      %3207 = vmatpush2.bf16.msra.mxu0 0
      %3208 = vmatprep.mubr.bf16.mxu0 0
      %3209 = vmatmul.mubr.bf16.gmra.mxu0 %v3112
      %v3210 = vpop.f32.mrf.mxu0
      %v3211 = vadd.f32 0.0, %v3210
      %v3212 = vpop.f32.mrf.mxu0
      %v3213 = vpop.f32.mrf.mxu0
      %v3214 = vadd.f32 0.0, %v3213
      %v3215 = vpop.f32.mrf.mxu0
      %3216 = vmatprep.mubr.bf16.mxu0 0
      %3217 = vmatmul.mubr.bf16.gmra.mxu0 %v3113
      %v3218 = vpop.f32.mrf.mxu0
      %v3219 = vadd.f32 0.0, %v3218
      %v3220 = vpop.f32.mrf.mxu0
      %v3221 = vpop.f32.mrf.mxu0
      %v3222 = vadd.f32 0.0, %v3221
      %v3223 = vpop.f32.mrf.mxu0
      %3224 = vmatprep.mubr.bf16.mxu0 0
      %3225 = vmatmul.mubr.bf16.gmra.mxu0 %v3114
      %v3226 = vpop.f32.mrf.mxu0
      %v3227 = vadd.f32 0.0, %v3226
      %v3228 = vpop.f32.mrf.mxu0
      %v3229 = vpop.f32.mrf.mxu0
      %v3230 = vadd.f32 0.0, %v3229
      %v3231 = vpop.f32.mrf.mxu0
      %3232 = vmatprep.mubr.bf16.mxu0 0
      %3233 = vmatmul.mubr.bf16.gmra.mxu0 %v3115
      %v3234 = vpop.f32.mrf.mxu0
      %v3235 = vadd.f32 0.0, %v3234
      %v3236 = vpop.f32.mrf.mxu0
      %v3237 = vpop.f32.mrf.mxu0
      %v3238 = vadd.f32 0.0, %v3237
      %v3239 = vpop.f32.mrf.mxu0
      %3240 = vmatprep.mubr.bf16.mxu0 0
      %3241 = vmatmul.mubr.bf16.gmra.mxu0 %v3116
      %v3242 = vpop.f32.mrf.mxu0
      %v3243 = vadd.f32 0.0, %v3242
      %v3244 = vpop.f32.mrf.mxu0
      %v3245 = vpop.f32.mrf.mxu0
      %v3246 = vadd.f32 0.0, %v3245
      %v3247 = vpop.f32.mrf.mxu0
      %3248 = vmatprep.mubr.bf16.mxu0 0
      %3249 = vmatmul.mubr.bf16.gmra.mxu0 %v3117
      %v3250 = vpop.f32.mrf.mxu0
      %v3251 = vadd.f32 0.0, %v3250
      %v3252 = vpop.f32.mrf.mxu0
      %v3253 = vpop.f32.mrf.mxu0
      %v3254 = vadd.f32 0.0, %v3253
      %v3255 = vpop.f32.mrf.mxu0
      %3256 = vmatprep.mubr.bf16.mxu0 0
      %3257 = vmatmul.mubr.bf16.gmra.mxu0 %v3118
      %v3258 = vpop.f32.mrf.mxu0
      %v3259 = vadd.f32 0.0, %v3258
      %v3260 = vpop.f32.mrf.mxu0
      %v3261 = vpop.f32.mrf.mxu0
      %v3262 = vadd.f32 0.0, %v3261
      %v3263 = vpop.f32.mrf.mxu0
      %3264 = vmatprep.mubr.bf16.mxu0 0
      %3265 = vmatmul.mubr.bf16.gmra.mxu0 %v3119
      %v3266 = vpop.f32.mrf.mxu0
      %v3267 = vadd.f32 0.0, %v3266
      %v3268 = vpop.f32.mrf.mxu0
      %v3269 = vpop.f32.mrf.mxu0
      %v3270 = vadd.f32 0.0, %v3269
      %v3271 = vpop.f32.mrf.mxu0
      %3272 = vdwg.mxu0
      %v3273 = vadd.f32 %v2847, %v3211
      %v3274 = vadd.f32 %v2848, %v3214
      %v3275 = vadd.f32 %v2849, %v3219
      %v3276 = vadd.f32 %v2850, %v3222
      %v3277 = vadd.f32 %v2851, %v3227
      %v3278 = vadd.f32 %v2852, %v3230
      %v3279 = vadd.f32 %v2853, %v3235
      %v3280 = vadd.f32 %v2854, %v3238
      %v3281 = vadd.f32 %v2855, %v3243
      %v3282 = vadd.f32 %v2856, %v3246
      %v3283 = vadd.f32 %v2857, %v3251
      %v3284 = vadd.f32 %v2858, %v3254
      %v3285 = vadd.f32 %v2859, %v3259
      %v3286 = vadd.f32 %v2860, %v3262
      %v3287 = vadd.f32 %v2861, %v3267
      %v3288 = vadd.f32 %v2862, %v3270
      %v3289 = vld [vmem:[%s2620] sm:$0xe]
      %v3290 = vld [vmem:[%s2620 + $0xc] sm:$0xe]
      %v3291 = vld [vmem:[%s2620 + $0x18] sm:$0xe]
      %v3292 = vld [vmem:[%s2620 + $0x24] sm:$0xe]
      %v3293 = vld [vmem:[%s2620 + $0x30] sm:$0xe]
      %v3294 = vld [vmem:[%s2620 + $0x3c] sm:$0xe]
      %v3295 = vld [vmem:[%s2620 + $0x48] sm:$0xe]
      %v3296 = vld [vmem:[%s2620 + $0x54] sm:$0xe]
      %v3321 = vrot.slane %v3289, 5
      %v3322 = vrot.slane %v3321, 4
      %v3323 = vrot.slane %v2864, 5
      %v3324 = vsel %vm1380, %v3322, %v3323
      %v3325 = vrot.slane %v3323, 4
      %v3326 = vrot.slane %v2865, 5
      %v3327 = vsel %vm1380, %v3325, %v3326
      %v3328 = vrot.slane %v3290, 5
      %v3329 = vrot.slane %v3328, 4
      %v3330 = vrot.slane %v2867, 5
      %v3331 = vsel %vm1380, %v3329, %v3330
      %v3332 = vrot.slane %v3330, 4
      %v3333 = vrot.slane %v2868, 5
      %v3334 = vsel %vm1380, %v3332, %v3333
      %v3335 = vrot.slane %v3291, 5
      %v3336 = vrot.slane %v3335, 4
      %v3337 = vrot.slane %v2870, 5
      %v3338 = vsel %vm1380, %v3336, %v3337
      %v3339 = vrot.slane %v3337, 4
      %v3340 = vrot.slane %v2871, 5
      %v3341 = vsel %vm1380, %v3339, %v3340
      %v3342 = vrot.slane %v3292, 5
      %v3343 = vrot.slane %v3342, 4
      %v3344 = vrot.slane %v2873, 5
      %v3345 = vsel %vm1380, %v3343, %v3344
      %v3346 = vrot.slane %v3344, 4
      %v3347 = vrot.slane %v2874, 5
      %v3348 = vsel %vm1380, %v3346, %v3347
      %v3349 = vrot.slane %v3293, 5
      %v3350 = vrot.slane %v3349, 4
      %v3351 = vrot.slane %v2876, 5
      %v3352 = vsel %vm1380, %v3350, %v3351
      %v3353 = vrot.slane %v3351, 4
      %v3354 = vrot.slane %v2877, 5
      %v3355 = vsel %vm1380, %v3353, %v3354
      %v3356 = vrot.slane %v3294, 5
      %v3357 = vrot.slane %v3356, 4
      %v3358 = vrot.slane %v2879, 5
      %v3359 = vsel %vm1380, %v3357, %v3358
      %v3360 = vrot.slane %v3358, 4
      %v3361 = vrot.slane %v2880, 5
      %v3362 = vsel %vm1380, %v3360, %v3361
      %v3363 = vrot.slane %v3295, 5
      %v3364 = vrot.slane %v3363, 4
      %v3365 = vrot.slane %v2882, 5
      %v3366 = vsel %vm1380, %v3364, %v3365
      %v3367 = vrot.slane %v3365, 4
      %v3368 = vrot.slane %v2883, 5
      %v3369 = vsel %vm1380, %v3367, %v3368
      %v3370 = vrot.slane %v3296, 5
      %v3371 = vrot.slane %v3370, 4
      %v3372 = vrot.slane %v2885, 5
      %v3373 = vsel %vm1380, %v3371, %v3372
      %v3374 = vrot.slane %v3372, 4
      %v3375 = vrot.slane %v2886, 5
      %v3376 = vsel %vm1380, %v3374, %v3375
      %s3377 = scalar_lea.vmem %s1, 512
      %v3378 = vld [vmem:[%s3377] sm:$0xf]
      %v3379 = vld [vmem:[%s3377 + $0x4] sm:$0xf]
      %v3380 = vld [vmem:[%s3377 + $0x8] sm:$0xf]
      %v3381 = vld [vmem:[%s3377 + $0xc] sm:$0xf]
      %v3382 = vld [vmem:[%s3377 + $0x10] sm:$0xf]
      %v3383 = vld [vmem:[%s3377 + $0x14] sm:$0xf]
      %v3384 = vld [vmem:[%s3377 + $0x18] sm:$0xf]
      %v3385 = vld [vmem:[%s3377 + $0x1c] sm:$0xf]
      %v3386 = vld [vmem:[%s3377 + $0x20] sm:$0xf]
      %v3387 = vld [vmem:[%s3377 + $0x24] sm:$0xf]
      %v3388 = vld [vmem:[%s3377 + $0x28] sm:$0xf]
      %v3389 = vld [vmem:[%s3377 + $0x2c] sm:$0xf]
      %v3390 = vld [vmem:[%s3377 + $0x30] sm:$0xf]
      %v3391 = vld [vmem:[%s3377 + $0x34] sm:$0xf]
      %v3392 = vld [vmem:[%s3377 + $0x38] sm:$0xf]
      %v3393 = vld [vmem:[%s3377 + $0x3c] sm:$0xf]
      %v3394 = vunpack.c.l.b16 %v3324
      %v3395 = vunpack.c.l.b16 %v3327
      %v3396 = vunpack.c.l.b16 %v3331
      %v3397 = vunpack.c.l.b16 %v3334
      %v3398 = vunpack.c.l.b16 %v3338
      %v3399 = vunpack.c.l.b16 %v3341
      %v3400 = vunpack.c.l.b16 %v3345
      %v3401 = vunpack.c.l.b16 %v3348
      %v3402 = vunpack.c.l.b16 %v3352
      %v3403 = vunpack.c.l.b16 %v3355
      %v3404 = vunpack.c.l.b16 %v3359
      %v3405 = vunpack.c.l.b16 %v3362
      %v3406 = vunpack.c.l.b16 %v3366
      %v3407 = vunpack.c.l.b16 %v3369
      %v3408 = vunpack.c.l.b16 %v3373
      %v3409 = vunpack.c.l.b16 %v3376
      %v3410 = vpack.c.b16 %v3395, %v3394
      %v3411 = vpack.c.b16 %v3397, %v3396
      %v3412 = vpack.c.b16 %v3399, %v3398
      %v3413 = vpack.c.b16 %v3401, %v3400
      %v3414 = vpack.c.b16 %v3403, %v3402
      %v3415 = vpack.c.b16 %v3405, %v3404
      %v3416 = vpack.c.b16 %v3407, %v3406
      %v3417 = vpack.c.b16 %v3409, %v3408
      %v3442 = vunpack.c.l.b16 %v3378
      %v3443 = vunpack.c.l.b16 %v3379
      %v3444 = vunpack.c.l.b16 %v3380
      %v3445 = vunpack.c.l.b16 %v3381
      %v3446 = vunpack.c.l.b16 %v3382
      %v3447 = vunpack.c.l.b16 %v3383
      %v3448 = vunpack.c.l.b16 %v3384
      %v3449 = vunpack.c.l.b16 %v3385
      %v3450 = vunpack.c.l.b16 %v3386
      %v3451 = vunpack.c.l.b16 %v3387
      %v3452 = vunpack.c.l.b16 %v3388
      %v3453 = vunpack.c.l.b16 %v3389
      %v3454 = vunpack.c.l.b16 %v3390
      %v3455 = vunpack.c.l.b16 %v3391
      %v3456 = vunpack.c.l.b16 %v3392
      %v3457 = vunpack.c.l.b16 %v3393
      %v3458 = vpack.c.b16 %v3443, %v3442
      %v3459 = vpack.c.b16 %v3445, %v3444
      %v3460 = vpack.c.b16 %v3447, %v3446
      %v3461 = vpack.c.b16 %v3449, %v3448
      %v3462 = vpack.c.b16 %v3451, %v3450
      %v3463 = vpack.c.b16 %v3453, %v3452
      %v3464 = vpack.c.b16 %v3455, %v3454
      %v3465 = vpack.c.b16 %v3457, %v3456
      %3474 = vmatprep.subr.bf16.mxu0 0
      %3475 = vmatpush1.bf16.msra.mxu0 %v3465
      %3476 = vmatprep.subr.bf16.mxu0 0
      %3477 = vmatpush1.bf16.msra.mxu0 %v3464
      %3478 = vmatprep.subr.bf16.mxu0 0
      %3479 = vmatpush1.bf16.msra.mxu0 %v3463
      %3480 = vmatprep.subr.bf16.mxu0 0
      %3481 = vmatpush1.bf16.msra.mxu0 %v3462
      %3482 = vmatprep.subr.bf16.mxu0 0
      %3483 = vmatpush1.bf16.msra.mxu0 %v3461
      %3484 = vmatprep.subr.bf16.mxu0 0
      %3485 = vmatpush1.bf16.msra.mxu0 %v3460
      %3486 = vmatprep.subr.bf16.mxu0 0
      %3487 = vmatpush1.bf16.msra.mxu0 %v3459
      %3488 = vmatprep.subr.bf16.mxu0 0
      %3489 = vmatpush1.bf16.msra.mxu0 %v3458
      %3490 = vmatprep.subr.bf16.mxu0 0
      %3491 = vmatpush2.bf16.msra.mxu0 0
      %3492 = vmatprep.subr.bf16.mxu0 0
      %3493 = vmatpush2.bf16.msra.mxu0 0
      %3494 = vmatprep.subr.bf16.mxu0 0
      %3495 = vmatpush2.bf16.msra.mxu0 0
      %3496 = vmatprep.subr.bf16.mxu0 0
      %3497 = vmatpush2.bf16.msra.mxu0 0
      %3498 = vmatprep.subr.bf16.mxu0 0
      %3499 = vmatpush2.bf16.msra.mxu0 0
      %3500 = vmatprep.subr.bf16.mxu0 0
      %3501 = vmatpush2.bf16.msra.mxu0 0
      %3502 = vmatprep.subr.bf16.mxu0 0
      %3503 = vmatpush2.bf16.msra.mxu0 0
      %3504 = vmatprep.subr.bf16.mxu0 0
      %3505 = vmatpush2.bf16.msra.mxu0 0
      %3506 = vmatprep.mubr.bf16.mxu0 0
      %3507 = vmatmul.mubr.bf16.gmra.mxu0 %v3410
      %v3508 = vpop.f32.mrf.mxu0
      %v3509 = vadd.f32 0.0, %v3508
      %v3510 = vpop.f32.mrf.mxu0
      %v3511 = vpop.f32.mrf.mxu0
      %v3512 = vadd.f32 0.0, %v3511
      %v3513 = vpop.f32.mrf.mxu0
      %3514 = vmatprep.mubr.bf16.mxu0 0
      %3515 = vmatmul.mubr.bf16.gmra.mxu0 %v3411
      %v3516 = vpop.f32.mrf.mxu0
      %v3517 = vadd.f32 0.0, %v3516
      %v3518 = vpop.f32.mrf.mxu0
      %v3519 = vpop.f32.mrf.mxu0
      %v3520 = vadd.f32 0.0, %v3519
      %v3521 = vpop.f32.mrf.mxu0
      %3522 = vmatprep.mubr.bf16.mxu0 0
      %3523 = vmatmul.mubr.bf16.gmra.mxu0 %v3412
      %v3524 = vpop.f32.mrf.mxu0
      %v3525 = vadd.f32 0.0, %v3524
      %v3526 = vpop.f32.mrf.mxu0
      %v3527 = vpop.f32.mrf.mxu0
      %v3528 = vadd.f32 0.0, %v3527
      %v3529 = vpop.f32.mrf.mxu0
      %3530 = vmatprep.mubr.bf16.mxu0 0
      %3531 = vmatmul.mubr.bf16.gmra.mxu0 %v3413
      %v3532 = vpop.f32.mrf.mxu0
      %v3533 = vadd.f32 0.0, %v3532
      %v3534 = vpop.f32.mrf.mxu0
      %v3535 = vpop.f32.mrf.mxu0
      %v3536 = vadd.f32 0.0, %v3535
      %v3537 = vpop.f32.mrf.mxu0
      %3538 = vmatprep.mubr.bf16.mxu0 0
      %3539 = vmatmul.mubr.bf16.gmra.mxu0 %v3414
      %v3540 = vpop.f32.mrf.mxu0
      %v3541 = vadd.f32 0.0, %v3540
      %v3542 = vpop.f32.mrf.mxu0
      %v3543 = vpop.f32.mrf.mxu0
      %v3544 = vadd.f32 0.0, %v3543
      %v3545 = vpop.f32.mrf.mxu0
      %3546 = vmatprep.mubr.bf16.mxu0 0
      %3547 = vmatmul.mubr.bf16.gmra.mxu0 %v3415
      %v3548 = vpop.f32.mrf.mxu0
      %v3549 = vadd.f32 0.0, %v3548
      %v3550 = vpop.f32.mrf.mxu0
      %v3551 = vpop.f32.mrf.mxu0
      %v3552 = vadd.f32 0.0, %v3551
      %v3553 = vpop.f32.mrf.mxu0
      %3554 = vmatprep.mubr.bf16.mxu0 0
      %3555 = vmatmul.mubr.bf16.gmra.mxu0 %v3416
      %v3556 = vpop.f32.mrf.mxu0
      %v3557 = vadd.f32 0.0, %v3556
      %v3558 = vpop.f32.mrf.mxu0
      %v3559 = vpop.f32.mrf.mxu0
      %v3560 = vadd.f32 0.0, %v3559
      %v3561 = vpop.f32.mrf.mxu0
      %3562 = vmatprep.mubr.bf16.mxu0 0
      %3563 = vmatmul.mubr.bf16.gmra.mxu0 %v3417
      %v3564 = vpop.f32.mrf.mxu0
      %v3565 = vadd.f32 0.0, %v3564
      %v3566 = vpop.f32.mrf.mxu0
      %v3567 = vpop.f32.mrf.mxu0
      %v3568 = vadd.f32 0.0, %v3567
      %v3569 = vpop.f32.mrf.mxu0
      %3570 = vdwg.mxu0
      %v3571 = vadd.f32 %v3273, %v3509
      %v3572 = vadd.f32 %v3274, %v3512
      %v3573 = vadd.f32 %v3275, %v3517
      %v3574 = vadd.f32 %v3276, %v3520
      %v3575 = vadd.f32 %v3277, %v3525
      %v3576 = vadd.f32 %v3278, %v3528
      %v3577 = vadd.f32 %v3279, %v3533
      %v3578 = vadd.f32 %v3280, %v3536
      %v3579 = vadd.f32 %v3281, %v3541
      %v3580 = vadd.f32 %v3282, %v3544
      %v3581 = vadd.f32 %v3283, %v3549
      %v3582 = vadd.f32 %v3284, %v3552
      %v3583 = vadd.f32 %v3285, %v3557
      %v3584 = vadd.f32 %v3286, %v3560
      %v3585 = vadd.f32 %v3287, %v3565
      %v3586 = vadd.f32 %v3288, %v3568
      %v3587 = vld [vmem:[%s2] sm:$0x1]
      %v3589 = vlaneseq
      %v3590 = vshrl.u32 %v3589, 7
      %v3591 = vsub.s32 0, %v3590
      %v3592 = vrot.slane %v3587, %v3591
      %v3594 = vadd.f32 %v3571, %v3592
      %v3595 = vadd.f32 %v3572, %v3592
      %v3596 = vadd.f32 %v3573, %v3592
      %v3597 = vadd.f32 %v3574, %v3592
      %v3598 = vadd.f32 %v3575, %v3592
      %v3599 = vadd.f32 %v3576, %v3592
      %v3600 = vadd.f32 %v3577, %v3592
      %v3601 = vadd.f32 %v3578, %v3592
      %v3602 = vadd.f32 %v3579, %v3592
      %v3603 = vadd.f32 %v3580, %v3592
      %v3604 = vadd.f32 %v3581, %v3592
      %v3605 = vadd.f32 %v3582, %v3592
      %v3606 = vadd.f32 %v3583, %v3592
      %v3607 = vadd.f32 %v3584, %v3592
      %v3608 = vadd.f32 %v3585, %v3592
      %v3609 = vadd.f32 %v3586, %v3592
      %v3610 = vmax.f32 %v3594, 0.0
      %v3611 = vmax.f32 %v3595, 0.0
      %v3612 = vmax.f32 %v3596, 0.0
      %v3613 = vmax.f32 %v3597, 0.0
      %v3614 = vmax.f32 %v3598, 0.0
      %v3615 = vmax.f32 %v3599, 0.0
      %v3616 = vmax.f32 %v3600, 0.0
      %v3617 = vmax.f32 %v3601, 0.0
      %v3618 = vmax.f32 %v3602, 0.0
      %v3619 = vmax.f32 %v3603, 0.0
      %v3620 = vmax.f32 %v3604, 0.0
      %v3621 = vmax.f32 %v3605, 0.0
      %v3622 = vmax.f32 %v3606, 0.0
      %v3623 = vmax.f32 %v3607, 0.0
      %v3624 = vmax.f32 %v3608, 0.0
      %v3625 = vmax.f32 %v3609, 0.0
      %v3626 = vpack.c.bf16 %v3611, %v3610
      %v3627 = vpack.c.bf16 %v3613, %v3612
      %v3628 = vpack.c.bf16 %v3615, %v3614
      %v3629 = vpack.c.bf16 %v3617, %v3616
      %v3630 = vpack.c.bf16 %v3619, %v3618
      %v3631 = vpack.c.bf16 %v3621, %v3620
      %v3632 = vpack.c.bf16 %v3623, %v3622
      %v3633 = vpack.c.bf16 %v3625, %v3624
      %v3642 = vunpack.c.l.b16 %v3626
      %v3643 = vunpack.c.h.b16 %v3626
      %v3644 = vunpack.c.l.b16 %v3627
      %v3645 = vunpack.c.h.b16 %v3627
      %v3646 = vunpack.c.l.b16 %v3628
      %v3647 = vunpack.c.h.b16 %v3628
      %v3648 = vunpack.c.l.b16 %v3629
      %v3649 = vunpack.c.h.b16 %v3629
      %v3650 = vunpack.c.l.b16 %v3630
      %v3651 = vunpack.c.h.b16 %v3630
      %v3652 = vunpack.c.l.b16 %v3631
      %v3653 = vunpack.c.h.b16 %v3631
      %v3654 = vunpack.c.l.b16 %v3632
      %v3655 = vunpack.c.h.b16 %v3632
      %v3656 = vunpack.c.l.b16 %v3633
      %v3657 = vunpack.c.h.b16 %v3633
      %v3658 = vpack.c.b16 %v3642, %v3642
      %v3659 = vpack.c.b16 %v3643, %v3643
      %v3660 = vpack.c.b16 %v3644, %v3644
      %v3661 = vpack.c.b16 %v3645, %v3645
      %v3662 = vpack.c.b16 %v3646, %v3646
      %v3663 = vpack.c.b16 %v3647, %v3647
      %v3664 = vpack.c.b16 %v3648, %v3648
      %v3665 = vpack.c.b16 %v3649, %v3649
      %v3666 = vpack.c.b16 %v3650, %v3650
      %v3667 = vpack.c.b16 %v3651, %v3651
      %v3668 = vpack.c.b16 %v3652, %v3652
      %v3669 = vpack.c.b16 %v3653, %v3653
      %v3670 = vpack.c.b16 %v3654, %v3654
      %v3671 = vpack.c.b16 %v3655, %v3655
      %v3672 = vpack.c.b16 %v3656, %v3656
      %v3673 = vpack.c.b16 %v3657, %v3657
      %3690 = vst [vmem:[%s194] sm:$0xf] %v3658
      %3691 = vst [vmem:[%s194 + $0x4] sm:$0xf] %v3659
      %3692 = vst [vmem:[%s194 + $0x8] sm:$0xf] %v3660
      %3693 = vst [vmem:[%s194 + $0xc] sm:$0xf] %v3661
      %3694 = vst [vmem:[%s194 + $0x10] sm:$0xf] %v3662
      %3695 = vst [vmem:[%s194 + $0x14] sm:$0xf] %v3663
      %3696 = vst [vmem:[%s194 + $0x18] sm:$0xf] %v3664
      %3697 = vst [vmem:[%s194 + $0x1c] sm:$0xf] %v3665
      %3698 = vst [vmem:[%s194 + $0x20] sm:$0xf] %v3666
      %3699 = vst [vmem:[%s194 + $0x24] sm:$0xf] %v3667
      %3700 = vst [vmem:[%s194 + $0x28] sm:$0xf] %v3668
      %3701 = vst [vmem:[%s194 + $0x2c] sm:$0xf] %v3669
      %3702 = vst [vmem:[%s194 + $0x30] sm:$0xf] %v3670
      %3703 = vst [vmem:[%s194 + $0x34] sm:$0xf] %v3671
      %3704 = vst [vmem:[%s194 + $0x38] sm:$0xf] %v3672
      %3705 = vst [vmem:[%s194 + $0x3c] sm:$0xf] %v3673
      %s3706 = smul.u32 8, %s19
      %p3707 = scmp.lt.s32.totalorder %s18, 1
      %s3708 = scalar_select %p3707, %s18, 1
      %p3709 = scmp.lt.s32.totalorder %s3706, 15
      %s3710 = scalar_select %p3709, %s3706, 15
      %s3711 = smul.addr %s3710, 2
      %s3712 = smul.addr %s3708, 32
      %s3713 = sadd.s32 %s3711, %s3712
      %s3714 = smul.addr %s3713, 4
      %s3715 = scalar_lea.vmem %s3, %s3714
      // Predicated region
      $region37: #{up_forward.9} parent=31 // pred_check
        %p3716 = pneg %p114
      $region38: #{up_forward.9} parent=31 // pred_check_branch
        %3718 = sbr.rel (%p3716) target = $region40
      $region39: #{up_forward.9} parent=31 // pred_region
        %s3719 = smul.u32 8, %s19
      $region40: #{up_forward.9} parent=31 // pred_fallthru
        _
    $region32: #{up_forward.9} parent=5 // pred_fallthru
      _
    %p3720 = scmp.le.s32.totalorder 2, %s9
    // Predicated region
    $region41: #{up_forward.9} parent=5 // pred_check
      %p3721 = pneg %p3720
    $region42: #{up_forward.9} parent=5 // pred_check_branch
      %3723 = sbr.rel (%p3721) target = $region44
    $region43: #{up_forward.9} parent=5 // pred_region
      %s3724 = ssub.s32 %s9, 2
      // Predicated region
      $region45: #{up_forward.9} parent=43 // pred_check
        %p3725 = pneg %p120
      $region46: #{up_forward.9} parent=43 // pred_check_branch
        %3727 = sbr.rel (%p3725) target = $region48
      $region47: #{up_forward.9} parent=43 // pred_region
        %s3728 = smul.u32 8, %s21
        %p3729 = scmp.lt.s32.totalorder %s20, 1
        %s3730 = scalar_select %p3729, %s20, 1
        %p3731 = scmp.lt.s32.totalorder %s3728, 15
        %s3732 = scalar_select %p3731, %s3728, 15
        %s3733 = smul.addr %s3732, 2
        %s3734 = smul.addr %s3730, 32
        %s3735 = sadd.s32 %s3733, %s3734
        %s3736 = smul.addr %s3735, 4
        %s3737 = scalar_lea.vmem %s3, %s3736
      $region48: #{up_forward.9} parent=43 // pred_fallthru
        _
    $region44: #{up_forward.9} parent=5 // pred_fallthru
      _
  $region6: #{up_forward.9} parent=0 // loop_footer
    %s13 = sadd.s32 1, %s9
  $region7: #{up_forward.9} parent=0 // loop_footer_branch
    %8 = sbr.rel target = $region3
  $region8: #{up_forward.9} parent=0 // loop_exit
    _

</llo_original>
